<compile_context>
chip_gen: v7x
topology: tpu7x:2x2x1
jax: 0.10.0
libtpu: 0.0.40
codegen_flags: <defaults>
</compile_context>

<pallas_src>
import math
from functools import partial

import numpy as np
import jax
import jax.numpy as jnp
from jax import lax
from jax.experimental import pallas as pl
from jax.experimental.pallas import tpu as pltpu  # noqa: F401  (kept for parity; no TPU-specific params needed)

# ---------------- synthetic config ----------------
PATCH = 4
IN_CHANS = 4
H = W = 16
EMBED_DIM = 32
NUM_HEADS = 4
HEAD_DIM = EMBED_DIM // NUM_HEADS
MLP_RATIO = 2
MLP_HIDDEN = EMBED_DIM * MLP_RATIO
BLOCK_LOOP = 2
NUM_QUANTILES = 8
NUM_COSINES = 16
IQN_MLP_HIDDEN = 32
NUM_ACTIONS = 4
BATCH = 2
N_PATCHES = (H // PATCH) * (W // PATCH)
T = N_PATCHES + 1
PATCH_DIM = IN_CHANS * PATCH * PATCH
LN_EPS = 1e-5

VECS_PER_BLOCK = 7  # rows per block in the packed "vecs" tensor: g1,b1,g2,b2,bproj,bm1,bm2


# ---------------- in-kernel helpers ----------------
def _layernorm(v, g, b):
    mu = jnp.mean(v, axis=-1, keepdims=True)
    c = v - mu
    var = jnp.mean(c * c, axis=-1, keepdims=True)
    return c * lax.rsqrt(var + LN_EPS) * g + b


def _gelu_exact(x):
    # torch.nn.GELU() default (exact, erf-based)
    return 0.5 * x * (1.0 + lax.erf(x * (1.0 / math.sqrt(2.0))))


# ---------------- the single fused kernel (whole batch in one invocation) ----------------
def _fused_kernel(
    patches_ref,                 # (B*T, PATCH_DIM)   saliency slots are zero rows
    cos_ref,                     # (B*Q, C+1)         cosines tiled over batch, ones column appended
    pe_w_ref,                    # (PATCH_DIM, D)
    addemb_ref,                  # (B*T, D)           pos_embed (+saliency / +pe_b), tiled over batch
    mask_ref,                    # (B*T, B*T)         block-diagonal additive mask (0 / -1e9)
    salsel_ref,                  # (B*Q, B*T)         saliency-row selection + per-quantile expansion
    qmean_ref,                   # (B,   B*Q)         per-batch quantile-mean matrix
    wq_ref, wk_ref, wv_ref,      # (L*H, D+1, hd)     per-head QKV weights (bias folded, scale in Wq)
    wp_ref,                      # (L*H, hd, D)       per-head output-projection weights
    w1_ref,                      # (L, D, MLP_HIDDEN)
    w2_ref,                      # (L, MLP_HIDDEN, D)
    cosw_ref,                    # (C+1, D)           cosine-net weight with bias row appended
    wva1_ref,                    # (D, 2*IQN_MLP_HIDDEN)   fused V|A fc1
    wva2_ref,                    # (2*IQN_MLP_HIDDEN, A)   fused block-diag fc2 with dueling combine folded
    vecs_ref,                    # (7*L + 4, 128)     packed LN params / bias rows
    o_ref,                       # (B, NUM_ACTIONS)
):
    D = EMBED_DIM

    # ---- patch embedding (saliency token + pos_embed + pe_b folded into addemb) ----
    x = jnp.dot(patches_ref[...], pe_w_ref[...],
                preferred_element_type=jnp.float32) + addemb_ref[...]        # (BT, D)
    bt = x.shape[0]
    ones_col = jnp.ones((bt, 1), jnp.float32)
    mask = mask_ref[...]

    # ---- transformer blocks (weights VMEM-resident; static unrolled loops) ----
    for l in range(BLOCK_LOOP):
        r = VECS_PER_BLOCK * l
        g1 = vecs_ref[r + 0:r + 1, 0:D]
        b1 = vecs_ref[r + 1:r + 2, 0:D]
        g2 = vecs_ref[r + 2:r + 3, 0:D]
        b2 = vecs_ref[r + 3:r + 4, 0:D]
        bproj = vecs_ref[r + 4:r + 5, 0:D]
        bm1 = vecs_ref[r + 5:r + 6, 0:MLP_HIDDEN]
        bm2 = vecs_ref[r + 6:r + 7, 0:D]

        # ones-augmented LN output -> QKV biases come out of the matmuls for free
        xn_aug = jnp.concatenate([_layernorm(x, g1, b1), ones_col], axis=1)  # (BT, D+1)

        attn_out = None
        for h in range(NUM_HEADS):
            lh = l * NUM_HEADS + h
            q = jnp.dot(xn_aug, wq_ref[lh], preferred_element_type=jnp.float32)   # (BT, hd)
            k = jnp.dot(xn_aug, wk_ref[lh], preferred_element_type=jnp.float32)   # (BT, hd)
            v = jnp.dot(xn_aug, wv_ref[lh], preferred_element_type=jnp.float32)   # (BT, hd)
            # scores over all rows; cross-batch entries are masked to -1e9
            s = lax.dot_general(q, k, (((1,), (1,)), ((), ())),
                                preferred_element_type=jnp.float32) + mask         # (BT, BT)
            s = s - jnp.max(s, axis=-1, keepdims=True)
            p = jnp.exp(s)
            p = p * pl.reciprocal(jnp.sum(p, axis=-1, keepdims=True), approx=True)
            o_h = jnp.dot(p, v, preferred_element_type=jnp.float32)                # (BT, hd)
            c = jnp.dot(o_h, wp_ref[lh], preferred_element_type=jnp.float32)       # (BT, D)
            attn_out = c if attn_out is None else attn_out + c
        x = x + attn_out + bproj

        xn2 = _layernorm(x, g2, b2)
        hid = _gelu_exact(
            jnp.dot(xn2, w1_ref[l], preferred_element_type=jnp.float32) + bm1)
        x = x + jnp.dot(hid, w2_ref[l], preferred_element_type=jnp.float32) + bm2

    # ---- final LayerNorm on (per-quantile duplicated) saliency rows + IQN head ----
    r = VECS_PER_BLOCK * BLOCK_LOOP
    lng = vecs_ref[r + 0:r + 1, 0:D]
    lnb = vecs_ref[r + 1:r + 2, 0:D]
    bva1 = vecs_ref[r + 2:r + 3, 0:2 * IQN_MLP_HIDDEN]
    bva2 = vecs_ref[r + 3:r + 4, 0:NUM_ACTIONS]

    sal = jnp.dot(salsel_ref[...], x, preferred_element_type=jnp.float32)           # (B*Q, D)
    sal = _layernorm(sal, lng, lnb)

    tau_emb = jnp.maximum(
        jnp.dot(cos_ref[...], cosw_ref[...], preferred_element_type=jnp.float32), 0.0)  # (B*Q, D)
    emb = sal * tau_emb
    hva = jnp.maximum(
        jnp.dot(emb, wva1_ref[...], preferred_element_type=jnp.float32) + bva1, 0.0)    # (B*Q, 2*H)
    quant = jnp.dot(hva, wva2_ref[...], preferred_element_type=jnp.float32) + bva2      # (B*Q, A)
    # quantile mean per batch element
    o_ref[...] = jnp.dot(qmean_ref[...], quant, preferred_element_type=jnp.float32)     # (B, A)


# ---------------- glue ----------------
def extract_patches(x):
    # x: NCHW -> (B * n_patches, C * p * p), patch flatten order (c, i, j).
    B, C, Hh, Ww = x.shape
    hp, wp = Hh // PATCH, Ww // PATCH
    x = x.reshape(B, C, hp, PATCH, wp, PATCH)
    x = x.transpose(0, 2, 4, 1, 3, 5)
    return x.reshape(B * hp * wp, C * PATCH * PATCH)


def prepare_kernel_params(params, batch):
    """One-time transform of module params into kernel-ready, consolidated constants."""
    L, D, Hn, hd = BLOCK_LOOP, EMBED_DIM, NUM_HEADS, HEAD_DIM
    (g1, b1, wqkv, bqkv, wproj, bproj, g2, b2, w1, bm1, w2, bm2) = params["blocks"]

    def heads_w(w):   # (L, D, D) -> (L, H, D, hd)
        return w.reshape(L, D, Hn, hd).transpose(0, 2, 1, 3)

    def heads_b(bv):  # (L, 1, D) -> (L, H, 1, hd)
        return bv.reshape(L, 1, Hn, hd).transpose(0, 2, 1, 3)

    wq = wqkv[:, :, 0:D]
    wk = wqkv[:, :, D:2 * D]
    wv = wqkv[:, :, 2 * D:3 * D]
    bq = bqkv[:, :, 0:D]
    bk = bqkv[:, :, D:2 * D]
    bv_ = bqkv[:, :, 2 * D:3 * D]
    scale = jnp.float32(hd ** -0.5)
    wq_aug = (jnp.concatenate([heads_w(wq), heads_b(bq)], axis=2) * scale).reshape(L * Hn, D + 1, hd)
    wk_aug = jnp.concatenate([heads_w(wk), heads_b(bk)], axis=2).reshape(L * Hn, D + 1, hd)
    wv_aug = jnp.concatenate([heads_w(wv), heads_b(bv_)], axis=2).reshape(L * Hn, D + 1, hd)
    wp_h = wproj.reshape(L, Hn, hd, D).reshape(L * Hn, hd, D)

    # additive embedding, tiled over batch:
    #   row 0 = pos[0] + saliency ; rows 1.. = pos + patch-embed bias
    add_emb1 = jnp.concatenate(
        [params["pos_embed"][0:1] + params["saliency"],
         params["pos_embed"][1:] + params["pe_b"]], axis=0)            # (T, D)
    add_emb = jnp.tile(add_emb1, (batch, 1))                           # (B*T, D)

    cos_w_aug = jnp.concatenate([params["cos_w"], params["cos_b"]], axis=0)   # (C+1, D)

    # fused value/advantage head; dueling combine folded into fc2
    IQH, A = IQN_MLP_HIDDEN, NUM_ACTIONS
    wVA1 = jnp.concatenate([params["vw1"], params["aw1"]], axis=1)     # (D, 2*IQH)
    bVA1 = jnp.concatenate([params["vb1"], params["ab1"]], axis=1)     # (1, 2*IQH)
    w2blk = jnp.zeros((2 * IQH, 1 + A), jnp.float32)
    w2blk = w2blk.at[:IQH, 0:1].set(params["vw2"]).at[IQH:, 1:].set(params["aw2"])
    b5 = jnp.concatenate([params["vb2"], params["ab2"]], axis=1)       # (1, 1+A)
    comb = np.zeros((1 + A, A), np.float32)
    comb[0, :] = 1.0
    comb[1:, :] = np.eye(A, dtype=np.float32) - 1.0 / A
    comb = jnp.asarray(comb)
    wVA2c = w2blk @ comb                                               # (2*IQH, A)
    bVA2c = b5 @ comb                                                  # (1, A)

    # packed LN params / bias rows (lane-dense, single operand)
    def pad128(row):
        return jnp.pad(row, ((0, 0), (0, 128 - row.shape[1])))

    rows = []
    for l in range(L):
        rows += [pad128(g1[l]), pad128(b1[l]), pad128(g2[l]), pad128(b2[l]),
                 pad128(bproj[l]), pad128(bm1[l]), pad128(bm2[l])]
    rows += [pad128(params["ln_g"]), pad128(params["ln_b"]), pad128(bVA1), pad128(bVA2c)]
    vecs = jnp.concatenate(rows, axis=0)                               # (7*L+4, 128)

    # batch-fold helpers: block-diagonal attention mask, saliency selector, quantile mean
    row_batch = np.repeat(np.arange(batch), T)
    attn_mask = np.where(row_batch[:, None] == row_batch[None, :], 0.0, -1e9).astype(np.float32)
    salsel = np.zeros((batch * NUM_QUANTILES, batch * T), np.float32)
    qmean = np.zeros((batch, batch * NUM_QUANTILES), np.float32)
    for b in range(batch):
        salsel[b * NUM_QUANTILES:(b + 1) * NUM_QUANTILES, b * T] = 1.0
        qmean[b, b * NUM_QUANTILES:(b + 1) * NUM_QUANTILES] = 1.0 / NUM_QUANTILES

    return dict(
        pe_w=params["pe_w"], add_emb=add_emb,
        attn_mask=jnp.asarray(attn_mask), salsel=jnp.asarray(salsel), qmean=jnp.asarray(qmean),
        wq=wq_aug, wk=wk_aug, wv=wv_aug, wp=wp_h, w1=w1, w2=w2,
        cos_w=cos_w_aug, wva1=wVA1, wva2=wVA2c, vecs=vecs,
    )


def da3_iqn_forward(kp, x, external_taus):
    B = x.shape[0]
    patches = extract_patches(x).reshape(B, N_PATCHES, PATCH_DIM)
    # zero row per batch for the saliency slot, then flatten batch along sublanes
    patches_flat = jnp.concatenate(
        [jnp.zeros((B, 1, PATCH_DIM), jnp.float32), patches], axis=1
    ).reshape(B * T, PATCH_DIM)

    # cosine features (data-dependent, trivial), tiled over batch, ones column for the bias
    i_pi = jnp.pi * jnp.arange(1, NUM_COSINES + 1, dtype=jnp.float32)
    cosines = jnp.cos(external_taus.reshape(NUM_QUANTILES, 1) * i_pi)          # (Q, C)
    cos_aug = jnp.concatenate(
        [jnp.tile(cosines, (B, 1)), jnp.ones((B * NUM_QUANTILES, 1), jnp.float32)], axis=1)

    # single invocation, no grid: whole working set (<0.5 MB) lives in VMEM.
    return pl.pallas_call(
        _fused_kernel,
        out_shape=jax.ShapeDtypeStruct((B, NUM_ACTIONS), jnp.float32),
    )(patches_flat, cos_aug, kp["pe_w"], kp["add_emb"], kp["attn_mask"],
      kp["salsel"], kp["qmean"], kp["wq"], kp["wk"], kp["wv"], kp["wp"],
      kp["w1"], kp["w2"], kp["cos_w"], kp["wva1"], kp["wva2"], kp["vecs"])


# ---------------- deterministic parameter init ----------------
def init_params(key):
    keys = iter(jax.random.split(key, 64))

    def nrm(shape, scale=0.02):
        return scale * jax.random.normal(next(keys), shape, dtype=jnp.float32)

    def stack(shape):
        return jnp.stack([nrm(shape) for _ in range(BLOCK_LOOP)], axis=0)

    params = {
        "pe_w": nrm((PATCH_DIM, EMBED_DIM)),
        "pe_b": nrm((1, EMBED_DIM)),
        "saliency": nrm((1, EMBED_DIM)),
        "pos_embed": nrm((T, EMBED_DIM)),
        "ln_g": jnp.ones((1, EMBED_DIM), jnp.float32),
        "ln_b": jnp.zeros((1, EMBED_DIM), jnp.float32),
        "cos_w": nrm((NUM_COSINES, EMBED_DIM)),
        "cos_b": nrm((1, EMBED_DIM)),
        "vw1": nrm((EMBED_DIM, IQN_MLP_HIDDEN)),
        "vb1": nrm((1, IQN_MLP_HIDDEN)),
        "vw2": nrm((IQN_MLP_HIDDEN, 1)),
        "vb2": nrm((1, 1)),
        "aw1": nrm((EMBED_DIM, IQN_MLP_HIDDEN)),
        "ab1": nrm((1, IQN_MLP_HIDDEN)),
        "aw2": nrm((IQN_MLP_HIDDEN, NUM_ACTIONS)),
        "ab2": nrm((1, NUM_ACTIONS)),
        "blocks": (
            jnp.ones((BLOCK_LOOP, 1, EMBED_DIM), jnp.float32),     # norm1 gamma
            jnp.zeros((BLOCK_LOOP, 1, EMBED_DIM), jnp.float32),    # norm1 beta
            stack((EMBED_DIM, 3 * EMBED_DIM)),                     # qkv weight
            stack((1, 3 * EMBED_DIM)),                             # qkv bias
            stack((EMBED_DIM, EMBED_DIM)),                         # proj weight
            stack((1, EMBED_DIM)),                                 # proj bias
            jnp.ones((BLOCK_LOOP, 1, EMBED_DIM), jnp.float32),     # norm2 gamma
            jnp.zeros((BLOCK_LOOP, 1, EMBED_DIM), jnp.float32),    # norm2 beta
            stack((EMBED_DIM, MLP_HIDDEN)),                        # mlp fc1 w
            stack((1, MLP_HIDDEN)),                                # mlp fc1 b
            stack((MLP_HIDDEN, EMBED_DIM)),                        # mlp fc2 w
            stack((1, EMBED_DIM)),                                 # mlp fc2 b
        ),
    }
    return params


# ---------------- pure-JAX reference for validation ----------------
def reference_forward(params, x, external_taus):
    dot = partial(jnp.dot, precision=lax.Precision.HIGHEST)

    def layernorm(v, g, b):
        mu = v.mean(-1, keepdims=True)
        var = ((v - mu) ** 2).mean(-1, keepdims=True)
        return (v - mu) / jnp.sqrt(var + LN_EPS) * g + b

    B = x.shape[0]
    patches = extract_patches(x)
    tok = dot(patches, params["pe_w"]) + params["pe_b"]
    tok = tok.reshape(B, N_PATCHES, EMBED_DIM)
    sal_tok = jnp.broadcast_to(params["saliency"][None], (B, 1, EMBED_DIM))
    out = jnp.concatenate([sal_tok, tok], axis=1) + params["pos_embed"][None]

    g1s, b1s, wqkvs, bqkvs, wprojs, bprojs, g2s, b2s, w1s, bm1s, w2s, bm2s = params["blocks"]
    for l in range(BLOCK_LOOP):
        xn = layernorm(out, g1s[l], b1s[l])
        qkv = jnp.einsum("btd,de->bte", xn, wqkvs[l],
                         precision=lax.Precision.HIGHEST) + bqkvs[l]
        q, k, v = jnp.split(qkv, 3, axis=-1)
        sh = lambda t: t.reshape(B, T, NUM_HEADS, HEAD_DIM).transpose(0, 2, 1, 3)
        q, k, v = sh(q), sh(k), sh(v)
        att = jnp.einsum("bhqd,bhkd->bhqk", q, k,
                         precision=lax.Precision.HIGHEST) * HEAD_DIM ** -0.5
        att = jax.nn.softmax(att, axis=-1)
        o = jnp.einsum("bhqk,bhkd->bhqd", att, v, precision=lax.Precision.HIGHEST)
        o = o.transpose(0, 2, 1, 3).reshape(B, T, EMBED_DIM)
        out = out + jnp.einsum("btd,de->bte", o, wprojs[l],
                               precision=lax.Precision.HIGHEST) + bprojs[l]
        xn2 = layernorm(out, g2s[l], b2s[l])
        hmid = jnp.einsum("btd,de->bte", xn2, w1s[l],
                          precision=lax.Precision.HIGHEST) + bm1s[l]
        hmid = 0.5 * hmid * (1.0 + lax.erf(hmid / jnp.sqrt(2.0)))
        out = out + jnp.einsum("btd,de->bte", hmid, w2s[l],
                               precision=lax.Precision.HIGHEST) + bm2s[l]

    sal = layernorm(out[:, 0, :], params["ln_g"], params["ln_b"])
    i_pi = jnp.pi * jnp.arange(1, NUM_COSINES + 1, dtype=jnp.float32)
    cosines = jnp.cos(external_taus.reshape(NUM_QUANTILES, 1) * i_pi)
    tau_emb = jax.nn.relu(dot(cosines, params["cos_w"]) + params["cos_b"])
    emb = (sal[:, None, :] * tau_emb[None, :, :]).reshape(B * NUM_QUANTILES, EMBED_DIM)
    hv = jax.nn.relu(dot(emb, params["vw1"]) + params["vb1"])
    V = (dot(hv, params["vw2"]) + params["vb2"]).reshape(B, NUM_QUANTILES, 1)
    ha = jax.nn.relu(dot(emb, params["aw1"]) + params["ab1"])
    A = (dot(ha, params["aw2"]) + params["ab2"]).reshape(B, NUM_QUANTILES, NUM_ACTIONS)
    quant = V + (A - A.mean(-1, keepdims=True))
    return quant.mean(axis=1)


# ---------------- main ----------------
if __name__ == "__main__":
    root = jax.random.PRNGKey(0)
    k_param, k_state, k_tau = jax.random.split(root, 3)

    params = init_params(k_param)
    # state dict with non-'relative' view method -> state[view_method] used directly
    state = {"local": jax.random.normal(k_state, (BATCH, IN_CHANS, H, W), dtype=jnp.float32)}
    external_taus = jax.random.uniform(k_tau, (1, NUM_QUANTILES), dtype=jnp.float32)

    kernel_params = prepare_kernel_params(params, BATCH)

    fwd = jax.jit(lambda kp, s, t: da3_iqn_forward(kp, s["local"], t))
    q_values = jax.block_until_ready(fwd(kernel_params, state, external_taus))

    q_ref = reference_forward(params, state["local"], external_taus)
    assert q_values.shape == (BATCH, NUM_ACTIONS)
    assert bool(jnp.all(jnp.isfinite(q_values)))
    assert bool(jnp.allclose(q_values, q_ref, rtol=5e-3, atol=5e-3)), (q_values, q_ref)

    print("KERNEL_OK")
</pallas_src>

<mosaic_0001>
module attributes {stable_mosaic.version = 11 : i64} {
  func.func @_fused_kernel(%arg0: memref<34x64xf32, #tpu.memory_space<vmem>>, %arg1: memref<16x17xf32, #tpu.memory_space<vmem>>, %arg2: memref<64x32xf32, #tpu.memory_space<vmem>>, %arg3: memref<34x32xf32, #tpu.memory_space<vmem>>, %arg4: memref<34x34xf32, #tpu.memory_space<vmem>>, %arg5: memref<16x34xf32, #tpu.memory_space<vmem>>, %arg6: memref<2x16xf32, #tpu.memory_space<vmem>>, %arg7: memref<8x33x8xf32, #tpu.memory_space<vmem>>, %arg8: memref<8x33x8xf32, #tpu.memory_space<vmem>>, %arg9: memref<8x33x8xf32, #tpu.memory_space<vmem>>, %arg10: memref<8x8x32xf32, #tpu.memory_space<vmem>>, %arg11: memref<2x32x64xf32, #tpu.memory_space<vmem>>, %arg12: memref<2x64x32xf32, #tpu.memory_space<vmem>>, %arg13: memref<17x32xf32, #tpu.memory_space<vmem>>, %arg14: memref<32x64xf32, #tpu.memory_space<vmem>>, %arg15: memref<64x4xf32, #tpu.memory_space<vmem>>, %arg16: memref<18x128xf32, #tpu.memory_space<vmem>>, %arg17: memref<2x4xf32, #tpu.memory_space<vmem>>) attributes {dimension_semantics = [], scalar_prefetch = 0 : i64, scratch_operands = 0 : i64, tpu.core_type = #tpu.core_type<tc>} {
    %c0 = arith.constant 0 : index
    %c0_0 = arith.constant 0 : index
    %0 = vector.load %arg0[%c0, %c0_0] : memref<34x64xf32, #tpu.memory_space<vmem>>, vector<34x64xf32>
    %c0_1 = arith.constant 0 : index
    %c0_2 = arith.constant 0 : index
    %1 = vector.load %arg2[%c0_1, %c0_2] : memref<64x32xf32, #tpu.memory_space<vmem>>, vector<64x32xf32>
    %cst = arith.constant dense<0.000000e+00> : vector<34x32xf32>
    %2 = tpu.matmul %0, %1, %cst {dimension_numbers = #tpu.dot_dimension_numbers<[1], [0], [0], [1], [0, 0, 1, 1], [], []>} : vector<34x64xf32>, vector<64x32xf32>, vector<34x32xf32> -> vector<34x32xf32>
    %c0_3 = arith.constant 0 : index
    %c0_4 = arith.constant 0 : index
    %3 = vector.load %arg3[%c0_3, %c0_4] : memref<34x32xf32, #tpu.memory_space<vmem>>, vector<34x32xf32>
    %4 = arith.addf %2, %3 : vector<34x32xf32>
    %cst_5 = arith.constant 1.000000e+00 : f32
    %5 = vector.broadcast %cst_5 : f32 to vector<34x1xf32>
    %c0_6 = arith.constant 0 : index
    %c0_7 = arith.constant 0 : index
    %6 = vector.load %arg4[%c0_6, %c0_7] : memref<34x34xf32, #tpu.memory_space<vmem>>, vector<34x34xf32>
    %c0_8 = arith.constant 0 : index
    %c0_9 = arith.constant 0 : index
    %7 = vector.load %arg16[%c0_8, %c0_9] : memref<18x128xf32, #tpu.memory_space<vmem>>, vector<1x32xf32>
    %c1 = arith.constant 1 : index
    %c0_10 = arith.constant 0 : index
    %8 = vector.load %arg16[%c1, %c0_10] : memref<18x128xf32, #tpu.memory_space<vmem>>, vector<1x32xf32>
    %c2 = arith.constant 2 : index
    %c0_11 = arith.constant 0 : index
    %9 = vector.load %arg16[%c2, %c0_11] : memref<18x128xf32, #tpu.memory_space<vmem>>, vector<1x32xf32>
    %c3 = arith.constant 3 : index
    %c0_12 = arith.constant 0 : index
    %10 = vector.load %arg16[%c3, %c0_12] : memref<18x128xf32, #tpu.memory_space<vmem>>, vector<1x32xf32>
    %c4 = arith.constant 4 : index
    %c0_13 = arith.constant 0 : index
    %11 = vector.load %arg16[%c4, %c0_13] : memref<18x128xf32, #tpu.memory_space<vmem>>, vector<1x32xf32>
    %c5 = arith.constant 5 : index
    %c0_14 = arith.constant 0 : index
    %12 = vector.load %arg16[%c5, %c0_14] : memref<18x128xf32, #tpu.memory_space<vmem>>, vector<1x64xf32>
    %c6 = arith.constant 6 : index
    %c0_15 = arith.constant 0 : index
    %13 = vector.load %arg16[%c6, %c0_15] : memref<18x128xf32, #tpu.memory_space<vmem>>, vector<1x32xf32>
    %cst_16 = arith.constant dense<0.000000e+00> : vector<34xf32>
    %14 = vector.multi_reduction <add>, %4, %cst_16 [1] : vector<34x32xf32> to vector<34xf32>
    %15 = vector.shape_cast %14 : vector<34xf32> to vector<34x1xf32>
    %cst_17 = arith.constant 3.200000e+01 : f32
    %16 = vector.broadcast %cst_17 : f32 to vector<34x1xf32>
    %17 = arith.divf %15, %16 : vector<34x1xf32>
    %18 = vector.broadcast %17 : vector<34x1xf32> to vector<34x32xf32>
    %19 = arith.subf %4, %18 : vector<34x32xf32>
    %20 = arith.mulf %19, %19 : vector<34x32xf32>
    %cst_18 = arith.constant dense<0.000000e+00> : vector<34xf32>
    %21 = vector.multi_reduction <add>, %20, %cst_18 [1] : vector<34x32xf32> to vector<34xf32>
    %22 = vector.shape_cast %21 : vector<34xf32> to vector<34x1xf32>
    %cst_19 = arith.constant 3.200000e+01 : f32
    %23 = vector.broadcast %cst_19 : f32 to vector<34x1xf32>
    %24 = arith.divf %22, %23 : vector<34x1xf32>
    %cst_20 = arith.constant 9.99999974E-6 : f32
    %25 = vector.broadcast %cst_20 : f32 to vector<34x1xf32>
    %26 = arith.addf %24, %25 : vector<34x1xf32>
    %27 = math.rsqrt %26 : vector<34x1xf32>
    %28 = vector.broadcast %27 : vector<34x1xf32> to vector<34x32xf32>
    %29 = arith.mulf %19, %28 : vector<34x32xf32>
    %30 = vector.broadcast %7 : vector<1x32xf32> to vector<34x32xf32>
    %31 = arith.mulf %29, %30 : vector<34x32xf32>
    %32 = vector.broadcast %8 : vector<1x32xf32> to vector<34x32xf32>
    %33 = arith.addf %31, %32 : vector<34x32xf32>
    %34 = tpu.concatenate %33, %5 in 1 : vector<34x32xf32>, vector<34x1xf32> -> vector<34x33xf32>
    %c0_21 = arith.constant 0 : index
    %c0_22 = arith.constant 0 : index
    %c0_23 = arith.constant 0 : index
    %35 = vector.load %arg7[%c0_21, %c0_22, %c0_23] : memref<8x33x8xf32, #tpu.memory_space<vmem>>, vector<1x33x8xf32>
    %36 = vector.shape_cast %35 : vector<1x33x8xf32> to vector<33x8xf32>
    %cst_24 = arith.constant dense<0.000000e+00> : vector<34x8xf32>
    %37 = tpu.matmul %34, %36, %cst_24 {dimension_numbers = #tpu.dot_dimension_numbers<[1], [0], [0], [1], [0, 0, 1, 1], [], []>} : vector<34x33xf32>, vector<33x8xf32>, vector<34x8xf32> -> vector<34x8xf32>
    %c0_25 = arith.constant 0 : index
    %c0_26 = arith.constant 0 : index
    %c0_27 = arith.constant 0 : index
    %38 = vector.load %arg8[%c0_25, %c0_26, %c0_27] : memref<8x33x8xf32, #tpu.memory_space<vmem>>, vector<1x33x8xf32>
    %39 = vector.shape_cast %38 : vector<1x33x8xf32> to vector<33x8xf32>
    %cst_28 = arith.constant dense<0.000000e+00> : vector<34x8xf32>
    %40 = tpu.matmul %34, %39, %cst_28 {dimension_numbers = #tpu.dot_dimension_numbers<[1], [0], [0], [1], [0, 0, 1, 1], [], []>} : vector<34x33xf32>, vector<33x8xf32>, vector<34x8xf32> -> vector<34x8xf32>
    %c0_29 = arith.constant 0 : index
    %c0_30 = arith.constant 0 : index
    %c0_31 = arith.constant 0 : index
    %41 = vector.load %arg9[%c0_29, %c0_30, %c0_31] : memref<8x33x8xf32, #tpu.memory_space<vmem>>, vector<1x33x8xf32>
    %42 = vector.shape_cast %41 : vector<1x33x8xf32> to vector<33x8xf32>
    %cst_32 = arith.constant dense<0.000000e+00> : vector<34x8xf32>
    %43 = tpu.matmul %34, %42, %cst_32 {dimension_numbers = #tpu.dot_dimension_numbers<[1], [0], [0], [1], [0, 0, 1, 1], [], []>} : vector<34x33xf32>, vector<33x8xf32>, vector<34x8xf32> -> vector<34x8xf32>
    %cst_33 = arith.constant dense<0.000000e+00> : vector<34x34xf32>
    %44 = tpu.matmul %37, %40, %cst_33 {dimension_numbers = #tpu.dot_dimension_numbers<[1], [1], [0], [0], [0, 0, 1, 0], [], []>} : vector<34x8xf32>, vector<34x8xf32>, vector<34x34xf32> -> vector<34x34xf32>
    %45 = arith.addf %44, %6 : vector<34x34xf32>
    %cst_34 = arith.constant dense<0xFF800000> : vector<34xf32>
    %46 = vector.multi_reduction <maximumf>, %45, %cst_34 [1] : vector<34x34xf32> to vector<34xf32>
    %47 = vector.shape_cast %46 : vector<34xf32> to vector<34x1xf32>
    %48 = vector.broadcast %47 : vector<34x1xf32> to vector<34x34xf32>
    %49 = arith.subf %45, %48 : vector<34x34xf32>
    %50 = math.exp %49 : vector<34x34xf32>
    %cst_35 = arith.constant dense<0.000000e+00> : vector<34xf32>
    %51 = vector.multi_reduction <add>, %50, %cst_35 [1] : vector<34x34xf32> to vector<34xf32>
    %52 = vector.shape_cast %51 : vector<34xf32> to vector<34x1xf32>
    %53 = tpu.reciprocal %52 {approx = true} : vector<34x1xf32> -> vector<34x1xf32>
    %54 = vector.broadcast %53 : vector<34x1xf32> to vector<34x34xf32>
    %55 = arith.mulf %50, %54 : vector<34x34xf32>
    %cst_36 = arith.constant dense<0.000000e+00> : vector<34x8xf32>
    %56 = tpu.matmul %55, %43, %cst_36 {dimension_numbers = #tpu.dot_dimension_numbers<[1], [0], [0], [1], [0, 0, 1, 1], [], []>} : vector<34x34xf32>, vector<34x8xf32>, vector<34x8xf32> -> vector<34x8xf32>
    %c0_37 = arith.constant 0 : index
    %c0_38 = arith.constant 0 : index
    %c0_39 = arith.constant 0 : index
    %57 = vector.load %arg10[%c0_37, %c0_38, %c0_39] : memref<8x8x32xf32, #tpu.memory_space<vmem>>, vector<1x8x32xf32>
    %58 = vector.shape_cast %57 : vector<1x8x32xf32> to vector<8x32xf32>
    %cst_40 = arith.constant dense<0.000000e+00> : vector<34x32xf32>
    %59 = tpu.matmul %56, %58, %cst_40 {dimension_numbers = #tpu.dot_dimension_numbers<[1], [0], [0], [1], [0, 0, 1, 1], [], []>} : vector<34x8xf32>, vector<8x32xf32>, vector<34x32xf32> -> vector<34x32xf32>
    %c1_41 = arith.constant 1 : index
    %c0_42 = arith.constant 0 : index
    %c0_43 = arith.constant 0 : index
    %60 = vector.load %arg7[%c1_41, %c0_42, %c0_43] : memref<8x33x8xf32, #tpu.memory_space<vmem>>, vector<1x33x8xf32>
    %61 = vector.shape_cast %60 : vector<1x33x8xf32> to vector<33x8xf32>
    %cst_44 = arith.constant dense<0.000000e+00> : vector<34x8xf32>
    %62 = tpu.matmul %34, %61, %cst_44 {dimension_numbers = #tpu.dot_dimension_numbers<[1], [0], [0], [1], [0, 0, 1, 1], [], []>} : vector<34x33xf32>, vector<33x8xf32>, vector<34x8xf32> -> vector<34x8xf32>
    %c1_45 = arith.constant 1 : index
    %c0_46 = arith.constant 0 : index
    %c0_47 = arith.constant 0 : index
    %63 = vector.load %arg8[%c1_45, %c0_46, %c0_47] : memref<8x33x8xf32, #tpu.memory_space<vmem>>, vector<1x33x8xf32>
    %64 = vector.shape_cast %63 : vector<1x33x8xf32> to vector<33x8xf32>
    %cst_48 = arith.constant dense<0.000000e+00> : vector<34x8xf32>
    %65 = tpu.matmul %34, %64, %cst_48 {dimension_numbers = #tpu.dot_dimension_numbers<[1], [0], [0], [1], [0, 0, 1, 1], [], []>} : vector<34x33xf32>, vector<33x8xf32>, vector<34x8xf32> -> vector<34x8xf32>
    %c1_49 = arith.constant 1 : index
    %c0_50 = arith.constant 0 : index
    %c0_51 = arith.constant 0 : index
    %66 = vector.load %arg9[%c1_49, %c0_50, %c0_51] : memref<8x33x8xf32, #tpu.memory_space<vmem>>, vector<1x33x8xf32>
    %67 = vector.shape_cast %66 : vector<1x33x8xf32> to vector<33x8xf32>
    %cst_52 = arith.constant dense<0.000000e+00> : vector<34x8xf32>
    %68 = tpu.matmul %34, %67, %cst_52 {dimension_numbers = #tpu.dot_dimension_numbers<[1], [0], [0], [1], [0, 0, 1, 1], [], []>} : vector<34x33xf32>, vector<33x8xf32>, vector<34x8xf32> -> vector<34x8xf32>
    %cst_53 = arith.constant dense<0.000000e+00> : vector<34x34xf32>
    %69 = tpu.matmul %62, %65, %cst_53 {dimension_numbers = #tpu.dot_dimension_numbers<[1], [1], [0], [0], [0, 0, 1, 0], [], []>} : vector<34x8xf32>, vector<34x8xf32>, vector<34x34xf32> -> vector<34x34xf32>
    %70 = arith.addf %69, %6 : vector<34x34xf32>
    %cst_54 = arith.constant dense<0xFF800000> : vector<34xf32>
    %71 = vector.multi_reduction <maximumf>, %70, %cst_54 [1] : vector<34x34xf32> to vector<34xf32>
    %72 = vector.shape_cast %71 : vector<34xf32> to vector<34x1xf32>
    %73 = vector.broadcast %72 : vector<34x1xf32> to vector<34x34xf32>
    %74 = arith.subf %70, %73 : vector<34x34xf32>
    %75 = math.exp %74 : vector<34x34xf32>
    %cst_55 = arith.constant dense<0.000000e+00> : vector<34xf32>
    %76 = vector.multi_reduction <add>, %75, %cst_55 [1] : vector<34x34xf32> to vector<34xf32>
    %77 = vector.shape_cast %76 : vector<34xf32> to vector<34x1xf32>
    %78 = tpu.reciprocal %77 {approx = true} : vector<34x1xf32> -> vector<34x1xf32>
    %79 = vector.broadcast %78 : vector<34x1xf32> to vector<34x34xf32>
    %80 = arith.mulf %75, %79 : vector<34x34xf32>
    %cst_56 = arith.constant dense<0.000000e+00> : vector<34x8xf32>
    %81 = tpu.matmul %80, %68, %cst_56 {dimension_numbers = #tpu.dot_dimension_numbers<[1], [0], [0], [1], [0, 0, 1, 1], [], []>} : vector<34x34xf32>, vector<34x8xf32>, vector<34x8xf32> -> vector<34x8xf32>
    %c1_57 = arith.constant 1 : index
    %c0_58 = arith.constant 0 : index
    %c0_59 = arith.constant 0 : index
    %82 = vector.load %arg10[%c1_57, %c0_58, %c0_59] : memref<8x8x32xf32, #tpu.memory_space<vmem>>, vector<1x8x32xf32>
    %83 = vector.shape_cast %82 : vector<1x8x32xf32> to vector<8x32xf32>
    %cst_60 = arith.constant dense<0.000000e+00> : vector<34x32xf32>
    %84 = tpu.matmul %81, %83, %cst_60 {dimension_numbers = #tpu.dot_dimension_numbers<[1], [0], [0], [1], [0, 0, 1, 1], [], []>} : vector<34x8xf32>, vector<8x32xf32>, vector<34x32xf32> -> vector<34x32xf32>
    %85 = arith.addf %59, %84 : vector<34x32xf32>
    %c2_61 = arith.constant 2 : index
    %c0_62 = arith.constant 0 : index
    %c0_63 = arith.constant 0 : index
    %86 = vector.load %arg7[%c2_61, %c0_62, %c0_63] : memref<8x33x8xf32, #tpu.memory_space<vmem>>, vector<1x33x8xf32>
    %87 = vector.shape_cast %86 : vector<1x33x8xf32> to vector<33x8xf32>
    %cst_64 = arith.constant dense<0.000000e+00> : vector<34x8xf32>
    %88 = tpu.matmul %34, %87, %cst_64 {dimension_numbers = #tpu.dot_dimension_numbers<[1], [0], [0], [1], [0, 0, 1, 1], [], []>} : vector<34x33xf32>, vector<33x8xf32>, vector<34x8xf32> -> vector<34x8xf32>
    %c2_65 = arith.constant 2 : index
    %c0_66 = arith.constant 0 : index
    %c0_67 = arith.constant 0 : index
    %89 = vector.load %arg8[%c2_65, %c0_66, %c0_67] : memref<8x33x8xf32, #tpu.memory_space<vmem>>, vector<1x33x8xf32>
    %90 = vector.shape_cast %89 : vector<1x33x8xf32> to vector<33x8xf32>
    %cst_68 = arith.constant dense<0.000000e+00> : vector<34x8xf32>
    %91 = tpu.matmul %34, %90, %cst_68 {dimension_numbers = #tpu.dot_dimension_numbers<[1], [0], [0], [1], [0, 0, 1, 1], [], []>} : vector<34x33xf32>, vector<33x8xf32>, vector<34x8xf32> -> vector<34x8xf32>
    %c2_69 = arith.constant 2 : index
    %c0_70 = arith.constant 0 : index
    %c0_71 = arith.constant 0 : index
    %92 = vector.load %arg9[%c2_69, %c0_70, %c0_71] : memref<8x33x8xf32, #tpu.memory_space<vmem>>, vector<1x33x8xf32>
    %93 = vector.shape_cast %92 : vector<1x33x8xf32> to vector<33x8xf32>
    %cst_72 = arith.constant dense<0.000000e+00> : vector<34x8xf32>
    %94 = tpu.matmul %34, %93, %cst_72 {dimension_numbers = #tpu.dot_dimension_numbers<[1], [0], [0], [1], [0, 0, 1, 1], [], []>} : vector<34x33xf32>, vector<33x8xf32>, vector<34x8xf32> -> vector<34x8xf32>
    %cst_73 = arith.constant dense<0.000000e+00> : vector<34x34xf32>
    %95 = tpu.matmul %88, %91, %cst_73 {dimension_numbers = #tpu.dot_dimension_numbers<[1], [1], [0], [0], [0, 0, 1, 0], [], []>} : vector<34x8xf32>, vector<34x8xf32>, vector<34x34xf32> -> vector<34x34xf32>
    %96 = arith.addf %95, %6 : vector<34x34xf32>
    %cst_74 = arith.constant dense<0xFF800000> : vector<34xf32>
    %97 = vector.multi_reduction <maximumf>, %96, %cst_74 [1] : vector<34x34xf32> to vector<34xf32>
    %98 = vector.shape_cast %97 : vector<34xf32> to vector<34x1xf32>
    %99 = vector.broadcast %98 : vector<34x1xf32> to vector<34x34xf32>
    %100 = arith.subf %96, %99 : vector<34x34xf32>
    %101 = math.exp %100 : vector<34x34xf32>
    %cst_75 = arith.constant dense<0.000000e+00> : vector<34xf32>
    %102 = vector.multi_reduction <add>, %101, %cst_75 [1] : vector<34x34xf32> to vector<34xf32>
    %103 = vector.shape_cast %102 : vector<34xf32> to vector<34x1xf32>
    %104 = tpu.reciprocal %103 {approx = true} : vector<34x1xf32> -> vector<34x1xf32>
    %105 = vector.broadcast %104 : vector<34x1xf32> to vector<34x34xf32>
    %106 = arith.mulf %101, %105 : vector<34x34xf32>
    %cst_76 = arith.constant dense<0.000000e+00> : vector<34x8xf32>
    %107 = tpu.matmul %106, %94, %cst_76 {dimension_numbers = #tpu.dot_dimension_numbers<[1], [0], [0], [1], [0, 0, 1, 1], [], []>} : vector<34x34xf32>, vector<34x8xf32>, vector<34x8xf32> -> vector<34x8xf32>
    %c2_77 = arith.constant 2 : index
    %c0_78 = arith.constant 0 : index
    %c0_79 = arith.constant 0 : index
    %108 = vector.load %arg10[%c2_77, %c0_78, %c0_79] : memref<8x8x32xf32, #tpu.memory_space<vmem>>, vector<1x8x32xf32>
    %109 = vector.shape_cast %108 : vector<1x8x32xf32> to vector<8x32xf32>
    %cst_80 = arith.constant dense<0.000000e+00> : vector<34x32xf32>
    %110 = tpu.matmul %107, %109, %cst_80 {dimension_numbers = #tpu.dot_dimension_numbers<[1], [0], [0], [1], [0, 0, 1, 1], [], []>} : vector<34x8xf32>, vector<8x32xf32>, vector<34x32xf32> -> vector<34x32xf32>
    %111 = arith.addf %85, %110 : vector<34x32xf32>
    %c3_81 = arith.constant 3 : index
    %c0_82 = arith.constant 0 : index
    %c0_83 = arith.constant 0 : index
    %112 = vector.load %arg7[%c3_81, %c0_82, %c0_83] : memref<8x33x8xf32, #tpu.memory_space<vmem>>, vector<1x33x8xf32>
    %113 = vector.shape_cast %112 : vector<1x33x8xf32> to vector<33x8xf32>
    %cst_84 = arith.constant dense<0.000000e+00> : vector<34x8xf32>
    %114 = tpu.matmul %34, %113, %cst_84 {dimension_numbers = #tpu.dot_dimension_numbers<[1], [0], [0], [1], [0, 0, 1, 1], [], []>} : vector<34x33xf32>, vector<33x8xf32>, vector<34x8xf32> -> vector<34x8xf32>
    %c3_85 = arith.constant 3 : index
    %c0_86 = arith.constant 0 : index
    %c0_87 = arith.constant 0 : index
    %115 = vector.load %arg8[%c3_85, %c0_86, %c0_87] : memref<8x33x8xf32, #tpu.memory_space<vmem>>, vector<1x33x8xf32>
    %116 = vector.shape_cast %115 : vector<1x33x8xf32> to vector<33x8xf32>
    %cst_88 = arith.constant dense<0.000000e+00> : vector<34x8xf32>
    %117 = tpu.matmul %34, %116, %cst_88 {dimension_numbers = #tpu.dot_dimension_numbers<[1], [0], [0], [1], [0, 0, 1, 1], [], []>} : vector<34x33xf32>, vector<33x8xf32>, vector<34x8xf32> -> vector<34x8xf32>
    %c3_89 = arith.constant 3 : index
    %c0_90 = arith.constant 0 : index
    %c0_91 = arith.constant 0 : index
    %118 = vector.load %arg9[%c3_89, %c0_90, %c0_91] : memref<8x33x8xf32, #tpu.memory_space<vmem>>, vector<1x33x8xf32>
    %119 = vector.shape_cast %118 : vector<1x33x8xf32> to vector<33x8xf32>
    %cst_92 = arith.constant dense<0.000000e+00> : vector<34x8xf32>
    %120 = tpu.matmul %34, %119, %cst_92 {dimension_numbers = #tpu.dot_dimension_numbers<[1], [0], [0], [1], [0, 0, 1, 1], [], []>} : vector<34x33xf32>, vector<33x8xf32>, vector<34x8xf32> -> vector<34x8xf32>
    %cst_93 = arith.constant dense<0.000000e+00> : vector<34x34xf32>
    %121 = tpu.matmul %114, %117, %cst_93 {dimension_numbers = #tpu.dot_dimension_numbers<[1], [1], [0], [0], [0, 0, 1, 0], [], []>} : vector<34x8xf32>, vector<34x8xf32>, vector<34x34xf32> -> vector<34x34xf32>
    %122 = arith.addf %121, %6 : vector<34x34xf32>
    %cst_94 = arith.constant dense<0xFF800000> : vector<34xf32>
    %123 = vector.multi_reduction <maximumf>, %122, %cst_94 [1] : vector<34x34xf32> to vector<34xf32>
    %124 = vector.shape_cast %123 : vector<34xf32> to vector<34x1xf32>
    %125 = vector.broadcast %124 : vector<34x1xf32> to vector<34x34xf32>
    %126 = arith.subf %122, %125 : vector<34x34xf32>
    %127 = math.exp %126 : vector<34x34xf32>
    %cst_95 = arith.constant dense<0.000000e+00> : vector<34xf32>
    %128 = vector.multi_reduction <add>, %127, %cst_95 [1] : vector<34x34xf32> to vector<34xf32>
    %129 = vector.shape_cast %128 : vector<34xf32> to vector<34x1xf32>
    %130 = tpu.reciprocal %129 {approx = true} : vector<34x1xf32> -> vector<34x1xf32>
    %131 = vector.broadcast %130 : vector<34x1xf32> to vector<34x34xf32>
    %132 = arith.mulf %127, %131 : vector<34x34xf32>
    %cst_96 = arith.constant dense<0.000000e+00> : vector<34x8xf32>
    %133 = tpu.matmul %132, %120, %cst_96 {dimension_numbers = #tpu.dot_dimension_numbers<[1], [0], [0], [1], [0, 0, 1, 1], [], []>} : vector<34x34xf32>, vector<34x8xf32>, vector<34x8xf32> -> vector<34x8xf32>
    %c3_97 = arith.constant 3 : index
    %c0_98 = arith.constant 0 : index
    %c0_99 = arith.constant 0 : index
    %134 = vector.load %arg10[%c3_97, %c0_98, %c0_99] : memref<8x8x32xf32, #tpu.memory_space<vmem>>, vector<1x8x32xf32>
    %135 = vector.shape_cast %134 : vector<1x8x32xf32> to vector<8x32xf32>
    %cst_100 = arith.constant dense<0.000000e+00> : vector<34x32xf32>
    %136 = tpu.matmul %133, %135, %cst_100 {dimension_numbers = #tpu.dot_dimension_numbers<[1], [0], [0], [1], [0, 0, 1, 1], [], []>} : vector<34x8xf32>, vector<8x32xf32>, vector<34x32xf32> -> vector<34x32xf32>
    %137 = arith.addf %111, %136 : vector<34x32xf32>
    %138 = arith.addf %4, %137 : vector<34x32xf32>
    %139 = vector.broadcast %11 : vector<1x32xf32> to vector<34x32xf32>
    %140 = arith.addf %138, %139 : vector<34x32xf32>
    %cst_101 = arith.constant dense<0.000000e+00> : vector<34xf32>
    %141 = vector.multi_reduction <add>, %140, %cst_101 [1] : vector<34x32xf32> to vector<34xf32>
    %142 = vector.shape_cast %141 : vector<34xf32> to vector<34x1xf32>
    %cst_102 = arith.constant 3.200000e+01 : f32
    %143 = vector.broadcast %cst_102 : f32 to vector<34x1xf32>
    %144 = arith.divf %142, %143 : vector<34x1xf32>
    %145 = vector.broadcast %144 : vector<34x1xf32> to vector<34x32xf32>
    %146 = arith.subf %140, %145 : vector<34x32xf32>
    %147 = arith.mulf %146, %146 : vector<34x32xf32>
    %cst_103 = arith.constant dense<0.000000e+00> : vector<34xf32>
    %148 = vector.multi_reduction <add>, %147, %cst_103 [1] : vector<34x32xf32> to vector<34xf32>
    %149 = vector.shape_cast %148 : vector<34xf32> to vector<34x1xf32>
    %cst_104 = arith.constant 3.200000e+01 : f32
    %150 = vector.broadcast %cst_104 : f32 to vector<34x1xf32>
    %151 = arith.divf %149, %150 : vector<34x1xf32>
    %cst_105 = arith.constant 9.99999974E-6 : f32
    %152 = vector.broadcast %cst_105 : f32 to vector<34x1xf32>
    %153 = arith.addf %151, %152 : vector<34x1xf32>
    %154 = math.rsqrt %153 : vector<34x1xf32>
    %155 = vector.broadcast %154 : vector<34x1xf32> to vector<34x32xf32>
    %156 = arith.mulf %146, %155 : vector<34x32xf32>
    %157 = vector.broadcast %9 : vector<1x32xf32> to vector<34x32xf32>
    %158 = arith.mulf %156, %157 : vector<34x32xf32>
    %159 = vector.broadcast %10 : vector<1x32xf32> to vector<34x32xf32>
    %160 = arith.addf %158, %159 : vector<34x32xf32>
    %c0_106 = arith.constant 0 : index
    %c0_107 = arith.constant 0 : index
    %c0_108 = arith.constant 0 : index
    %161 = vector.load %arg11[%c0_106, %c0_107, %c0_108] : memref<2x32x64xf32, #tpu.memory_space<vmem>>, vector<1x32x64xf32>
    %162 = vector.shape_cast %161 : vector<1x32x64xf32> to vector<32x64xf32>
    %cst_109 = arith.constant dense<0.000000e+00> : vector<34x64xf32>
    %163 = tpu.matmul %160, %162, %cst_109 {dimension_numbers = #tpu.dot_dimension_numbers<[1], [0], [0], [1], [0, 0, 1, 1], [], []>} : vector<34x32xf32>, vector<32x64xf32>, vector<34x64xf32> -> vector<34x64xf32>
    %164 = vector.broadcast %12 : vector<1x64xf32> to vector<34x64xf32>
    %165 = arith.addf %163, %164 : vector<34x64xf32>
    %cst_110 = arith.constant 5.000000e-01 : f32
    %166 = vector.broadcast %cst_110 : f32 to vector<34x64xf32>
    %167 = arith.mulf %166, %165 : vector<34x64xf32>
    %cst_111 = arith.constant 0.707106769 : f32
    %168 = vector.broadcast %cst_111 : f32 to vector<34x64xf32>
    %169 = arith.mulf %165, %168 : vector<34x64xf32>
    %170 = math.erf %169 : vector<34x64xf32>
    %cst_112 = arith.constant 1.000000e+00 : f32
    %171 = vector.broadcast %cst_112 : f32 to vector<34x64xf32>
    %172 = arith.addf %171, %170 : vector<34x64xf32>
    %173 = arith.mulf %167, %172 : vector<34x64xf32>
    %c0_113 = arith.constant 0 : index
    %c0_114 = arith.constant 0 : index
    %c0_115 = arith.constant 0 : index
    %174 = vector.load %arg12[%c0_113, %c0_114, %c0_115] : memref<2x64x32xf32, #tpu.memory_space<vmem>>, vector<1x64x32xf32>
    %175 = vector.shape_cast %174 : vector<1x64x32xf32> to vector<64x32xf32>
    %cst_116 = arith.constant dense<0.000000e+00> : vector<34x32xf32>
    %176 = tpu.matmul %173, %175, %cst_116 {dimension_numbers = #tpu.dot_dimension_numbers<[1], [0], [0], [1], [0, 0, 1, 1], [], []>} : vector<34x64xf32>, vector<64x32xf32>, vector<34x32xf32> -> vector<34x32xf32>
    %177 = arith.addf %140, %176 : vector<34x32xf32>
    %178 = vector.broadcast %13 : vector<1x32xf32> to vector<34x32xf32>
    %179 = arith.addf %177, %178 : vector<34x32xf32>
    %c7 = arith.constant 7 : index
    %c0_117 = arith.constant 0 : index
    %180 = vector.load %arg16[%c7, %c0_117] : memref<18x128xf32, #tpu.memory_space<vmem>>, vector<1x32xf32>
    %c8 = arith.constant 8 : index
    %c0_118 = arith.constant 0 : index
    %181 = vector.load %arg16[%c8, %c0_118] : memref<18x128xf32, #tpu.memory_space<vmem>>, vector<1x32xf32>
    %c9 = arith.constant 9 : index
    %c0_119 = arith.constant 0 : index
    %182 = vector.load %arg16[%c9, %c0_119] : memref<18x128xf32, #tpu.memory_space<vmem>>, vector<1x32xf32>
    %c10 = arith.constant 10 : index
    %c0_120 = arith.constant 0 : index
    %183 = vector.load %arg16[%c10, %c0_120] : memref<18x128xf32, #tpu.memory_space<vmem>>, vector<1x32xf32>
    %c11 = arith.constant 11 : index
    %c0_121 = arith.constant 0 : index
    %184 = vector.load %arg16[%c11, %c0_121] : memref<18x128xf32, #tpu.memory_space<vmem>>, vector<1x32xf32>
    %c12 = arith.constant 12 : index
    %c0_122 = arith.constant 0 : index
    %185 = vector.load %arg16[%c12, %c0_122] : memref<18x128xf32, #tpu.memory_space<vmem>>, vector<1x64xf32>
    %c13 = arith.constant 13 : index
    %c0_123 = arith.constant 0 : index
    %186 = vector.load %arg16[%c13, %c0_123] : memref<18x128xf32, #tpu.memory_space<vmem>>, vector<1x32xf32>
    %cst_124 = arith.constant dense<0.000000e+00> : vector<34xf32>
    %187 = vector.multi_reduction <add>, %179, %cst_124 [1] : vector<34x32xf32> to vector<34xf32>
    %188 = vector.shape_cast %187 : vector<34xf32> to vector<34x1xf32>
    %cst_125 = arith.constant 3.200000e+01 : f32
    %189 = vector.broadcast %cst_125 : f32 to vector<34x1xf32>
    %190 = arith.divf %188, %189 : vector<34x1xf32>
    %191 = vector.broadcast %190 : vector<34x1xf32> to vector<34x32xf32>
    %192 = arith.subf %179, %191 : vector<34x32xf32>
    %193 = arith.mulf %192, %192 : vector<34x32xf32>
    %cst_126 = arith.constant dense<0.000000e+00> : vector<34xf32>
    %194 = vector.multi_reduction <add>, %193, %cst_126 [1] : vector<34x32xf32> to vector<34xf32>
    %195 = vector.shape_cast %194 : vector<34xf32> to vector<34x1xf32>
    %cst_127 = arith.constant 3.200000e+01 : f32
    %196 = vector.broadcast %cst_127 : f32 to vector<34x1xf32>
    %197 = arith.divf %195, %196 : vector<34x1xf32>
    %cst_128 = arith.constant 9.99999974E-6 : f32
    %198 = vector.broadcast %cst_128 : f32 to vector<34x1xf32>
    %199 = arith.addf %197, %198 : vector<34x1xf32>
    %200 = math.rsqrt %199 : vector<34x1xf32>
    %201 = vector.broadcast %200 : vector<34x1xf32> to vector<34x32xf32>
    %202 = arith.mulf %192, %201 : vector<34x32xf32>
    %203 = vector.broadcast %180 : vector<1x32xf32> to vector<34x32xf32>
    %204 = arith.mulf %202, %203 : vector<34x32xf32>
    %205 = vector.broadcast %181 : vector<1x32xf32> to vector<34x32xf32>
    %206 = arith.addf %204, %205 : vector<34x32xf32>
    %207 = tpu.concatenate %206, %5 in 1 : vector<34x32xf32>, vector<34x1xf32> -> vector<34x33xf32>
    %c4_129 = arith.constant 4 : index
    %c0_130 = arith.constant 0 : index
    %c0_131 = arith.constant 0 : index
    %208 = vector.load %arg7[%c4_129, %c0_130, %c0_131] : memref<8x33x8xf32, #tpu.memory_space<vmem>>, vector<1x33x8xf32>
    %209 = vector.shape_cast %208 : vector<1x33x8xf32> to vector<33x8xf32>
    %cst_132 = arith.constant dense<0.000000e+00> : vector<34x8xf32>
    %210 = tpu.matmul %207, %209, %cst_132 {dimension_numbers = #tpu.dot_dimension_numbers<[1], [0], [0], [1], [0, 0, 1, 1], [], []>} : vector<34x33xf32>, vector<33x8xf32>, vector<34x8xf32> -> vector<34x8xf32>
    %c4_133 = arith.constant 4 : index
    %c0_134 = arith.constant 0 : index
    %c0_135 = arith.constant 0 : index
    %211 = vector.load %arg8[%c4_133, %c0_134, %c0_135] : memref<8x33x8xf32, #tpu.memory_space<vmem>>, vector<1x33x8xf32>
    %212 = vector.shape_cast %211 : vector<1x33x8xf32> to vector<33x8xf32>
    %cst_136 = arith.constant dense<0.000000e+00> : vector<34x8xf32>
    %213 = tpu.matmul %207, %212, %cst_136 {dimension_numbers = #tpu.dot_dimension_numbers<[1], [0], [0], [1], [0, 0, 1, 1], [], []>} : vector<34x33xf32>, vector<33x8xf32>, vector<34x8xf32> -> vector<34x8xf32>
    %c4_137 = arith.constant 4 : index
    %c0_138 = arith.constant 0 : index
    %c0_139 = arith.constant 0 : index
    %214 = vector.load %arg9[%c4_137, %c0_138, %c0_139] : memref<8x33x8xf32, #tpu.memory_space<vmem>>, vector<1x33x8xf32>
    %215 = vector.shape_cast %214 : vector<1x33x8xf32> to vector<33x8xf32>
    %cst_140 = arith.constant dense<0.000000e+00> : vector<34x8xf32>
    %216 = tpu.matmul %207, %215, %cst_140 {dimension_numbers = #tpu.dot_dimension_numbers<[1], [0], [0], [1], [0, 0, 1, 1], [], []>} : vector<34x33xf32>, vector<33x8xf32>, vector<34x8xf32> -> vector<34x8xf32>
    %cst_141 = arith.constant dense<0.000000e+00> : vector<34x34xf32>
    %217 = tpu.matmul %210, %213, %cst_141 {dimension_numbers = #tpu.dot_dimension_numbers<[1], [1], [0], [0], [0, 0, 1, 0], [], []>} : vector<34x8xf32>, vector<34x8xf32>, vector<34x34xf32> -> vector<34x34xf32>
    %218 = arith.addf %217, %6 : vector<34x34xf32>
    %cst_142 = arith.constant dense<0xFF800000> : vector<34xf32>
    %219 = vector.multi_reduction <maximumf>, %218, %cst_142 [1] : vector<34x34xf32> to vector<34xf32>
    %220 = vector.shape_cast %219 : vector<34xf32> to vector<34x1xf32>
    %221 = vector.broadcast %220 : vector<34x1xf32> to vector<34x34xf32>
    %222 = arith.subf %218, %221 : vector<34x34xf32>
    %223 = math.exp %222 : vector<34x34xf32>
    %cst_143 = arith.constant dense<0.000000e+00> : vector<34xf32>
    %224 = vector.multi_reduction <add>, %223, %cst_143 [1] : vector<34x34xf32> to vector<34xf32>
    %225 = vector.shape_cast %224 : vector<34xf32> to vector<34x1xf32>
    %226 = tpu.reciprocal %225 {approx = true} : vector<34x1xf32> -> vector<34x1xf32>
    %227 = vector.broadcast %226 : vector<34x1xf32> to vector<34x34xf32>
    %228 = arith.mulf %223, %227 : vector<34x34xf32>
    %cst_144 = arith.constant dense<0.000000e+00> : vector<34x8xf32>
    %229 = tpu.matmul %228, %216, %cst_144 {dimension_numbers = #tpu.dot_dimension_numbers<[1], [0], [0], [1], [0, 0, 1, 1], [], []>} : vector<34x34xf32>, vector<34x8xf32>, vector<34x8xf32> -> vector<34x8xf32>
    %c4_145 = arith.constant 4 : index
    %c0_146 = arith.constant 0 : index
    %c0_147 = arith.constant 0 : index
    %230 = vector.load %arg10[%c4_145, %c0_146, %c0_147] : memref<8x8x32xf32, #tpu.memory_space<vmem>>, vector<1x8x32xf32>
    %231 = vector.shape_cast %230 : vector<1x8x32xf32> to vector<8x32xf32>
    %cst_148 = arith.constant dense<0.000000e+00> : vector<34x32xf32>
    %232 = tpu.matmul %229, %231, %cst_148 {dimension_numbers = #tpu.dot_dimension_numbers<[1], [0], [0], [1], [0, 0, 1, 1], [], []>} : vector<34x8xf32>, vector<8x32xf32>, vector<34x32xf32> -> vector<34x32xf32>
    %c5_149 = arith.constant 5 : index
    %c0_150 = arith.constant 0 : index
    %c0_151 = arith.constant 0 : index
    %233 = vector.load %arg7[%c5_149, %c0_150, %c0_151] : memref<8x33x8xf32, #tpu.memory_space<vmem>>, vector<1x33x8xf32>
    %234 = vector.shape_cast %233 : vector<1x33x8xf32> to vector<33x8xf32>
    %cst_152 = arith.constant dense<0.000000e+00> : vector<34x8xf32>
    %235 = tpu.matmul %207, %234, %cst_152 {dimension_numbers = #tpu.dot_dimension_numbers<[1], [0], [0], [1], [0, 0, 1, 1], [], []>} : vector<34x33xf32>, vector<33x8xf32>, vector<34x8xf32> -> vector<34x8xf32>
    %c5_153 = arith.constant 5 : index
    %c0_154 = arith.constant 0 : index
    %c0_155 = arith.constant 0 : index
    %236 = vector.load %arg8[%c5_153, %c0_154, %c0_155] : memref<8x33x8xf32, #tpu.memory_space<vmem>>, vector<1x33x8xf32>
    %237 = vector.shape_cast %236 : vector<1x33x8xf32> to vector<33x8xf32>
    %cst_156 = arith.constant dense<0.000000e+00> : vector<34x8xf32>
    %238 = tpu.matmul %207, %237, %cst_156 {dimension_numbers = #tpu.dot_dimension_numbers<[1], [0], [0], [1], [0, 0, 1, 1], [], []>} : vector<34x33xf32>, vector<33x8xf32>, vector<34x8xf32> -> vector<34x8xf32>
    %c5_157 = arith.constant 5 : index
    %c0_158 = arith.constant 0 : index
    %c0_159 = arith.constant 0 : index
    %239 = vector.load %arg9[%c5_157, %c0_158, %c0_159] : memref<8x33x8xf32, #tpu.memory_space<vmem>>, vector<1x33x8xf32>
    %240 = vector.shape_cast %239 : vector<1x33x8xf32> to vector<33x8xf32>
    %cst_160 = arith.constant dense<0.000000e+00> : vector<34x8xf32>
    %241 = tpu.matmul %207, %240, %cst_160 {dimension_numbers = #tpu.dot_dimension_numbers<[1], [0], [0], [1], [0, 0, 1, 1], [], []>} : vector<34x33xf32>, vector<33x8xf32>, vector<34x8xf32> -> vector<34x8xf32>
    %cst_161 = arith.constant dense<0.000000e+00> : vector<34x34xf32>
    %242 = tpu.matmul %235, %238, %cst_161 {dimension_numbers = #tpu.dot_dimension_numbers<[1], [1], [0], [0], [0, 0, 1, 0], [], []>} : vector<34x8xf32>, vector<34x8xf32>, vector<34x34xf32> -> vector<34x34xf32>
    %243 = arith.addf %242, %6 : vector<34x34xf32>
    %cst_162 = arith.constant dense<0xFF800000> : vector<34xf32>
    %244 = vector.multi_reduction <maximumf>, %243, %cst_162 [1] : vector<34x34xf32> to vector<34xf32>
    %245 = vector.shape_cast %244 : vector<34xf32> to vector<34x1xf32>
    %246 = vector.broadcast %245 : vector<34x1xf32> to vector<34x34xf32>
    %247 = arith.subf %243, %246 : vector<34x34xf32>
    %248 = math.exp %247 : vector<34x34xf32>
    %cst_163 = arith.constant dense<0.000000e+00> : vector<34xf32>
    %249 = vector.multi_reduction <add>, %248, %cst_163 [1] : vector<34x34xf32> to vector<34xf32>
    %250 = vector.shape_cast %249 : vector<34xf32> to vector<34x1xf32>
    %251 = tpu.reciprocal %250 {approx = true} : vector<34x1xf32> -> vector<34x1xf32>
    %252 = vector.broadcast %251 : vector<34x1xf32> to vector<34x34xf32>
    %253 = arith.mulf %248, %252 : vector<34x34xf32>
    %cst_164 = arith.constant dense<0.000000e+00> : vector<34x8xf32>
    %254 = tpu.matmul %253, %241, %cst_164 {dimension_numbers = #tpu.dot_dimension_numbers<[1], [0], [0], [1], [0, 0, 1, 1], [], []>} : vector<34x34xf32>, vector<34x8xf32>, vector<34x8xf32> -> vector<34x8xf32>
    %c5_165 = arith.constant 5 : index
    %c0_166 = arith.constant 0 : index
    %c0_167 = arith.constant 0 : index
    %255 = vector.load %arg10[%c5_165, %c0_166, %c0_167] : memref<8x8x32xf32, #tpu.memory_space<vmem>>, vector<1x8x32xf32>
    %256 = vector.shape_cast %255 : vector<1x8x32xf32> to vector<8x32xf32>
    %cst_168 = arith.constant dense<0.000000e+00> : vector<34x32xf32>
    %257 = tpu.matmul %254, %256, %cst_168 {dimension_numbers = #tpu.dot_dimension_numbers<[1], [0], [0], [1], [0, 0, 1, 1], [], []>} : vector<34x8xf32>, vector<8x32xf32>, vector<34x32xf32> -> vector<34x32xf32>
    %258 = arith.addf %232, %257 : vector<34x32xf32>
    %c6_169 = arith.constant 6 : index
    %c0_170 = arith.constant 0 : index
    %c0_171 = arith.constant 0 : index
    %259 = vector.load %arg7[%c6_169, %c0_170, %c0_171] : memref<8x33x8xf32, #tpu.memory_space<vmem>>, vector<1x33x8xf32>
    %260 = vector.shape_cast %259 : vector<1x33x8xf32> to vector<33x8xf32>
    %cst_172 = arith.constant dense<0.000000e+00> : vector<34x8xf32>
    %261 = tpu.matmul %207, %260, %cst_172 {dimension_numbers = #tpu.dot_dimension_numbers<[1], [0], [0], [1], [0, 0, 1, 1], [], []>} : vector<34x33xf32>, vector<33x8xf32>, vector<34x8xf32> -> vector<34x8xf32>
    %c6_173 = arith.constant 6 : index
    %c0_174 = arith.constant 0 : index
    %c0_175 = arith.constant 0 : index
    %262 = vector.load %arg8[%c6_173, %c0_174, %c0_175] : memref<8x33x8xf32, #tpu.memory_space<vmem>>, vector<1x33x8xf32>
    %263 = vector.shape_cast %262 : vector<1x33x8xf32> to vector<33x8xf32>
    %cst_176 = arith.constant dense<0.000000e+00> : vector<34x8xf32>
    %264 = tpu.matmul %207, %263, %cst_176 {dimension_numbers = #tpu.dot_dimension_numbers<[1], [0], [0], [1], [0, 0, 1, 1], [], []>} : vector<34x33xf32>, vector<33x8xf32>, vector<34x8xf32> -> vector<34x8xf32>
    %c6_177 = arith.constant 6 : index
    %c0_178 = arith.constant 0 : index
    %c0_179 = arith.constant 0 : index
    %265 = vector.load %arg9[%c6_177, %c0_178, %c0_179] : memref<8x33x8xf32, #tpu.memory_space<vmem>>, vector<1x33x8xf32>
    %266 = vector.shape_cast %265 : vector<1x33x8xf32> to vector<33x8xf32>
    %cst_180 = arith.constant dense<0.000000e+00> : vector<34x8xf32>
    %267 = tpu.matmul %207, %266, %cst_180 {dimension_numbers = #tpu.dot_dimension_numbers<[1], [0], [0], [1], [0, 0, 1, 1], [], []>} : vector<34x33xf32>, vector<33x8xf32>, vector<34x8xf32> -> vector<34x8xf32>
    %cst_181 = arith.constant dense<0.000000e+00> : vector<34x34xf32>
    %268 = tpu.matmul %261, %264, %cst_181 {dimension_numbers = #tpu.dot_dimension_numbers<[1], [1], [0], [0], [0, 0, 1, 0], [], []>} : vector<34x8xf32>, vector<34x8xf32>, vector<34x34xf32> -> vector<34x34xf32>
    %269 = arith.addf %268, %6 : vector<34x34xf32>
    %cst_182 = arith.constant dense<0xFF800000> : vector<34xf32>
    %270 = vector.multi_reduction <maximumf>, %269, %cst_182 [1] : vector<34x34xf32> to vector<34xf32>
    %271 = vector.shape_cast %270 : vector<34xf32> to vector<34x1xf32>
    %272 = vector.broadcast %271 : vector<34x1xf32> to vector<34x34xf32>
    %273 = arith.subf %269, %272 : vector<34x34xf32>
    %274 = math.exp %273 : vector<34x34xf32>
    %cst_183 = arith.constant dense<0.000000e+00> : vector<34xf32>
    %275 = vector.multi_reduction <add>, %274, %cst_183 [1] : vector<34x34xf32> to vector<34xf32>
    %276 = vector.shape_cast %275 : vector<34xf32> to vector<34x1xf32>
    %277 = tpu.reciprocal %276 {approx = true} : vector<34x1xf32> -> vector<34x1xf32>
    %278 = vector.broadcast %277 : vector<34x1xf32> to vector<34x34xf32>
    %279 = arith.mulf %274, %278 : vector<34x34xf32>
    %cst_184 = arith.constant dense<0.000000e+00> : vector<34x8xf32>
    %280 = tpu.matmul %279, %267, %cst_184 {dimension_numbers = #tpu.dot_dimension_numbers<[1], [0], [0], [1], [0, 0, 1, 1], [], []>} : vector<34x34xf32>, vector<34x8xf32>, vector<34x8xf32> -> vector<34x8xf32>
    %c6_185 = arith.constant 6 : index
    %c0_186 = arith.constant 0 : index
    %c0_187 = arith.constant 0 : index
    %281 = vector.load %arg10[%c6_185, %c0_186, %c0_187] : memref<8x8x32xf32, #tpu.memory_space<vmem>>, vector<1x8x32xf32>
    %282 = vector.shape_cast %281 : vector<1x8x32xf32> to vector<8x32xf32>
    %cst_188 = arith.constant dense<0.000000e+00> : vector<34x32xf32>
    %283 = tpu.matmul %280, %282, %cst_188 {dimension_numbers = #tpu.dot_dimension_numbers<[1], [0], [0], [1], [0, 0, 1, 1], [], []>} : vector<34x8xf32>, vector<8x32xf32>, vector<34x32xf32> -> vector<34x32xf32>
    %284 = arith.addf %258, %283 : vector<34x32xf32>
    %c7_189 = arith.constant 7 : index
    %c0_190 = arith.constant 0 : index
    %c0_191 = arith.constant 0 : index
    %285 = vector.load %arg7[%c7_189, %c0_190, %c0_191] : memref<8x33x8xf32, #tpu.memory_space<vmem>>, vector<1x33x8xf32>
    %286 = vector.shape_cast %285 : vector<1x33x8xf32> to vector<33x8xf32>
    %cst_192 = arith.constant dense<0.000000e+00> : vector<34x8xf32>
    %287 = tpu.matmul %207, %286, %cst_192 {dimension_numbers = #tpu.dot_dimension_numbers<[1], [0], [0], [1], [0, 0, 1, 1], [], []>} : vector<34x33xf32>, vector<33x8xf32>, vector<34x8xf32> -> vector<34x8xf32>
    %c7_193 = arith.constant 7 : index
    %c0_194 = arith.constant 0 : index
    %c0_195 = arith.constant 0 : index
    %288 = vector.load %arg8[%c7_193, %c0_194, %c0_195] : memref<8x33x8xf32, #tpu.memory_space<vmem>>, vector<1x33x8xf32>
    %289 = vector.shape_cast %288 : vector<1x33x8xf32> to vector<33x8xf32>
    %cst_196 = arith.constant dense<0.000000e+00> : vector<34x8xf32>
    %290 = tpu.matmul %207, %289, %cst_196 {dimension_numbers = #tpu.dot_dimension_numbers<[1], [0], [0], [1], [0, 0, 1, 1], [], []>} : vector<34x33xf32>, vector<33x8xf32>, vector<34x8xf32> -> vector<34x8xf32>
    %c7_197 = arith.constant 7 : index
    %c0_198 = arith.constant 0 : index
    %c0_199 = arith.constant 0 : index
    %291 = vector.load %arg9[%c7_197, %c0_198, %c0_199] : memref<8x33x8xf32, #tpu.memory_space<vmem>>, vector<1x33x8xf32>
    %292 = vector.shape_cast %291 : vector<1x33x8xf32> to vector<33x8xf32>
    %cst_200 = arith.constant dense<0.000000e+00> : vector<34x8xf32>
    %293 = tpu.matmul %207, %292, %cst_200 {dimension_numbers = #tpu.dot_dimension_numbers<[1], [0], [0], [1], [0, 0, 1, 1], [], []>} : vector<34x33xf32>, vector<33x8xf32>, vector<34x8xf32> -> vector<34x8xf32>
    %cst_201 = arith.constant dense<0.000000e+00> : vector<34x34xf32>
    %294 = tpu.matmul %287, %290, %cst_201 {dimension_numbers = #tpu.dot_dimension_numbers<[1], [1], [0], [0], [0, 0, 1, 0], [], []>} : vector<34x8xf32>, vector<34x8xf32>, vector<34x34xf32> -> vector<34x34xf32>
    %295 = arith.addf %294, %6 : vector<34x34xf32>
    %cst_202 = arith.constant dense<0xFF800000> : vector<34xf32>
    %296 = vector.multi_reduction <maximumf>, %295, %cst_202 [1] : vector<34x34xf32> to vector<34xf32>
    %297 = vector.shape_cast %296 : vector<34xf32> to vector<34x1xf32>
    %298 = vector.broadcast %297 : vector<34x1xf32> to vector<34x34xf32>
    %299 = arith.subf %295, %298 : vector<34x34xf32>
    %300 = math.exp %299 : vector<34x34xf32>
    %cst_203 = arith.constant dense<0.000000e+00> : vector<34xf32>
    %301 = vector.multi_reduction <add>, %300, %cst_203 [1] : vector<34x34xf32> to vector<34xf32>
    %302 = vector.shape_cast %301 : vector<34xf32> to vector<34x1xf32>
    %303 = tpu.reciprocal %302 {approx = true} : vector<34x1xf32> -> vector<34x1xf32>
    %304 = vector.broadcast %303 : vector<34x1xf32> to vector<34x34xf32>
    %305 = arith.mulf %300, %304 : vector<34x34xf32>
    %cst_204 = arith.constant dense<0.000000e+00> : vector<34x8xf32>
    %306 = tpu.matmul %305, %293, %cst_204 {dimension_numbers = #tpu.dot_dimension_numbers<[1], [0], [0], [1], [0, 0, 1, 1], [], []>} : vector<34x34xf32>, vector<34x8xf32>, vector<34x8xf32> -> vector<34x8xf32>
    %c7_205 = arith.constant 7 : index
    %c0_206 = arith.constant 0 : index
    %c0_207 = arith.constant 0 : index
    %307 = vector.load %arg10[%c7_205, %c0_206, %c0_207] : memref<8x8x32xf32, #tpu.memory_space<vmem>>, vector<1x8x32xf32>
    %308 = vector.shape_cast %307 : vector<1x8x32xf32> to vector<8x32xf32>
    %cst_208 = arith.constant dense<0.000000e+00> : vector<34x32xf32>
    %309 = tpu.matmul %306, %308, %cst_208 {dimension_numbers = #tpu.dot_dimension_numbers<[1], [0], [0], [1], [0, 0, 1, 1], [], []>} : vector<34x8xf32>, vector<8x32xf32>, vector<34x32xf32> -> vector<34x32xf32>
    %310 = arith.addf %284, %309 : vector<34x32xf32>
    %311 = arith.addf %179, %310 : vector<34x32xf32>
    %312 = vector.broadcast %184 : vector<1x32xf32> to vector<34x32xf32>
    %313 = arith.addf %311, %312 : vector<34x32xf32>
    %cst_209 = arith.constant dense<0.000000e+00> : vector<34xf32>
    %314 = vector.multi_reduction <add>, %313, %cst_209 [1] : vector<34x32xf32> to vector<34xf32>
    %315 = vector.shape_cast %314 : vector<34xf32> to vector<34x1xf32>
    %cst_210 = arith.constant 3.200000e+01 : f32
    %316 = vector.broadcast %cst_210 : f32 to vector<34x1xf32>
    %317 = arith.divf %315, %316 : vector<34x1xf32>
    %318 = vector.broadcast %317 : vector<34x1xf32> to vector<34x32xf32>
    %319 = arith.subf %313, %318 : vector<34x32xf32>
    %320 = arith.mulf %319, %319 : vector<34x32xf32>
    %cst_211 = arith.constant dense<0.000000e+00> : vector<34xf32>
    %321 = vector.multi_reduction <add>, %320, %cst_211 [1] : vector<34x32xf32> to vector<34xf32>
    %322 = vector.shape_cast %321 : vector<34xf32> to vector<34x1xf32>
    %cst_212 = arith.constant 3.200000e+01 : f32
    %323 = vector.broadcast %cst_212 : f32 to vector<34x1xf32>
    %324 = arith.divf %322, %323 : vector<34x1xf32>
    %cst_213 = arith.constant 9.99999974E-6 : f32
    %325 = vector.broadcast %cst_213 : f32 to vector<34x1xf32>
    %326 = arith.addf %324, %325 : vector<34x1xf32>
    %327 = math.rsqrt %326 : vector<34x1xf32>
    %328 = vector.broadcast %327 : vector<34x1xf32> to vector<34x32xf32>
    %329 = arith.mulf %319, %328 : vector<34x32xf32>
    %330 = vector.broadcast %182 : vector<1x32xf32> to vector<34x32xf32>
    %331 = arith.mulf %329, %330 : vector<34x32xf32>
    %332 = vector.broadcast %183 : vector<1x32xf32> to vector<34x32xf32>
    %333 = arith.addf %331, %332 : vector<34x32xf32>
    %c1_214 = arith.constant 1 : index
    %c0_215 = arith.constant 0 : index
    %c0_216 = arith.constant 0 : index
    %334 = vector.load %arg11[%c1_214, %c0_215, %c0_216] : memref<2x32x64xf32, #tpu.memory_space<vmem>>, vector<1x32x64xf32>
    %335 = vector.shape_cast %334 : vector<1x32x64xf32> to vector<32x64xf32>
    %cst_217 = arith.constant dense<0.000000e+00> : vector<34x64xf32>
    %336 = tpu.matmul %333, %335, %cst_217 {dimension_numbers = #tpu.dot_dimension_numbers<[1], [0], [0], [1], [0, 0, 1, 1], [], []>} : vector<34x32xf32>, vector<32x64xf32>, vector<34x64xf32> -> vector<34x64xf32>
    %337 = vector.broadcast %185 : vector<1x64xf32> to vector<34x64xf32>
    %338 = arith.addf %336, %337 : vector<34x64xf32>
    %cst_218 = arith.constant 5.000000e-01 : f32
    %339 = vector.broadcast %cst_218 : f32 to vector<34x64xf32>
    %340 = arith.mulf %339, %338 : vector<34x64xf32>
    %cst_219 = arith.constant 0.707106769 : f32
    %341 = vector.broadcast %cst_219 : f32 to vector<34x64xf32>
    %342 = arith.mulf %338, %341 : vector<34x64xf32>
    %343 = math.erf %342 : vector<34x64xf32>
    %cst_220 = arith.constant 1.000000e+00 : f32
    %344 = vector.broadcast %cst_220 : f32 to vector<34x64xf32>
    %345 = arith.addf %344, %343 : vector<34x64xf32>
    %346 = arith.mulf %340, %345 : vector<34x64xf32>
    %c1_221 = arith.constant 1 : index
    %c0_222 = arith.constant 0 : index
    %c0_223 = arith.constant 0 : index
    %347 = vector.load %arg12[%c1_221, %c0_222, %c0_223] : memref<2x64x32xf32, #tpu.memory_space<vmem>>, vector<1x64x32xf32>
    %348 = vector.shape_cast %347 : vector<1x64x32xf32> to vector<64x32xf32>
    %cst_224 = arith.constant dense<0.000000e+00> : vector<34x32xf32>
    %349 = tpu.matmul %346, %348, %cst_224 {dimension_numbers = #tpu.dot_dimension_numbers<[1], [0], [0], [1], [0, 0, 1, 1], [], []>} : vector<34x64xf32>, vector<64x32xf32>, vector<34x32xf32> -> vector<34x32xf32>
    %350 = arith.addf %313, %349 : vector<34x32xf32>
    %351 = vector.broadcast %186 : vector<1x32xf32> to vector<34x32xf32>
    %352 = arith.addf %350, %351 : vector<34x32xf32>
    %c14 = arith.constant 14 : index
    %c0_225 = arith.constant 0 : index
    %353 = vector.load %arg16[%c14, %c0_225] : memref<18x128xf32, #tpu.memory_space<vmem>>, vector<1x32xf32>
    %c15 = arith.constant 15 : index
    %c0_226 = arith.constant 0 : index
    %354 = vector.load %arg16[%c15, %c0_226] : memref<18x128xf32, #tpu.memory_space<vmem>>, vector<1x32xf32>
    %c16 = arith.constant 16 : index
    %c0_227 = arith.constant 0 : index
    %355 = vector.load %arg16[%c16, %c0_227] : memref<18x128xf32, #tpu.memory_space<vmem>>, vector<1x64xf32>
    %c17 = arith.constant 17 : index
    %c0_228 = arith.constant 0 : index
    %356 = vector.load %arg16[%c17, %c0_228] : memref<18x128xf32, #tpu.memory_space<vmem>>, vector<1x4xf32>
    %c0_229 = arith.constant 0 : index
    %c0_230 = arith.constant 0 : index
    %357 = vector.load %arg5[%c0_229, %c0_230] : memref<16x34xf32, #tpu.memory_space<vmem>>, vector<16x34xf32>
    %cst_231 = arith.constant dense<0.000000e+00> : vector<16x32xf32>
    %358 = tpu.matmul %357, %352, %cst_231 {dimension_numbers = #tpu.dot_dimension_numbers<[1], [0], [0], [1], [0, 0, 1, 1], [], []>} : vector<16x34xf32>, vector<34x32xf32>, vector<16x32xf32> -> vector<16x32xf32>
    %cst_232 = arith.constant dense<0.000000e+00> : vector<16xf32>
    %359 = vector.multi_reduction <add>, %358, %cst_232 [1] : vector<16x32xf32> to vector<16xf32>
    %360 = vector.shape_cast %359 : vector<16xf32> to vector<16x1xf32>
    %cst_233 = arith.constant 3.200000e+01 : f32
    %361 = vector.broadcast %cst_233 : f32 to vector<16x1xf32>
    %362 = arith.divf %360, %361 : vector<16x1xf32>
    %363 = vector.broadcast %362 : vector<16x1xf32> to vector<16x32xf32>
    %364 = arith.subf %358, %363 : vector<16x32xf32>
    %365 = arith.mulf %364, %364 : vector<16x32xf32>
    %cst_234 = arith.constant dense<0.000000e+00> : vector<16xf32>
    %366 = vector.multi_reduction <add>, %365, %cst_234 [1] : vector<16x32xf32> to vector<16xf32>
    %367 = vector.shape_cast %366 : vector<16xf32> to vector<16x1xf32>
    %cst_235 = arith.constant 3.200000e+01 : f32
    %368 = vector.broadcast %cst_235 : f32 to vector<16x1xf32>
    %369 = arith.divf %367, %368 : vector<16x1xf32>
    %cst_236 = arith.constant 9.99999974E-6 : f32
    %370 = vector.broadcast %cst_236 : f32 to vector<16x1xf32>
    %371 = arith.addf %369, %370 : vector<16x1xf32>
    %372 = math.rsqrt %371 : vector<16x1xf32>
    %373 = vector.broadcast %372 : vector<16x1xf32> to vector<16x32xf32>
    %374 = arith.mulf %364, %373 : vector<16x32xf32>
    %375 = vector.broadcast %353 : vector<1x32xf32> to vector<16x32xf32>
    %376 = arith.mulf %374, %375 : vector<16x32xf32>
    %377 = vector.broadcast %354 : vector<1x32xf32> to vector<16x32xf32>
    %378 = arith.addf %376, %377 : vector<16x32xf32>
    %c0_237 = arith.constant 0 : index
    %c0_238 = arith.constant 0 : index
    %379 = vector.load %arg1[%c0_237, %c0_238] : memref<16x17xf32, #tpu.memory_space<vmem>>, vector<16x17xf32>
    %c0_239 = arith.constant 0 : index
    %c0_240 = arith.constant 0 : index
    %380 = vector.load %arg13[%c0_239, %c0_240] : memref<17x32xf32, #tpu.memory_space<vmem>>, vector<17x32xf32>
    %cst_241 = arith.constant dense<0.000000e+00> : vector<16x32xf32>
    %381 = tpu.matmul %379, %380, %cst_241 {dimension_numbers = #tpu.dot_dimension_numbers<[1], [0], [0], [1], [0, 0, 1, 1], [], []>} : vector<16x17xf32>, vector<17x32xf32>, vector<16x32xf32> -> vector<16x32xf32>
    %cst_242 = arith.constant 0.000000e+00 : f32
    %382 = vector.broadcast %cst_242 : f32 to vector<16x32xf32>
    %383 = arith.maximumf %381, %382 : vector<16x32xf32>
    %384 = arith.mulf %378, %383 : vector<16x32xf32>
    %c0_243 = arith.constant 0 : index
    %c0_244 = arith.constant 0 : index
    %385 = vector.load %arg14[%c0_243, %c0_244] : memref<32x64xf32, #tpu.memory_space<vmem>>, vector<32x64xf32>
    %cst_245 = arith.constant dense<0.000000e+00> : vector<16x64xf32>
    %386 = tpu.matmul %384, %385, %cst_245 {dimension_numbers = #tpu.dot_dimension_numbers<[1], [0], [0], [1], [0, 0, 1, 1], [], []>} : vector<16x32xf32>, vector<32x64xf32>, vector<16x64xf32> -> vector<16x64xf32>
    %387 = vector.broadcast %355 : vector<1x64xf32> to vector<16x64xf32>
    %388 = arith.addf %386, %387 : vector<16x64xf32>
    %cst_246 = arith.constant 0.000000e+00 : f32
    %389 = vector.broadcast %cst_246 : f32 to vector<16x64xf32>
    %390 = arith.maximumf %388, %389 : vector<16x64xf32>
    %c0_247 = arith.constant 0 : index
    %c0_248 = arith.constant 0 : index
    %391 = vector.load %arg15[%c0_247, %c0_248] : memref<64x4xf32, #tpu.memory_space<vmem>>, vector<64x4xf32>
    %cst_249 = arith.constant dense<0.000000e+00> : vector<16x4xf32>
    %392 = tpu.matmul %390, %391, %cst_249 {dimension_numbers = #tpu.dot_dimension_numbers<[1], [0], [0], [1], [0, 0, 1, 1], [], []>} : vector<16x64xf32>, vector<64x4xf32>, vector<16x4xf32> -> vector<16x4xf32>
    %393 = vector.broadcast %356 : vector<1x4xf32> to vector<16x4xf32>
    %394 = arith.addf %392, %393 : vector<16x4xf32>
    %c0_250 = arith.constant 0 : index
    %c0_251 = arith.constant 0 : index
    %395 = vector.load %arg6[%c0_250, %c0_251] : memref<2x16xf32, #tpu.memory_space<vmem>>, vector<2x16xf32>
    %cst_252 = arith.constant dense<0.000000e+00> : vector<2x4xf32>
    %396 = tpu.matmul %395, %394, %cst_252 {dimension_numbers = #tpu.dot_dimension_numbers<[1], [0], [0], [1], [0, 0, 1, 1], [], []>} : vector<2x16xf32>, vector<16x4xf32>, vector<2x4xf32> -> vector<2x4xf32>
    %c0_253 = arith.constant 0 : index
    %c0_254 = arith.constant 0 : index
    %397 = vector.load %arg17[%c0_253, %c0_254] : memref<2x4xf32, #tpu.memory_space<vmem>>, vector<2x4xf32>
    tpu.vector_store %arg17[%c0_253, %c0_254], %396 {strides = array<i32>} : memref<2x4xf32, #tpu.memory_space<vmem>>, vector<2x4xf32>,
    return
  }
}

</mosaic_0001>

<llo_original>
// kernel: _lambda_.1
$region0: #{_lambda_.1}
  #allocation0 [shape = 'u32[]', space=smem, size = 0x4, offset = 0x4, fixed_abs, tag = 'smem constant byte address 0x4 - core index']
  #allocation1 [shape = 'u32[144,128]{1,0:T(1,128)}', space=vmem, size = 0x12000, scoped, tag = 'internal scratch']
  %s0 = inlined_call_operand.vmem [shape: f32[34,64], index: 0, kind: input, shape index: {}]
  %s1 = inlined_call_operand.vmem [shape: f32[16,17], index: 1, kind: input, shape index: {}]
  %s2 = inlined_call_operand.vmem [shape: f32[64,32], index: 2, kind: input, shape index: {}]
  %s3 = inlined_call_operand.vmem [shape: f32[34,32], index: 3, kind: input, shape index: {}]
  %s4 = inlined_call_operand.vmem [shape: f32[34,34], index: 4, kind: input, shape index: {}]
  %s5 = inlined_call_operand.vmem [shape: f32[16,34], index: 5, kind: input, shape index: {}]
  %s6 = inlined_call_operand.vmem [shape: f32[2,16], index: 6, kind: input, shape index: {}]
  %s7 = inlined_call_operand.vmem [shape: f32[8,33,8], index: 7, kind: input, shape index: {}]
  %s8 = inlined_call_operand.vmem [shape: f32[8,33,8], index: 8, kind: input, shape index: {}]
  %s9 = inlined_call_operand.vmem [shape: f32[8,33,8], index: 9, kind: input, shape index: {}]
  %s10 = inlined_call_operand.vmem [shape: f32[8,8,32], index: 10, kind: input, shape index: {}]
  %s11 = inlined_call_operand.vmem [shape: f32[2,32,64], index: 11, kind: input, shape index: {}]
  %s12 = inlined_call_operand.vmem [shape: f32[2,64,32], index: 12, kind: input, shape index: {}]
  %s13 = inlined_call_operand.vmem [shape: f32[17,32], index: 13, kind: input, shape index: {}]
  %s14 = inlined_call_operand.vmem [shape: f32[32,64], index: 14, kind: input, shape index: {}]
  %s15 = inlined_call_operand.vmem [shape: f32[64,4], index: 15, kind: input, shape index: {}]
  %s16 = inlined_call_operand.vmem [shape: f32[18,128], index: 16, kind: input, shape index: {}]
  %s17 = inlined_call_operand.hbm [shape: f32[2,4], index: 17, kind: output, shape index: {}]
  %s18 = sld [smem:[#allocation0]]
  $region78: #{_lambda_.1} parent=0
    _
  %s20 = ssub.s32 1, %s18
  %s21 = scalar_select 0, %s20, %s18
  $region1: #{_lambda_.1} parent=0
    #allocation2 [shape = 'u8[1024]{0}', space=vmem, size = 0x400, scoped, tag = 'output window, operand 0, single buffered']
    #allocation3 [shape = 's32[1]{0}', space=sflag, size = 0x4, scoped, tag = 'scoped memory for _lambda_.1']
    %22 = vsyncpa [#allocation3], 0
    // Predicated region
    $region2: #{_lambda_.1} parent=1 // pred_check
      _
    $region3: #{_lambda_.1} parent=1 // pred_check_branch
      %24 = sbr.rel (0) target = $region5
    $region4: #{_lambda_.1} parent=1 // pred_region
      _
    $region5: #{_lambda_.1} parent=1 // pred_fallthru
      _
    // Predicated region
    $region6: #{_lambda_.1} parent=1 // pred_check
      _
    $region7: #{_lambda_.1} parent=1 // pred_check_branch
      %26 = sbr.rel (0) target = $region9
    $region8: #{_lambda_.1} parent=1 // pred_region
      _
    $region9: #{_lambda_.1} parent=1 // pred_fallthru
      _
    // Predicated region
    $region10: #{_lambda_.1} parent=1 // pred_check
      _
    $region11: #{_lambda_.1} parent=1 // pred_check_branch
      %28 = sbr.rel (0) target = $region13
    $region12: #{_lambda_.1} parent=1 // pred_region
      _
    $region13: #{_lambda_.1} parent=1 // pred_fallthru
      _
    // Predicated region
    $region14: #{_lambda_.1} parent=1 // pred_check
      _
    $region15: #{_lambda_.1} parent=1 // pred_check_branch
      %30 = sbr.rel (0) target = $region17
    $region16: #{_lambda_.1} parent=1 // pred_region
      _
    $region17: #{_lambda_.1} parent=1 // pred_fallthru
      _
    // Predicated region
    $region18: #{_lambda_.1} parent=1 // pred_check
      _
    $region19: #{_lambda_.1} parent=1 // pred_check_branch
      %32 = sbr.rel (0) target = $region21
    $region20: #{_lambda_.1} parent=1 // pred_region
      _
    $region21: #{_lambda_.1} parent=1 // pred_fallthru
      _
    // Predicated region
    $region22: #{_lambda_.1} parent=1 // pred_check
      _
    $region23: #{_lambda_.1} parent=1 // pred_check_branch
      %34 = sbr.rel (0) target = $region25
    $region24: #{_lambda_.1} parent=1 // pred_region
      _
    $region25: #{_lambda_.1} parent=1 // pred_fallthru
      _
    // Predicated region
    $region26: #{_lambda_.1} parent=1 // pred_check
      _
    $region27: #{_lambda_.1} parent=1 // pred_check_branch
      %36 = sbr.rel (0) target = $region29
    $region28: #{_lambda_.1} parent=1 // pred_region
      _
    $region29: #{_lambda_.1} parent=1 // pred_fallthru
      _
    // Predicated region
    $region30: #{_lambda_.1} parent=1 // pred_check
      _
    $region31: #{_lambda_.1} parent=1 // pred_check_branch
      %38 = sbr.rel (0) target = $region33
    $region32: #{_lambda_.1} parent=1 // pred_region
      _
    $region33: #{_lambda_.1} parent=1 // pred_fallthru
      _
    // Predicated region
    $region34: #{_lambda_.1} parent=1 // pred_check
      _
    $region35: #{_lambda_.1} parent=1 // pred_check_branch
      %40 = sbr.rel (0) target = $region37
    $region36: #{_lambda_.1} parent=1 // pred_region
      _
    $region37: #{_lambda_.1} parent=1 // pred_fallthru
      _
    // Predicated region
    $region38: #{_lambda_.1} parent=1 // pred_check
      _
    $region39: #{_lambda_.1} parent=1 // pred_check_branch
      %42 = sbr.rel (0) target = $region41
    $region40: #{_lambda_.1} parent=1 // pred_region
      _
    $region41: #{_lambda_.1} parent=1 // pred_fallthru
      _
    // Predicated region
    $region42: #{_lambda_.1} parent=1 // pred_check
      _
    $region43: #{_lambda_.1} parent=1 // pred_check_branch
      %44 = sbr.rel (0) target = $region45
    $region44: #{_lambda_.1} parent=1 // pred_region
      _
    $region45: #{_lambda_.1} parent=1 // pred_fallthru
      _
    // Predicated region
    $region46: #{_lambda_.1} parent=1 // pred_check
      _
    $region47: #{_lambda_.1} parent=1 // pred_check_branch
      %46 = sbr.rel (0) target = $region49
    $region48: #{_lambda_.1} parent=1 // pred_region
      _
    $region49: #{_lambda_.1} parent=1 // pred_fallthru
      _
    // Predicated region
    $region50: #{_lambda_.1} parent=1 // pred_check
      _
    $region51: #{_lambda_.1} parent=1 // pred_check_branch
      %48 = sbr.rel (0) target = $region53
    $region52: #{_lambda_.1} parent=1 // pred_region
      _
    $region53: #{_lambda_.1} parent=1 // pred_fallthru
      _
    // Predicated region
    $region54: #{_lambda_.1} parent=1 // pred_check
      _
    $region55: #{_lambda_.1} parent=1 // pred_check_branch
      %50 = sbr.rel (0) target = $region57
    $region56: #{_lambda_.1} parent=1 // pred_region
      _
    $region57: #{_lambda_.1} parent=1 // pred_fallthru
      _
    // Predicated region
    $region58: #{_lambda_.1} parent=1 // pred_check
      _
    $region59: #{_lambda_.1} parent=1 // pred_check_branch
      %52 = sbr.rel (0) target = $region61
    $region60: #{_lambda_.1} parent=1 // pred_region
      _
    $region61: #{_lambda_.1} parent=1 // pred_fallthru
      _
    // Predicated region
    $region62: #{_lambda_.1} parent=1 // pred_check
      _
    $region63: #{_lambda_.1} parent=1 // pred_check_branch
      %54 = sbr.rel (0) target = $region65
    $region64: #{_lambda_.1} parent=1 // pred_region
      _
    $region65: #{_lambda_.1} parent=1 // pred_fallthru
      _
    // Predicated region
    $region66: #{_lambda_.1} parent=1 // pred_check
      _
    $region67: #{_lambda_.1} parent=1 // pred_check_branch
      %56 = sbr.rel (0) target = $region69
    $region68: #{_lambda_.1} parent=1 // pred_region
      _
    $region69: #{_lambda_.1} parent=1 // pred_fallthru
      _
    %v57 = vld [vmem:[%s0] sm:$0xff]
    %v58 = vld [vmem:[%s0 + $0x8] sm:$0xff]
    %v59 = vld [vmem:[%s0 + $0x10] sm:$0xff]
    %v60 = vld [vmem:[%s0 + $0x18] sm:$0xff]
    %v61 = vld [vmem:[%s0 + $0x20] sm:$0x3]
    %v62 = vld [vmem:[%s2] sm:$0xff]
    %v63 = vld [vmem:[%s2 + $0x8] sm:$0xff]
    %v64 = vld [vmem:[%s2 + $0x10] sm:$0xff]
    %v65 = vld [vmem:[%s2 + $0x18] sm:$0xff]
    %v66 = vld [vmem:[%s2 + $0x20] sm:$0xff]
    %v67 = vld [vmem:[%s2 + $0x28] sm:$0xff]
    %v68 = vld [vmem:[%s2 + $0x30] sm:$0xff]
    %v69 = vld [vmem:[%s2 + $0x38] sm:$0xff]
    %v70 = vld [vmem:[%s3] sm:$0xff]
    %v71 = vld [vmem:[%s3 + $0x8] sm:$0xff]
    %v72 = vld [vmem:[%s3 + $0x10] sm:$0xff]
    %v73 = vld [vmem:[%s3 + $0x18] sm:$0xff]
    %v74 = vld [vmem:[%s3 + $0x20] sm:$0x3]
    %vm75 = vcmask 523264
    %v77 = vsel %vm75, %v57, 0
    %v80 = vsel %vm75, %v58, 0
    %v83 = vsel %vm75, %v59, 0
    %v86 = vsel %vm75, %v60, 0
    %v89 = vsel %vm75, %v61, 0
    %91 = vmatprep.subr.mxu0 0.0
    %92 = vmatpush1.msra.mxu0 %v62
    %93 = vmatprep.subr.mxu0 0.0
    %94 = vmatpush1.msra.mxu0 %v63
    %95 = vmatprep.subr.mxu0 0.0
    %96 = vmatpush1.msra.mxu0 %v64
    %97 = vmatprep.subr.mxu0 0.0
    %98 = vmatpush1.msra.mxu0 %v65
    %99 = vmatprep.subr.mxu0 0.0
    %100 = vmatpush1.msra.mxu0 %v66
    %101 = vmatprep.subr.mxu0 0.0
    %102 = vmatpush1.msra.mxu0 %v67
    %103 = vmatprep.subr.mxu0 0.0
    %104 = vmatpush1.msra.mxu0 %v68
    %105 = vmatprep.subr.mxu0 0.0
    %106 = vmatpush1.msra.mxu0 %v69
    %107 = vmatprep.subr.mxu0 0.0
    %108 = vmatpush1.msra.mxu0 0.0
    %109 = vmatprep.subr.mxu0 0.0
    %110 = vmatpush1.msra.mxu0 0.0
    %111 = vmatprep.subr.mxu0 0.0
    %112 = vmatpush1.msra.mxu0 0.0
    %113 = vmatprep.subr.mxu0 0.0
    %114 = vmatpush1.msra.mxu0 0.0
    %115 = vmatprep.subr.mxu0 0.0
    %116 = vmatpush1.msra.mxu0 0.0
    %117 = vmatprep.subr.mxu0 0.0
    %118 = vmatpush1.msra.mxu0 0.0
    %119 = vmatprep.subr.mxu0 0.0
    %120 = vmatpush1.msra.mxu0 0.0
    %121 = vmatprep.subr.mxu0 0.0
    %122 = vmatpush1.msra.mxu0 0.0
    %123 = vmatprep.subr.mxu0 0.0
    %124 = vmatpush1.msra.mxu0 0.0
    %125 = vmatprep.subr.mxu0 0.0
    %126 = vmatpush1.msra.mxu0 0.0
    %127 = vmatprep.subr.mxu0 0.0
    %128 = vmatpush1.msra.mxu0 0.0
    %129 = vmatprep.subr.mxu0 0.0
    %130 = vmatpush1.msra.mxu0 0.0
    %131 = vmatprep.subr.mxu0 0.0
    %132 = vmatpush1.msra.mxu0 0.0
    %133 = vmatprep.subr.mxu0 0.0
    %134 = vmatpush1.msra.mxu0 0.0
    %135 = vmatprep.subr.mxu0 0.0
    %136 = vmatpush1.msra.mxu0 0.0
    %137 = vmatprep.subr.mxu0 0.0
    %138 = vmatpush1.msra.mxu0 0.0
    %139 = vmatprep.subr.mxu0 0.0
    %140 = vmatpush1.msra.mxu0 0.0
    %141 = vmatprep.subr.mxu0 0.0
    %142 = vmatpush1.msra.mxu0 0.0
    %143 = vmatprep.subr.mxu0 0.0
    %144 = vmatpush1.msra.mxu0 0.0
    %145 = vmatprep.subr.mxu0 0.0
    %146 = vmatpush1.msra.mxu0 0.0
    %147 = vmatprep.subr.mxu0 0.0
    %148 = vmatpush1.msra.mxu0 0.0
    %149 = vmatprep.subr.mxu0 0.0
    %150 = vmatpush1.msra.mxu0 0.0
    %151 = vmatprep.subr.mxu0 0.0
    %152 = vmatpush1.msra.mxu0 0.0
    %153 = vmatprep.subr.mxu0 0.0
    %154 = vmatpush1.msra.mxu0 0.0
    %155 = vmatprep.mubr.f32.mxu0 0.0
    %156 = vmatmul.mubr.f32.gmra.mrb[0].mxu0 %v77
    %v157 = vpop.f32.mrb[0].mxu0
    %v158 = vadd.f32 %v70, %v157
    %v159 = vpop.f32.mrb[0].mxu0
    %160 = vmatprep.mubr.f32.mxu0 0.0
    %161 = vmatmul.mubr.f32.gmra.mrb[0].mxu0 %v80
    %v162 = vpop.f32.mrb[0].mxu0
    %v163 = vadd.f32 %v71, %v162
    %v164 = vpop.f32.mrb[0].mxu0
    %165 = vmatprep.mubr.f32.mxu0 0.0
    %166 = vmatmul.mubr.f32.gmra.mrb[0].mxu0 %v83
    %v167 = vpop.f32.mrb[0].mxu0
    %v168 = vadd.f32 %v72, %v167
    %v169 = vpop.f32.mrb[0].mxu0
    %170 = vmatprep.mubr.f32.mxu0 0.0
    %171 = vmatmul.mubr.f32.gmra.mrb[0].mxu0 %v86
    %v172 = vpop.f32.mrb[0].mxu0
    %v173 = vadd.f32 %v73, %v172
    %v174 = vpop.f32.mrb[0].mxu0
    %175 = vmatprep.mubr.f32.mxu0 0.0
    %176 = vmatmul.mubr.f32.gmra.mrb[0].mxu0 %v89
    %v177 = vpop.f32.mrb[0].mxu0
    %v178 = vadd.f32 %v74, %v177
    %v179 = vpop.f32.mrb[0].mxu0
    %180 = vdwg.mxu0
    %v181 = vld [vmem:[%s4] sm:$0xff]
    %v182 = vld [vmem:[%s4 + $0x8] sm:$0xff]
    %v183 = vld [vmem:[%s4 + $0x10] sm:$0xff]
    %v184 = vld [vmem:[%s4 + $0x18] sm:$0xff]
    %v185 = vld [vmem:[%s4 + $0x20] sm:$0x3]
    %v186 = vld [vmem:[%s16] sm:$0x1]
    %v187 = vld [vmem:[%s16 + $0x1] sm:$0x1]
    %v188 = vld [vmem:[%s16 + $0x2] sm:$0x1]
    %v189 = vld [vmem:[%s16 + $0x3] sm:$0x1]
    %v190 = vld [vmem:[%s16 + $0x4] sm:$0x1]
    %v191 = vld [vmem:[%s16 + $0x5] sm:$0x1]
    %v192 = vld [vmem:[%s16 + $0x6] sm:$0x1]
    %vm193 = vcmask 261120
    %v194 = vsel %vm193, %v158, 0.0
    %195 = vadd.xlane.f32.xlu0 %v194
    %v196 = vpop.xlane.xlu0 %195
    %v197 = vsel %vm193, %v163, 0.0
    %198 = vadd.xlane.f32.xlu0 %v197
    %v199 = vpop.xlane.xlu0 %198
    %v200 = vsel %vm193, %v168, 0.0
    %201 = vadd.xlane.f32.xlu0 %v200
    %v202 = vpop.xlane.xlu0 %201
    %v203 = vsel %vm193, %v173, 0.0
    %204 = vadd.xlane.f32.xlu0 %v203
    %v205 = vpop.xlane.xlu0 %204
    %vm206 = vcmask 254976
    %v207 = vsel %vm206, %v178, 0.0
    %208 = vadd.xlane.f32.xlu0 %v207
    %v209 = vpop.xlane.xlu0 %208
    %v210 = vrcp.pop 32.0
    %v211 = vmul.f32 %v196, %v210
    %v212 = vmul.f32 %v199, %v210
    %v213 = vmul.f32 %v202, %v210
    %v214 = vmul.f32 %v205, %v210
    %v215 = vmul.f32 %v209, %v210
    %v216 = vsub.f32 %v158, %v211
    %v217 = vsub.f32 %v163, %v212
    %v218 = vsub.f32 %v168, %v213
    %v219 = vsub.f32 %v173, %v214
    %v220 = vsub.f32 %v178, %v215
    %v221 = vmul.f32 %v216, %v216
    %v222 = vmul.f32 %v217, %v217
    %v223 = vmul.f32 %v218, %v218
    %v224 = vmul.f32 %v219, %v219
    %v225 = vmul.f32 %v220, %v220
    %v226 = vsel %vm193, %v221, 0.0
    %227 = vadd.xlane.f32.xlu0 %v226
    %v228 = vpop.xlane.xlu0 %227
    %v229 = vsel %vm193, %v222, 0.0
    %230 = vadd.xlane.f32.xlu0 %v229
    %v231 = vpop.xlane.xlu0 %230
    %v232 = vsel %vm193, %v223, 0.0
    %233 = vadd.xlane.f32.xlu0 %v232
    %v234 = vpop.xlane.xlu0 %233
    %v235 = vsel %vm193, %v224, 0.0
    %236 = vadd.xlane.f32.xlu0 %v235
    %v237 = vpop.xlane.xlu0 %236
    %v238 = vsel %vm206, %v225, 0.0
    %239 = vadd.xlane.f32.xlu0 %v238
    %v240 = vpop.xlane.xlu0 %239
    %v241 = vmul.f32 %v228, %v210
    %v242 = vmul.f32 %v231, %v210
    %v243 = vmul.f32 %v234, %v210
    %v244 = vmul.f32 %v237, %v210
    %v245 = vmul.f32 %v240, %v210
    %v246 = vadd.f32 %v241, 1e-05
    %v247 = vadd.f32 %v242, 1e-05
    %v248 = vadd.f32 %v243, 1e-05
    %v249 = vadd.f32 %v244, 1e-05
    %v250 = vadd.f32 %v245, 1e-05
    %v251 = vrsqrt.pop %v246
    %v252 = vrsqrt.pop %v247
    %v253 = vrsqrt.pop %v248
    %v254 = vrsqrt.pop %v249
    %v255 = vrsqrt.pop %v250
    %v256 = vmul.f32 %v216, %v251
    %v257 = vmul.f32 %v217, %v252
    %v258 = vmul.f32 %v218, %v253
    %v259 = vmul.f32 %v219, %v254
    %v260 = vmul.f32 %v220, %v255
    %v261 = vlaneseq
    %v262 = vshrl.u32 %v261, 7
    %v263 = vsub.s32 0, %v262
    %v264 = vrot.slane %v186, %v263
    %v265 = vmul.f32 %v256, %v264
    %v266 = vmul.f32 %v257, %v264
    %v267 = vmul.f32 %v258, %v264
    %v268 = vmul.f32 %v259, %v264
    %v269 = vmul.f32 %v260, %v264
    %v270 = vlaneseq
    %v271 = vshrl.u32 %v270, 7
    %v272 = vsub.s32 0, %v271
    %v273 = vrot.slane %v187, %v272
    %v274 = vadd.f32 %v265, %v273
    %v275 = vadd.f32 %v266, %v273
    %v276 = vadd.f32 %v267, %v273
    %v277 = vadd.f32 %v268, %v273
    %v278 = vadd.f32 %v269, %v273
    %v279 = vsel %vm193, %v274, 1.0
    %v280 = vsel %vm193, %v275, 1.0
    %v281 = vsel %vm193, %v276, 1.0
    %v282 = vsel %vm193, %v277, 1.0
    %v283 = vsel %vm193, %v278, 1.0
    %v284 = vld [vmem:[%s7] sm:$0xff]
    %v285 = vld [vmem:[%s7 + $0x8] sm:$0xff]
    %v286 = vld [vmem:[%s7 + $0x10] sm:$0xff]
    %v287 = vld [vmem:[%s7 + $0x18] sm:$0xff]
    %v288 = vld [vmem:[%s7 + $0x20] sm:$0x1]
    %vm289 = vcmask 269312
    %v291 = vsel %vm289, %v279, 0
    %v294 = vsel %vm289, %v280, 0
    %v297 = vsel %vm289, %v281, 0
    %v300 = vsel %vm289, %v282, 0
    %v303 = vsel %vm289, %v283, 0
    %vm305 = vcmask 1040384
    %v307 = vsel %vm305, %v288, 0
    %309 = vmatprep.subr.mxu0 0.0
    %310 = vmatpush1.msra.mxu0 %v284
    %311 = vmatprep.subr.mxu0 0.0
    %312 = vmatpush1.msra.mxu0 %v285
    %313 = vmatprep.subr.mxu0 0.0
    %314 = vmatpush1.msra.mxu0 %v286
    %315 = vmatprep.subr.mxu0 0.0
    %316 = vmatpush1.msra.mxu0 %v287
    %317 = vmatprep.subr.mxu0 0.0
    %318 = vmatpush1.msra.mxu0 %v307
    %319 = vmatprep.subr.mxu0 0.0
    %320 = vmatpush1.msra.mxu0 0.0
    %321 = vmatprep.subr.mxu0 0.0
    %322 = vmatpush1.msra.mxu0 0.0
    %323 = vmatprep.subr.mxu0 0.0
    %324 = vmatpush1.msra.mxu0 0.0
    %325 = vmatprep.subr.mxu0 0.0
    %326 = vmatpush1.msra.mxu0 0.0
    %327 = vmatprep.subr.mxu0 0.0
    %328 = vmatpush1.msra.mxu0 0.0
    %329 = vmatprep.subr.mxu0 0.0
    %330 = vmatpush1.msra.mxu0 0.0
    %331 = vmatprep.subr.mxu0 0.0
    %332 = vmatpush1.msra.mxu0 0.0
    %333 = vmatprep.subr.mxu0 0.0
    %334 = vmatpush1.msra.mxu0 0.0
    %335 = vmatprep.subr.mxu0 0.0
    %336 = vmatpush1.msra.mxu0 0.0
    %337 = vmatprep.subr.mxu0 0.0
    %338 = vmatpush1.msra.mxu0 0.0
    %339 = vmatprep.subr.mxu0 0.0
    %340 = vmatpush1.msra.mxu0 0.0
    %341 = vmatprep.subr.mxu0 0.0
    %342 = vmatpush1.msra.mxu0 0.0
    %343 = vmatprep.subr.mxu0 0.0
    %344 = vmatpush1.msra.mxu0 0.0
    %345 = vmatprep.subr.mxu0 0.0
    %346 = vmatpush1.msra.mxu0 0.0
    %347 = vmatprep.subr.mxu0 0.0
    %348 = vmatpush1.msra.mxu0 0.0
    %349 = vmatprep.subr.mxu0 0.0
    %350 = vmatpush1.msra.mxu0 0.0
    %351 = vmatprep.subr.mxu0 0.0
    %352 = vmatpush1.msra.mxu0 0.0
    %353 = vmatprep.subr.mxu0 0.0
    %354 = vmatpush1.msra.mxu0 0.0
    %355 = vmatprep.subr.mxu0 0.0
    %356 = vmatpush1.msra.mxu0 0.0
    %357 = vmatprep.subr.mxu0 0.0
    %358 = vmatpush1.msra.mxu0 0.0
    %359 = vmatprep.subr.mxu0 0.0
    %360 = vmatpush1.msra.mxu0 0.0
    %361 = vmatprep.subr.mxu0 0.0
    %362 = vmatpush1.msra.mxu0 0.0
    %363 = vmatprep.subr.mxu0 0.0
    %364 = vmatpush1.msra.mxu0 0.0
    %365 = vmatprep.subr.mxu0 0.0
    %366 = vmatpush1.msra.mxu0 0.0
    %367 = vmatprep.subr.mxu0 0.0
    %368 = vmatpush1.msra.mxu0 0.0
    %369 = vmatprep.subr.mxu0 0.0
    %370 = vmatpush1.msra.mxu0 0.0
    %371 = vmatprep.subr.mxu0 0.0
    %372 = vmatpush1.msra.mxu0 0.0
    %373 = vmatprep.mubr.f32.mxu0 0.0
    %374 = vmatmul.mubr.f32.gmra.mrb[0].mxu0 %v291
    %v375 = vpop.f32.mrb[0].mxu0
    %v376 = vadd.f32 0.0, %v375
    %v377 = vpop.f32.mrb[0].mxu0
    %378 = vmatprep.mubr.f32.mxu0 0.0
    %379 = vmatmul.mubr.f32.gmra.mrb[0].mxu0 %v294
    %v380 = vpop.f32.mrb[0].mxu0
    %v381 = vadd.f32 0.0, %v380
    %v382 = vpop.f32.mrb[0].mxu0
    %383 = vmatprep.mubr.f32.mxu0 0.0
    %384 = vmatmul.mubr.f32.gmra.mrb[0].mxu0 %v297
    %v385 = vpop.f32.mrb[0].mxu0
    %v386 = vadd.f32 0.0, %v385
    %v387 = vpop.f32.mrb[0].mxu0
    %388 = vmatprep.mubr.f32.mxu0 0.0
    %389 = vmatmul.mubr.f32.gmra.mrb[0].mxu0 %v300
    %v390 = vpop.f32.mrb[0].mxu0
    %v391 = vadd.f32 0.0, %v390
    %v392 = vpop.f32.mrb[0].mxu0
    %393 = vmatprep.mubr.f32.mxu0 0.0
    %394 = vmatmul.mubr.f32.gmra.mrb[0].mxu0 %v303
    %v395 = vpop.f32.mrb[0].mxu0
    %v396 = vadd.f32 0.0, %v395
    %v397 = vpop.f32.mrb[0].mxu0
    %398 = vdwg.mxu0
    %v399 = vld [vmem:[%s8] sm:$0xff]
    %v400 = vld [vmem:[%s8 + $0x8] sm:$0xff]
    %v401 = vld [vmem:[%s8 + $0x10] sm:$0xff]
    %v402 = vld [vmem:[%s8 + $0x18] sm:$0xff]
    %v403 = vld [vmem:[%s8 + $0x20] sm:$0x1]
    %v405 = vsel %vm305, %v403, 0
    %407 = vmatprep.subr.mxu0 0.0
    %408 = vmatpush1.msra.mxu0 %v399
    %409 = vmatprep.subr.mxu0 0.0
    %410 = vmatpush1.msra.mxu0 %v400
    %411 = vmatprep.subr.mxu0 0.0
    %412 = vmatpush1.msra.mxu0 %v401
    %413 = vmatprep.subr.mxu0 0.0
    %414 = vmatpush1.msra.mxu0 %v402
    %415 = vmatprep.subr.mxu0 0.0
    %416 = vmatpush1.msra.mxu0 %v405
    %417 = vmatprep.subr.mxu0 0.0
    %418 = vmatpush1.msra.mxu0 0.0
    %419 = vmatprep.subr.mxu0 0.0
    %420 = vmatpush1.msra.mxu0 0.0
    %421 = vmatprep.subr.mxu0 0.0
    %422 = vmatpush1.msra.mxu0 0.0
    %423 = vmatprep.subr.mxu0 0.0
    %424 = vmatpush1.msra.mxu0 0.0
    %425 = vmatprep.subr.mxu0 0.0
    %426 = vmatpush1.msra.mxu0 0.0
    %427 = vmatprep.subr.mxu0 0.0
    %428 = vmatpush1.msra.mxu0 0.0
    %429 = vmatprep.subr.mxu0 0.0
    %430 = vmatpush1.msra.mxu0 0.0
    %431 = vmatprep.subr.mxu0 0.0
    %432 = vmatpush1.msra.mxu0 0.0
    %433 = vmatprep.subr.mxu0 0.0
    %434 = vmatpush1.msra.mxu0 0.0
    %435 = vmatprep.subr.mxu0 0.0
    %436 = vmatpush1.msra.mxu0 0.0
    %437 = vmatprep.subr.mxu0 0.0
    %438 = vmatpush1.msra.mxu0 0.0
    %439 = vmatprep.subr.mxu0 0.0
    %440 = vmatpush1.msra.mxu0 0.0
    %441 = vmatprep.subr.mxu0 0.0
    %442 = vmatpush1.msra.mxu0 0.0
    %443 = vmatprep.subr.mxu0 0.0
    %444 = vmatpush1.msra.mxu0 0.0
    %445 = vmatprep.subr.mxu0 0.0
    %446 = vmatpush1.msra.mxu0 0.0
    %447 = vmatprep.subr.mxu0 0.0
    %448 = vmatpush1.msra.mxu0 0.0
    %449 = vmatprep.subr.mxu0 0.0
    %450 = vmatpush1.msra.mxu0 0.0
    %451 = vmatprep.subr.mxu0 0.0
    %452 = vmatpush1.msra.mxu0 0.0
    %453 = vmatprep.subr.mxu0 0.0
    %454 = vmatpush1.msra.mxu0 0.0
    %455 = vmatprep.subr.mxu0 0.0
    %456 = vmatpush1.msra.mxu0 0.0
    %457 = vmatprep.subr.mxu0 0.0
    %458 = vmatpush1.msra.mxu0 0.0
    %459 = vmatprep.subr.mxu0 0.0
    %460 = vmatpush1.msra.mxu0 0.0
    %461 = vmatprep.subr.mxu0 0.0
    %462 = vmatpush1.msra.mxu0 0.0
    %463 = vmatprep.subr.mxu0 0.0
    %464 = vmatpush1.msra.mxu0 0.0
    %465 = vmatprep.subr.mxu0 0.0
    %466 = vmatpush1.msra.mxu0 0.0
    %467 = vmatprep.subr.mxu0 0.0
    %468 = vmatpush1.msra.mxu0 0.0
    %469 = vmatprep.subr.mxu0 0.0
    %470 = vmatpush1.msra.mxu0 0.0
    %471 = vmatprep.mubr.f32.mxu0 0.0
    %472 = vmatmul.mubr.f32.gmra.mrb[0].mxu0 %v291
    %v473 = vpop.f32.mrb[0].mxu0
    %v474 = vadd.f32 0.0, %v473
    %v475 = vpop.f32.mrb[0].mxu0
    %476 = vmatprep.mubr.f32.mxu0 0.0
    %477 = vmatmul.mubr.f32.gmra.mrb[0].mxu0 %v294
    %v478 = vpop.f32.mrb[0].mxu0
    %v479 = vadd.f32 0.0, %v478
    %v480 = vpop.f32.mrb[0].mxu0
    %481 = vmatprep.mubr.f32.mxu0 0.0
    %482 = vmatmul.mubr.f32.gmra.mrb[0].mxu0 %v297
    %v483 = vpop.f32.mrb[0].mxu0
    %v484 = vadd.f32 0.0, %v483
    %v485 = vpop.f32.mrb[0].mxu0
    %486 = vmatprep.mubr.f32.mxu0 0.0
    %487 = vmatmul.mubr.f32.gmra.mrb[0].mxu0 %v300
    %v488 = vpop.f32.mrb[0].mxu0
    %v489 = vadd.f32 0.0, %v488
    %v490 = vpop.f32.mrb[0].mxu0
    %491 = vmatprep.mubr.f32.mxu0 0.0
    %492 = vmatmul.mubr.f32.gmra.mrb[0].mxu0 %v303
    %v493 = vpop.f32.mrb[0].mxu0
    %v494 = vadd.f32 0.0, %v493
    %v495 = vpop.f32.mrb[0].mxu0
    %496 = vdwg.mxu0
    %v497 = vld [vmem:[%s9] sm:$0xff]
    %v498 = vld [vmem:[%s9 + $0x8] sm:$0xff]
    %v499 = vld [vmem:[%s9 + $0x10] sm:$0xff]
    %v500 = vld [vmem:[%s9 + $0x18] sm:$0xff]
    %v501 = vld [vmem:[%s9 + $0x20] sm:$0x1]
    %v503 = vsel %vm305, %v501, 0
    %505 = vmatprep.subr.mxu0 0.0
    %506 = vmatpush1.msra.mxu0 %v497
    %507 = vmatprep.subr.mxu0 0.0
    %508 = vmatpush1.msra.mxu0 %v498
    %509 = vmatprep.subr.mxu0 0.0
    %510 = vmatpush1.msra.mxu0 %v499
    %511 = vmatprep.subr.mxu0 0.0
    %512 = vmatpush1.msra.mxu0 %v500
    %513 = vmatprep.subr.mxu0 0.0
    %514 = vmatpush1.msra.mxu0 %v503
    %515 = vmatprep.subr.mxu0 0.0
    %516 = vmatpush1.msra.mxu0 0.0
    %517 = vmatprep.subr.mxu0 0.0
    %518 = vmatpush1.msra.mxu0 0.0
    %519 = vmatprep.subr.mxu0 0.0
    %520 = vmatpush1.msra.mxu0 0.0
    %521 = vmatprep.subr.mxu0 0.0
    %522 = vmatpush1.msra.mxu0 0.0
    %523 = vmatprep.subr.mxu0 0.0
    %524 = vmatpush1.msra.mxu0 0.0
    %525 = vmatprep.subr.mxu0 0.0
    %526 = vmatpush1.msra.mxu0 0.0
    %527 = vmatprep.subr.mxu0 0.0
    %528 = vmatpush1.msra.mxu0 0.0
    %529 = vmatprep.subr.mxu0 0.0
    %530 = vmatpush1.msra.mxu0 0.0
    %531 = vmatprep.subr.mxu0 0.0
    %532 = vmatpush1.msra.mxu0 0.0
    %533 = vmatprep.subr.mxu0 0.0
    %534 = vmatpush1.msra.mxu0 0.0
    %535 = vmatprep.subr.mxu0 0.0
    %536 = vmatpush1.msra.mxu0 0.0
    %537 = vmatprep.subr.mxu0 0.0
    %538 = vmatpush1.msra.mxu0 0.0
    %539 = vmatprep.subr.mxu0 0.0
    %540 = vmatpush1.msra.mxu0 0.0
    %541 = vmatprep.subr.mxu0 0.0
    %542 = vmatpush1.msra.mxu0 0.0
    %543 = vmatprep.subr.mxu0 0.0
    %544 = vmatpush1.msra.mxu0 0.0
    %545 = vmatprep.subr.mxu0 0.0
    %546 = vmatpush1.msra.mxu0 0.0
    %547 = vmatprep.subr.mxu0 0.0
    %548 = vmatpush1.msra.mxu0 0.0
    %549 = vmatprep.subr.mxu0 0.0
    %550 = vmatpush1.msra.mxu0 0.0
    %551 = vmatprep.subr.mxu0 0.0
    %552 = vmatpush1.msra.mxu0 0.0
    %553 = vmatprep.subr.mxu0 0.0
    %554 = vmatpush1.msra.mxu0 0.0
    %555 = vmatprep.subr.mxu0 0.0
    %556 = vmatpush1.msra.mxu0 0.0
    %557 = vmatprep.subr.mxu0 0.0
    %558 = vmatpush1.msra.mxu0 0.0
    %559 = vmatprep.subr.mxu0 0.0
    %560 = vmatpush1.msra.mxu0 0.0
    %561 = vmatprep.subr.mxu0 0.0
    %562 = vmatpush1.msra.mxu0 0.0
    %563 = vmatprep.subr.mxu0 0.0
    %564 = vmatpush1.msra.mxu0 0.0
    %565 = vmatprep.subr.mxu0 0.0
    %566 = vmatpush1.msra.mxu0 0.0
    %567 = vmatprep.subr.mxu0 0.0
    %568 = vmatpush1.msra.mxu0 0.0
    %569 = vmatprep.mubr.f32.mxu0 0.0
    %570 = vmatmul.mubr.f32.gmra.mrb[0].mxu0 %v291
    %v571 = vpop.f32.mrb[0].mxu0
    %v572 = vadd.f32 0.0, %v571
    %v573 = vpop.f32.mrb[0].mxu0
    %574 = vmatprep.mubr.f32.mxu0 0.0
    %575 = vmatmul.mubr.f32.gmra.mrb[0].mxu0 %v294
    %v576 = vpop.f32.mrb[0].mxu0
    %v577 = vadd.f32 0.0, %v576
    %v578 = vpop.f32.mrb[0].mxu0
    %579 = vmatprep.mubr.f32.mxu0 0.0
    %580 = vmatmul.mubr.f32.gmra.mrb[0].mxu0 %v297
    %v581 = vpop.f32.mrb[0].mxu0
    %v582 = vadd.f32 0.0, %v581
    %v583 = vpop.f32.mrb[0].mxu0
    %584 = vmatprep.mubr.f32.mxu0 0.0
    %585 = vmatmul.mubr.f32.gmra.mrb[0].mxu0 %v300
    %v586 = vpop.f32.mrb[0].mxu0
    %v587 = vadd.f32 0.0, %v586
    %v588 = vpop.f32.mrb[0].mxu0
    %589 = vmatprep.mubr.f32.mxu0 0.0
    %590 = vmatmul.mubr.f32.gmra.mrb[0].mxu0 %v303
    %v591 = vpop.f32.mrb[0].mxu0
    %v592 = vadd.f32 0.0, %v591
    %v593 = vpop.f32.mrb[0].mxu0
    %594 = vdwg.mxu0
    %vm595 = vcmask 64512
    %v597 = vsel %vm595, %v376, 0
    %v600 = vsel %vm595, %v381, 0
    %v603 = vsel %vm595, %v386, 0
    %v606 = vsel %vm595, %v391, 0
    %v609 = vsel %vm595, %v396, 0
    %v612 = vsel %vm595, %v474, 0
    %v615 = vsel %vm595, %v479, 0
    %v618 = vsel %vm595, %v484, 0
    %v621 = vsel %vm595, %v489, 0
    %v624 = vsel %vm595, %v494, 0
    %626 = vmatprep.subr.mxu0 0.0
    %627 = vmatpush1.xpose.msra.mxu0 %v612
    %628 = vmatprep.subr.mxu0 0.0
    %629 = vmatpush1.xpose.msra.mxu0 %v615
    %630 = vmatprep.subr.mxu0 0.0
    %631 = vmatpush1.xpose.msra.mxu0 %v618
    %632 = vmatprep.subr.mxu0 0.0
    %633 = vmatpush1.xpose.msra.mxu0 %v621
    %634 = vmatprep.subr.mxu0 0.0
    %635 = vmatpush1.xpose.msra.mxu0 %v624
    %636 = vmatprep.subr.mxu0 0.0
    %637 = vmatpush1.xpose.msra.mxu0 0.0
    %638 = vmatprep.subr.mxu0 0.0
    %639 = vmatpush1.xpose.msra.mxu0 0.0
    %640 = vmatprep.subr.mxu0 0.0
    %641 = vmatpush1.xpose.msra.mxu0 0.0
    %642 = vmatprep.subr.mxu0 0.0
    %643 = vmatpush1.xpose.msra.mxu0 0.0
    %644 = vmatprep.subr.mxu0 0.0
    %645 = vmatpush1.xpose.msra.mxu0 0.0
    %646 = vmatprep.subr.mxu0 0.0
    %647 = vmatpush1.xpose.msra.mxu0 0.0
    %648 = vmatprep.subr.mxu0 0.0
    %649 = vmatpush1.xpose.msra.mxu0 0.0
    %650 = vmatprep.subr.mxu0 0.0
    %651 = vmatpush1.xpose.msra.mxu0 0.0
    %652 = vmatprep.subr.mxu0 0.0
    %653 = vmatpush1.xpose.msra.mxu0 0.0
    %654 = vmatprep.subr.mxu0 0.0
    %655 = vmatpush1.xpose.msra.mxu0 0.0
    %656 = vmatprep.subr.mxu0 0.0
    %657 = vmatpush1.xpose.msra.mxu0 0.0
    %658 = vmatprep.subr.mxu0 0.0
    %659 = vmatpush1.xpose.msra.mxu0 0.0
    %660 = vmatprep.subr.mxu0 0.0
    %661 = vmatpush1.xpose.msra.mxu0 0.0
    %662 = vmatprep.subr.mxu0 0.0
    %663 = vmatpush1.xpose.msra.mxu0 0.0
    %664 = vmatprep.subr.mxu0 0.0
    %665 = vmatpush1.xpose.msra.mxu0 0.0
    %666 = vmatprep.subr.mxu0 0.0
    %667 = vmatpush1.xpose.msra.mxu0 0.0
    %668 = vmatprep.subr.mxu0 0.0
    %669 = vmatpush1.xpose.msra.mxu0 0.0
    %670 = vmatprep.subr.mxu0 0.0
    %671 = vmatpush1.xpose.msra.mxu0 0.0
    %672 = vmatprep.subr.mxu0 0.0
    %673 = vmatpush1.xpose.msra.mxu0 0.0
    %674 = vmatprep.subr.mxu0 0.0
    %675 = vmatpush1.xpose.msra.mxu0 0.0
    %676 = vmatprep.subr.mxu0 0.0
    %677 = vmatpush1.xpose.msra.mxu0 0.0
    %678 = vmatprep.subr.mxu0 0.0
    %679 = vmatpush1.xpose.msra.mxu0 0.0
    %680 = vmatprep.subr.mxu0 0.0
    %681 = vmatpush1.xpose.msra.mxu0 0.0
    %682 = vmatprep.subr.mxu0 0.0
    %683 = vmatpush1.xpose.msra.mxu0 0.0
    %684 = vmatprep.subr.mxu0 0.0
    %685 = vmatpush1.xpose.msra.mxu0 0.0
    %686 = vmatprep.subr.mxu0 0.0
    %687 = vmatpush1.xpose.msra.mxu0 0.0
    %688 = vmatprep.subr.mxu0 0.0
    %689 = vmatpush1.xpose.msra.mxu0 0.0
    %690 = vmatprep.mubr.f32.mxu0 0.0
    %691 = vmatmul.mubr.f32.gmra.mrb[0].mxu0 %v597
    %v692 = vpop.f32.mrb[0].mxu0
    %v693 = vadd.f32 %v181, %v692
    %v694 = vpop.f32.mrb[0].mxu0
    %695 = vmatprep.mubr.f32.mxu0 0.0
    %696 = vmatmul.mubr.f32.gmra.mrb[0].mxu0 %v600
    %v697 = vpop.f32.mrb[0].mxu0
    %v698 = vadd.f32 %v182, %v697
    %v699 = vpop.f32.mrb[0].mxu0
    %700 = vmatprep.mubr.f32.mxu0 0.0
    %701 = vmatmul.mubr.f32.gmra.mrb[0].mxu0 %v603
    %v702 = vpop.f32.mrb[0].mxu0
    %v703 = vadd.f32 %v183, %v702
    %v704 = vpop.f32.mrb[0].mxu0
    %705 = vmatprep.mubr.f32.mxu0 0.0
    %706 = vmatmul.mubr.f32.gmra.mrb[0].mxu0 %v606
    %v707 = vpop.f32.mrb[0].mxu0
    %v708 = vadd.f32 %v184, %v707
    %v709 = vpop.f32.mrb[0].mxu0
    %710 = vmatprep.mubr.f32.mxu0 0.0
    %711 = vmatmul.mubr.f32.gmra.mrb[0].mxu0 %v609
    %v712 = vpop.f32.mrb[0].mxu0
    %v713 = vadd.f32 %v185, %v712
    %v714 = vpop.f32.mrb[0].mxu0
    %715 = vdwg.mxu0
    %vm716 = vcmask 277504
    %v717 = vsel %vm716, %v693, -inf
    %718 = vmax.xlane.f32.xlu0 %v717
    %v719 = vpop.xlane.xlu0 %718
    %v720 = vsel %vm716, %v698, -inf
    %721 = vmax.xlane.f32.xlu0 %v720
    %v722 = vpop.xlane.xlu0 %721
    %v723 = vsel %vm716, %v703, -inf
    %724 = vmax.xlane.f32.xlu0 %v723
    %v725 = vpop.xlane.xlu0 %724
    %v726 = vsel %vm716, %v708, -inf
    %727 = vmax.xlane.f32.xlu0 %v726
    %v728 = vpop.xlane.xlu0 %727
    %vm729 = vcmask 271360
    %v730 = vsel %vm729, %v713, -inf
    %731 = vmax.xlane.f32.xlu0 %v730
    %v732 = vpop.xlane.xlu0 %731
    %v733 = vsub.f32 %v693, %v719
    %v734 = vsub.f32 %v698, %v722
    %v735 = vsub.f32 %v703, %v725
    %v736 = vsub.f32 %v708, %v728
    %v737 = vsub.f32 %v713, %v732
    %v738 = vmul.f32 %v733, 1.442695
    %v739 = vpow.pop %v738
    %v740 = vmul.f32 %v734, 1.442695
    %v741 = vpow.pop %v740
    %v742 = vmul.f32 %v735, 1.442695
    %v743 = vpow.pop %v742
    %v744 = vmul.f32 %v736, 1.442695
    %v745 = vpow.pop %v744
    %v746 = vmul.f32 %v737, 1.442695
    %v747 = vpow.pop %v746
    %v748 = vsel %vm716, %v739, 0.0
    %749 = vadd.xlane.f32.xlu0 %v748
    %v750 = vpop.xlane.xlu0 %749
    %v751 = vsel %vm716, %v741, 0.0
    %752 = vadd.xlane.f32.xlu0 %v751
    %v753 = vpop.xlane.xlu0 %752
    %v754 = vsel %vm716, %v743, 0.0
    %755 = vadd.xlane.f32.xlu0 %v754
    %v756 = vpop.xlane.xlu0 %755
    %v757 = vsel %vm716, %v745, 0.0
    %758 = vadd.xlane.f32.xlu0 %v757
    %v759 = vpop.xlane.xlu0 %758
    %v760 = vsel %vm729, %v747, 0.0
    %761 = vadd.xlane.f32.xlu0 %v760
    %v762 = vpop.xlane.xlu0 %761
    %v763 = vrcp.pop %v750
    %v764 = vrcp.pop %v753
    %v765 = vrcp.pop %v756
    %v766 = vrcp.pop %v759
    %v767 = vrcp.pop %v762
    %v768 = vmul.f32 %v739, %v763
    %v769 = vmul.f32 %v741, %v764
    %v770 = vmul.f32 %v743, %v765
    %v771 = vmul.f32 %v745, %v766
    %v772 = vmul.f32 %v747, %v767
    %v774 = vsel %vm716, %v768, 0
    %v777 = vsel %vm716, %v769, 0
    %v780 = vsel %vm716, %v770, 0
    %v783 = vsel %vm716, %v771, 0
    %v786 = vsel %vm716, %v772, 0
    %vm788 = vcmask 1041408
    %v790 = vsel %vm788, %v592, 0
    %792 = vmatprep.subr.mxu0 0.0
    %793 = vmatpush1.msra.mxu0 %v572
    %794 = vmatprep.subr.mxu0 0.0
    %795 = vmatpush1.msra.mxu0 %v577
    %796 = vmatprep.subr.mxu0 0.0
    %797 = vmatpush1.msra.mxu0 %v582
    %798 = vmatprep.subr.mxu0 0.0
    %799 = vmatpush1.msra.mxu0 %v587
    %800 = vmatprep.subr.mxu0 0.0
    %801 = vmatpush1.msra.mxu0 %v790
    %802 = vmatprep.subr.mxu0 0.0
    %803 = vmatpush1.msra.mxu0 0.0
    %804 = vmatprep.subr.mxu0 0.0
    %805 = vmatpush1.msra.mxu0 0.0
    %806 = vmatprep.subr.mxu0 0.0
    %807 = vmatpush1.msra.mxu0 0.0
    %808 = vmatprep.subr.mxu0 0.0
    %809 = vmatpush1.msra.mxu0 0.0
    %810 = vmatprep.subr.mxu0 0.0
    %811 = vmatpush1.msra.mxu0 0.0
    %812 = vmatprep.subr.mxu0 0.0
    %813 = vmatpush1.msra.mxu0 0.0
    %814 = vmatprep.subr.mxu0 0.0
    %815 = vmatpush1.msra.mxu0 0.0
    %816 = vmatprep.subr.mxu0 0.0
    %817 = vmatpush1.msra.mxu0 0.0
    %818 = vmatprep.subr.mxu0 0.0
    %819 = vmatpush1.msra.mxu0 0.0
    %820 = vmatprep.subr.mxu0 0.0
    %821 = vmatpush1.msra.mxu0 0.0
    %822 = vmatprep.subr.mxu0 0.0
    %823 = vmatpush1.msra.mxu0 0.0
    %824 = vmatprep.subr.mxu0 0.0
    %825 = vmatpush1.msra.mxu0 0.0
    %826 = vmatprep.subr.mxu0 0.0
    %827 = vmatpush1.msra.mxu0 0.0
    %828 = vmatprep.subr.mxu0 0.0
    %829 = vmatpush1.msra.mxu0 0.0
    %830 = vmatprep.subr.mxu0 0.0
    %831 = vmatpush1.msra.mxu0 0.0
    %832 = vmatprep.subr.mxu0 0.0
    %833 = vmatpush1.msra.mxu0 0.0
    %834 = vmatprep.subr.mxu0 0.0
    %835 = vmatpush1.msra.mxu0 0.0
    %836 = vmatprep.subr.mxu0 0.0
    %837 = vmatpush1.msra.mxu0 0.0
    %838 = vmatprep.subr.mxu0 0.0
    %839 = vmatpush1.msra.mxu0 0.0
    %840 = vmatprep.subr.mxu0 0.0
    %841 = vmatpush1.msra.mxu0 0.0
    %842 = vmatprep.subr.mxu0 0.0
    %843 = vmatpush1.msra.mxu0 0.0
    %844 = vmatprep.subr.mxu0 0.0
    %845 = vmatpush1.msra.mxu0 0.0
    %846 = vmatprep.subr.mxu0 0.0
    %847 = vmatpush1.msra.mxu0 0.0
    %848 = vmatprep.subr.mxu0 0.0
    %849 = vmatpush1.msra.mxu0 0.0
    %850 = vmatprep.subr.mxu0 0.0
    %851 = vmatpush1.msra.mxu0 0.0
    %852 = vmatprep.subr.mxu0 0.0
    %853 = vmatpush1.msra.mxu0 0.0
    %854 = vmatprep.subr.mxu0 0.0
    %855 = vmatpush1.msra.mxu0 0.0
    %856 = vmatprep.mubr.f32.mxu0 0.0
    %857 = vmatmul.mubr.f32.gmra.mrb[0].mxu0 %v774
    %v858 = vpop.f32.mrb[0].mxu0
    %v859 = vadd.f32 0.0, %v858
    %v860 = vpop.f32.mrb[0].mxu0
    %861 = vmatprep.mubr.f32.mxu0 0.0
    %862 = vmatmul.mubr.f32.gmra.mrb[0].mxu0 %v777
    %v863 = vpop.f32.mrb[0].mxu0
    %v864 = vadd.f32 0.0, %v863
    %v865 = vpop.f32.mrb[0].mxu0
    %866 = vmatprep.mubr.f32.mxu0 0.0
    %867 = vmatmul.mubr.f32.gmra.mrb[0].mxu0 %v780
    %v868 = vpop.f32.mrb[0].mxu0
    %v869 = vadd.f32 0.0, %v868
    %v870 = vpop.f32.mrb[0].mxu0
    %871 = vmatprep.mubr.f32.mxu0 0.0
    %872 = vmatmul.mubr.f32.gmra.mrb[0].mxu0 %v783
    %v873 = vpop.f32.mrb[0].mxu0
    %v874 = vadd.f32 0.0, %v873
    %v875 = vpop.f32.mrb[0].mxu0
    %876 = vmatprep.mubr.f32.mxu0 0.0
    %877 = vmatmul.mubr.f32.gmra.mrb[0].mxu0 %v786
    %v878 = vpop.f32.mrb[0].mxu0
    %v879 = vadd.f32 0.0, %v878
    %v880 = vpop.f32.mrb[0].mxu0
    %881 = vdwg.mxu0
    %v882 = vld [vmem:[%s10] sm:$0xff]
    %s883 = scalar_lea.vmem %s7, 40
    %v884 = vld [vmem:[%s883] sm:$0xff]
    %v885 = vld [vmem:[%s883 + $0x8] sm:$0xff]
    %v886 = vld [vmem:[%s883 + $0x10] sm:$0xff]
    %v887 = vld [vmem:[%s883 + $0x18] sm:$0xff]
    %v888 = vld [vmem:[%s883 + $0x20] sm:$0x1]
    %v890 = vsel %vm305, %v888, 0
    %892 = vmatprep.subr.mxu0 0.0
    %893 = vmatpush1.msra.mxu0 %v884
    %894 = vmatprep.subr.mxu0 0.0
    %895 = vmatpush1.msra.mxu0 %v885
    %896 = vmatprep.subr.mxu0 0.0
    %897 = vmatpush1.msra.mxu0 %v886
    %898 = vmatprep.subr.mxu0 0.0
    %899 = vmatpush1.msra.mxu0 %v887
    %900 = vmatprep.subr.mxu0 0.0
    %901 = vmatpush1.msra.mxu0 %v890
    %902 = vmatprep.subr.mxu0 0.0
    %903 = vmatpush1.msra.mxu0 0.0
    %904 = vmatprep.subr.mxu0 0.0
    %905 = vmatpush1.msra.mxu0 0.0
    %906 = vmatprep.subr.mxu0 0.0
    %907 = vmatpush1.msra.mxu0 0.0
    %908 = vmatprep.subr.mxu0 0.0
    %909 = vmatpush1.msra.mxu0 0.0
    %910 = vmatprep.subr.mxu0 0.0
    %911 = vmatpush1.msra.mxu0 0.0
    %912 = vmatprep.subr.mxu0 0.0
    %913 = vmatpush1.msra.mxu0 0.0
    %914 = vmatprep.subr.mxu0 0.0
    %915 = vmatpush1.msra.mxu0 0.0
    %916 = vmatprep.subr.mxu0 0.0
    %917 = vmatpush1.msra.mxu0 0.0
    %918 = vmatprep.subr.mxu0 0.0
    %919 = vmatpush1.msra.mxu0 0.0
    %920 = vmatprep.subr.mxu0 0.0
    %921 = vmatpush1.msra.mxu0 0.0
    %922 = vmatprep.subr.mxu0 0.0
    %923 = vmatpush1.msra.mxu0 0.0
    %924 = vmatprep.subr.mxu0 0.0
    %925 = vmatpush1.msra.mxu0 0.0
    %926 = vmatprep.subr.mxu0 0.0
    %927 = vmatpush1.msra.mxu0 0.0
    %928 = vmatprep.subr.mxu0 0.0
    %929 = vmatpush1.msra.mxu0 0.0
    %930 = vmatprep.subr.mxu0 0.0
    %931 = vmatpush1.msra.mxu0 0.0
    %932 = vmatprep.subr.mxu0 0.0
    %933 = vmatpush1.msra.mxu0 0.0
    %934 = vmatprep.subr.mxu0 0.0
    %935 = vmatpush1.msra.mxu0 0.0
    %936 = vmatprep.subr.mxu0 0.0
    %937 = vmatpush1.msra.mxu0 0.0
    %938 = vmatprep.subr.mxu0 0.0
    %939 = vmatpush1.msra.mxu0 0.0
    %940 = vmatprep.subr.mxu0 0.0
    %941 = vmatpush1.msra.mxu0 0.0
    %942 = vmatprep.subr.mxu0 0.0
    %943 = vmatpush1.msra.mxu0 0.0
    %944 = vmatprep.subr.mxu0 0.0
    %945 = vmatpush1.msra.mxu0 0.0
    %946 = vmatprep.subr.mxu0 0.0
    %947 = vmatpush1.msra.mxu0 0.0
    %948 = vmatprep.subr.mxu0 0.0
    %949 = vmatpush1.msra.mxu0 0.0
    %950 = vmatprep.subr.mxu0 0.0
    %951 = vmatpush1.msra.mxu0 0.0
    %952 = vmatprep.subr.mxu0 0.0
    %953 = vmatpush1.msra.mxu0 0.0
    %954 = vmatprep.subr.mxu0 0.0
    %955 = vmatpush1.msra.mxu0 0.0
    %956 = vmatprep.mubr.f32.mxu0 0.0
    %957 = vmatmul.mubr.f32.gmra.mrb[0].mxu0 %v291
    %v958 = vpop.f32.mrb[0].mxu0
    %v959 = vadd.f32 0.0, %v958
    %v960 = vpop.f32.mrb[0].mxu0
    %961 = vmatprep.mubr.f32.mxu0 0.0
    %962 = vmatmul.mubr.f32.gmra.mrb[0].mxu0 %v294
    %v963 = vpop.f32.mrb[0].mxu0
    %v964 = vadd.f32 0.0, %v963
    %v965 = vpop.f32.mrb[0].mxu0
    %966 = vmatprep.mubr.f32.mxu0 0.0
    %967 = vmatmul.mubr.f32.gmra.mrb[0].mxu0 %v297
    %v968 = vpop.f32.mrb[0].mxu0
    %v969 = vadd.f32 0.0, %v968
    %v970 = vpop.f32.mrb[0].mxu0
    %971 = vmatprep.mubr.f32.mxu0 0.0
    %972 = vmatmul.mubr.f32.gmra.mrb[0].mxu0 %v300
    %v973 = vpop.f32.mrb[0].mxu0
    %v974 = vadd.f32 0.0, %v973
    %v975 = vpop.f32.mrb[0].mxu0
    %976 = vmatprep.mubr.f32.mxu0 0.0
    %977 = vmatmul.mubr.f32.gmra.mrb[0].mxu0 %v303
    %v978 = vpop.f32.mrb[0].mxu0
    %v979 = vadd.f32 0.0, %v978
    %v980 = vpop.f32.mrb[0].mxu0
    %981 = vdwg.mxu0
    %s982 = scalar_lea.vmem %s8, 40
    %v983 = vld [vmem:[%s982] sm:$0xff]
    %v984 = vld [vmem:[%s982 + $0x8] sm:$0xff]
    %v985 = vld [vmem:[%s982 + $0x10] sm:$0xff]
    %v986 = vld [vmem:[%s982 + $0x18] sm:$0xff]
    %v987 = vld [vmem:[%s982 + $0x20] sm:$0x1]
    %v989 = vsel %vm305, %v987, 0
    %991 = vmatprep.subr.mxu0 0.0
    %992 = vmatpush1.msra.mxu0 %v983
    %993 = vmatprep.subr.mxu0 0.0
    %994 = vmatpush1.msra.mxu0 %v984
    %995 = vmatprep.subr.mxu0 0.0
    %996 = vmatpush1.msra.mxu0 %v985
    %997 = vmatprep.subr.mxu0 0.0
    %998 = vmatpush1.msra.mxu0 %v986
    %999 = vmatprep.subr.mxu0 0.0
    %1000 = vmatpush1.msra.mxu0 %v989
    %1001 = vmatprep.subr.mxu0 0.0
    %1002 = vmatpush1.msra.mxu0 0.0
    %1003 = vmatprep.subr.mxu0 0.0
    %1004 = vmatpush1.msra.mxu0 0.0
    %1005 = vmatprep.subr.mxu0 0.0
    %1006 = vmatpush1.msra.mxu0 0.0
    %1007 = vmatprep.subr.mxu0 0.0
    %1008 = vmatpush1.msra.mxu0 0.0
    %1009 = vmatprep.subr.mxu0 0.0
    %1010 = vmatpush1.msra.mxu0 0.0
    %1011 = vmatprep.subr.mxu0 0.0
    %1012 = vmatpush1.msra.mxu0 0.0
    %1013 = vmatprep.subr.mxu0 0.0
    %1014 = vmatpush1.msra.mxu0 0.0
    %1015 = vmatprep.subr.mxu0 0.0
    %1016 = vmatpush1.msra.mxu0 0.0
    %1017 = vmatprep.subr.mxu0 0.0
    %1018 = vmatpush1.msra.mxu0 0.0
    %1019 = vmatprep.subr.mxu0 0.0
    %1020 = vmatpush1.msra.mxu0 0.0
    %1021 = vmatprep.subr.mxu0 0.0
    %1022 = vmatpush1.msra.mxu0 0.0
    %1023 = vmatprep.subr.mxu0 0.0
    %1024 = vmatpush1.msra.mxu0 0.0
    %1025 = vmatprep.subr.mxu0 0.0
    %1026 = vmatpush1.msra.mxu0 0.0
    %1027 = vmatprep.subr.mxu0 0.0
    %1028 = vmatpush1.msra.mxu0 0.0
    %1029 = vmatprep.subr.mxu0 0.0
    %1030 = vmatpush1.msra.mxu0 0.0
    %1031 = vmatprep.subr.mxu0 0.0
    %1032 = vmatpush1.msra.mxu0 0.0
    %1033 = vmatprep.subr.mxu0 0.0
    %1034 = vmatpush1.msra.mxu0 0.0
    %1035 = vmatprep.subr.mxu0 0.0
    %1036 = vmatpush1.msra.mxu0 0.0
    %1037 = vmatprep.subr.mxu0 0.0
    %1038 = vmatpush1.msra.mxu0 0.0
    %1039 = vmatprep.subr.mxu0 0.0
    %1040 = vmatpush1.msra.mxu0 0.0
    %1041 = vmatprep.subr.mxu0 0.0
    %1042 = vmatpush1.msra.mxu0 0.0
    %1043 = vmatprep.subr.mxu0 0.0
    %1044 = vmatpush1.msra.mxu0 0.0
    %1045 = vmatprep.subr.mxu0 0.0
    %1046 = vmatpush1.msra.mxu0 0.0
    %1047 = vmatprep.subr.mxu0 0.0
    %1048 = vmatpush1.msra.mxu0 0.0
    %1049 = vmatprep.subr.mxu0 0.0
    %1050 = vmatpush1.msra.mxu0 0.0
    %1051 = vmatprep.subr.mxu0 0.0
    %1052 = vmatpush1.msra.mxu0 0.0
    %1053 = vmatprep.subr.mxu0 0.0
    %1054 = vmatpush1.msra.mxu0 0.0
    %1055 = vmatprep.mubr.f32.mxu0 0.0
    %1056 = vmatmul.mubr.f32.gmra.mrb[0].mxu0 %v291
    %v1057 = vpop.f32.mrb[0].mxu0
    %v1058 = vadd.f32 0.0, %v1057
    %v1059 = vpop.f32.mrb[0].mxu0
    %1060 = vmatprep.mubr.f32.mxu0 0.0
    %1061 = vmatmul.mubr.f32.gmra.mrb[0].mxu0 %v294
    %v1062 = vpop.f32.mrb[0].mxu0
    %v1063 = vadd.f32 0.0, %v1062
    %v1064 = vpop.f32.mrb[0].mxu0
    %1065 = vmatprep.mubr.f32.mxu0 0.0
    %1066 = vmatmul.mubr.f32.gmra.mrb[0].mxu0 %v297
    %v1067 = vpop.f32.mrb[0].mxu0
    %v1068 = vadd.f32 0.0, %v1067
    %v1069 = vpop.f32.mrb[0].mxu0
    %1070 = vmatprep.mubr.f32.mxu0 0.0
    %1071 = vmatmul.mubr.f32.gmra.mrb[0].mxu0 %v300
    %v1072 = vpop.f32.mrb[0].mxu0
    %v1073 = vadd.f32 0.0, %v1072
    %v1074 = vpop.f32.mrb[0].mxu0
    %1075 = vmatprep.mubr.f32.mxu0 0.0
    %1076 = vmatmul.mubr.f32.gmra.mrb[0].mxu0 %v303
    %v1077 = vpop.f32.mrb[0].mxu0
    %v1078 = vadd.f32 0.0, %v1077
    %v1079 = vpop.f32.mrb[0].mxu0
    %1080 = vdwg.mxu0
    %s1081 = scalar_lea.vmem %s9, 40
    %v1082 = vld [vmem:[%s1081] sm:$0xff]
    %v1083 = vld [vmem:[%s1081 + $0x8] sm:$0xff]
    %v1084 = vld [vmem:[%s1081 + $0x10] sm:$0xff]
    %v1085 = vld [vmem:[%s1081 + $0x18] sm:$0xff]
    %v1086 = vld [vmem:[%s1081 + $0x20] sm:$0x1]
    %v1088 = vsel %vm305, %v1086, 0
    %1090 = vmatprep.subr.mxu0 0.0
    %1091 = vmatpush1.msra.mxu0 %v1082
    %1092 = vmatprep.subr.mxu0 0.0
    %1093 = vmatpush1.msra.mxu0 %v1083
    %1094 = vmatprep.subr.mxu0 0.0
    %1095 = vmatpush1.msra.mxu0 %v1084
    %1096 = vmatprep.subr.mxu0 0.0
    %1097 = vmatpush1.msra.mxu0 %v1085
    %1098 = vmatprep.subr.mxu0 0.0
    %1099 = vmatpush1.msra.mxu0 %v1088
    %1100 = vmatprep.subr.mxu0 0.0
    %1101 = vmatpush1.msra.mxu0 0.0
    %1102 = vmatprep.subr.mxu0 0.0
    %1103 = vmatpush1.msra.mxu0 0.0
    %1104 = vmatprep.subr.mxu0 0.0
    %1105 = vmatpush1.msra.mxu0 0.0
    %1106 = vmatprep.subr.mxu0 0.0
    %1107 = vmatpush1.msra.mxu0 0.0
    %1108 = vmatprep.subr.mxu0 0.0
    %1109 = vmatpush1.msra.mxu0 0.0
    %1110 = vmatprep.subr.mxu0 0.0
    %1111 = vmatpush1.msra.mxu0 0.0
    %1112 = vmatprep.subr.mxu0 0.0
    %1113 = vmatpush1.msra.mxu0 0.0
    %1114 = vmatprep.subr.mxu0 0.0
    %1115 = vmatpush1.msra.mxu0 0.0
    %1116 = vmatprep.subr.mxu0 0.0
    %1117 = vmatpush1.msra.mxu0 0.0
    %1118 = vmatprep.subr.mxu0 0.0
    %1119 = vmatpush1.msra.mxu0 0.0
    %1120 = vmatprep.subr.mxu0 0.0
    %1121 = vmatpush1.msra.mxu0 0.0
    %1122 = vmatprep.subr.mxu0 0.0
    %1123 = vmatpush1.msra.mxu0 0.0
    %1124 = vmatprep.subr.mxu0 0.0
    %1125 = vmatpush1.msra.mxu0 0.0
    %1126 = vmatprep.subr.mxu0 0.0
    %1127 = vmatpush1.msra.mxu0 0.0
    %1128 = vmatprep.subr.mxu0 0.0
    %1129 = vmatpush1.msra.mxu0 0.0
    %1130 = vmatprep.subr.mxu0 0.0
    %1131 = vmatpush1.msra.mxu0 0.0
    %1132 = vmatprep.subr.mxu0 0.0
    %1133 = vmatpush1.msra.mxu0 0.0
    %1134 = vmatprep.subr.mxu0 0.0
    %1135 = vmatpush1.msra.mxu0 0.0
    %1136 = vmatprep.subr.mxu0 0.0
    %1137 = vmatpush1.msra.mxu0 0.0
    %1138 = vmatprep.subr.mxu0 0.0
    %1139 = vmatpush1.msra.mxu0 0.0
    %1140 = vmatprep.subr.mxu0 0.0
    %1141 = vmatpush1.msra.mxu0 0.0
    %1142 = vmatprep.subr.mxu0 0.0
    %1143 = vmatpush1.msra.mxu0 0.0
    %1144 = vmatprep.subr.mxu0 0.0
    %1145 = vmatpush1.msra.mxu0 0.0
    %1146 = vmatprep.subr.mxu0 0.0
    %1147 = vmatpush1.msra.mxu0 0.0
    %1148 = vmatprep.subr.mxu0 0.0
    %1149 = vmatpush1.msra.mxu0 0.0
    %1150 = vmatprep.subr.mxu0 0.0
    %1151 = vmatpush1.msra.mxu0 0.0
    %1152 = vmatprep.subr.mxu0 0.0
    %1153 = vmatpush1.msra.mxu0 0.0
    %1154 = vmatprep.mubr.f32.mxu0 0.0
    %1155 = vmatmul.mubr.f32.gmra.mrb[0].mxu0 %v291
    %v1156 = vpop.f32.mrb[0].mxu0
    %v1157 = vadd.f32 0.0, %v1156
    %v1158 = vpop.f32.mrb[0].mxu0
    %1159 = vmatprep.mubr.f32.mxu0 0.0
    %1160 = vmatmul.mubr.f32.gmra.mrb[0].mxu0 %v294
    %v1161 = vpop.f32.mrb[0].mxu0
    %v1162 = vadd.f32 0.0, %v1161
    %v1163 = vpop.f32.mrb[0].mxu0
    %1164 = vmatprep.mubr.f32.mxu0 0.0
    %1165 = vmatmul.mubr.f32.gmra.mrb[0].mxu0 %v297
    %v1166 = vpop.f32.mrb[0].mxu0
    %v1167 = vadd.f32 0.0, %v1166
    %v1168 = vpop.f32.mrb[0].mxu0
    %1169 = vmatprep.mubr.f32.mxu0 0.0
    %1170 = vmatmul.mubr.f32.gmra.mrb[0].mxu0 %v300
    %v1171 = vpop.f32.mrb[0].mxu0
    %v1172 = vadd.f32 0.0, %v1171
    %v1173 = vpop.f32.mrb[0].mxu0
    %1174 = vmatprep.mubr.f32.mxu0 0.0
    %1175 = vmatmul.mubr.f32.gmra.mrb[0].mxu0 %v303
    %v1176 = vpop.f32.mrb[0].mxu0
    %v1177 = vadd.f32 0.0, %v1176
    %v1178 = vpop.f32.mrb[0].mxu0
    %1179 = vdwg.mxu0
    %v1181 = vsel %vm595, %v959, 0
    %v1184 = vsel %vm595, %v964, 0
    %v1187 = vsel %vm595, %v969, 0
    %v1190 = vsel %vm595, %v974, 0
    %v1193 = vsel %vm595, %v979, 0
    %v1196 = vsel %vm595, %v1058, 0
    %v1199 = vsel %vm595, %v1063, 0
    %v1202 = vsel %vm595, %v1068, 0
    %v1205 = vsel %vm595, %v1073, 0
    %v1208 = vsel %vm595, %v1078, 0
    %1210 = vmatprep.subr.mxu0 0.0
    %1211 = vmatpush1.xpose.msra.mxu0 %v1196
    %1212 = vmatprep.subr.mxu0 0.0
    %1213 = vmatpush1.xpose.msra.mxu0 %v1199
    %1214 = vmatprep.subr.mxu0 0.0
    %1215 = vmatpush1.xpose.msra.mxu0 %v1202
    %1216 = vmatprep.subr.mxu0 0.0
    %1217 = vmatpush1.xpose.msra.mxu0 %v1205
    %1218 = vmatprep.subr.mxu0 0.0
    %1219 = vmatpush1.xpose.msra.mxu0 %v1208
    %1220 = vmatprep.subr.mxu0 0.0
    %1221 = vmatpush1.xpose.msra.mxu0 0.0
    %1222 = vmatprep.subr.mxu0 0.0
    %1223 = vmatpush1.xpose.msra.mxu0 0.0
    %1224 = vmatprep.subr.mxu0 0.0
    %1225 = vmatpush1.xpose.msra.mxu0 0.0
    %1226 = vmatprep.subr.mxu0 0.0
    %1227 = vmatpush1.xpose.msra.mxu0 0.0
    %1228 = vmatprep.subr.mxu0 0.0
    %1229 = vmatpush1.xpose.msra.mxu0 0.0
    %1230 = vmatprep.subr.mxu0 0.0
    %1231 = vmatpush1.xpose.msra.mxu0 0.0
    %1232 = vmatprep.subr.mxu0 0.0
    %1233 = vmatpush1.xpose.msra.mxu0 0.0
    %1234 = vmatprep.subr.mxu0 0.0
    %1235 = vmatpush1.xpose.msra.mxu0 0.0
    %1236 = vmatprep.subr.mxu0 0.0
    %1237 = vmatpush1.xpose.msra.mxu0 0.0
    %1238 = vmatprep.subr.mxu0 0.0
    %1239 = vmatpush1.xpose.msra.mxu0 0.0
    %1240 = vmatprep.subr.mxu0 0.0
    %1241 = vmatpush1.xpose.msra.mxu0 0.0
    %1242 = vmatprep.subr.mxu0 0.0
    %1243 = vmatpush1.xpose.msra.mxu0 0.0
    %1244 = vmatprep.subr.mxu0 0.0
    %1245 = vmatpush1.xpose.msra.mxu0 0.0
    %1246 = vmatprep.subr.mxu0 0.0
    %1247 = vmatpush1.xpose.msra.mxu0 0.0
    %1248 = vmatprep.subr.mxu0 0.0
    %1249 = vmatpush1.xpose.msra.mxu0 0.0
    %1250 = vmatprep.subr.mxu0 0.0
    %1251 = vmatpush1.xpose.msra.mxu0 0.0
    %1252 = vmatprep.subr.mxu0 0.0
    %1253 = vmatpush1.xpose.msra.mxu0 0.0
    %1254 = vmatprep.subr.mxu0 0.0
    %1255 = vmatpush1.xpose.msra.mxu0 0.0
    %1256 = vmatprep.subr.mxu0 0.0
    %1257 = vmatpush1.xpose.msra.mxu0 0.0
    %1258 = vmatprep.subr.mxu0 0.0
    %1259 = vmatpush1.xpose.msra.mxu0 0.0
    %1260 = vmatprep.subr.mxu0 0.0
    %1261 = vmatpush1.xpose.msra.mxu0 0.0
    %1262 = vmatprep.subr.mxu0 0.0
    %1263 = vmatpush1.xpose.msra.mxu0 0.0
    %1264 = vmatprep.subr.mxu0 0.0
    %1265 = vmatpush1.xpose.msra.mxu0 0.0
    %1266 = vmatprep.subr.mxu0 0.0
    %1267 = vmatpush1.xpose.msra.mxu0 0.0
    %1268 = vmatprep.subr.mxu0 0.0
    %1269 = vmatpush1.xpose.msra.mxu0 0.0
    %1270 = vmatprep.subr.mxu0 0.0
    %1271 = vmatpush1.xpose.msra.mxu0 0.0
    %1272 = vmatprep.subr.mxu0 0.0
    %1273 = vmatpush1.xpose.msra.mxu0 0.0
    %1274 = vmatprep.mubr.f32.mxu0 0.0
    %1275 = vmatmul.mubr.f32.gmra.mrb[0].mxu0 %v1181
    %v1276 = vpop.f32.mrb[0].mxu0
    %v1277 = vadd.f32 %v181, %v1276
    %v1278 = vpop.f32.mrb[0].mxu0
    %1279 = vmatprep.mubr.f32.mxu0 0.0
    %1280 = vmatmul.mubr.f32.gmra.mrb[0].mxu0 %v1184
    %v1281 = vpop.f32.mrb[0].mxu0
    %v1282 = vadd.f32 %v182, %v1281
    %v1283 = vpop.f32.mrb[0].mxu0
    %1284 = vmatprep.mubr.f32.mxu0 0.0
    %1285 = vmatmul.mubr.f32.gmra.mrb[0].mxu0 %v1187
    %v1286 = vpop.f32.mrb[0].mxu0
    %v1287 = vadd.f32 %v183, %v1286
    %v1288 = vpop.f32.mrb[0].mxu0
    %1289 = vmatprep.mubr.f32.mxu0 0.0
    %1290 = vmatmul.mubr.f32.gmra.mrb[0].mxu0 %v1190
    %v1291 = vpop.f32.mrb[0].mxu0
    %v1292 = vadd.f32 %v184, %v1291
    %v1293 = vpop.f32.mrb[0].mxu0
    %1294 = vmatprep.mubr.f32.mxu0 0.0
    %1295 = vmatmul.mubr.f32.gmra.mrb[0].mxu0 %v1193
    %v1296 = vpop.f32.mrb[0].mxu0
    %v1297 = vadd.f32 %v185, %v1296
    %v1298 = vpop.f32.mrb[0].mxu0
    %1299 = vdwg.mxu0
    %v1300 = vsel %vm716, %v1277, -inf
    %1301 = vmax.xlane.f32.xlu0 %v1300
    %v1302 = vpop.xlane.xlu0 %1301
    %v1303 = vsel %vm716, %v1282, -inf
    %1304 = vmax.xlane.f32.xlu0 %v1303
    %v1305 = vpop.xlane.xlu0 %1304
    %v1306 = vsel %vm716, %v1287, -inf
    %1307 = vmax.xlane.f32.xlu0 %v1306
    %v1308 = vpop.xlane.xlu0 %1307
    %v1309 = vsel %vm716, %v1292, -inf
    %1310 = vmax.xlane.f32.xlu0 %v1309
    %v1311 = vpop.xlane.xlu0 %1310
    %v1312 = vsel %vm729, %v1297, -inf
    %1313 = vmax.xlane.f32.xlu0 %v1312
    %v1314 = vpop.xlane.xlu0 %1313
    %v1315 = vsub.f32 %v1277, %v1302
    %v1316 = vsub.f32 %v1282, %v1305
    %v1317 = vsub.f32 %v1287, %v1308
    %v1318 = vsub.f32 %v1292, %v1311
    %v1319 = vsub.f32 %v1297, %v1314
    %v1320 = vmul.f32 %v1315, 1.442695
    %v1321 = vpow.pop %v1320
    %v1322 = vmul.f32 %v1316, 1.442695
    %v1323 = vpow.pop %v1322
    %v1324 = vmul.f32 %v1317, 1.442695
    %v1325 = vpow.pop %v1324
    %v1326 = vmul.f32 %v1318, 1.442695
    %v1327 = vpow.pop %v1326
    %v1328 = vmul.f32 %v1319, 1.442695
    %v1329 = vpow.pop %v1328
    %v1330 = vsel %vm716, %v1321, 0.0
    %1331 = vadd.xlane.f32.xlu0 %v1330
    %v1332 = vpop.xlane.xlu0 %1331
    %v1333 = vsel %vm716, %v1323, 0.0
    %1334 = vadd.xlane.f32.xlu0 %v1333
    %v1335 = vpop.xlane.xlu0 %1334
    %v1336 = vsel %vm716, %v1325, 0.0
    %1337 = vadd.xlane.f32.xlu0 %v1336
    %v1338 = vpop.xlane.xlu0 %1337
    %v1339 = vsel %vm716, %v1327, 0.0
    %1340 = vadd.xlane.f32.xlu0 %v1339
    %v1341 = vpop.xlane.xlu0 %1340
    %v1342 = vsel %vm729, %v1329, 0.0
    %1343 = vadd.xlane.f32.xlu0 %v1342
    %v1344 = vpop.xlane.xlu0 %1343
    %v1345 = vrcp.pop %v1332
    %v1346 = vrcp.pop %v1335
    %v1347 = vrcp.pop %v1338
    %v1348 = vrcp.pop %v1341
    %v1349 = vrcp.pop %v1344
    %v1350 = vmul.f32 %v1321, %v1345
    %v1351 = vmul.f32 %v1323, %v1346
    %v1352 = vmul.f32 %v1325, %v1347
    %v1353 = vmul.f32 %v1327, %v1348
    %v1354 = vmul.f32 %v1329, %v1349
    %v1356 = vsel %vm716, %v1350, 0
    %v1359 = vsel %vm716, %v1351, 0
    %v1362 = vsel %vm716, %v1352, 0
    %v1365 = vsel %vm716, %v1353, 0
    %v1368 = vsel %vm716, %v1354, 0
    %v1371 = vsel %vm788, %v1177, 0
    %1373 = vmatprep.subr.mxu0 0.0
    %1374 = vmatpush1.msra.mxu0 %v1157
    %1375 = vmatprep.subr.mxu0 0.0
    %1376 = vmatpush1.msra.mxu0 %v1162
    %1377 = vmatprep.subr.mxu0 0.0
    %1378 = vmatpush1.msra.mxu0 %v1167
    %1379 = vmatprep.subr.mxu0 0.0
    %1380 = vmatpush1.msra.mxu0 %v1172
    %1381 = vmatprep.subr.mxu0 0.0
    %1382 = vmatpush1.msra.mxu0 %v1371
    %1383 = vmatprep.subr.mxu0 0.0
    %1384 = vmatpush1.msra.mxu0 0.0
    %1385 = vmatprep.subr.mxu0 0.0
    %1386 = vmatpush1.msra.mxu0 0.0
    %1387 = vmatprep.subr.mxu0 0.0
    %1388 = vmatpush1.msra.mxu0 0.0
    %1389 = vmatprep.subr.mxu0 0.0
    %1390 = vmatpush1.msra.mxu0 0.0
    %1391 = vmatprep.subr.mxu0 0.0
    %1392 = vmatpush1.msra.mxu0 0.0
    %1393 = vmatprep.subr.mxu0 0.0
    %1394 = vmatpush1.msra.mxu0 0.0
    %1395 = vmatprep.subr.mxu0 0.0
    %1396 = vmatpush1.msra.mxu0 0.0
    %1397 = vmatprep.subr.mxu0 0.0
    %1398 = vmatpush1.msra.mxu0 0.0
    %1399 = vmatprep.subr.mxu0 0.0
    %1400 = vmatpush1.msra.mxu0 0.0
    %1401 = vmatprep.subr.mxu0 0.0
    %1402 = vmatpush1.msra.mxu0 0.0
    %1403 = vmatprep.subr.mxu0 0.0
    %1404 = vmatpush1.msra.mxu0 0.0
    %1405 = vmatprep.subr.mxu0 0.0
    %1406 = vmatpush1.msra.mxu0 0.0
    %1407 = vmatprep.subr.mxu0 0.0
    %1408 = vmatpush1.msra.mxu0 0.0
    %1409 = vmatprep.subr.mxu0 0.0
    %1410 = vmatpush1.msra.mxu0 0.0
    %1411 = vmatprep.subr.mxu0 0.0
    %1412 = vmatpush1.msra.mxu0 0.0
    %1413 = vmatprep.subr.mxu0 0.0
    %1414 = vmatpush1.msra.mxu0 0.0
    %1415 = vmatprep.subr.mxu0 0.0
    %1416 = vmatpush1.msra.mxu0 0.0
    %1417 = vmatprep.subr.mxu0 0.0
    %1418 = vmatpush1.msra.mxu0 0.0
    %1419 = vmatprep.subr.mxu0 0.0
    %1420 = vmatpush1.msra.mxu0 0.0
    %1421 = vmatprep.subr.mxu0 0.0
    %1422 = vmatpush1.msra.mxu0 0.0
    %1423 = vmatprep.subr.mxu0 0.0
    %1424 = vmatpush1.msra.mxu0 0.0
    %1425 = vmatprep.subr.mxu0 0.0
    %1426 = vmatpush1.msra.mxu0 0.0
    %1427 = vmatprep.subr.mxu0 0.0
    %1428 = vmatpush1.msra.mxu0 0.0
    %1429 = vmatprep.subr.mxu0 0.0
    %1430 = vmatpush1.msra.mxu0 0.0
    %1431 = vmatprep.subr.mxu0 0.0
    %1432 = vmatpush1.msra.mxu0 0.0
    %1433 = vmatprep.subr.mxu0 0.0
    %1434 = vmatpush1.msra.mxu0 0.0
    %1435 = vmatprep.subr.mxu0 0.0
    %1436 = vmatpush1.msra.mxu0 0.0
    %1437 = vmatprep.mubr.f32.mxu0 0.0
    %1438 = vmatmul.mubr.f32.gmra.mrb[0].mxu0 %v1356
    %v1439 = vpop.f32.mrb[0].mxu0
    %v1440 = vadd.f32 0.0, %v1439
    %v1441 = vpop.f32.mrb[0].mxu0
    %1442 = vmatprep.mubr.f32.mxu0 0.0
    %1443 = vmatmul.mubr.f32.gmra.mrb[0].mxu0 %v1359
    %v1444 = vpop.f32.mrb[0].mxu0
    %v1445 = vadd.f32 0.0, %v1444
    %v1446 = vpop.f32.mrb[0].mxu0
    %1447 = vmatprep.mubr.f32.mxu0 0.0
    %1448 = vmatmul.mubr.f32.gmra.mrb[0].mxu0 %v1362
    %v1449 = vpop.f32.mrb[0].mxu0
    %v1450 = vadd.f32 0.0, %v1449
    %v1451 = vpop.f32.mrb[0].mxu0
    %1452 = vmatprep.mubr.f32.mxu0 0.0
    %1453 = vmatmul.mubr.f32.gmra.mrb[0].mxu0 %v1365
    %v1454 = vpop.f32.mrb[0].mxu0
    %v1455 = vadd.f32 0.0, %v1454
    %v1456 = vpop.f32.mrb[0].mxu0
    %1457 = vmatprep.mubr.f32.mxu0 0.0
    %1458 = vmatmul.mubr.f32.gmra.mrb[0].mxu0 %v1368
    %v1459 = vpop.f32.mrb[0].mxu0
    %v1460 = vadd.f32 0.0, %v1459
    %v1461 = vpop.f32.mrb[0].mxu0
    %1462 = vdwg.mxu0
    %s1463 = scalar_lea.vmem %s10, 8
    %v1464 = vld [vmem:[%s1463] sm:$0xff]
    %v1466 = vsel %vm595, %v1440, 0
    %v1469 = vsel %vm595, %v1445, 0
    %v1472 = vsel %vm595, %v1450, 0
    %v1475 = vsel %vm595, %v1455, 0
    %v1478 = vsel %vm595, %v1460, 0
    %1480 = vmatprep.subr.mxu0 0.0
    %1481 = vmatpush1.msra.mxu0 %v1464
    %1482 = vmatprep.subr.mxu0 0.0
    %1483 = vmatpush1.msra.mxu0 0.0
    %1484 = vmatprep.subr.mxu0 0.0
    %1485 = vmatpush1.msra.mxu0 0.0
    %1486 = vmatprep.subr.mxu0 0.0
    %1487 = vmatpush1.msra.mxu0 0.0
    %1488 = vmatprep.subr.mxu0 0.0
    %1489 = vmatpush1.msra.mxu0 0.0
    %1490 = vmatprep.subr.mxu0 0.0
    %1491 = vmatpush1.msra.mxu0 0.0
    %1492 = vmatprep.subr.mxu0 0.0
    %1493 = vmatpush1.msra.mxu0 0.0
    %1494 = vmatprep.subr.mxu0 0.0
    %1495 = vmatpush1.msra.mxu0 0.0
    %1496 = vmatprep.subr.mxu0 0.0
    %1497 = vmatpush1.msra.mxu0 0.0
    %1498 = vmatprep.subr.mxu0 0.0
    %1499 = vmatpush1.msra.mxu0 0.0
    %1500 = vmatprep.subr.mxu0 0.0
    %1501 = vmatpush1.msra.mxu0 0.0
    %1502 = vmatprep.subr.mxu0 0.0
    %1503 = vmatpush1.msra.mxu0 0.0
    %1504 = vmatprep.subr.mxu0 0.0
    %1505 = vmatpush1.msra.mxu0 0.0
    %1506 = vmatprep.subr.mxu0 0.0
    %1507 = vmatpush1.msra.mxu0 0.0
    %1508 = vmatprep.subr.mxu0 0.0
    %1509 = vmatpush1.msra.mxu0 0.0
    %1510 = vmatprep.subr.mxu0 0.0
    %1511 = vmatpush1.msra.mxu0 0.0
    %1512 = vmatprep.subr.mxu0 0.0
    %1513 = vmatpush1.msra.mxu0 0.0
    %1514 = vmatprep.subr.mxu0 0.0
    %1515 = vmatpush1.msra.mxu0 0.0
    %1516 = vmatprep.subr.mxu0 0.0
    %1517 = vmatpush1.msra.mxu0 0.0
    %1518 = vmatprep.subr.mxu0 0.0
    %1519 = vmatpush1.msra.mxu0 0.0
    %1520 = vmatprep.subr.mxu0 0.0
    %1521 = vmatpush1.msra.mxu0 0.0
    %1522 = vmatprep.subr.mxu0 0.0
    %1523 = vmatpush1.msra.mxu0 0.0
    %1524 = vmatprep.subr.mxu0 0.0
    %1525 = vmatpush1.msra.mxu0 0.0
    %1526 = vmatprep.subr.mxu0 0.0
    %1527 = vmatpush1.msra.mxu0 0.0
    %1528 = vmatprep.subr.mxu0 0.0
    %1529 = vmatpush1.msra.mxu0 0.0
    %1530 = vmatprep.subr.mxu0 0.0
    %1531 = vmatpush1.msra.mxu0 0.0
    %1532 = vmatprep.subr.mxu0 0.0
    %1533 = vmatpush1.msra.mxu0 0.0
    %1534 = vmatprep.subr.mxu0 0.0
    %1535 = vmatpush1.msra.mxu0 0.0
    %1536 = vmatprep.subr.mxu0 0.0
    %1537 = vmatpush1.msra.mxu0 0.0
    %1538 = vmatprep.subr.mxu0 0.0
    %1539 = vmatpush1.msra.mxu0 0.0
    %1540 = vmatprep.subr.mxu0 0.0
    %1541 = vmatpush1.msra.mxu0 0.0
    %1542 = vmatprep.subr.mxu0 0.0
    %1543 = vmatpush1.msra.mxu0 0.0
    %1544 = vmatprep.mubr.f32.mxu0 0.0
    %1545 = vmatmul.mubr.f32.gmra.mrb[0].mxu0 %v1466
    %v1546 = vpop.f32.mrb[0].mxu0
    %v1547 = vadd.f32 0.0, %v1546
    %v1548 = vpop.f32.mrb[0].mxu0
    %1549 = vmatprep.mubr.f32.mxu0 0.0
    %1550 = vmatmul.mubr.f32.gmra.mrb[0].mxu0 %v1469
    %v1551 = vpop.f32.mrb[0].mxu0
    %v1552 = vadd.f32 0.0, %v1551
    %v1553 = vpop.f32.mrb[0].mxu0
    %1554 = vmatprep.mubr.f32.mxu0 0.0
    %1555 = vmatmul.mubr.f32.gmra.mrb[0].mxu0 %v1472
    %v1556 = vpop.f32.mrb[0].mxu0
    %v1557 = vadd.f32 0.0, %v1556
    %v1558 = vpop.f32.mrb[0].mxu0
    %1559 = vmatprep.mubr.f32.mxu0 0.0
    %1560 = vmatmul.mubr.f32.gmra.mrb[0].mxu0 %v1475
    %v1561 = vpop.f32.mrb[0].mxu0
    %v1562 = vadd.f32 0.0, %v1561
    %v1563 = vpop.f32.mrb[0].mxu0
    %1564 = vmatprep.mubr.f32.mxu0 0.0
    %1565 = vmatmul.mubr.f32.gmra.mrb[0].mxu0 %v1478
    %v1566 = vpop.f32.mrb[0].mxu0
    %v1567 = vadd.f32 0.0, %v1566
    %v1568 = vpop.f32.mrb[0].mxu0
    %1569 = vdwg.mxu0
    %v1571 = vsel %vm595, %v859, 0
    %v1574 = vsel %vm595, %v864, 0
    %v1577 = vsel %vm595, %v869, 0
    %v1580 = vsel %vm595, %v874, 0
    %v1583 = vsel %vm595, %v879, 0
    %1585 = vmatprep.subr.mxu0 0.0
    %1586 = vmatpush1.msra.mxu0 %v882
    %1587 = vmatprep.subr.mxu0 0.0
    %1588 = vmatpush1.msra.mxu0 0.0
    %1589 = vmatprep.subr.mxu0 0.0
    %1590 = vmatpush1.msra.mxu0 0.0
    %1591 = vmatprep.subr.mxu0 0.0
    %1592 = vmatpush1.msra.mxu0 0.0
    %1593 = vmatprep.subr.mxu0 0.0
    %1594 = vmatpush1.msra.mxu0 0.0
    %1595 = vmatprep.subr.mxu0 0.0
    %1596 = vmatpush1.msra.mxu0 0.0
    %1597 = vmatprep.subr.mxu0 0.0
    %1598 = vmatpush1.msra.mxu0 0.0
    %1599 = vmatprep.subr.mxu0 0.0
    %1600 = vmatpush1.msra.mxu0 0.0
    %1601 = vmatprep.subr.mxu0 0.0
    %1602 = vmatpush1.msra.mxu0 0.0
    %1603 = vmatprep.subr.mxu0 0.0
    %1604 = vmatpush1.msra.mxu0 0.0
    %1605 = vmatprep.subr.mxu0 0.0
    %1606 = vmatpush1.msra.mxu0 0.0
    %1607 = vmatprep.subr.mxu0 0.0
    %1608 = vmatpush1.msra.mxu0 0.0
    %1609 = vmatprep.subr.mxu0 0.0
    %1610 = vmatpush1.msra.mxu0 0.0
    %1611 = vmatprep.subr.mxu0 0.0
    %1612 = vmatpush1.msra.mxu0 0.0
    %1613 = vmatprep.subr.mxu0 0.0
    %1614 = vmatpush1.msra.mxu0 0.0
    %1615 = vmatprep.subr.mxu0 0.0
    %1616 = vmatpush1.msra.mxu0 0.0
    %1617 = vmatprep.subr.mxu0 0.0
    %1618 = vmatpush1.msra.mxu0 0.0
    %1619 = vmatprep.subr.mxu0 0.0
    %1620 = vmatpush1.msra.mxu0 0.0
    %1621 = vmatprep.subr.mxu0 0.0
    %1622 = vmatpush1.msra.mxu0 0.0
    %1623 = vmatprep.subr.mxu0 0.0
    %1624 = vmatpush1.msra.mxu0 0.0
    %1625 = vmatprep.subr.mxu0 0.0
    %1626 = vmatpush1.msra.mxu0 0.0
    %1627 = vmatprep.subr.mxu0 0.0
    %1628 = vmatpush1.msra.mxu0 0.0
    %1629 = vmatprep.subr.mxu0 0.0
    %1630 = vmatpush1.msra.mxu0 0.0
    %1631 = vmatprep.subr.mxu0 0.0
    %1632 = vmatpush1.msra.mxu0 0.0
    %1633 = vmatprep.subr.mxu0 0.0
    %1634 = vmatpush1.msra.mxu0 0.0
    %1635 = vmatprep.subr.mxu0 0.0
    %1636 = vmatpush1.msra.mxu0 0.0
    %1637 = vmatprep.subr.mxu0 0.0
    %1638 = vmatpush1.msra.mxu0 0.0
    %1639 = vmatprep.subr.mxu0 0.0
    %1640 = vmatpush1.msra.mxu0 0.0
    %1641 = vmatprep.subr.mxu0 0.0
    %1642 = vmatpush1.msra.mxu0 0.0
    %1643 = vmatprep.subr.mxu0 0.0
    %1644 = vmatpush1.msra.mxu0 0.0
    %1645 = vmatprep.subr.mxu0 0.0
    %1646 = vmatpush1.msra.mxu0 0.0
    %1647 = vmatprep.subr.mxu0 0.0
    %1648 = vmatpush1.msra.mxu0 0.0
    %1649 = vmatprep.mubr.f32.mxu0 0.0
    %1650 = vmatmul.mubr.f32.gmra.mrb[0].mxu0 %v1571
    %v1651 = vpop.f32.mrb[0].mxu0
    %v1652 = vadd.f32 %v1547, %v1651
    %v1653 = vpop.f32.mrb[0].mxu0
    %1654 = vmatprep.mubr.f32.mxu0 0.0
    %1655 = vmatmul.mubr.f32.gmra.mrb[0].mxu0 %v1574
    %v1656 = vpop.f32.mrb[0].mxu0
    %v1657 = vadd.f32 %v1552, %v1656
    %v1658 = vpop.f32.mrb[0].mxu0
    %1659 = vmatprep.mubr.f32.mxu0 0.0
    %1660 = vmatmul.mubr.f32.gmra.mrb[0].mxu0 %v1577
    %v1661 = vpop.f32.mrb[0].mxu0
    %v1662 = vadd.f32 %v1557, %v1661
    %v1663 = vpop.f32.mrb[0].mxu0
    %1664 = vmatprep.mubr.f32.mxu0 0.0
    %1665 = vmatmul.mubr.f32.gmra.mrb[0].mxu0 %v1580
    %v1666 = vpop.f32.mrb[0].mxu0
    %v1667 = vadd.f32 %v1562, %v1666
    %v1668 = vpop.f32.mrb[0].mxu0
    %1669 = vmatprep.mubr.f32.mxu0 0.0
    %1670 = vmatmul.mubr.f32.gmra.mrb[0].mxu0 %v1583
    %v1671 = vpop.f32.mrb[0].mxu0
    %v1672 = vadd.f32 %v1567, %v1671
    %v1673 = vpop.f32.mrb[0].mxu0
    %1674 = vdwg.mxu0
    %s1675 = scalar_lea.vmem %s7, 80
    %v1676 = vld [vmem:[%s1675] sm:$0xff]
    %v1677 = vld [vmem:[%s1675 + $0x8] sm:$0xff]
    %v1678 = vld [vmem:[%s1675 + $0x10] sm:$0xff]
    %v1679 = vld [vmem:[%s1675 + $0x18] sm:$0xff]
    %v1680 = vld [vmem:[%s1675 + $0x20] sm:$0x1]
    %v1682 = vsel %vm305, %v1680, 0
    %1684 = vmatprep.subr.mxu0 0.0
    %1685 = vmatpush1.msra.mxu0 %v1676
    %1686 = vmatprep.subr.mxu0 0.0
    %1687 = vmatpush1.msra.mxu0 %v1677
    %1688 = vmatprep.subr.mxu0 0.0
    %1689 = vmatpush1.msra.mxu0 %v1678
    %1690 = vmatprep.subr.mxu0 0.0
    %1691 = vmatpush1.msra.mxu0 %v1679
    %1692 = vmatprep.subr.mxu0 0.0
    %1693 = vmatpush1.msra.mxu0 %v1682
    %1694 = vmatprep.subr.mxu0 0.0
    %1695 = vmatpush1.msra.mxu0 0.0
    %1696 = vmatprep.subr.mxu0 0.0
    %1697 = vmatpush1.msra.mxu0 0.0
    %1698 = vmatprep.subr.mxu0 0.0
    %1699 = vmatpush1.msra.mxu0 0.0
    %1700 = vmatprep.subr.mxu0 0.0
    %1701 = vmatpush1.msra.mxu0 0.0
    %1702 = vmatprep.subr.mxu0 0.0
    %1703 = vmatpush1.msra.mxu0 0.0
    %1704 = vmatprep.subr.mxu0 0.0
    %1705 = vmatpush1.msra.mxu0 0.0
    %1706 = vmatprep.subr.mxu0 0.0
    %1707 = vmatpush1.msra.mxu0 0.0
    %1708 = vmatprep.subr.mxu0 0.0
    %1709 = vmatpush1.msra.mxu0 0.0
    %1710 = vmatprep.subr.mxu0 0.0
    %1711 = vmatpush1.msra.mxu0 0.0
    %1712 = vmatprep.subr.mxu0 0.0
    %1713 = vmatpush1.msra.mxu0 0.0
    %1714 = vmatprep.subr.mxu0 0.0
    %1715 = vmatpush1.msra.mxu0 0.0
    %1716 = vmatprep.subr.mxu0 0.0
    %1717 = vmatpush1.msra.mxu0 0.0
    %1718 = vmatprep.subr.mxu0 0.0
    %1719 = vmatpush1.msra.mxu0 0.0
    %1720 = vmatprep.subr.mxu0 0.0
    %1721 = vmatpush1.msra.mxu0 0.0
    %1722 = vmatprep.subr.mxu0 0.0
    %1723 = vmatpush1.msra.mxu0 0.0
    %1724 = vmatprep.subr.mxu0 0.0
    %1725 = vmatpush1.msra.mxu0 0.0
    %1726 = vmatprep.subr.mxu0 0.0
    %1727 = vmatpush1.msra.mxu0 0.0
    %1728 = vmatprep.subr.mxu0 0.0
    %1729 = vmatpush1.msra.mxu0 0.0
    %1730 = vmatprep.subr.mxu0 0.0
    %1731 = vmatpush1.msra.mxu0 0.0
    %1732 = vmatprep.subr.mxu0 0.0
    %1733 = vmatpush1.msra.mxu0 0.0
    %1734 = vmatprep.subr.mxu0 0.0
    %1735 = vmatpush1.msra.mxu0 0.0
    %1736 = vmatprep.subr.mxu0 0.0
    %1737 = vmatpush1.msra.mxu0 0.0
    %1738 = vmatprep.subr.mxu0 0.0
    %1739 = vmatpush1.msra.mxu0 0.0
    %1740 = vmatprep.subr.mxu0 0.0
    %1741 = vmatpush1.msra.mxu0 0.0
    %1742 = vmatprep.subr.mxu0 0.0
    %1743 = vmatpush1.msra.mxu0 0.0
    %1744 = vmatprep.subr.mxu0 0.0
    %1745 = vmatpush1.msra.mxu0 0.0
    %1746 = vmatprep.subr.mxu0 0.0
    %1747 = vmatpush1.msra.mxu0 0.0
    %1748 = vmatprep.mubr.f32.mxu0 0.0
    %1749 = vmatmul.mubr.f32.gmra.mrb[0].mxu0 %v291
    %v1750 = vpop.f32.mrb[0].mxu0
    %v1751 = vadd.f32 0.0, %v1750
    %v1752 = vpop.f32.mrb[0].mxu0
    %1753 = vmatprep.mubr.f32.mxu0 0.0
    %1754 = vmatmul.mubr.f32.gmra.mrb[0].mxu0 %v294
    %v1755 = vpop.f32.mrb[0].mxu0
    %v1756 = vadd.f32 0.0, %v1755
    %v1757 = vpop.f32.mrb[0].mxu0
    %1758 = vmatprep.mubr.f32.mxu0 0.0
    %1759 = vmatmul.mubr.f32.gmra.mrb[0].mxu0 %v297
    %v1760 = vpop.f32.mrb[0].mxu0
    %v1761 = vadd.f32 0.0, %v1760
    %v1762 = vpop.f32.mrb[0].mxu0
    %1763 = vmatprep.mubr.f32.mxu0 0.0
    %1764 = vmatmul.mubr.f32.gmra.mrb[0].mxu0 %v300
    %v1765 = vpop.f32.mrb[0].mxu0
    %v1766 = vadd.f32 0.0, %v1765
    %v1767 = vpop.f32.mrb[0].mxu0
    %1768 = vmatprep.mubr.f32.mxu0 0.0
    %1769 = vmatmul.mubr.f32.gmra.mrb[0].mxu0 %v303
    %v1770 = vpop.f32.mrb[0].mxu0
    %v1771 = vadd.f32 0.0, %v1770
    %v1772 = vpop.f32.mrb[0].mxu0
    %1773 = vdwg.mxu0
    %s1774 = scalar_lea.vmem %s8, 80
    %v1775 = vld [vmem:[%s1774] sm:$0xff]
    %v1776 = vld [vmem:[%s1774 + $0x8] sm:$0xff]
    %v1777 = vld [vmem:[%s1774 + $0x10] sm:$0xff]
    %v1778 = vld [vmem:[%s1774 + $0x18] sm:$0xff]
    %v1779 = vld [vmem:[%s1774 + $0x20] sm:$0x1]
    %v1781 = vsel %vm305, %v1779, 0
    %1783 = vmatprep.subr.mxu0 0.0
    %1784 = vmatpush1.msra.mxu0 %v1775
    %1785 = vmatprep.subr.mxu0 0.0
    %1786 = vmatpush1.msra.mxu0 %v1776
    %1787 = vmatprep.subr.mxu0 0.0
    %1788 = vmatpush1.msra.mxu0 %v1777
    %1789 = vmatprep.subr.mxu0 0.0
    %1790 = vmatpush1.msra.mxu0 %v1778
    %1791 = vmatprep.subr.mxu0 0.0
    %1792 = vmatpush1.msra.mxu0 %v1781
    %1793 = vmatprep.subr.mxu0 0.0
    %1794 = vmatpush1.msra.mxu0 0.0
    %1795 = vmatprep.subr.mxu0 0.0
    %1796 = vmatpush1.msra.mxu0 0.0
    %1797 = vmatprep.subr.mxu0 0.0
    %1798 = vmatpush1.msra.mxu0 0.0
    %1799 = vmatprep.subr.mxu0 0.0
    %1800 = vmatpush1.msra.mxu0 0.0
    %1801 = vmatprep.subr.mxu0 0.0
    %1802 = vmatpush1.msra.mxu0 0.0
    %1803 = vmatprep.subr.mxu0 0.0
    %1804 = vmatpush1.msra.mxu0 0.0
    %1805 = vmatprep.subr.mxu0 0.0
    %1806 = vmatpush1.msra.mxu0 0.0
    %1807 = vmatprep.subr.mxu0 0.0
    %1808 = vmatpush1.msra.mxu0 0.0
    %1809 = vmatprep.subr.mxu0 0.0
    %1810 = vmatpush1.msra.mxu0 0.0
    %1811 = vmatprep.subr.mxu0 0.0
    %1812 = vmatpush1.msra.mxu0 0.0
    %1813 = vmatprep.subr.mxu0 0.0
    %1814 = vmatpush1.msra.mxu0 0.0
    %1815 = vmatprep.subr.mxu0 0.0
    %1816 = vmatpush1.msra.mxu0 0.0
    %1817 = vmatprep.subr.mxu0 0.0
    %1818 = vmatpush1.msra.mxu0 0.0
    %1819 = vmatprep.subr.mxu0 0.0
    %1820 = vmatpush1.msra.mxu0 0.0
    %1821 = vmatprep.subr.mxu0 0.0
    %1822 = vmatpush1.msra.mxu0 0.0
    %1823 = vmatprep.subr.mxu0 0.0
    %1824 = vmatpush1.msra.mxu0 0.0
    %1825 = vmatprep.subr.mxu0 0.0
    %1826 = vmatpush1.msra.mxu0 0.0
    %1827 = vmatprep.subr.mxu0 0.0
    %1828 = vmatpush1.msra.mxu0 0.0
    %1829 = vmatprep.subr.mxu0 0.0
    %1830 = vmatpush1.msra.mxu0 0.0
    %1831 = vmatprep.subr.mxu0 0.0
    %1832 = vmatpush1.msra.mxu0 0.0
    %1833 = vmatprep.subr.mxu0 0.0
    %1834 = vmatpush1.msra.mxu0 0.0
    %1835 = vmatprep.subr.mxu0 0.0
    %1836 = vmatpush1.msra.mxu0 0.0
    %1837 = vmatprep.subr.mxu0 0.0
    %1838 = vmatpush1.msra.mxu0 0.0
    %1839 = vmatprep.subr.mxu0 0.0
    %1840 = vmatpush1.msra.mxu0 0.0
    %1841 = vmatprep.subr.mxu0 0.0
    %1842 = vmatpush1.msra.mxu0 0.0
    %1843 = vmatprep.subr.mxu0 0.0
    %1844 = vmatpush1.msra.mxu0 0.0
    %1845 = vmatprep.subr.mxu0 0.0
    %1846 = vmatpush1.msra.mxu0 0.0
    %1847 = vmatprep.mubr.f32.mxu0 0.0
    %1848 = vmatmul.mubr.f32.gmra.mrb[0].mxu0 %v291
    %v1849 = vpop.f32.mrb[0].mxu0
    %v1850 = vadd.f32 0.0, %v1849
    %v1851 = vpop.f32.mrb[0].mxu0
    %1852 = vmatprep.mubr.f32.mxu0 0.0
    %1853 = vmatmul.mubr.f32.gmra.mrb[0].mxu0 %v294
    %v1854 = vpop.f32.mrb[0].mxu0
    %v1855 = vadd.f32 0.0, %v1854
    %v1856 = vpop.f32.mrb[0].mxu0
    %1857 = vmatprep.mubr.f32.mxu0 0.0
    %1858 = vmatmul.mubr.f32.gmra.mrb[0].mxu0 %v297
    %v1859 = vpop.f32.mrb[0].mxu0
    %v1860 = vadd.f32 0.0, %v1859
    %v1861 = vpop.f32.mrb[0].mxu0
    %1862 = vmatprep.mubr.f32.mxu0 0.0
    %1863 = vmatmul.mubr.f32.gmra.mrb[0].mxu0 %v300
    %v1864 = vpop.f32.mrb[0].mxu0
    %v1865 = vadd.f32 0.0, %v1864
    %v1866 = vpop.f32.mrb[0].mxu0
    %1867 = vmatprep.mubr.f32.mxu0 0.0
    %1868 = vmatmul.mubr.f32.gmra.mrb[0].mxu0 %v303
    %v1869 = vpop.f32.mrb[0].mxu0
    %v1870 = vadd.f32 0.0, %v1869
    %v1871 = vpop.f32.mrb[0].mxu0
    %1872 = vdwg.mxu0
    %s1873 = scalar_lea.vmem %s9, 80
    %v1874 = vld [vmem:[%s1873] sm:$0xff]
    %v1875 = vld [vmem:[%s1873 + $0x8] sm:$0xff]
    %v1876 = vld [vmem:[%s1873 + $0x10] sm:$0xff]
    %v1877 = vld [vmem:[%s1873 + $0x18] sm:$0xff]
    %v1878 = vld [vmem:[%s1873 + $0x20] sm:$0x1]
    %v1880 = vsel %vm305, %v1878, 0
    %1882 = vmatprep.subr.mxu0 0.0
    %1883 = vmatpush1.msra.mxu0 %v1874
    %1884 = vmatprep.subr.mxu0 0.0
    %1885 = vmatpush1.msra.mxu0 %v1875
    %1886 = vmatprep.subr.mxu0 0.0
    %1887 = vmatpush1.msra.mxu0 %v1876
    %1888 = vmatprep.subr.mxu0 0.0
    %1889 = vmatpush1.msra.mxu0 %v1877
    %1890 = vmatprep.subr.mxu0 0.0
    %1891 = vmatpush1.msra.mxu0 %v1880
    %1892 = vmatprep.subr.mxu0 0.0
    %1893 = vmatpush1.msra.mxu0 0.0
    %1894 = vmatprep.subr.mxu0 0.0
    %1895 = vmatpush1.msra.mxu0 0.0
    %1896 = vmatprep.subr.mxu0 0.0
    %1897 = vmatpush1.msra.mxu0 0.0
    %1898 = vmatprep.subr.mxu0 0.0
    %1899 = vmatpush1.msra.mxu0 0.0
    %1900 = vmatprep.subr.mxu0 0.0
    %1901 = vmatpush1.msra.mxu0 0.0
    %1902 = vmatprep.subr.mxu0 0.0
    %1903 = vmatpush1.msra.mxu0 0.0
    %1904 = vmatprep.subr.mxu0 0.0
    %1905 = vmatpush1.msra.mxu0 0.0
    %1906 = vmatprep.subr.mxu0 0.0
    %1907 = vmatpush1.msra.mxu0 0.0
    %1908 = vmatprep.subr.mxu0 0.0
    %1909 = vmatpush1.msra.mxu0 0.0
    %1910 = vmatprep.subr.mxu0 0.0
    %1911 = vmatpush1.msra.mxu0 0.0
    %1912 = vmatprep.subr.mxu0 0.0
    %1913 = vmatpush1.msra.mxu0 0.0
    %1914 = vmatprep.subr.mxu0 0.0
    %1915 = vmatpush1.msra.mxu0 0.0
    %1916 = vmatprep.subr.mxu0 0.0
    %1917 = vmatpush1.msra.mxu0 0.0
    %1918 = vmatprep.subr.mxu0 0.0
    %1919 = vmatpush1.msra.mxu0 0.0
    %1920 = vmatprep.subr.mxu0 0.0
    %1921 = vmatpush1.msra.mxu0 0.0
    %1922 = vmatprep.subr.mxu0 0.0
    %1923 = vmatpush1.msra.mxu0 0.0
    %1924 = vmatprep.subr.mxu0 0.0
    %1925 = vmatpush1.msra.mxu0 0.0
    %1926 = vmatprep.subr.mxu0 0.0
    %1927 = vmatpush1.msra.mxu0 0.0
    %1928 = vmatprep.subr.mxu0 0.0
    %1929 = vmatpush1.msra.mxu0 0.0
    %1930 = vmatprep.subr.mxu0 0.0
    %1931 = vmatpush1.msra.mxu0 0.0
    %1932 = vmatprep.subr.mxu0 0.0
    %1933 = vmatpush1.msra.mxu0 0.0
    %1934 = vmatprep.subr.mxu0 0.0
    %1935 = vmatpush1.msra.mxu0 0.0
    %1936 = vmatprep.subr.mxu0 0.0
    %1937 = vmatpush1.msra.mxu0 0.0
    %1938 = vmatprep.subr.mxu0 0.0
    %1939 = vmatpush1.msra.mxu0 0.0
    %1940 = vmatprep.subr.mxu0 0.0
    %1941 = vmatpush1.msra.mxu0 0.0
    %1942 = vmatprep.subr.mxu0 0.0
    %1943 = vmatpush1.msra.mxu0 0.0
    %1944 = vmatprep.subr.mxu0 0.0
    %1945 = vmatpush1.msra.mxu0 0.0
    %1946 = vmatprep.mubr.f32.mxu0 0.0
    %1947 = vmatmul.mubr.f32.gmra.mrb[0].mxu0 %v291
    %v1948 = vpop.f32.mrb[0].mxu0
    %v1949 = vadd.f32 0.0, %v1948
    %v1950 = vpop.f32.mrb[0].mxu0
    %1951 = vmatprep.mubr.f32.mxu0 0.0
    %1952 = vmatmul.mubr.f32.gmra.mrb[0].mxu0 %v294
    %v1953 = vpop.f32.mrb[0].mxu0
    %v1954 = vadd.f32 0.0, %v1953
    %v1955 = vpop.f32.mrb[0].mxu0
    %1956 = vmatprep.mubr.f32.mxu0 0.0
    %1957 = vmatmul.mubr.f32.gmra.mrb[0].mxu0 %v297
    %v1958 = vpop.f32.mrb[0].mxu0
    %v1959 = vadd.f32 0.0, %v1958
    %v1960 = vpop.f32.mrb[0].mxu0
    %1961 = vmatprep.mubr.f32.mxu0 0.0
    %1962 = vmatmul.mubr.f32.gmra.mrb[0].mxu0 %v300
    %v1963 = vpop.f32.mrb[0].mxu0
    %v1964 = vadd.f32 0.0, %v1963
    %v1965 = vpop.f32.mrb[0].mxu0
    %1966 = vmatprep.mubr.f32.mxu0 0.0
    %1967 = vmatmul.mubr.f32.gmra.mrb[0].mxu0 %v303
    %v1968 = vpop.f32.mrb[0].mxu0
    %v1969 = vadd.f32 0.0, %v1968
    %v1970 = vpop.f32.mrb[0].mxu0
    %1971 = vdwg.mxu0
    %v1973 = vsel %vm595, %v1751, 0
    %v1976 = vsel %vm595, %v1756, 0
    %v1979 = vsel %vm595, %v1761, 0
    %v1982 = vsel %vm595, %v1766, 0
    %v1985 = vsel %vm595, %v1771, 0
    %v1988 = vsel %vm595, %v1850, 0
    %v1991 = vsel %vm595, %v1855, 0
    %v1994 = vsel %vm595, %v1860, 0
    %v1997 = vsel %vm595, %v1865, 0
    %v2000 = vsel %vm595, %v1870, 0
    %2002 = vmatprep.subr.mxu0 0.0
    %2003 = vmatpush1.xpose.msra.mxu0 %v1988
    %2004 = vmatprep.subr.mxu0 0.0
    %2005 = vmatpush1.xpose.msra.mxu0 %v1991
    %2006 = vmatprep.subr.mxu0 0.0
    %2007 = vmatpush1.xpose.msra.mxu0 %v1994
    %2008 = vmatprep.subr.mxu0 0.0
    %2009 = vmatpush1.xpose.msra.mxu0 %v1997
    %2010 = vmatprep.subr.mxu0 0.0
    %2011 = vmatpush1.xpose.msra.mxu0 %v2000
    %2012 = vmatprep.subr.mxu0 0.0
    %2013 = vmatpush1.xpose.msra.mxu0 0.0
    %2014 = vmatprep.subr.mxu0 0.0
    %2015 = vmatpush1.xpose.msra.mxu0 0.0
    %2016 = vmatprep.subr.mxu0 0.0
    %2017 = vmatpush1.xpose.msra.mxu0 0.0
    %2018 = vmatprep.subr.mxu0 0.0
    %2019 = vmatpush1.xpose.msra.mxu0 0.0
    %2020 = vmatprep.subr.mxu0 0.0
    %2021 = vmatpush1.xpose.msra.mxu0 0.0
    %2022 = vmatprep.subr.mxu0 0.0
    %2023 = vmatpush1.xpose.msra.mxu0 0.0
    %2024 = vmatprep.subr.mxu0 0.0
    %2025 = vmatpush1.xpose.msra.mxu0 0.0
    %2026 = vmatprep.subr.mxu0 0.0
    %2027 = vmatpush1.xpose.msra.mxu0 0.0
    %2028 = vmatprep.subr.mxu0 0.0
    %2029 = vmatpush1.xpose.msra.mxu0 0.0
    %2030 = vmatprep.subr.mxu0 0.0
    %2031 = vmatpush1.xpose.msra.mxu0 0.0
    %2032 = vmatprep.subr.mxu0 0.0
    %2033 = vmatpush1.xpose.msra.mxu0 0.0
    %2034 = vmatprep.subr.mxu0 0.0
    %2035 = vmatpush1.xpose.msra.mxu0 0.0
    %2036 = vmatprep.subr.mxu0 0.0
    %2037 = vmatpush1.xpose.msra.mxu0 0.0
    %2038 = vmatprep.subr.mxu0 0.0
    %2039 = vmatpush1.xpose.msra.mxu0 0.0
    %2040 = vmatprep.subr.mxu0 0.0
    %2041 = vmatpush1.xpose.msra.mxu0 0.0
    %2042 = vmatprep.subr.mxu0 0.0
    %2043 = vmatpush1.xpose.msra.mxu0 0.0
    %2044 = vmatprep.subr.mxu0 0.0
    %2045 = vmatpush1.xpose.msra.mxu0 0.0
    %2046 = vmatprep.subr.mxu0 0.0
    %2047 = vmatpush1.xpose.msra.mxu0 0.0
    %2048 = vmatprep.subr.mxu0 0.0
    %2049 = vmatpush1.xpose.msra.mxu0 0.0
    %2050 = vmatprep.subr.mxu0 0.0
    %2051 = vmatpush1.xpose.msra.mxu0 0.0
    %2052 = vmatprep.subr.mxu0 0.0
    %2053 = vmatpush1.xpose.msra.mxu0 0.0
    %2054 = vmatprep.subr.mxu0 0.0
    %2055 = vmatpush1.xpose.msra.mxu0 0.0
    %2056 = vmatprep.subr.mxu0 0.0
    %2057 = vmatpush1.xpose.msra.mxu0 0.0
    %2058 = vmatprep.subr.mxu0 0.0
    %2059 = vmatpush1.xpose.msra.mxu0 0.0
    %2060 = vmatprep.subr.mxu0 0.0
    %2061 = vmatpush1.xpose.msra.mxu0 0.0
    %2062 = vmatprep.subr.mxu0 0.0
    %2063 = vmatpush1.xpose.msra.mxu0 0.0
    %2064 = vmatprep.subr.mxu0 0.0
    %2065 = vmatpush1.xpose.msra.mxu0 0.0
    %2066 = vmatprep.mubr.f32.mxu0 0.0
    %2067 = vmatmul.mubr.f32.gmra.mrb[0].mxu0 %v1973
    %v2068 = vpop.f32.mrb[0].mxu0
    %v2069 = vadd.f32 %v181, %v2068
    %v2070 = vpop.f32.mrb[0].mxu0
    %2071 = vmatprep.mubr.f32.mxu0 0.0
    %2072 = vmatmul.mubr.f32.gmra.mrb[0].mxu0 %v1976
    %v2073 = vpop.f32.mrb[0].mxu0
    %v2074 = vadd.f32 %v182, %v2073
    %v2075 = vpop.f32.mrb[0].mxu0
    %2076 = vmatprep.mubr.f32.mxu0 0.0
    %2077 = vmatmul.mubr.f32.gmra.mrb[0].mxu0 %v1979
    %v2078 = vpop.f32.mrb[0].mxu0
    %v2079 = vadd.f32 %v183, %v2078
    %v2080 = vpop.f32.mrb[0].mxu0
    %2081 = vmatprep.mubr.f32.mxu0 0.0
    %2082 = vmatmul.mubr.f32.gmra.mrb[0].mxu0 %v1982
    %v2083 = vpop.f32.mrb[0].mxu0
    %v2084 = vadd.f32 %v184, %v2083
    %v2085 = vpop.f32.mrb[0].mxu0
    %2086 = vmatprep.mubr.f32.mxu0 0.0
    %2087 = vmatmul.mubr.f32.gmra.mrb[0].mxu0 %v1985
    %v2088 = vpop.f32.mrb[0].mxu0
    %v2089 = vadd.f32 %v185, %v2088
    %v2090 = vpop.f32.mrb[0].mxu0
    %2091 = vdwg.mxu0
    %v2092 = vsel %vm716, %v2069, -inf
    %2093 = vmax.xlane.f32.xlu0 %v2092
    %v2094 = vpop.xlane.xlu0 %2093
    %v2095 = vsel %vm716, %v2074, -inf
    %2096 = vmax.xlane.f32.xlu0 %v2095
    %v2097 = vpop.xlane.xlu0 %2096
    %v2098 = vsel %vm716, %v2079, -inf
    %2099 = vmax.xlane.f32.xlu0 %v2098
    %v2100 = vpop.xlane.xlu0 %2099
    %v2101 = vsel %vm716, %v2084, -inf
    %2102 = vmax.xlane.f32.xlu0 %v2101
    %v2103 = vpop.xlane.xlu0 %2102
    %v2104 = vsel %vm729, %v2089, -inf
    %2105 = vmax.xlane.f32.xlu0 %v2104
    %v2106 = vpop.xlane.xlu0 %2105
    %v2107 = vsub.f32 %v2069, %v2094
    %v2108 = vsub.f32 %v2074, %v2097
    %v2109 = vsub.f32 %v2079, %v2100
    %v2110 = vsub.f32 %v2084, %v2103
    %v2111 = vsub.f32 %v2089, %v2106
    %v2112 = vmul.f32 %v2107, 1.442695
    %v2113 = vpow.pop %v2112
    %v2114 = vmul.f32 %v2108, 1.442695
    %v2115 = vpow.pop %v2114
    %v2116 = vmul.f32 %v2109, 1.442695
    %v2117 = vpow.pop %v2116
    %v2118 = vmul.f32 %v2110, 1.442695
    %v2119 = vpow.pop %v2118
    %v2120 = vmul.f32 %v2111, 1.442695
    %v2121 = vpow.pop %v2120
    %v2122 = vsel %vm716, %v2113, 0.0
    %2123 = vadd.xlane.f32.xlu0 %v2122
    %v2124 = vpop.xlane.xlu0 %2123
    %v2125 = vsel %vm716, %v2115, 0.0
    %2126 = vadd.xlane.f32.xlu0 %v2125
    %v2127 = vpop.xlane.xlu0 %2126
    %v2128 = vsel %vm716, %v2117, 0.0
    %2129 = vadd.xlane.f32.xlu0 %v2128
    %v2130 = vpop.xlane.xlu0 %2129
    %v2131 = vsel %vm716, %v2119, 0.0
    %2132 = vadd.xlane.f32.xlu0 %v2131
    %v2133 = vpop.xlane.xlu0 %2132
    %v2134 = vsel %vm729, %v2121, 0.0
    %2135 = vadd.xlane.f32.xlu0 %v2134
    %v2136 = vpop.xlane.xlu0 %2135
    %v2137 = vrcp.pop %v2124
    %v2138 = vrcp.pop %v2127
    %v2139 = vrcp.pop %v2130
    %v2140 = vrcp.pop %v2133
    %v2141 = vrcp.pop %v2136
    %v2142 = vmul.f32 %v2113, %v2137
    %v2143 = vmul.f32 %v2115, %v2138
    %v2144 = vmul.f32 %v2117, %v2139
    %v2145 = vmul.f32 %v2119, %v2140
    %v2146 = vmul.f32 %v2121, %v2141
    %v2148 = vsel %vm716, %v2142, 0
    %v2151 = vsel %vm716, %v2143, 0
    %v2154 = vsel %vm716, %v2144, 0
    %v2157 = vsel %vm716, %v2145, 0
    %v2160 = vsel %vm716, %v2146, 0
    %v2163 = vsel %vm788, %v1969, 0
    %2165 = vmatprep.subr.mxu0 0.0
    %2166 = vmatpush1.msra.mxu0 %v1949
    %2167 = vmatprep.subr.mxu0 0.0
    %2168 = vmatpush1.msra.mxu0 %v1954
    %2169 = vmatprep.subr.mxu0 0.0
    %2170 = vmatpush1.msra.mxu0 %v1959
    %2171 = vmatprep.subr.mxu0 0.0
    %2172 = vmatpush1.msra.mxu0 %v1964
    %2173 = vmatprep.subr.mxu0 0.0
    %2174 = vmatpush1.msra.mxu0 %v2163
    %2175 = vmatprep.subr.mxu0 0.0
    %2176 = vmatpush1.msra.mxu0 0.0
    %2177 = vmatprep.subr.mxu0 0.0
    %2178 = vmatpush1.msra.mxu0 0.0
    %2179 = vmatprep.subr.mxu0 0.0
    %2180 = vmatpush1.msra.mxu0 0.0
    %2181 = vmatprep.subr.mxu0 0.0
    %2182 = vmatpush1.msra.mxu0 0.0
    %2183 = vmatprep.subr.mxu0 0.0
    %2184 = vmatpush1.msra.mxu0 0.0
    %2185 = vmatprep.subr.mxu0 0.0
    %2186 = vmatpush1.msra.mxu0 0.0
    %2187 = vmatprep.subr.mxu0 0.0
    %2188 = vmatpush1.msra.mxu0 0.0
    %2189 = vmatprep.subr.mxu0 0.0
    %2190 = vmatpush1.msra.mxu0 0.0
    %2191 = vmatprep.subr.mxu0 0.0
    %2192 = vmatpush1.msra.mxu0 0.0
    %2193 = vmatprep.subr.mxu0 0.0
    %2194 = vmatpush1.msra.mxu0 0.0
    %2195 = vmatprep.subr.mxu0 0.0
    %2196 = vmatpush1.msra.mxu0 0.0
    %2197 = vmatprep.subr.mxu0 0.0
    %2198 = vmatpush1.msra.mxu0 0.0
    %2199 = vmatprep.subr.mxu0 0.0
    %2200 = vmatpush1.msra.mxu0 0.0
    %2201 = vmatprep.subr.mxu0 0.0
    %2202 = vmatpush1.msra.mxu0 0.0
    %2203 = vmatprep.subr.mxu0 0.0
    %2204 = vmatpush1.msra.mxu0 0.0
    %2205 = vmatprep.subr.mxu0 0.0
    %2206 = vmatpush1.msra.mxu0 0.0
    %2207 = vmatprep.subr.mxu0 0.0
    %2208 = vmatpush1.msra.mxu0 0.0
    %2209 = vmatprep.subr.mxu0 0.0
    %2210 = vmatpush1.msra.mxu0 0.0
    %2211 = vmatprep.subr.mxu0 0.0
    %2212 = vmatpush1.msra.mxu0 0.0
    %2213 = vmatprep.subr.mxu0 0.0
    %2214 = vmatpush1.msra.mxu0 0.0
    %2215 = vmatprep.subr.mxu0 0.0
    %2216 = vmatpush1.msra.mxu0 0.0
    %2217 = vmatprep.subr.mxu0 0.0
    %2218 = vmatpush1.msra.mxu0 0.0
    %2219 = vmatprep.subr.mxu0 0.0
    %2220 = vmatpush1.msra.mxu0 0.0
    %2221 = vmatprep.subr.mxu0 0.0
    %2222 = vmatpush1.msra.mxu0 0.0
    %2223 = vmatprep.subr.mxu0 0.0
    %2224 = vmatpush1.msra.mxu0 0.0
    %2225 = vmatprep.subr.mxu0 0.0
    %2226 = vmatpush1.msra.mxu0 0.0
    %2227 = vmatprep.subr.mxu0 0.0
    %2228 = vmatpush1.msra.mxu0 0.0
    %2229 = vmatprep.mubr.f32.mxu0 0.0
    %2230 = vmatmul.mubr.f32.gmra.mrb[0].mxu0 %v2148
    %v2231 = vpop.f32.mrb[0].mxu0
    %v2232 = vadd.f32 0.0, %v2231
    %v2233 = vpop.f32.mrb[0].mxu0
    %2234 = vmatprep.mubr.f32.mxu0 0.0
    %2235 = vmatmul.mubr.f32.gmra.mrb[0].mxu0 %v2151
    %v2236 = vpop.f32.mrb[0].mxu0
    %v2237 = vadd.f32 0.0, %v2236
    %v2238 = vpop.f32.mrb[0].mxu0
    %2239 = vmatprep.mubr.f32.mxu0 0.0
    %2240 = vmatmul.mubr.f32.gmra.mrb[0].mxu0 %v2154
    %v2241 = vpop.f32.mrb[0].mxu0
    %v2242 = vadd.f32 0.0, %v2241
    %v2243 = vpop.f32.mrb[0].mxu0
    %2244 = vmatprep.mubr.f32.mxu0 0.0
    %2245 = vmatmul.mubr.f32.gmra.mrb[0].mxu0 %v2157
    %v2246 = vpop.f32.mrb[0].mxu0
    %v2247 = vadd.f32 0.0, %v2246
    %v2248 = vpop.f32.mrb[0].mxu0
    %2249 = vmatprep.mubr.f32.mxu0 0.0
    %2250 = vmatmul.mubr.f32.gmra.mrb[0].mxu0 %v2160
    %v2251 = vpop.f32.mrb[0].mxu0
    %v2252 = vadd.f32 0.0, %v2251
    %v2253 = vpop.f32.mrb[0].mxu0
    %2254 = vdwg.mxu0
    %s2255 = scalar_lea.vmem %s10, 16
    %v2256 = vld [vmem:[%s2255] sm:$0xff]
    %v2258 = vsel %vm595, %v2232, 0
    %v2261 = vsel %vm595, %v2237, 0
    %v2264 = vsel %vm595, %v2242, 0
    %v2267 = vsel %vm595, %v2247, 0
    %v2270 = vsel %vm595, %v2252, 0
    %2272 = vmatprep.subr.mxu0 0.0
    %2273 = vmatpush1.msra.mxu0 %v2256
    %2274 = vmatprep.subr.mxu0 0.0
    %2275 = vmatpush1.msra.mxu0 0.0
    %2276 = vmatprep.subr.mxu0 0.0
    %2277 = vmatpush1.msra.mxu0 0.0
    %2278 = vmatprep.subr.mxu0 0.0
    %2279 = vmatpush1.msra.mxu0 0.0
    %2280 = vmatprep.subr.mxu0 0.0
    %2281 = vmatpush1.msra.mxu0 0.0
    %2282 = vmatprep.subr.mxu0 0.0
    %2283 = vmatpush1.msra.mxu0 0.0
    %2284 = vmatprep.subr.mxu0 0.0
    %2285 = vmatpush1.msra.mxu0 0.0
    %2286 = vmatprep.subr.mxu0 0.0
    %2287 = vmatpush1.msra.mxu0 0.0
    %2288 = vmatprep.subr.mxu0 0.0
    %2289 = vmatpush1.msra.mxu0 0.0
    %2290 = vmatprep.subr.mxu0 0.0
    %2291 = vmatpush1.msra.mxu0 0.0
    %2292 = vmatprep.subr.mxu0 0.0
    %2293 = vmatpush1.msra.mxu0 0.0
    %2294 = vmatprep.subr.mxu0 0.0
    %2295 = vmatpush1.msra.mxu0 0.0
    %2296 = vmatprep.subr.mxu0 0.0
    %2297 = vmatpush1.msra.mxu0 0.0
    %2298 = vmatprep.subr.mxu0 0.0
    %2299 = vmatpush1.msra.mxu0 0.0
    %2300 = vmatprep.subr.mxu0 0.0
    %2301 = vmatpush1.msra.mxu0 0.0
    %2302 = vmatprep.subr.mxu0 0.0
    %2303 = vmatpush1.msra.mxu0 0.0
    %2304 = vmatprep.subr.mxu0 0.0
    %2305 = vmatpush1.msra.mxu0 0.0
    %2306 = vmatprep.subr.mxu0 0.0
    %2307 = vmatpush1.msra.mxu0 0.0
    %2308 = vmatprep.subr.mxu0 0.0
    %2309 = vmatpush1.msra.mxu0 0.0
    %2310 = vmatprep.subr.mxu0 0.0
    %2311 = vmatpush1.msra.mxu0 0.0
    %2312 = vmatprep.subr.mxu0 0.0
    %2313 = vmatpush1.msra.mxu0 0.0
    %2314 = vmatprep.subr.mxu0 0.0
    %2315 = vmatpush1.msra.mxu0 0.0
    %2316 = vmatprep.subr.mxu0 0.0
    %2317 = vmatpush1.msra.mxu0 0.0
    %2318 = vmatprep.subr.mxu0 0.0
    %2319 = vmatpush1.msra.mxu0 0.0
    %2320 = vmatprep.subr.mxu0 0.0
    %2321 = vmatpush1.msra.mxu0 0.0
    %2322 = vmatprep.subr.mxu0 0.0
    %2323 = vmatpush1.msra.mxu0 0.0
    %2324 = vmatprep.subr.mxu0 0.0
    %2325 = vmatpush1.msra.mxu0 0.0
    %2326 = vmatprep.subr.mxu0 0.0
    %2327 = vmatpush1.msra.mxu0 0.0
    %2328 = vmatprep.subr.mxu0 0.0
    %2329 = vmatpush1.msra.mxu0 0.0
    %2330 = vmatprep.subr.mxu0 0.0
    %2331 = vmatpush1.msra.mxu0 0.0
    %2332 = vmatprep.subr.mxu0 0.0
    %2333 = vmatpush1.msra.mxu0 0.0
    %2334 = vmatprep.subr.mxu0 0.0
    %2335 = vmatpush1.msra.mxu0 0.0
    %2336 = vmatprep.mubr.f32.mxu0 0.0
    %2337 = vmatmul.mubr.f32.gmra.mrb[0].mxu0 %v2258
    %v2338 = vpop.f32.mrb[0].mxu0
    %v2339 = vadd.f32 0.0, %v2338
    %v2340 = vpop.f32.mrb[0].mxu0
    %2341 = vmatprep.mubr.f32.mxu0 0.0
    %2342 = vmatmul.mubr.f32.gmra.mrb[0].mxu0 %v2261
    %v2343 = vpop.f32.mrb[0].mxu0
    %v2344 = vadd.f32 0.0, %v2343
    %v2345 = vpop.f32.mrb[0].mxu0
    %2346 = vmatprep.mubr.f32.mxu0 0.0
    %2347 = vmatmul.mubr.f32.gmra.mrb[0].mxu0 %v2264
    %v2348 = vpop.f32.mrb[0].mxu0
    %v2349 = vadd.f32 0.0, %v2348
    %v2350 = vpop.f32.mrb[0].mxu0
    %2351 = vmatprep.mubr.f32.mxu0 0.0
    %2352 = vmatmul.mubr.f32.gmra.mrb[0].mxu0 %v2267
    %v2353 = vpop.f32.mrb[0].mxu0
    %v2354 = vadd.f32 0.0, %v2353
    %v2355 = vpop.f32.mrb[0].mxu0
    %2356 = vmatprep.mubr.f32.mxu0 0.0
    %2357 = vmatmul.mubr.f32.gmra.mrb[0].mxu0 %v2270
    %v2358 = vpop.f32.mrb[0].mxu0
    %v2359 = vadd.f32 0.0, %v2358
    %v2360 = vpop.f32.mrb[0].mxu0
    %2361 = vdwg.mxu0
    %v2362 = vadd.f32 %v1652, %v2339
    %v2363 = vadd.f32 %v1657, %v2344
    %v2364 = vadd.f32 %v1662, %v2349
    %v2365 = vadd.f32 %v1667, %v2354
    %v2366 = vadd.f32 %v1672, %v2359
    %s2367 = scalar_lea.vmem %s7, 120
    %v2368 = vld [vmem:[%s2367] sm:$0xff]
    %v2369 = vld [vmem:[%s2367 + $0x8] sm:$0xff]
    %v2370 = vld [vmem:[%s2367 + $0x10] sm:$0xff]
    %v2371 = vld [vmem:[%s2367 + $0x18] sm:$0xff]
    %v2372 = vld [vmem:[%s2367 + $0x20] sm:$0x1]
    %v2374 = vsel %vm305, %v2372, 0
    %2376 = vmatprep.subr.mxu0 0.0
    %2377 = vmatpush1.msra.mxu0 %v2368
    %2378 = vmatprep.subr.mxu0 0.0
    %2379 = vmatpush1.msra.mxu0 %v2369
    %2380 = vmatprep.subr.mxu0 0.0
    %2381 = vmatpush1.msra.mxu0 %v2370
    %2382 = vmatprep.subr.mxu0 0.0
    %2383 = vmatpush1.msra.mxu0 %v2371
    %2384 = vmatprep.subr.mxu0 0.0
    %2385 = vmatpush1.msra.mxu0 %v2374
    %2386 = vmatprep.subr.mxu0 0.0
    %2387 = vmatpush1.msra.mxu0 0.0
    %2388 = vmatprep.subr.mxu0 0.0
    %2389 = vmatpush1.msra.mxu0 0.0
    %2390 = vmatprep.subr.mxu0 0.0
    %2391 = vmatpush1.msra.mxu0 0.0
    %2392 = vmatprep.subr.mxu0 0.0
    %2393 = vmatpush1.msra.mxu0 0.0
    %2394 = vmatprep.subr.mxu0 0.0
    %2395 = vmatpush1.msra.mxu0 0.0
    %2396 = vmatprep.subr.mxu0 0.0
    %2397 = vmatpush1.msra.mxu0 0.0
    %2398 = vmatprep.subr.mxu0 0.0
    %2399 = vmatpush1.msra.mxu0 0.0
    %2400 = vmatprep.subr.mxu0 0.0
    %2401 = vmatpush1.msra.mxu0 0.0
    %2402 = vmatprep.subr.mxu0 0.0
    %2403 = vmatpush1.msra.mxu0 0.0
    %2404 = vmatprep.subr.mxu0 0.0
    %2405 = vmatpush1.msra.mxu0 0.0
    %2406 = vmatprep.subr.mxu0 0.0
    %2407 = vmatpush1.msra.mxu0 0.0
    %2408 = vmatprep.subr.mxu0 0.0
    %2409 = vmatpush1.msra.mxu0 0.0
    %2410 = vmatprep.subr.mxu0 0.0
    %2411 = vmatpush1.msra.mxu0 0.0
    %2412 = vmatprep.subr.mxu0 0.0
    %2413 = vmatpush1.msra.mxu0 0.0
    %2414 = vmatprep.subr.mxu0 0.0
    %2415 = vmatpush1.msra.mxu0 0.0
    %2416 = vmatprep.subr.mxu0 0.0
    %2417 = vmatpush1.msra.mxu0 0.0
    %2418 = vmatprep.subr.mxu0 0.0
    %2419 = vmatpush1.msra.mxu0 0.0
    %2420 = vmatprep.subr.mxu0 0.0
    %2421 = vmatpush1.msra.mxu0 0.0
    %2422 = vmatprep.subr.mxu0 0.0
    %2423 = vmatpush1.msra.mxu0 0.0
    %2424 = vmatprep.subr.mxu0 0.0
    %2425 = vmatpush1.msra.mxu0 0.0
    %2426 = vmatprep.subr.mxu0 0.0
    %2427 = vmatpush1.msra.mxu0 0.0
    %2428 = vmatprep.subr.mxu0 0.0
    %2429 = vmatpush1.msra.mxu0 0.0
    %2430 = vmatprep.subr.mxu0 0.0
    %2431 = vmatpush1.msra.mxu0 0.0
    %2432 = vmatprep.subr.mxu0 0.0
    %2433 = vmatpush1.msra.mxu0 0.0
    %2434 = vmatprep.subr.mxu0 0.0
    %2435 = vmatpush1.msra.mxu0 0.0
    %2436 = vmatprep.subr.mxu0 0.0
    %2437 = vmatpush1.msra.mxu0 0.0
    %2438 = vmatprep.subr.mxu0 0.0
    %2439 = vmatpush1.msra.mxu0 0.0
    %2440 = vmatprep.mubr.f32.mxu0 0.0
    %2441 = vmatmul.mubr.f32.gmra.mrb[0].mxu0 %v291
    %v2442 = vpop.f32.mrb[0].mxu0
    %v2443 = vadd.f32 0.0, %v2442
    %v2444 = vpop.f32.mrb[0].mxu0
    %2445 = vmatprep.mubr.f32.mxu0 0.0
    %2446 = vmatmul.mubr.f32.gmra.mrb[0].mxu0 %v294
    %v2447 = vpop.f32.mrb[0].mxu0
    %v2448 = vadd.f32 0.0, %v2447
    %v2449 = vpop.f32.mrb[0].mxu0
    %2450 = vmatprep.mubr.f32.mxu0 0.0
    %2451 = vmatmul.mubr.f32.gmra.mrb[0].mxu0 %v297
    %v2452 = vpop.f32.mrb[0].mxu0
    %v2453 = vadd.f32 0.0, %v2452
    %v2454 = vpop.f32.mrb[0].mxu0
    %2455 = vmatprep.mubr.f32.mxu0 0.0
    %2456 = vmatmul.mubr.f32.gmra.mrb[0].mxu0 %v300
    %v2457 = vpop.f32.mrb[0].mxu0
    %v2458 = vadd.f32 0.0, %v2457
    %v2459 = vpop.f32.mrb[0].mxu0
    %2460 = vmatprep.mubr.f32.mxu0 0.0
    %2461 = vmatmul.mubr.f32.gmra.mrb[0].mxu0 %v303
    %v2462 = vpop.f32.mrb[0].mxu0
    %v2463 = vadd.f32 0.0, %v2462
    %v2464 = vpop.f32.mrb[0].mxu0
    %2465 = vdwg.mxu0
    %s2466 = scalar_lea.vmem %s8, 120
    %v2467 = vld [vmem:[%s2466] sm:$0xff]
    %v2468 = vld [vmem:[%s2466 + $0x8] sm:$0xff]
    %v2469 = vld [vmem:[%s2466 + $0x10] sm:$0xff]
    %v2470 = vld [vmem:[%s2466 + $0x18] sm:$0xff]
    %v2471 = vld [vmem:[%s2466 + $0x20] sm:$0x1]
    %v2473 = vsel %vm305, %v2471, 0
    %2475 = vmatprep.subr.mxu0 0.0
    %2476 = vmatpush1.msra.mxu0 %v2467
    %2477 = vmatprep.subr.mxu0 0.0
    %2478 = vmatpush1.msra.mxu0 %v2468
    %2479 = vmatprep.subr.mxu0 0.0
    %2480 = vmatpush1.msra.mxu0 %v2469
    %2481 = vmatprep.subr.mxu0 0.0
    %2482 = vmatpush1.msra.mxu0 %v2470
    %2483 = vmatprep.subr.mxu0 0.0
    %2484 = vmatpush1.msra.mxu0 %v2473
    %2485 = vmatprep.subr.mxu0 0.0
    %2486 = vmatpush1.msra.mxu0 0.0
    %2487 = vmatprep.subr.mxu0 0.0
    %2488 = vmatpush1.msra.mxu0 0.0
    %2489 = vmatprep.subr.mxu0 0.0
    %2490 = vmatpush1.msra.mxu0 0.0
    %2491 = vmatprep.subr.mxu0 0.0
    %2492 = vmatpush1.msra.mxu0 0.0
    %2493 = vmatprep.subr.mxu0 0.0
    %2494 = vmatpush1.msra.mxu0 0.0
    %2495 = vmatprep.subr.mxu0 0.0
    %2496 = vmatpush1.msra.mxu0 0.0
    %2497 = vmatprep.subr.mxu0 0.0
    %2498 = vmatpush1.msra.mxu0 0.0
    %2499 = vmatprep.subr.mxu0 0.0
    %2500 = vmatpush1.msra.mxu0 0.0
    %2501 = vmatprep.subr.mxu0 0.0
    %2502 = vmatpush1.msra.mxu0 0.0
    %2503 = vmatprep.subr.mxu0 0.0
    %2504 = vmatpush1.msra.mxu0 0.0
    %2505 = vmatprep.subr.mxu0 0.0
    %2506 = vmatpush1.msra.mxu0 0.0
    %2507 = vmatprep.subr.mxu0 0.0
    %2508 = vmatpush1.msra.mxu0 0.0
    %2509 = vmatprep.subr.mxu0 0.0
    %2510 = vmatpush1.msra.mxu0 0.0
    %2511 = vmatprep.subr.mxu0 0.0
    %2512 = vmatpush1.msra.mxu0 0.0
    %2513 = vmatprep.subr.mxu0 0.0
    %2514 = vmatpush1.msra.mxu0 0.0
    %2515 = vmatprep.subr.mxu0 0.0
    %2516 = vmatpush1.msra.mxu0 0.0
    %2517 = vmatprep.subr.mxu0 0.0
    %2518 = vmatpush1.msra.mxu0 0.0
    %2519 = vmatprep.subr.mxu0 0.0
    %2520 = vmatpush1.msra.mxu0 0.0
    %2521 = vmatprep.subr.mxu0 0.0
    %2522 = vmatpush1.msra.mxu0 0.0
    %2523 = vmatprep.subr.mxu0 0.0
    %2524 = vmatpush1.msra.mxu0 0.0
    %2525 = vmatprep.subr.mxu0 0.0
    %2526 = vmatpush1.msra.mxu0 0.0
    %2527 = vmatprep.subr.mxu0 0.0
    %2528 = vmatpush1.msra.mxu0 0.0
    %2529 = vmatprep.subr.mxu0 0.0
    %2530 = vmatpush1.msra.mxu0 0.0
    %2531 = vmatprep.subr.mxu0 0.0
    %2532 = vmatpush1.msra.mxu0 0.0
    %2533 = vmatprep.subr.mxu0 0.0
    %2534 = vmatpush1.msra.mxu0 0.0
    %2535 = vmatprep.subr.mxu0 0.0
    %2536 = vmatpush1.msra.mxu0 0.0
    %2537 = vmatprep.subr.mxu0 0.0
    %2538 = vmatpush1.msra.mxu0 0.0
    %2539 = vmatprep.mubr.f32.mxu0 0.0
    %2540 = vmatmul.mubr.f32.gmra.mrb[0].mxu0 %v291
    %v2541 = vpop.f32.mrb[0].mxu0
    %v2542 = vadd.f32 0.0, %v2541
    %v2543 = vpop.f32.mrb[0].mxu0
    %2544 = vmatprep.mubr.f32.mxu0 0.0
    %2545 = vmatmul.mubr.f32.gmra.mrb[0].mxu0 %v294
    %v2546 = vpop.f32.mrb[0].mxu0
    %v2547 = vadd.f32 0.0, %v2546
    %v2548 = vpop.f32.mrb[0].mxu0
    %2549 = vmatprep.mubr.f32.mxu0 0.0
    %2550 = vmatmul.mubr.f32.gmra.mrb[0].mxu0 %v297
    %v2551 = vpop.f32.mrb[0].mxu0
    %v2552 = vadd.f32 0.0, %v2551
    %v2553 = vpop.f32.mrb[0].mxu0
    %2554 = vmatprep.mubr.f32.mxu0 0.0
    %2555 = vmatmul.mubr.f32.gmra.mrb[0].mxu0 %v300
    %v2556 = vpop.f32.mrb[0].mxu0
    %v2557 = vadd.f32 0.0, %v2556
    %v2558 = vpop.f32.mrb[0].mxu0
    %2559 = vmatprep.mubr.f32.mxu0 0.0
    %2560 = vmatmul.mubr.f32.gmra.mrb[0].mxu0 %v303
    %v2561 = vpop.f32.mrb[0].mxu0
    %v2562 = vadd.f32 0.0, %v2561
    %v2563 = vpop.f32.mrb[0].mxu0
    %2564 = vdwg.mxu0
    %s2565 = scalar_lea.vmem %s9, 120
    %v2566 = vld [vmem:[%s2565] sm:$0xff]
    %v2567 = vld [vmem:[%s2565 + $0x8] sm:$0xff]
    %v2568 = vld [vmem:[%s2565 + $0x10] sm:$0xff]
    %v2569 = vld [vmem:[%s2565 + $0x18] sm:$0xff]
    %v2570 = vld [vmem:[%s2565 + $0x20] sm:$0x1]
    %v2572 = vsel %vm305, %v2570, 0
    %2574 = vmatprep.subr.mxu0 0.0
    %2575 = vmatpush1.msra.mxu0 %v2566
    %2576 = vmatprep.subr.mxu0 0.0
    %2577 = vmatpush1.msra.mxu0 %v2567
    %2578 = vmatprep.subr.mxu0 0.0
    %2579 = vmatpush1.msra.mxu0 %v2568
    %2580 = vmatprep.subr.mxu0 0.0
    %2581 = vmatpush1.msra.mxu0 %v2569
    %2582 = vmatprep.subr.mxu0 0.0
    %2583 = vmatpush1.msra.mxu0 %v2572
    %2584 = vmatprep.subr.mxu0 0.0
    %2585 = vmatpush1.msra.mxu0 0.0
    %2586 = vmatprep.subr.mxu0 0.0
    %2587 = vmatpush1.msra.mxu0 0.0
    %2588 = vmatprep.subr.mxu0 0.0
    %2589 = vmatpush1.msra.mxu0 0.0
    %2590 = vmatprep.subr.mxu0 0.0
    %2591 = vmatpush1.msra.mxu0 0.0
    %2592 = vmatprep.subr.mxu0 0.0
    %2593 = vmatpush1.msra.mxu0 0.0
    %2594 = vmatprep.subr.mxu0 0.0
    %2595 = vmatpush1.msra.mxu0 0.0
    %2596 = vmatprep.subr.mxu0 0.0
    %2597 = vmatpush1.msra.mxu0 0.0
    %2598 = vmatprep.subr.mxu0 0.0
    %2599 = vmatpush1.msra.mxu0 0.0
    %2600 = vmatprep.subr.mxu0 0.0
    %2601 = vmatpush1.msra.mxu0 0.0
    %2602 = vmatprep.subr.mxu0 0.0
    %2603 = vmatpush1.msra.mxu0 0.0
    %2604 = vmatprep.subr.mxu0 0.0
    %2605 = vmatpush1.msra.mxu0 0.0
    %2606 = vmatprep.subr.mxu0 0.0
    %2607 = vmatpush1.msra.mxu0 0.0
    %2608 = vmatprep.subr.mxu0 0.0
    %2609 = vmatpush1.msra.mxu0 0.0
    %2610 = vmatprep.subr.mxu0 0.0
    %2611 = vmatpush1.msra.mxu0 0.0
    %2612 = vmatprep.subr.mxu0 0.0
    %2613 = vmatpush1.msra.mxu0 0.0
    %2614 = vmatprep.subr.mxu0 0.0
    %2615 = vmatpush1.msra.mxu0 0.0
    %2616 = vmatprep.subr.mxu0 0.0
    %2617 = vmatpush1.msra.mxu0 0.0
    %2618 = vmatprep.subr.mxu0 0.0
    %2619 = vmatpush1.msra.mxu0 0.0
    %2620 = vmatprep.subr.mxu0 0.0
    %2621 = vmatpush1.msra.mxu0 0.0
    %2622 = vmatprep.subr.mxu0 0.0
    %2623 = vmatpush1.msra.mxu0 0.0
    %2624 = vmatprep.subr.mxu0 0.0
    %2625 = vmatpush1.msra.mxu0 0.0
    %2626 = vmatprep.subr.mxu0 0.0
    %2627 = vmatpush1.msra.mxu0 0.0
    %2628 = vmatprep.subr.mxu0 0.0
    %2629 = vmatpush1.msra.mxu0 0.0
    %2630 = vmatprep.subr.mxu0 0.0
    %2631 = vmatpush1.msra.mxu0 0.0
    %2632 = vmatprep.subr.mxu0 0.0
    %2633 = vmatpush1.msra.mxu0 0.0
    %2634 = vmatprep.subr.mxu0 0.0
    %2635 = vmatpush1.msra.mxu0 0.0
    %2636 = vmatprep.subr.mxu0 0.0
    %2637 = vmatpush1.msra.mxu0 0.0
    %2638 = vmatprep.mubr.f32.mxu0 0.0
    %2639 = vmatmul.mubr.f32.gmra.mrb[0].mxu0 %v291
    %v2640 = vpop.f32.mrb[0].mxu0
    %v2641 = vadd.f32 0.0, %v2640
    %v2642 = vpop.f32.mrb[0].mxu0
    %2643 = vmatprep.mubr.f32.mxu0 0.0
    %2644 = vmatmul.mubr.f32.gmra.mrb[0].mxu0 %v294
    %v2645 = vpop.f32.mrb[0].mxu0
    %v2646 = vadd.f32 0.0, %v2645
    %v2647 = vpop.f32.mrb[0].mxu0
    %2648 = vmatprep.mubr.f32.mxu0 0.0
    %2649 = vmatmul.mubr.f32.gmra.mrb[0].mxu0 %v297
    %v2650 = vpop.f32.mrb[0].mxu0
    %v2651 = vadd.f32 0.0, %v2650
    %v2652 = vpop.f32.mrb[0].mxu0
    %2653 = vmatprep.mubr.f32.mxu0 0.0
    %2654 = vmatmul.mubr.f32.gmra.mrb[0].mxu0 %v300
    %v2655 = vpop.f32.mrb[0].mxu0
    %v2656 = vadd.f32 0.0, %v2655
    %v2657 = vpop.f32.mrb[0].mxu0
    %2658 = vmatprep.mubr.f32.mxu0 0.0
    %2659 = vmatmul.mubr.f32.gmra.mrb[0].mxu0 %v303
    %v2660 = vpop.f32.mrb[0].mxu0
    %v2661 = vadd.f32 0.0, %v2660
    %v2662 = vpop.f32.mrb[0].mxu0
    %2663 = vdwg.mxu0
    %v2665 = vsel %vm595, %v2443, 0
    %v2668 = vsel %vm595, %v2448, 0
    %v2671 = vsel %vm595, %v2453, 0
    %v2674 = vsel %vm595, %v2458, 0
    %v2677 = vsel %vm595, %v2463, 0
    %v2680 = vsel %vm595, %v2542, 0
    %v2683 = vsel %vm595, %v2547, 0
    %v2686 = vsel %vm595, %v2552, 0
    %v2689 = vsel %vm595, %v2557, 0
    %v2692 = vsel %vm595, %v2562, 0
    %2694 = vmatprep.subr.mxu0 0.0
    %2695 = vmatpush1.xpose.msra.mxu0 %v2680
    %2696 = vmatprep.subr.mxu0 0.0
    %2697 = vmatpush1.xpose.msra.mxu0 %v2683
    %2698 = vmatprep.subr.mxu0 0.0
    %2699 = vmatpush1.xpose.msra.mxu0 %v2686
    %2700 = vmatprep.subr.mxu0 0.0
    %2701 = vmatpush1.xpose.msra.mxu0 %v2689
    %2702 = vmatprep.subr.mxu0 0.0
    %2703 = vmatpush1.xpose.msra.mxu0 %v2692
    %2704 = vmatprep.subr.mxu0 0.0
    %2705 = vmatpush1.xpose.msra.mxu0 0.0
    %2706 = vmatprep.subr.mxu0 0.0
    %2707 = vmatpush1.xpose.msra.mxu0 0.0
    %2708 = vmatprep.subr.mxu0 0.0
    %2709 = vmatpush1.xpose.msra.mxu0 0.0
    %2710 = vmatprep.subr.mxu0 0.0
    %2711 = vmatpush1.xpose.msra.mxu0 0.0
    %2712 = vmatprep.subr.mxu0 0.0
    %2713 = vmatpush1.xpose.msra.mxu0 0.0
    %2714 = vmatprep.subr.mxu0 0.0
    %2715 = vmatpush1.xpose.msra.mxu0 0.0
    %2716 = vmatprep.subr.mxu0 0.0
    %2717 = vmatpush1.xpose.msra.mxu0 0.0
    %2718 = vmatprep.subr.mxu0 0.0
    %2719 = vmatpush1.xpose.msra.mxu0 0.0
    %2720 = vmatprep.subr.mxu0 0.0
    %2721 = vmatpush1.xpose.msra.mxu0 0.0
    %2722 = vmatprep.subr.mxu0 0.0
    %2723 = vmatpush1.xpose.msra.mxu0 0.0
    %2724 = vmatprep.subr.mxu0 0.0
    %2725 = vmatpush1.xpose.msra.mxu0 0.0
    %2726 = vmatprep.subr.mxu0 0.0
    %2727 = vmatpush1.xpose.msra.mxu0 0.0
    %2728 = vmatprep.subr.mxu0 0.0
    %2729 = vmatpush1.xpose.msra.mxu0 0.0
    %2730 = vmatprep.subr.mxu0 0.0
    %2731 = vmatpush1.xpose.msra.mxu0 0.0
    %2732 = vmatprep.subr.mxu0 0.0
    %2733 = vmatpush1.xpose.msra.mxu0 0.0
    %2734 = vmatprep.subr.mxu0 0.0
    %2735 = vmatpush1.xpose.msra.mxu0 0.0
    %2736 = vmatprep.subr.mxu0 0.0
    %2737 = vmatpush1.xpose.msra.mxu0 0.0
    %2738 = vmatprep.subr.mxu0 0.0
    %2739 = vmatpush1.xpose.msra.mxu0 0.0
    %2740 = vmatprep.subr.mxu0 0.0
    %2741 = vmatpush1.xpose.msra.mxu0 0.0
    %2742 = vmatprep.subr.mxu0 0.0
    %2743 = vmatpush1.xpose.msra.mxu0 0.0
    %2744 = vmatprep.subr.mxu0 0.0
    %2745 = vmatpush1.xpose.msra.mxu0 0.0
    %2746 = vmatprep.subr.mxu0 0.0
    %2747 = vmatpush1.xpose.msra.mxu0 0.0
    %2748 = vmatprep.subr.mxu0 0.0
    %2749 = vmatpush1.xpose.msra.mxu0 0.0
    %2750 = vmatprep.subr.mxu0 0.0
    %2751 = vmatpush1.xpose.msra.mxu0 0.0
    %2752 = vmatprep.subr.mxu0 0.0
    %2753 = vmatpush1.xpose.msra.mxu0 0.0
    %2754 = vmatprep.subr.mxu0 0.0
    %2755 = vmatpush1.xpose.msra.mxu0 0.0
    %2756 = vmatprep.subr.mxu0 0.0
    %2757 = vmatpush1.xpose.msra.mxu0 0.0
    %2758 = vmatprep.mubr.f32.mxu0 0.0
    %2759 = vmatmul.mubr.f32.gmra.mrb[0].mxu0 %v2665
    %v2760 = vpop.f32.mrb[0].mxu0
    %v2761 = vadd.f32 %v181, %v2760
    %v2762 = vpop.f32.mrb[0].mxu0
    %2763 = vmatprep.mubr.f32.mxu0 0.0
    %2764 = vmatmul.mubr.f32.gmra.mrb[0].mxu0 %v2668
    %v2765 = vpop.f32.mrb[0].mxu0
    %v2766 = vadd.f32 %v182, %v2765
    %v2767 = vpop.f32.mrb[0].mxu0
    %2768 = vmatprep.mubr.f32.mxu0 0.0
    %2769 = vmatmul.mubr.f32.gmra.mrb[0].mxu0 %v2671
    %v2770 = vpop.f32.mrb[0].mxu0
    %v2771 = vadd.f32 %v183, %v2770
    %v2772 = vpop.f32.mrb[0].mxu0
    %2773 = vmatprep.mubr.f32.mxu0 0.0
    %2774 = vmatmul.mubr.f32.gmra.mrb[0].mxu0 %v2674
    %v2775 = vpop.f32.mrb[0].mxu0
    %v2776 = vadd.f32 %v184, %v2775
    %v2777 = vpop.f32.mrb[0].mxu0
    %2778 = vmatprep.mubr.f32.mxu0 0.0
    %2779 = vmatmul.mubr.f32.gmra.mrb[0].mxu0 %v2677
    %v2780 = vpop.f32.mrb[0].mxu0
    %v2781 = vadd.f32 %v185, %v2780
    %v2782 = vpop.f32.mrb[0].mxu0
    %2783 = vdwg.mxu0
    %v2784 = vsel %vm716, %v2761, -inf
    %2785 = vmax.xlane.f32.xlu0 %v2784
    %v2786 = vpop.xlane.xlu0 %2785
    %v2787 = vsel %vm716, %v2766, -inf
    %2788 = vmax.xlane.f32.xlu0 %v2787
    %v2789 = vpop.xlane.xlu0 %2788
    %v2790 = vsel %vm716, %v2771, -inf
    %2791 = vmax.xlane.f32.xlu0 %v2790
    %v2792 = vpop.xlane.xlu0 %2791
    %v2793 = vsel %vm716, %v2776, -inf
    %2794 = vmax.xlane.f32.xlu0 %v2793
    %v2795 = vpop.xlane.xlu0 %2794
    %v2796 = vsel %vm729, %v2781, -inf
    %2797 = vmax.xlane.f32.xlu0 %v2796
    %v2798 = vpop.xlane.xlu0 %2797
    %v2799 = vsub.f32 %v2761, %v2786
    %v2800 = vsub.f32 %v2766, %v2789
    %v2801 = vsub.f32 %v2771, %v2792
    %v2802 = vsub.f32 %v2776, %v2795
    %v2803 = vsub.f32 %v2781, %v2798
    %v2804 = vmul.f32 %v2799, 1.442695
    %v2805 = vpow.pop %v2804
    %v2806 = vmul.f32 %v2800, 1.442695
    %v2807 = vpow.pop %v2806
    %v2808 = vmul.f32 %v2801, 1.442695
    %v2809 = vpow.pop %v2808
    %v2810 = vmul.f32 %v2802, 1.442695
    %v2811 = vpow.pop %v2810
    %v2812 = vmul.f32 %v2803, 1.442695
    %v2813 = vpow.pop %v2812
    %v2814 = vsel %vm716, %v2805, 0.0
    %2815 = vadd.xlane.f32.xlu0 %v2814
    %v2816 = vpop.xlane.xlu0 %2815
    %v2817 = vsel %vm716, %v2807, 0.0
    %2818 = vadd.xlane.f32.xlu0 %v2817
    %v2819 = vpop.xlane.xlu0 %2818
    %v2820 = vsel %vm716, %v2809, 0.0
    %2821 = vadd.xlane.f32.xlu0 %v2820
    %v2822 = vpop.xlane.xlu0 %2821
    %v2823 = vsel %vm716, %v2811, 0.0
    %2824 = vadd.xlane.f32.xlu0 %v2823
    %v2825 = vpop.xlane.xlu0 %2824
    %v2826 = vsel %vm729, %v2813, 0.0
    %2827 = vadd.xlane.f32.xlu0 %v2826
    %v2828 = vpop.xlane.xlu0 %2827
    %v2829 = vrcp.pop %v2816
    %v2830 = vrcp.pop %v2819
    %v2831 = vrcp.pop %v2822
    %v2832 = vrcp.pop %v2825
    %v2833 = vrcp.pop %v2828
    %v2834 = vmul.f32 %v2805, %v2829
    %v2835 = vmul.f32 %v2807, %v2830
    %v2836 = vmul.f32 %v2809, %v2831
    %v2837 = vmul.f32 %v2811, %v2832
    %v2838 = vmul.f32 %v2813, %v2833
    %v2840 = vsel %vm716, %v2834, 0
    %v2843 = vsel %vm716, %v2835, 0
    %v2846 = vsel %vm716, %v2836, 0
    %v2849 = vsel %vm716, %v2837, 0
    %v2852 = vsel %vm716, %v2838, 0
    %v2855 = vsel %vm788, %v2661, 0
    %2857 = vmatprep.subr.mxu0 0.0
    %2858 = vmatpush1.msra.mxu0 %v2641
    %2859 = vmatprep.subr.mxu0 0.0
    %2860 = vmatpush1.msra.mxu0 %v2646
    %2861 = vmatprep.subr.mxu0 0.0
    %2862 = vmatpush1.msra.mxu0 %v2651
    %2863 = vmatprep.subr.mxu0 0.0
    %2864 = vmatpush1.msra.mxu0 %v2656
    %2865 = vmatprep.subr.mxu0 0.0
    %2866 = vmatpush1.msra.mxu0 %v2855
    %2867 = vmatprep.subr.mxu0 0.0
    %2868 = vmatpush1.msra.mxu0 0.0
    %2869 = vmatprep.subr.mxu0 0.0
    %2870 = vmatpush1.msra.mxu0 0.0
    %2871 = vmatprep.subr.mxu0 0.0
    %2872 = vmatpush1.msra.mxu0 0.0
    %2873 = vmatprep.subr.mxu0 0.0
    %2874 = vmatpush1.msra.mxu0 0.0
    %2875 = vmatprep.subr.mxu0 0.0
    %2876 = vmatpush1.msra.mxu0 0.0
    %2877 = vmatprep.subr.mxu0 0.0
    %2878 = vmatpush1.msra.mxu0 0.0
    %2879 = vmatprep.subr.mxu0 0.0
    %2880 = vmatpush1.msra.mxu0 0.0
    %2881 = vmatprep.subr.mxu0 0.0
    %2882 = vmatpush1.msra.mxu0 0.0
    %2883 = vmatprep.subr.mxu0 0.0
    %2884 = vmatpush1.msra.mxu0 0.0
    %2885 = vmatprep.subr.mxu0 0.0
    %2886 = vmatpush1.msra.mxu0 0.0
    %2887 = vmatprep.subr.mxu0 0.0
    %2888 = vmatpush1.msra.mxu0 0.0
    %2889 = vmatprep.subr.mxu0 0.0
    %2890 = vmatpush1.msra.mxu0 0.0
    %2891 = vmatprep.subr.mxu0 0.0
    %2892 = vmatpush1.msra.mxu0 0.0
    %2893 = vmatprep.subr.mxu0 0.0
    %2894 = vmatpush1.msra.mxu0 0.0
    %2895 = vmatprep.subr.mxu0 0.0
    %2896 = vmatpush1.msra.mxu0 0.0
    %2897 = vmatprep.subr.mxu0 0.0
    %2898 = vmatpush1.msra.mxu0 0.0
    %2899 = vmatprep.subr.mxu0 0.0
    %2900 = vmatpush1.msra.mxu0 0.0
    %2901 = vmatprep.subr.mxu0 0.0
    %2902 = vmatpush1.msra.mxu0 0.0
    %2903 = vmatprep.subr.mxu0 0.0
    %2904 = vmatpush1.msra.mxu0 0.0
    %2905 = vmatprep.subr.mxu0 0.0
    %2906 = vmatpush1.msra.mxu0 0.0
    %2907 = vmatprep.subr.mxu0 0.0
    %2908 = vmatpush1.msra.mxu0 0.0
    %2909 = vmatprep.subr.mxu0 0.0
    %2910 = vmatpush1.msra.mxu0 0.0
    %2911 = vmatprep.subr.mxu0 0.0
    %2912 = vmatpush1.msra.mxu0 0.0
    %2913 = vmatprep.subr.mxu0 0.0
    %2914 = vmatpush1.msra.mxu0 0.0
    %2915 = vmatprep.subr.mxu0 0.0
    %2916 = vmatpush1.msra.mxu0 0.0
    %2917 = vmatprep.subr.mxu0 0.0
    %2918 = vmatpush1.msra.mxu0 0.0
    %2919 = vmatprep.subr.mxu0 0.0
    %2920 = vmatpush1.msra.mxu0 0.0
    %2921 = vmatprep.mubr.f32.mxu0 0.0
    %2922 = vmatmul.mubr.f32.gmra.mrb[0].mxu0 %v2840
    %v2923 = vpop.f32.mrb[0].mxu0
    %v2924 = vadd.f32 0.0, %v2923
    %v2925 = vpop.f32.mrb[0].mxu0
    %2926 = vmatprep.mubr.f32.mxu0 0.0
    %2927 = vmatmul.mubr.f32.gmra.mrb[0].mxu0 %v2843
    %v2928 = vpop.f32.mrb[0].mxu0
    %v2929 = vadd.f32 0.0, %v2928
    %v2930 = vpop.f32.mrb[0].mxu0
    %2931 = vmatprep.mubr.f32.mxu0 0.0
    %2932 = vmatmul.mubr.f32.gmra.mrb[0].mxu0 %v2846
    %v2933 = vpop.f32.mrb[0].mxu0
    %v2934 = vadd.f32 0.0, %v2933
    %v2935 = vpop.f32.mrb[0].mxu0
    %2936 = vmatprep.mubr.f32.mxu0 0.0
    %2937 = vmatmul.mubr.f32.gmra.mrb[0].mxu0 %v2849
    %v2938 = vpop.f32.mrb[0].mxu0
    %v2939 = vadd.f32 0.0, %v2938
    %v2940 = vpop.f32.mrb[0].mxu0
    %2941 = vmatprep.mubr.f32.mxu0 0.0
    %2942 = vmatmul.mubr.f32.gmra.mrb[0].mxu0 %v2852
    %v2943 = vpop.f32.mrb[0].mxu0
    %v2944 = vadd.f32 0.0, %v2943
    %v2945 = vpop.f32.mrb[0].mxu0
    %2946 = vdwg.mxu0
    %s2947 = scalar_lea.vmem %s10, 24
    %v2948 = vld [vmem:[%s2947] sm:$0xff]
    %v2950 = vsel %vm595, %v2924, 0
    %v2953 = vsel %vm595, %v2929, 0
    %v2956 = vsel %vm595, %v2934, 0
    %v2959 = vsel %vm595, %v2939, 0
    %v2962 = vsel %vm595, %v2944, 0
    %2964 = vmatprep.subr.mxu0 0.0
    %2965 = vmatpush1.msra.mxu0 %v2948
    %2966 = vmatprep.subr.mxu0 0.0
    %2967 = vmatpush1.msra.mxu0 0.0
    %2968 = vmatprep.subr.mxu0 0.0
    %2969 = vmatpush1.msra.mxu0 0.0
    %2970 = vmatprep.subr.mxu0 0.0
    %2971 = vmatpush1.msra.mxu0 0.0
    %2972 = vmatprep.subr.mxu0 0.0
    %2973 = vmatpush1.msra.mxu0 0.0
    %2974 = vmatprep.subr.mxu0 0.0
    %2975 = vmatpush1.msra.mxu0 0.0
    %2976 = vmatprep.subr.mxu0 0.0
    %2977 = vmatpush1.msra.mxu0 0.0
    %2978 = vmatprep.subr.mxu0 0.0
    %2979 = vmatpush1.msra.mxu0 0.0
    %2980 = vmatprep.subr.mxu0 0.0
    %2981 = vmatpush1.msra.mxu0 0.0
    %2982 = vmatprep.subr.mxu0 0.0
    %2983 = vmatpush1.msra.mxu0 0.0
    %2984 = vmatprep.subr.mxu0 0.0
    %2985 = vmatpush1.msra.mxu0 0.0
    %2986 = vmatprep.subr.mxu0 0.0
    %2987 = vmatpush1.msra.mxu0 0.0
    %2988 = vmatprep.subr.mxu0 0.0
    %2989 = vmatpush1.msra.mxu0 0.0
    %2990 = vmatprep.subr.mxu0 0.0
    %2991 = vmatpush1.msra.mxu0 0.0
    %2992 = vmatprep.subr.mxu0 0.0
    %2993 = vmatpush1.msra.mxu0 0.0
    %2994 = vmatprep.subr.mxu0 0.0
    %2995 = vmatpush1.msra.mxu0 0.0
    %2996 = vmatprep.subr.mxu0 0.0
    %2997 = vmatpush1.msra.mxu0 0.0
    %2998 = vmatprep.subr.mxu0 0.0
    %2999 = vmatpush1.msra.mxu0 0.0
    %3000 = vmatprep.subr.mxu0 0.0
    %3001 = vmatpush1.msra.mxu0 0.0
    %3002 = vmatprep.subr.mxu0 0.0
    %3003 = vmatpush1.msra.mxu0 0.0
    %3004 = vmatprep.subr.mxu0 0.0
    %3005 = vmatpush1.msra.mxu0 0.0
    %3006 = vmatprep.subr.mxu0 0.0
    %3007 = vmatpush1.msra.mxu0 0.0
    %3008 = vmatprep.subr.mxu0 0.0
    %3009 = vmatpush1.msra.mxu0 0.0
    %3010 = vmatprep.subr.mxu0 0.0
    %3011 = vmatpush1.msra.mxu0 0.0
    %3012 = vmatprep.subr.mxu0 0.0
    %3013 = vmatpush1.msra.mxu0 0.0
    %3014 = vmatprep.subr.mxu0 0.0
    %3015 = vmatpush1.msra.mxu0 0.0
    %3016 = vmatprep.subr.mxu0 0.0
    %3017 = vmatpush1.msra.mxu0 0.0
    %3018 = vmatprep.subr.mxu0 0.0
    %3019 = vmatpush1.msra.mxu0 0.0
    %3020 = vmatprep.subr.mxu0 0.0
    %3021 = vmatpush1.msra.mxu0 0.0
    %3022 = vmatprep.subr.mxu0 0.0
    %3023 = vmatpush1.msra.mxu0 0.0
    %3024 = vmatprep.subr.mxu0 0.0
    %3025 = vmatpush1.msra.mxu0 0.0
    %3026 = vmatprep.subr.mxu0 0.0
    %3027 = vmatpush1.msra.mxu0 0.0
    %3028 = vmatprep.mubr.f32.mxu0 0.0
    %3029 = vmatmul.mubr.f32.gmra.mrb[0].mxu0 %v2950
    %v3030 = vpop.f32.mrb[0].mxu0
    %v3031 = vadd.f32 0.0, %v3030
    %v3032 = vpop.f32.mrb[0].mxu0
    %3033 = vmatprep.mubr.f32.mxu0 0.0
    %3034 = vmatmul.mubr.f32.gmra.mrb[0].mxu0 %v2953
    %v3035 = vpop.f32.mrb[0].mxu0
    %v3036 = vadd.f32 0.0, %v3035
    %v3037 = vpop.f32.mrb[0].mxu0
    %3038 = vmatprep.mubr.f32.mxu0 0.0
    %3039 = vmatmul.mubr.f32.gmra.mrb[0].mxu0 %v2956
    %v3040 = vpop.f32.mrb[0].mxu0
    %v3041 = vadd.f32 0.0, %v3040
    %v3042 = vpop.f32.mrb[0].mxu0
    %3043 = vmatprep.mubr.f32.mxu0 0.0
    %3044 = vmatmul.mubr.f32.gmra.mrb[0].mxu0 %v2959
    %v3045 = vpop.f32.mrb[0].mxu0
    %v3046 = vadd.f32 0.0, %v3045
    %v3047 = vpop.f32.mrb[0].mxu0
    %3048 = vmatprep.mubr.f32.mxu0 0.0
    %3049 = vmatmul.mubr.f32.gmra.mrb[0].mxu0 %v2962
    %v3050 = vpop.f32.mrb[0].mxu0
    %v3051 = vadd.f32 0.0, %v3050
    %v3052 = vpop.f32.mrb[0].mxu0
    %3053 = vdwg.mxu0
    %v3054 = vadd.f32 %v2362, %v3031
    %v3055 = vadd.f32 %v2363, %v3036
    %v3056 = vadd.f32 %v2364, %v3041
    %v3057 = vadd.f32 %v2365, %v3046
    %v3058 = vadd.f32 %v2366, %v3051
    %v3059 = vadd.f32 %v158, %v3054
    %v3060 = vadd.f32 %v163, %v3055
    %v3061 = vadd.f32 %v168, %v3056
    %v3062 = vadd.f32 %v173, %v3057
    %v3063 = vadd.f32 %v178, %v3058
    %v3064 = vlaneseq
    %v3065 = vshrl.u32 %v3064, 7
    %v3066 = vsub.s32 0, %v3065
    %v3067 = vrot.slane %v190, %v3066
    %v3068 = vadd.f32 %v3059, %v3067
    %v3069 = vadd.f32 %v3060, %v3067
    %v3070 = vadd.f32 %v3061, %v3067
    %v3071 = vadd.f32 %v3062, %v3067
    %v3072 = vadd.f32 %v3063, %v3067
    %v3073 = vsel %vm193, %v3068, 0.0
    %3074 = vadd.xlane.f32.xlu0 %v3073
    %v3075 = vpop.xlane.xlu0 %3074
    %v3076 = vsel %vm193, %v3069, 0.0
    %3077 = vadd.xlane.f32.xlu0 %v3076
    %v3078 = vpop.xlane.xlu0 %3077
    %v3079 = vsel %vm193, %v3070, 0.0
    %3080 = vadd.xlane.f32.xlu0 %v3079
    %v3081 = vpop.xlane.xlu0 %3080
    %v3082 = vsel %vm193, %v3071, 0.0
    %3083 = vadd.xlane.f32.xlu0 %v3082
    %v3084 = vpop.xlane.xlu0 %3083
    %v3085 = vsel %vm206, %v3072, 0.0
    %3086 = vadd.xlane.f32.xlu0 %v3085
    %v3087 = vpop.xlane.xlu0 %3086
    %v3088 = vmul.f32 %v3075, %v210
    %v3089 = vmul.f32 %v3078, %v210
    %v3090 = vmul.f32 %v3081, %v210
    %v3091 = vmul.f32 %v3084, %v210
    %v3092 = vmul.f32 %v3087, %v210
    %v3093 = vsub.f32 %v3068, %v3088
    %v3094 = vsub.f32 %v3069, %v3089
    %v3095 = vsub.f32 %v3070, %v3090
    %v3096 = vsub.f32 %v3071, %v3091
    %v3097 = vsub.f32 %v3072, %v3092
    %v3098 = vmul.f32 %v3093, %v3093
    %v3099 = vmul.f32 %v3094, %v3094
    %v3100 = vmul.f32 %v3095, %v3095
    %v3101 = vmul.f32 %v3096, %v3096
    %v3102 = vmul.f32 %v3097, %v3097
    %v3103 = vsel %vm193, %v3098, 0.0
    %3104 = vadd.xlane.f32.xlu0 %v3103
    %v3105 = vpop.xlane.xlu0 %3104
    %v3106 = vsel %vm193, %v3099, 0.0
    %3107 = vadd.xlane.f32.xlu0 %v3106
    %v3108 = vpop.xlane.xlu0 %3107
    %v3109 = vsel %vm193, %v3100, 0.0
    %3110 = vadd.xlane.f32.xlu0 %v3109
    %v3111 = vpop.xlane.xlu0 %3110
    %v3112 = vsel %vm193, %v3101, 0.0
    %3113 = vadd.xlane.f32.xlu0 %v3112
    %v3114 = vpop.xlane.xlu0 %3113
    %v3115 = vsel %vm206, %v3102, 0.0
    %3116 = vadd.xlane.f32.xlu0 %v3115
    %v3117 = vpop.xlane.xlu0 %3116
    %v3118 = vmul.f32 %v3105, %v210
    %v3119 = vmul.f32 %v3108, %v210
    %v3120 = vmul.f32 %v3111, %v210
    %v3121 = vmul.f32 %v3114, %v210
    %v3122 = vmul.f32 %v3117, %v210
    %v3123 = vadd.f32 %v3118, 1e-05
    %v3124 = vadd.f32 %v3119, 1e-05
    %v3125 = vadd.f32 %v3120, 1e-05
    %v3126 = vadd.f32 %v3121, 1e-05
    %v3127 = vadd.f32 %v3122, 1e-05
    %v3128 = vrsqrt.pop %v3123
    %v3129 = vrsqrt.pop %v3124
    %v3130 = vrsqrt.pop %v3125
    %v3131 = vrsqrt.pop %v3126
    %v3132 = vrsqrt.pop %v3127
    %v3133 = vmul.f32 %v3093, %v3128
    %v3134 = vmul.f32 %v3094, %v3129
    %v3135 = vmul.f32 %v3095, %v3130
    %v3136 = vmul.f32 %v3096, %v3131
    %v3137 = vmul.f32 %v3097, %v3132
    %v3138 = vlaneseq
    %v3139 = vshrl.u32 %v3138, 7
    %v3140 = vsub.s32 0, %v3139
    %v3141 = vrot.slane %v188, %v3140
    %v3142 = vmul.f32 %v3133, %v3141
    %v3143 = vmul.f32 %v3134, %v3141
    %v3144 = vmul.f32 %v3135, %v3141
    %v3145 = vmul.f32 %v3136, %v3141
    %v3146 = vmul.f32 %v3137, %v3141
    %v3147 = vlaneseq
    %v3148 = vshrl.u32 %v3147, 7
    %v3149 = vsub.s32 0, %v3148
    %v3150 = vrot.slane %v189, %v3149
    %v3151 = vadd.f32 %v3142, %v3150
    %v3152 = vadd.f32 %v3143, %v3150
    %v3153 = vadd.f32 %v3144, %v3150
    %v3154 = vadd.f32 %v3145, %v3150
    %v3155 = vadd.f32 %v3146, %v3150
    %v3156 = vld [vmem:[%s11] sm:$0xff]
    %v3157 = vld [vmem:[%s11 + $0x8] sm:$0xff]
    %v3158 = vld [vmem:[%s11 + $0x10] sm:$0xff]
    %v3159 = vld [vmem:[%s11 + $0x18] sm:$0xff]
    %v3160 = vlaneseq
    %v3161 = vshrl.u32 %v3160, 7
    %v3162 = vsub.s32 0, %v3161
    %v3163 = vrot.slane %v191, %v3162
    %v3165 = vsel %vm193, %v3151, 0
    %v3168 = vsel %vm193, %v3152, 0
    %v3171 = vsel %vm193, %v3153, 0
    %v3174 = vsel %vm193, %v3154, 0
    %v3177 = vsel %vm193, %v3155, 0
    %3179 = vmatprep.subr.mxu0 0.0
    %3180 = vmatpush1.msra.mxu0 %v3156
    %3181 = vmatprep.subr.mxu0 0.0
    %3182 = vmatpush1.msra.mxu0 %v3157
    %3183 = vmatprep.subr.mxu0 0.0
    %3184 = vmatpush1.msra.mxu0 %v3158
    %3185 = vmatprep.subr.mxu0 0.0
    %3186 = vmatpush1.msra.mxu0 %v3159
    %3187 = vmatprep.subr.mxu0 0.0
    %3188 = vmatpush1.msra.mxu0 0.0
    %3189 = vmatprep.subr.mxu0 0.0
    %3190 = vmatpush1.msra.mxu0 0.0
    %3191 = vmatprep.subr.mxu0 0.0
    %3192 = vmatpush1.msra.mxu0 0.0
    %3193 = vmatprep.subr.mxu0 0.0
    %3194 = vmatpush1.msra.mxu0 0.0
    %3195 = vmatprep.subr.mxu0 0.0
    %3196 = vmatpush1.msra.mxu0 0.0
    %3197 = vmatprep.subr.mxu0 0.0
    %3198 = vmatpush1.msra.mxu0 0.0
    %3199 = vmatprep.subr.mxu0 0.0
    %3200 = vmatpush1.msra.mxu0 0.0
    %3201 = vmatprep.subr.mxu0 0.0
    %3202 = vmatpush1.msra.mxu0 0.0
    %3203 = vmatprep.subr.mxu0 0.0
    %3204 = vmatpush1.msra.mxu0 0.0
    %3205 = vmatprep.subr.mxu0 0.0
    %3206 = vmatpush1.msra.mxu0 0.0
    %3207 = vmatprep.subr.mxu0 0.0
    %3208 = vmatpush1.msra.mxu0 0.0
    %3209 = vmatprep.subr.mxu0 0.0
    %3210 = vmatpush1.msra.mxu0 0.0
    %3211 = vmatprep.subr.mxu0 0.0
    %3212 = vmatpush1.msra.mxu0 0.0
    %3213 = vmatprep.subr.mxu0 0.0
    %3214 = vmatpush1.msra.mxu0 0.0
    %3215 = vmatprep.subr.mxu0 0.0
    %3216 = vmatpush1.msra.mxu0 0.0
    %3217 = vmatprep.subr.mxu0 0.0
    %3218 = vmatpush1.msra.mxu0 0.0
    %3219 = vmatprep.subr.mxu0 0.0
    %3220 = vmatpush1.msra.mxu0 0.0
    %3221 = vmatprep.subr.mxu0 0.0
    %3222 = vmatpush1.msra.mxu0 0.0
    %3223 = vmatprep.subr.mxu0 0.0
    %3224 = vmatpush1.msra.mxu0 0.0
    %3225 = vmatprep.subr.mxu0 0.0
    %3226 = vmatpush1.msra.mxu0 0.0
    %3227 = vmatprep.subr.mxu0 0.0
    %3228 = vmatpush1.msra.mxu0 0.0
    %3229 = vmatprep.subr.mxu0 0.0
    %3230 = vmatpush1.msra.mxu0 0.0
    %3231 = vmatprep.subr.mxu0 0.0
    %3232 = vmatpush1.msra.mxu0 0.0
    %3233 = vmatprep.subr.mxu0 0.0
    %3234 = vmatpush1.msra.mxu0 0.0
    %3235 = vmatprep.subr.mxu0 0.0
    %3236 = vmatpush1.msra.mxu0 0.0
    %3237 = vmatprep.subr.mxu0 0.0
    %3238 = vmatpush1.msra.mxu0 0.0
    %3239 = vmatprep.subr.mxu0 0.0
    %3240 = vmatpush1.msra.mxu0 0.0
    %3241 = vmatprep.subr.mxu0 0.0
    %3242 = vmatpush1.msra.mxu0 0.0
    %3243 = vmatprep.mubr.f32.mxu0 0.0
    %3244 = vmatmul.mubr.f32.gmra.mrb[0].mxu0 %v3165
    %v3245 = vpop.f32.mrb[0].mxu0
    %v3246 = vadd.f32 %v3163, %v3245
    %v3247 = vpop.f32.mrb[0].mxu0
    %3248 = vmatprep.mubr.f32.mxu0 0.0
    %3249 = vmatmul.mubr.f32.gmra.mrb[0].mxu0 %v3168
    %v3250 = vpop.f32.mrb[0].mxu0
    %v3251 = vadd.f32 %v3163, %v3250
    %v3252 = vpop.f32.mrb[0].mxu0
    %3253 = vmatprep.mubr.f32.mxu0 0.0
    %3254 = vmatmul.mubr.f32.gmra.mrb[0].mxu0 %v3171
    %v3255 = vpop.f32.mrb[0].mxu0
    %v3256 = vadd.f32 %v3163, %v3255
    %v3257 = vpop.f32.mrb[0].mxu0
    %3258 = vmatprep.mubr.f32.mxu0 0.0
    %3259 = vmatmul.mubr.f32.gmra.mrb[0].mxu0 %v3174
    %v3260 = vpop.f32.mrb[0].mxu0
    %v3261 = vadd.f32 %v3163, %v3260
    %v3262 = vpop.f32.mrb[0].mxu0
    %3263 = vmatprep.mubr.f32.mxu0 0.0
    %3264 = vmatmul.mubr.f32.gmra.mrb[0].mxu0 %v3177
    %v3265 = vpop.f32.mrb[0].mxu0
    %v3266 = vadd.f32 %v3163, %v3265
    %v3267 = vpop.f32.mrb[0].mxu0
    %3268 = vdwg.mxu0
    %v3269 = vmul.f32 %v3246, 0.5
    %v3270 = vmul.f32 %v3251, 0.5
    %v3271 = vmul.f32 %v3256, 0.5
    %v3272 = vmul.f32 %v3261, 0.5
    %v3273 = vmul.f32 %v3266, 0.5
    %v3274 = vmul.f32 %v3246, 0.70710677
    %v3275 = vmul.f32 %v3251, 0.70710677
    %v3276 = vmul.f32 %v3256, 0.70710677
    %v3277 = vmul.f32 %v3261, 0.70710677
    %v3278 = vmul.f32 %v3266, 0.70710677
    %v3279 = verf.f32.pop %v3274
    %v3280 = verf.f32.pop %v3275
    %v3281 = verf.f32.pop %v3276
    %v3282 = verf.f32.pop %v3277
    %v3283 = verf.f32.pop %v3278
    %v3284 = vadd.f32 %v3279, 1.0
    %v3285 = vadd.f32 %v3280, 1.0
    %v3286 = vadd.f32 %v3281, 1.0
    %v3287 = vadd.f32 %v3282, 1.0
    %v3288 = vadd.f32 %v3283, 1.0
    %v3289 = vmul.f32 %v3269, %v3284
    %v3290 = vmul.f32 %v3270, %v3285
    %v3291 = vmul.f32 %v3271, %v3286
    %v3292 = vmul.f32 %v3272, %v3287
    %v3293 = vmul.f32 %v3273, %v3288
    %v3294 = vld [vmem:[%s12] sm:$0xff]
    %v3295 = vld [vmem:[%s12 + $0x8] sm:$0xff]
    %v3296 = vld [vmem:[%s12 + $0x10] sm:$0xff]
    %v3297 = vld [vmem:[%s12 + $0x18] sm:$0xff]
    %v3298 = vld [vmem:[%s12 + $0x20] sm:$0xff]
    %v3299 = vld [vmem:[%s12 + $0x28] sm:$0xff]
    %v3300 = vld [vmem:[%s12 + $0x30] sm:$0xff]
    %v3301 = vld [vmem:[%s12 + $0x38] sm:$0xff]
    %v3303 = vsel %vm75, %v3289, 0
    %v3306 = vsel %vm75, %v3290, 0
    %v3309 = vsel %vm75, %v3291, 0
    %v3312 = vsel %vm75, %v3292, 0
    %v3315 = vsel %vm75, %v3293, 0
    %3317 = vmatprep.subr.mxu0 0.0
    %3318 = vmatpush1.msra.mxu0 %v3294
    %3319 = vmatprep.subr.mxu0 0.0
    %3320 = vmatpush1.msra.mxu0 %v3295
    %3321 = vmatprep.subr.mxu0 0.0
    %3322 = vmatpush1.msra.mxu0 %v3296
    %3323 = vmatprep.subr.mxu0 0.0
    %3324 = vmatpush1.msra.mxu0 %v3297
    %3325 = vmatprep.subr.mxu0 0.0
    %3326 = vmatpush1.msra.mxu0 %v3298
    %3327 = vmatprep.subr.mxu0 0.0
    %3328 = vmatpush1.msra.mxu0 %v3299
    %3329 = vmatprep.subr.mxu0 0.0
    %3330 = vmatpush1.msra.mxu0 %v3300
    %3331 = vmatprep.subr.mxu0 0.0
    %3332 = vmatpush1.msra.mxu0 %v3301
    %3333 = vmatprep.subr.mxu0 0.0
    %3334 = vmatpush1.msra.mxu0 0.0
    %3335 = vmatprep.subr.mxu0 0.0
    %3336 = vmatpush1.msra.mxu0 0.0
    %3337 = vmatprep.subr.mxu0 0.0
    %3338 = vmatpush1.msra.mxu0 0.0
    %3339 = vmatprep.subr.mxu0 0.0
    %3340 = vmatpush1.msra.mxu0 0.0
    %3341 = vmatprep.subr.mxu0 0.0
    %3342 = vmatpush1.msra.mxu0 0.0
    %3343 = vmatprep.subr.mxu0 0.0
    %3344 = vmatpush1.msra.mxu0 0.0
    %3345 = vmatprep.subr.mxu0 0.0
    %3346 = vmatpush1.msra.mxu0 0.0
    %3347 = vmatprep.subr.mxu0 0.0
    %3348 = vmatpush1.msra.mxu0 0.0
    %3349 = vmatprep.subr.mxu0 0.0
    %3350 = vmatpush1.msra.mxu0 0.0
    %3351 = vmatprep.subr.mxu0 0.0
    %3352 = vmatpush1.msra.mxu0 0.0
    %3353 = vmatprep.subr.mxu0 0.0
    %3354 = vmatpush1.msra.mxu0 0.0
    %3355 = vmatprep.subr.mxu0 0.0
    %3356 = vmatpush1.msra.mxu0 0.0
    %3357 = vmatprep.subr.mxu0 0.0
    %3358 = vmatpush1.msra.mxu0 0.0
    %3359 = vmatprep.subr.mxu0 0.0
    %3360 = vmatpush1.msra.mxu0 0.0
    %3361 = vmatprep.subr.mxu0 0.0
    %3362 = vmatpush1.msra.mxu0 0.0
    %3363 = vmatprep.subr.mxu0 0.0
    %3364 = vmatpush1.msra.mxu0 0.0
    %3365 = vmatprep.subr.mxu0 0.0
    %3366 = vmatpush1.msra.mxu0 0.0
    %3367 = vmatprep.subr.mxu0 0.0
    %3368 = vmatpush1.msra.mxu0 0.0
    %3369 = vmatprep.subr.mxu0 0.0
    %3370 = vmatpush1.msra.mxu0 0.0
    %3371 = vmatprep.subr.mxu0 0.0
    %3372 = vmatpush1.msra.mxu0 0.0
    %3373 = vmatprep.subr.mxu0 0.0
    %3374 = vmatpush1.msra.mxu0 0.0
    %3375 = vmatprep.subr.mxu0 0.0
    %3376 = vmatpush1.msra.mxu0 0.0
    %3377 = vmatprep.subr.mxu0 0.0
    %3378 = vmatpush1.msra.mxu0 0.0
    %3379 = vmatprep.subr.mxu0 0.0
    %3380 = vmatpush1.msra.mxu0 0.0
    %3381 = vmatprep.mubr.f32.mxu0 0.0
    %3382 = vmatmul.mubr.f32.gmra.mrb[0].mxu0 %v3303
    %v3383 = vpop.f32.mrb[0].mxu0
    %v3384 = vadd.f32 0.0, %v3383
    %v3385 = vpop.f32.mrb[0].mxu0
    %3386 = vmatprep.mubr.f32.mxu0 0.0
    %3387 = vmatmul.mubr.f32.gmra.mrb[0].mxu0 %v3306
    %v3388 = vpop.f32.mrb[0].mxu0
    %v3389 = vadd.f32 0.0, %v3388
    %v3390 = vpop.f32.mrb[0].mxu0
    %3391 = vmatprep.mubr.f32.mxu0 0.0
    %3392 = vmatmul.mubr.f32.gmra.mrb[0].mxu0 %v3309
    %v3393 = vpop.f32.mrb[0].mxu0
    %v3394 = vadd.f32 0.0, %v3393
    %v3395 = vpop.f32.mrb[0].mxu0
    %3396 = vmatprep.mubr.f32.mxu0 0.0
    %3397 = vmatmul.mubr.f32.gmra.mrb[0].mxu0 %v3312
    %v3398 = vpop.f32.mrb[0].mxu0
    %v3399 = vadd.f32 0.0, %v3398
    %v3400 = vpop.f32.mrb[0].mxu0
    %3401 = vmatprep.mubr.f32.mxu0 0.0
    %3402 = vmatmul.mubr.f32.gmra.mrb[0].mxu0 %v3315
    %v3403 = vpop.f32.mrb[0].mxu0
    %v3404 = vadd.f32 0.0, %v3403
    %v3405 = vpop.f32.mrb[0].mxu0
    %3406 = vdwg.mxu0
    %v3407 = vadd.f32 %v3068, %v3384
    %v3408 = vadd.f32 %v3069, %v3389
    %v3409 = vadd.f32 %v3070, %v3394
    %v3410 = vadd.f32 %v3071, %v3399
    %v3411 = vadd.f32 %v3072, %v3404
    %v3412 = vlaneseq
    %v3413 = vshrl.u32 %v3412, 7
    %v3414 = vsub.s32 0, %v3413
    %v3415 = vrot.slane %v192, %v3414
    %v3416 = vadd.f32 %v3407, %v3415
    %v3417 = vadd.f32 %v3408, %v3415
    %v3418 = vadd.f32 %v3409, %v3415
    %v3419 = vadd.f32 %v3410, %v3415
    %v3420 = vadd.f32 %v3411, %v3415
    %v3421 = vld [vmem:[%s16 + $0x7] sm:$0x1]
    %v3422 = vld [vmem:[%s16 + $0x8] sm:$0x1]
    %v3423 = vld [vmem:[%s16 + $0x9] sm:$0x1]
    %v3424 = vld [vmem:[%s16 + $0xa] sm:$0x1]
    %v3425 = vld [vmem:[%s16 + $0xb] sm:$0x1]
    %v3426 = vld [vmem:[%s16 + $0xc] sm:$0x1]
    %v3427 = vld [vmem:[%s16 + $0xd] sm:$0x1]
    %v3428 = vsel %vm193, %v3416, 0.0
    %3429 = vadd.xlane.f32.xlu0 %v3428
    %v3430 = vpop.xlane.xlu0 %3429
    %v3431 = vsel %vm193, %v3417, 0.0
    %3432 = vadd.xlane.f32.xlu0 %v3431
    %v3433 = vpop.xlane.xlu0 %3432
    %v3434 = vsel %vm193, %v3418, 0.0
    %3435 = vadd.xlane.f32.xlu0 %v3434
    %v3436 = vpop.xlane.xlu0 %3435
    %v3437 = vsel %vm193, %v3419, 0.0
    %3438 = vadd.xlane.f32.xlu0 %v3437
    %v3439 = vpop.xlane.xlu0 %3438
    %v3440 = vsel %vm206, %v3420, 0.0
    %3441 = vadd.xlane.f32.xlu0 %v3440
    %v3442 = vpop.xlane.xlu0 %3441
    %v3443 = vmul.f32 %v3430, %v210
    %v3444 = vmul.f32 %v3433, %v210
    %v3445 = vmul.f32 %v3436, %v210
    %v3446 = vmul.f32 %v3439, %v210
    %v3447 = vmul.f32 %v3442, %v210
    %v3448 = vsub.f32 %v3416, %v3443
    %v3449 = vsub.f32 %v3417, %v3444
    %v3450 = vsub.f32 %v3418, %v3445
    %v3451 = vsub.f32 %v3419, %v3446
    %v3452 = vsub.f32 %v3420, %v3447
    %v3453 = vmul.f32 %v3448, %v3448
    %v3454 = vmul.f32 %v3449, %v3449
    %v3455 = vmul.f32 %v3450, %v3450
    %v3456 = vmul.f32 %v3451, %v3451
    %v3457 = vmul.f32 %v3452, %v3452
    %v3458 = vsel %vm193, %v3453, 0.0
    %3459 = vadd.xlane.f32.xlu0 %v3458
    %v3460 = vpop.xlane.xlu0 %3459
    %v3461 = vsel %vm193, %v3454, 0.0
    %3462 = vadd.xlane.f32.xlu0 %v3461
    %v3463 = vpop.xlane.xlu0 %3462
    %v3464 = vsel %vm193, %v3455, 0.0
    %3465 = vadd.xlane.f32.xlu0 %v3464
    %v3466 = vpop.xlane.xlu0 %3465
    %v3467 = vsel %vm193, %v3456, 0.0
    %3468 = vadd.xlane.f32.xlu0 %v3467
    %v3469 = vpop.xlane.xlu0 %3468
    %v3470 = vsel %vm206, %v3457, 0.0
    %3471 = vadd.xlane.f32.xlu0 %v3470
    %v3472 = vpop.xlane.xlu0 %3471
    %v3473 = vmul.f32 %v3460, %v210
    %v3474 = vmul.f32 %v3463, %v210
    %v3475 = vmul.f32 %v3466, %v210
    %v3476 = vmul.f32 %v3469, %v210
    %v3477 = vmul.f32 %v3472, %v210
    %v3478 = vadd.f32 %v3473, 1e-05
    %v3479 = vadd.f32 %v3474, 1e-05
    %v3480 = vadd.f32 %v3475, 1e-05
    %v3481 = vadd.f32 %v3476, 1e-05
    %v3482 = vadd.f32 %v3477, 1e-05
    %v3483 = vrsqrt.pop %v3478
    %v3484 = vrsqrt.pop %v3479
    %v3485 = vrsqrt.pop %v3480
    %v3486 = vrsqrt.pop %v3481
    %v3487 = vrsqrt.pop %v3482
    %v3488 = vmul.f32 %v3448, %v3483
    %v3489 = vmul.f32 %v3449, %v3484
    %v3490 = vmul.f32 %v3450, %v3485
    %v3491 = vmul.f32 %v3451, %v3486
    %v3492 = vmul.f32 %v3452, %v3487
    %v3493 = vlaneseq
    %v3494 = vshrl.u32 %v3493, 7
    %v3495 = vsub.s32 0, %v3494
    %v3496 = vrot.slane %v3421, %v3495
    %v3497 = vmul.f32 %v3488, %v3496
    %v3498 = vmul.f32 %v3489, %v3496
    %v3499 = vmul.f32 %v3490, %v3496
    %v3500 = vmul.f32 %v3491, %v3496
    %v3501 = vmul.f32 %v3492, %v3496
    %v3502 = vlaneseq
    %v3503 = vshrl.u32 %v3502, 7
    %v3504 = vsub.s32 0, %v3503
    %v3505 = vrot.slane %v3422, %v3504
    %v3506 = vadd.f32 %v3497, %v3505
    %v3507 = vadd.f32 %v3498, %v3505
    %v3508 = vadd.f32 %v3499, %v3505
    %v3509 = vadd.f32 %v3500, %v3505
    %v3510 = vadd.f32 %v3501, %v3505
    %v3511 = vsel %vm193, %v3506, 1.0
    %v3512 = vsel %vm193, %v3507, 1.0
    %v3513 = vsel %vm193, %v3508, 1.0
    %v3514 = vsel %vm193, %v3509, 1.0
    %v3515 = vsel %vm193, %v3510, 1.0
    %s3516 = scalar_lea.vmem %s7, 160
    %v3517 = vld [vmem:[%s3516] sm:$0xff]
    %v3518 = vld [vmem:[%s3516 + $0x8] sm:$0xff]
    %v3519 = vld [vmem:[%s3516 + $0x10] sm:$0xff]
    %v3520 = vld [vmem:[%s3516 + $0x18] sm:$0xff]
    %v3521 = vld [vmem:[%s3516 + $0x20] sm:$0x1]
    %v3523 = vsel %vm289, %v3511, 0
    %v3526 = vsel %vm289, %v3512, 0
    %v3529 = vsel %vm289, %v3513, 0
    %v3532 = vsel %vm289, %v3514, 0
    %v3535 = vsel %vm289, %v3515, 0
    %v3538 = vsel %vm305, %v3521, 0
    %3540 = vmatprep.subr.mxu0 0.0
    %3541 = vmatpush1.msra.mxu0 %v3517
    %3542 = vmatprep.subr.mxu0 0.0
    %3543 = vmatpush1.msra.mxu0 %v3518
    %3544 = vmatprep.subr.mxu0 0.0
    %3545 = vmatpush1.msra.mxu0 %v3519
    %3546 = vmatprep.subr.mxu0 0.0
    %3547 = vmatpush1.msra.mxu0 %v3520
    %3548 = vmatprep.subr.mxu0 0.0
    %3549 = vmatpush1.msra.mxu0 %v3538
    %3550 = vmatprep.subr.mxu0 0.0
    %3551 = vmatpush1.msra.mxu0 0.0
    %3552 = vmatprep.subr.mxu0 0.0
    %3553 = vmatpush1.msra.mxu0 0.0
    %3554 = vmatprep.subr.mxu0 0.0
    %3555 = vmatpush1.msra.mxu0 0.0
    %3556 = vmatprep.subr.mxu0 0.0
    %3557 = vmatpush1.msra.mxu0 0.0
    %3558 = vmatprep.subr.mxu0 0.0
    %3559 = vmatpush1.msra.mxu0 0.0
    %3560 = vmatprep.subr.mxu0 0.0
    %3561 = vmatpush1.msra.mxu0 0.0
    %3562 = vmatprep.subr.mxu0 0.0
    %3563 = vmatpush1.msra.mxu0 0.0
    %3564 = vmatprep.subr.mxu0 0.0
    %3565 = vmatpush1.msra.mxu0 0.0
    %3566 = vmatprep.subr.mxu0 0.0
    %3567 = vmatpush1.msra.mxu0 0.0
    %3568 = vmatprep.subr.mxu0 0.0
    %3569 = vmatpush1.msra.mxu0 0.0
    %3570 = vmatprep.subr.mxu0 0.0
    %3571 = vmatpush1.msra.mxu0 0.0
    %3572 = vmatprep.subr.mxu0 0.0
    %3573 = vmatpush1.msra.mxu0 0.0
    %3574 = vmatprep.subr.mxu0 0.0
    %3575 = vmatpush1.msra.mxu0 0.0
    %3576 = vmatprep.subr.mxu0 0.0
    %3577 = vmatpush1.msra.mxu0 0.0
    %3578 = vmatprep.subr.mxu0 0.0
    %3579 = vmatpush1.msra.mxu0 0.0
    %3580 = vmatprep.subr.mxu0 0.0
    %3581 = vmatpush1.msra.mxu0 0.0
    %3582 = vmatprep.subr.mxu0 0.0
    %3583 = vmatpush1.msra.mxu0 0.0
    %3584 = vmatprep.subr.mxu0 0.0
    %3585 = vmatpush1.msra.mxu0 0.0
    %3586 = vmatprep.subr.mxu0 0.0
    %3587 = vmatpush1.msra.mxu0 0.0
    %3588 = vmatprep.subr.mxu0 0.0
    %3589 = vmatpush1.msra.mxu0 0.0
    %3590 = vmatprep.subr.mxu0 0.0
    %3591 = vmatpush1.msra.mxu0 0.0
    %3592 = vmatprep.subr.mxu0 0.0
    %3593 = vmatpush1.msra.mxu0 0.0
    %3594 = vmatprep.subr.mxu0 0.0
    %3595 = vmatpush1.msra.mxu0 0.0
    %3596 = vmatprep.subr.mxu0 0.0
    %3597 = vmatpush1.msra.mxu0 0.0
    %3598 = vmatprep.subr.mxu0 0.0
    %3599 = vmatpush1.msra.mxu0 0.0
    %3600 = vmatprep.subr.mxu0 0.0
    %3601 = vmatpush1.msra.mxu0 0.0
    %3602 = vmatprep.subr.mxu0 0.0
    %3603 = vmatpush1.msra.mxu0 0.0
    %3604 = vmatprep.mubr.f32.mxu0 0.0
    %3605 = vmatmul.mubr.f32.gmra.mrb[0].mxu0 %v3523
    %v3606 = vpop.f32.mrb[0].mxu0
    %v3607 = vadd.f32 0.0, %v3606
    %v3608 = vpop.f32.mrb[0].mxu0
    %3609 = vmatprep.mubr.f32.mxu0 0.0
    %3610 = vmatmul.mubr.f32.gmra.mrb[0].mxu0 %v3526
    %v3611 = vpop.f32.mrb[0].mxu0
    %v3612 = vadd.f32 0.0, %v3611
    %v3613 = vpop.f32.mrb[0].mxu0
    %3614 = vmatprep.mubr.f32.mxu0 0.0
    %3615 = vmatmul.mubr.f32.gmra.mrb[0].mxu0 %v3529
    %v3616 = vpop.f32.mrb[0].mxu0
    %v3617 = vadd.f32 0.0, %v3616
    %v3618 = vpop.f32.mrb[0].mxu0
    %3619 = vmatprep.mubr.f32.mxu0 0.0
    %3620 = vmatmul.mubr.f32.gmra.mrb[0].mxu0 %v3532
    %v3621 = vpop.f32.mrb[0].mxu0
    %v3622 = vadd.f32 0.0, %v3621
    %v3623 = vpop.f32.mrb[0].mxu0
    %3624 = vmatprep.mubr.f32.mxu0 0.0
    %3625 = vmatmul.mubr.f32.gmra.mrb[0].mxu0 %v3535
    %v3626 = vpop.f32.mrb[0].mxu0
    %v3627 = vadd.f32 0.0, %v3626
    %v3628 = vpop.f32.mrb[0].mxu0
    %3629 = vdwg.mxu0
    %s3630 = scalar_lea.vmem %s8, 160
    %v3631 = vld [vmem:[%s3630] sm:$0xff]
    %v3632 = vld [vmem:[%s3630 + $0x8] sm:$0xff]
    %v3633 = vld [vmem:[%s3630 + $0x10] sm:$0xff]
    %v3634 = vld [vmem:[%s3630 + $0x18] sm:$0xff]
    %v3635 = vld [vmem:[%s3630 + $0x20] sm:$0x1]
    %v3637 = vsel %vm305, %v3635, 0
    %3639 = vmatprep.subr.mxu0 0.0
    %3640 = vmatpush1.msra.mxu0 %v3631
    %3641 = vmatprep.subr.mxu0 0.0
    %3642 = vmatpush1.msra.mxu0 %v3632
    %3643 = vmatprep.subr.mxu0 0.0
    %3644 = vmatpush1.msra.mxu0 %v3633
    %3645 = vmatprep.subr.mxu0 0.0
    %3646 = vmatpush1.msra.mxu0 %v3634
    %3647 = vmatprep.subr.mxu0 0.0
    %3648 = vmatpush1.msra.mxu0 %v3637
    %3649 = vmatprep.subr.mxu0 0.0
    %3650 = vmatpush1.msra.mxu0 0.0
    %3651 = vmatprep.subr.mxu0 0.0
    %3652 = vmatpush1.msra.mxu0 0.0
    %3653 = vmatprep.subr.mxu0 0.0
    %3654 = vmatpush1.msra.mxu0 0.0
    %3655 = vmatprep.subr.mxu0 0.0
    %3656 = vmatpush1.msra.mxu0 0.0
    %3657 = vmatprep.subr.mxu0 0.0
    %3658 = vmatpush1.msra.mxu0 0.0
    %3659 = vmatprep.subr.mxu0 0.0
    %3660 = vmatpush1.msra.mxu0 0.0
    %3661 = vmatprep.subr.mxu0 0.0
    %3662 = vmatpush1.msra.mxu0 0.0
    %3663 = vmatprep.subr.mxu0 0.0
    %3664 = vmatpush1.msra.mxu0 0.0
    %3665 = vmatprep.subr.mxu0 0.0
    %3666 = vmatpush1.msra.mxu0 0.0
    %3667 = vmatprep.subr.mxu0 0.0
    %3668 = vmatpush1.msra.mxu0 0.0
    %3669 = vmatprep.subr.mxu0 0.0
    %3670 = vmatpush1.msra.mxu0 0.0
    %3671 = vmatprep.subr.mxu0 0.0
    %3672 = vmatpush1.msra.mxu0 0.0
    %3673 = vmatprep.subr.mxu0 0.0
    %3674 = vmatpush1.msra.mxu0 0.0
    %3675 = vmatprep.subr.mxu0 0.0
    %3676 = vmatpush1.msra.mxu0 0.0
    %3677 = vmatprep.subr.mxu0 0.0
    %3678 = vmatpush1.msra.mxu0 0.0
    %3679 = vmatprep.subr.mxu0 0.0
    %3680 = vmatpush1.msra.mxu0 0.0
    %3681 = vmatprep.subr.mxu0 0.0
    %3682 = vmatpush1.msra.mxu0 0.0
    %3683 = vmatprep.subr.mxu0 0.0
    %3684 = vmatpush1.msra.mxu0 0.0
    %3685 = vmatprep.subr.mxu0 0.0
    %3686 = vmatpush1.msra.mxu0 0.0
    %3687 = vmatprep.subr.mxu0 0.0
    %3688 = vmatpush1.msra.mxu0 0.0
    %3689 = vmatprep.subr.mxu0 0.0
    %3690 = vmatpush1.msra.mxu0 0.0
    %3691 = vmatprep.subr.mxu0 0.0
    %3692 = vmatpush1.msra.mxu0 0.0
    %3693 = vmatprep.subr.mxu0 0.0
    %3694 = vmatpush1.msra.mxu0 0.0
    %3695 = vmatprep.subr.mxu0 0.0
    %3696 = vmatpush1.msra.mxu0 0.0
    %3697 = vmatprep.subr.mxu0 0.0
    %3698 = vmatpush1.msra.mxu0 0.0
    %3699 = vmatprep.subr.mxu0 0.0
    %3700 = vmatpush1.msra.mxu0 0.0
    %3701 = vmatprep.subr.mxu0 0.0
    %3702 = vmatpush1.msra.mxu0 0.0
    %3703 = vmatprep.mubr.f32.mxu0 0.0
    %3704 = vmatmul.mubr.f32.gmra.mrb[0].mxu0 %v3523
    %v3705 = vpop.f32.mrb[0].mxu0
    %v3706 = vadd.f32 0.0, %v3705
    %v3707 = vpop.f32.mrb[0].mxu0
    %3708 = vmatprep.mubr.f32.mxu0 0.0
    %3709 = vmatmul.mubr.f32.gmra.mrb[0].mxu0 %v3526
    %v3710 = vpop.f32.mrb[0].mxu0
    %v3711 = vadd.f32 0.0, %v3710
    %v3712 = vpop.f32.mrb[0].mxu0
    %3713 = vmatprep.mubr.f32.mxu0 0.0
    %3714 = vmatmul.mubr.f32.gmra.mrb[0].mxu0 %v3529
    %v3715 = vpop.f32.mrb[0].mxu0
    %v3716 = vadd.f32 0.0, %v3715
    %v3717 = vpop.f32.mrb[0].mxu0
    %3718 = vmatprep.mubr.f32.mxu0 0.0
    %3719 = vmatmul.mubr.f32.gmra.mrb[0].mxu0 %v3532
    %v3720 = vpop.f32.mrb[0].mxu0
    %v3721 = vadd.f32 0.0, %v3720
    %v3722 = vpop.f32.mrb[0].mxu0
    %3723 = vmatprep.mubr.f32.mxu0 0.0
    %3724 = vmatmul.mubr.f32.gmra.mrb[0].mxu0 %v3535
    %v3725 = vpop.f32.mrb[0].mxu0
    %v3726 = vadd.f32 0.0, %v3725
    %v3727 = vpop.f32.mrb[0].mxu0
    %3728 = vdwg.mxu0
    %s3729 = scalar_lea.vmem %s9, 160
    %v3730 = vld [vmem:[%s3729] sm:$0xff]
    %v3731 = vld [vmem:[%s3729 + $0x8] sm:$0xff]
    %v3732 = vld [vmem:[%s3729 + $0x10] sm:$0xff]
    %v3733 = vld [vmem:[%s3729 + $0x18] sm:$0xff]
    %v3734 = vld [vmem:[%s3729 + $0x20] sm:$0x1]
    %v3736 = vsel %vm305, %v3734, 0
    %3738 = vmatprep.subr.mxu0 0.0
    %3739 = vmatpush1.msra.mxu0 %v3730
    %3740 = vmatprep.subr.mxu0 0.0
    %3741 = vmatpush1.msra.mxu0 %v3731
    %3742 = vmatprep.subr.mxu0 0.0
    %3743 = vmatpush1.msra.mxu0 %v3732
    %3744 = vmatprep.subr.mxu0 0.0
    %3745 = vmatpush1.msra.mxu0 %v3733
    %3746 = vmatprep.subr.mxu0 0.0
    %3747 = vmatpush1.msra.mxu0 %v3736
    %3748 = vmatprep.subr.mxu0 0.0
    %3749 = vmatpush1.msra.mxu0 0.0
    %3750 = vmatprep.subr.mxu0 0.0
    %3751 = vmatpush1.msra.mxu0 0.0
    %3752 = vmatprep.subr.mxu0 0.0
    %3753 = vmatpush1.msra.mxu0 0.0
    %3754 = vmatprep.subr.mxu0 0.0
    %3755 = vmatpush1.msra.mxu0 0.0
    %3756 = vmatprep.subr.mxu0 0.0
    %3757 = vmatpush1.msra.mxu0 0.0
    %3758 = vmatprep.subr.mxu0 0.0
    %3759 = vmatpush1.msra.mxu0 0.0
    %3760 = vmatprep.subr.mxu0 0.0
    %3761 = vmatpush1.msra.mxu0 0.0
    %3762 = vmatprep.subr.mxu0 0.0
    %3763 = vmatpush1.msra.mxu0 0.0
    %3764 = vmatprep.subr.mxu0 0.0
    %3765 = vmatpush1.msra.mxu0 0.0
    %3766 = vmatprep.subr.mxu0 0.0
    %3767 = vmatpush1.msra.mxu0 0.0
    %3768 = vmatprep.subr.mxu0 0.0
    %3769 = vmatpush1.msra.mxu0 0.0
    %3770 = vmatprep.subr.mxu0 0.0
    %3771 = vmatpush1.msra.mxu0 0.0
    %3772 = vmatprep.subr.mxu0 0.0
    %3773 = vmatpush1.msra.mxu0 0.0
    %3774 = vmatprep.subr.mxu0 0.0
    %3775 = vmatpush1.msra.mxu0 0.0
    %3776 = vmatprep.subr.mxu0 0.0
    %3777 = vmatpush1.msra.mxu0 0.0
    %3778 = vmatprep.subr.mxu0 0.0
    %3779 = vmatpush1.msra.mxu0 0.0
    %3780 = vmatprep.subr.mxu0 0.0
    %3781 = vmatpush1.msra.mxu0 0.0
    %3782 = vmatprep.subr.mxu0 0.0
    %3783 = vmatpush1.msra.mxu0 0.0
    %3784 = vmatprep.subr.mxu0 0.0
    %3785 = vmatpush1.msra.mxu0 0.0
    %3786 = vmatprep.subr.mxu0 0.0
    %3787 = vmatpush1.msra.mxu0 0.0
    %3788 = vmatprep.subr.mxu0 0.0
    %3789 = vmatpush1.msra.mxu0 0.0
    %3790 = vmatprep.subr.mxu0 0.0
    %3791 = vmatpush1.msra.mxu0 0.0
    %3792 = vmatprep.subr.mxu0 0.0
    %3793 = vmatpush1.msra.mxu0 0.0
    %3794 = vmatprep.subr.mxu0 0.0
    %3795 = vmatpush1.msra.mxu0 0.0
    %3796 = vmatprep.subr.mxu0 0.0
    %3797 = vmatpush1.msra.mxu0 0.0
    %3798 = vmatprep.subr.mxu0 0.0
    %3799 = vmatpush1.msra.mxu0 0.0
    %3800 = vmatprep.subr.mxu0 0.0
    %3801 = vmatpush1.msra.mxu0 0.0
    %3802 = vmatprep.mubr.f32.mxu0 0.0
    %3803 = vmatmul.mubr.f32.gmra.mrb[0].mxu0 %v3523
    %v3804 = vpop.f32.mrb[0].mxu0
    %v3805 = vadd.f32 0.0, %v3804
    %v3806 = vpop.f32.mrb[0].mxu0
    %3807 = vmatprep.mubr.f32.mxu0 0.0
    %3808 = vmatmul.mubr.f32.gmra.mrb[0].mxu0 %v3526
    %v3809 = vpop.f32.mrb[0].mxu0
    %v3810 = vadd.f32 0.0, %v3809
    %v3811 = vpop.f32.mrb[0].mxu0
    %3812 = vmatprep.mubr.f32.mxu0 0.0
    %3813 = vmatmul.mubr.f32.gmra.mrb[0].mxu0 %v3529
    %v3814 = vpop.f32.mrb[0].mxu0
    %v3815 = vadd.f32 0.0, %v3814
    %v3816 = vpop.f32.mrb[0].mxu0
    %3817 = vmatprep.mubr.f32.mxu0 0.0
    %3818 = vmatmul.mubr.f32.gmra.mrb[0].mxu0 %v3532
    %v3819 = vpop.f32.mrb[0].mxu0
    %v3820 = vadd.f32 0.0, %v3819
    %v3821 = vpop.f32.mrb[0].mxu0
    %3822 = vmatprep.mubr.f32.mxu0 0.0
    %3823 = vmatmul.mubr.f32.gmra.mrb[0].mxu0 %v3535
    %v3824 = vpop.f32.mrb[0].mxu0
    %v3825 = vadd.f32 0.0, %v3824
    %v3826 = vpop.f32.mrb[0].mxu0
    %3827 = vdwg.mxu0
    %v3829 = vsel %vm595, %v3607, 0
    %v3832 = vsel %vm595, %v3612, 0
    %v3835 = vsel %vm595, %v3617, 0
    %v3838 = vsel %vm595, %v3622, 0
    %v3841 = vsel %vm595, %v3627, 0
    %v3844 = vsel %vm595, %v3706, 0
    %v3847 = vsel %vm595, %v3711, 0
    %v3850 = vsel %vm595, %v3716, 0
    %v3853 = vsel %vm595, %v3721, 0
    %v3856 = vsel %vm595, %v3726, 0
    %3858 = vmatprep.subr.mxu0 0.0
    %3859 = vmatpush1.xpose.msra.mxu0 %v3844
    %3860 = vmatprep.subr.mxu0 0.0
    %3861 = vmatpush1.xpose.msra.mxu0 %v3847
    %3862 = vmatprep.subr.mxu0 0.0
    %3863 = vmatpush1.xpose.msra.mxu0 %v3850
    %3864 = vmatprep.subr.mxu0 0.0
    %3865 = vmatpush1.xpose.msra.mxu0 %v3853
    %3866 = vmatprep.subr.mxu0 0.0
    %3867 = vmatpush1.xpose.msra.mxu0 %v3856
    %3868 = vmatprep.subr.mxu0 0.0
    %3869 = vmatpush1.xpose.msra.mxu0 0.0
    %3870 = vmatprep.subr.mxu0 0.0
    %3871 = vmatpush1.xpose.msra.mxu0 0.0
    %3872 = vmatprep.subr.mxu0 0.0
    %3873 = vmatpush1.xpose.msra.mxu0 0.0
    %3874 = vmatprep.subr.mxu0 0.0
    %3875 = vmatpush1.xpose.msra.mxu0 0.0
    %3876 = vmatprep.subr.mxu0 0.0
    %3877 = vmatpush1.xpose.msra.mxu0 0.0
    %3878 = vmatprep.subr.mxu0 0.0
    %3879 = vmatpush1.xpose.msra.mxu0 0.0
    %3880 = vmatprep.subr.mxu0 0.0
    %3881 = vmatpush1.xpose.msra.mxu0 0.0
    %3882 = vmatprep.subr.mxu0 0.0
    %3883 = vmatpush1.xpose.msra.mxu0 0.0
    %3884 = vmatprep.subr.mxu0 0.0
    %3885 = vmatpush1.xpose.msra.mxu0 0.0
    %3886 = vmatprep.subr.mxu0 0.0
    %3887 = vmatpush1.xpose.msra.mxu0 0.0
    %3888 = vmatprep.subr.mxu0 0.0
    %3889 = vmatpush1.xpose.msra.mxu0 0.0
    %3890 = vmatprep.subr.mxu0 0.0
    %3891 = vmatpush1.xpose.msra.mxu0 0.0
    %3892 = vmatprep.subr.mxu0 0.0
    %3893 = vmatpush1.xpose.msra.mxu0 0.0
    %3894 = vmatprep.subr.mxu0 0.0
    %3895 = vmatpush1.xpose.msra.mxu0 0.0
    %3896 = vmatprep.subr.mxu0 0.0
    %3897 = vmatpush1.xpose.msra.mxu0 0.0
    %3898 = vmatprep.subr.mxu0 0.0
    %3899 = vmatpush1.xpose.msra.mxu0 0.0
    %3900 = vmatprep.subr.mxu0 0.0
    %3901 = vmatpush1.xpose.msra.mxu0 0.0
    %3902 = vmatprep.subr.mxu0 0.0
    %3903 = vmatpush1.xpose.msra.mxu0 0.0
    %3904 = vmatprep.subr.mxu0 0.0
    %3905 = vmatpush1.xpose.msra.mxu0 0.0
    %3906 = vmatprep.subr.mxu0 0.0
    %3907 = vmatpush1.xpose.msra.mxu0 0.0
    %3908 = vmatprep.subr.mxu0 0.0
    %3909 = vmatpush1.xpose.msra.mxu0 0.0
    %3910 = vmatprep.subr.mxu0 0.0
    %3911 = vmatpush1.xpose.msra.mxu0 0.0
    %3912 = vmatprep.subr.mxu0 0.0
    %3913 = vmatpush1.xpose.msra.mxu0 0.0
    %3914 = vmatprep.subr.mxu0 0.0
    %3915 = vmatpush1.xpose.msra.mxu0 0.0
    %3916 = vmatprep.subr.mxu0 0.0
    %3917 = vmatpush1.xpose.msra.mxu0 0.0
    %3918 = vmatprep.subr.mxu0 0.0
    %3919 = vmatpush1.xpose.msra.mxu0 0.0
    %3920 = vmatprep.subr.mxu0 0.0
    %3921 = vmatpush1.xpose.msra.mxu0 0.0
    %3922 = vmatprep.mubr.f32.mxu0 0.0
    %3923 = vmatmul.mubr.f32.gmra.mrb[0].mxu0 %v3829
    %v3924 = vpop.f32.mrb[0].mxu0
    %v3925 = vadd.f32 %v181, %v3924
    %v3926 = vpop.f32.mrb[0].mxu0
    %3927 = vmatprep.mubr.f32.mxu0 0.0
    %3928 = vmatmul.mubr.f32.gmra.mrb[0].mxu0 %v3832
    %v3929 = vpop.f32.mrb[0].mxu0
    %v3930 = vadd.f32 %v182, %v3929
    %v3931 = vpop.f32.mrb[0].mxu0
    %3932 = vmatprep.mubr.f32.mxu0 0.0
    %3933 = vmatmul.mubr.f32.gmra.mrb[0].mxu0 %v3835
    %v3934 = vpop.f32.mrb[0].mxu0
    %v3935 = vadd.f32 %v183, %v3934
    %v3936 = vpop.f32.mrb[0].mxu0
    %3937 = vmatprep.mubr.f32.mxu0 0.0
    %3938 = vmatmul.mubr.f32.gmra.mrb[0].mxu0 %v3838
    %v3939 = vpop.f32.mrb[0].mxu0
    %v3940 = vadd.f32 %v184, %v3939
    %v3941 = vpop.f32.mrb[0].mxu0
    %3942 = vmatprep.mubr.f32.mxu0 0.0
    %3943 = vmatmul.mubr.f32.gmra.mrb[0].mxu0 %v3841
    %v3944 = vpop.f32.mrb[0].mxu0
    %v3945 = vadd.f32 %v185, %v3944
    %v3946 = vpop.f32.mrb[0].mxu0
    %3947 = vdwg.mxu0
    %v3948 = vsel %vm716, %v3925, -inf
    %3949 = vmax.xlane.f32.xlu0 %v3948
    %v3950 = vpop.xlane.xlu0 %3949
    %v3951 = vsel %vm716, %v3930, -inf
    %3952 = vmax.xlane.f32.xlu0 %v3951
    %v3953 = vpop.xlane.xlu0 %3952
    %v3954 = vsel %vm716, %v3935, -inf
    %3955 = vmax.xlane.f32.xlu0 %v3954
    %v3956 = vpop.xlane.xlu0 %3955
    %v3957 = vsel %vm716, %v3940, -inf
    %3958 = vmax.xlane.f32.xlu0 %v3957
    %v3959 = vpop.xlane.xlu0 %3958
    %v3960 = vsel %vm729, %v3945, -inf
    %3961 = vmax.xlane.f32.xlu0 %v3960
    %v3962 = vpop.xlane.xlu0 %3961
    %v3963 = vsub.f32 %v3925, %v3950
    %v3964 = vsub.f32 %v3930, %v3953
    %v3965 = vsub.f32 %v3935, %v3956
    %v3966 = vsub.f32 %v3940, %v3959
    %v3967 = vsub.f32 %v3945, %v3962
    %v3968 = vmul.f32 %v3963, 1.442695
    %v3969 = vpow.pop %v3968
    %v3970 = vmul.f32 %v3964, 1.442695
    %v3971 = vpow.pop %v3970
    %v3972 = vmul.f32 %v3965, 1.442695
    %v3973 = vpow.pop %v3972
    %v3974 = vmul.f32 %v3966, 1.442695
    %v3975 = vpow.pop %v3974
    %v3976 = vmul.f32 %v3967, 1.442695
    %v3977 = vpow.pop %v3976
    %v3978 = vsel %vm716, %v3969, 0.0
    %3979 = vadd.xlane.f32.xlu0 %v3978
    %v3980 = vpop.xlane.xlu0 %3979
    %v3981 = vsel %vm716, %v3971, 0.0
    %3982 = vadd.xlane.f32.xlu0 %v3981
    %v3983 = vpop.xlane.xlu0 %3982
    %v3984 = vsel %vm716, %v3973, 0.0
    %3985 = vadd.xlane.f32.xlu0 %v3984
    %v3986 = vpop.xlane.xlu0 %3985
    %v3987 = vsel %vm716, %v3975, 0.0
    %3988 = vadd.xlane.f32.xlu0 %v3987
    %v3989 = vpop.xlane.xlu0 %3988
    %v3990 = vsel %vm729, %v3977, 0.0
    %3991 = vadd.xlane.f32.xlu0 %v3990
    %v3992 = vpop.xlane.xlu0 %3991
    %v3993 = vrcp.pop %v3980
    %v3994 = vrcp.pop %v3983
    %v3995 = vrcp.pop %v3986
    %v3996 = vrcp.pop %v3989
    %v3997 = vrcp.pop %v3992
    %v3998 = vmul.f32 %v3969, %v3993
    %v3999 = vmul.f32 %v3971, %v3994
    %v4000 = vmul.f32 %v3973, %v3995
    %v4001 = vmul.f32 %v3975, %v3996
    %v4002 = vmul.f32 %v3977, %v3997
    %v4004 = vsel %vm716, %v3998, 0
    %v4007 = vsel %vm716, %v3999, 0
    %v4010 = vsel %vm716, %v4000, 0
    %v4013 = vsel %vm716, %v4001, 0
    %v4016 = vsel %vm716, %v4002, 0
    %v4019 = vsel %vm788, %v3825, 0
    %4021 = vmatprep.subr.mxu0 0.0
    %4022 = vmatpush1.msra.mxu0 %v3805
    %4023 = vmatprep.subr.mxu0 0.0
    %4024 = vmatpush1.msra.mxu0 %v3810
    %4025 = vmatprep.subr.mxu0 0.0
    %4026 = vmatpush1.msra.mxu0 %v3815
    %4027 = vmatprep.subr.mxu0 0.0
    %4028 = vmatpush1.msra.mxu0 %v3820
    %4029 = vmatprep.subr.mxu0 0.0
    %4030 = vmatpush1.msra.mxu0 %v4019
    %4031 = vmatprep.subr.mxu0 0.0
    %4032 = vmatpush1.msra.mxu0 0.0
    %4033 = vmatprep.subr.mxu0 0.0
    %4034 = vmatpush1.msra.mxu0 0.0
    %4035 = vmatprep.subr.mxu0 0.0
    %4036 = vmatpush1.msra.mxu0 0.0
    %4037 = vmatprep.subr.mxu0 0.0
    %4038 = vmatpush1.msra.mxu0 0.0
    %4039 = vmatprep.subr.mxu0 0.0
    %4040 = vmatpush1.msra.mxu0 0.0
    %4041 = vmatprep.subr.mxu0 0.0
    %4042 = vmatpush1.msra.mxu0 0.0
    %4043 = vmatprep.subr.mxu0 0.0
    %4044 = vmatpush1.msra.mxu0 0.0
    %4045 = vmatprep.subr.mxu0 0.0
    %4046 = vmatpush1.msra.mxu0 0.0
    %4047 = vmatprep.subr.mxu0 0.0
    %4048 = vmatpush1.msra.mxu0 0.0
    %4049 = vmatprep.subr.mxu0 0.0
    %4050 = vmatpush1.msra.mxu0 0.0
    %4051 = vmatprep.subr.mxu0 0.0
    %4052 = vmatpush1.msra.mxu0 0.0
    %4053 = vmatprep.subr.mxu0 0.0
    %4054 = vmatpush1.msra.mxu0 0.0
    %4055 = vmatprep.subr.mxu0 0.0
    %4056 = vmatpush1.msra.mxu0 0.0
    %4057 = vmatprep.subr.mxu0 0.0
    %4058 = vmatpush1.msra.mxu0 0.0
    %4059 = vmatprep.subr.mxu0 0.0
    %4060 = vmatpush1.msra.mxu0 0.0
    %4061 = vmatprep.subr.mxu0 0.0
    %4062 = vmatpush1.msra.mxu0 0.0
    %4063 = vmatprep.subr.mxu0 0.0
    %4064 = vmatpush1.msra.mxu0 0.0
    %4065 = vmatprep.subr.mxu0 0.0
    %4066 = vmatpush1.msra.mxu0 0.0
    %4067 = vmatprep.subr.mxu0 0.0
    %4068 = vmatpush1.msra.mxu0 0.0
    %4069 = vmatprep.subr.mxu0 0.0
    %4070 = vmatpush1.msra.mxu0 0.0
    %4071 = vmatprep.subr.mxu0 0.0
    %4072 = vmatpush1.msra.mxu0 0.0
    %4073 = vmatprep.subr.mxu0 0.0
    %4074 = vmatpush1.msra.mxu0 0.0
    %4075 = vmatprep.subr.mxu0 0.0
    %4076 = vmatpush1.msra.mxu0 0.0
    %4077 = vmatprep.subr.mxu0 0.0
    %4078 = vmatpush1.msra.mxu0 0.0
    %4079 = vmatprep.subr.mxu0 0.0
    %4080 = vmatpush1.msra.mxu0 0.0
    %4081 = vmatprep.subr.mxu0 0.0
    %4082 = vmatpush1.msra.mxu0 0.0
    %4083 = vmatprep.subr.mxu0 0.0
    %4084 = vmatpush1.msra.mxu0 0.0
    %4085 = vmatprep.mubr.f32.mxu0 0.0
    %4086 = vmatmul.mubr.f32.gmra.mrb[0].mxu0 %v4004
    %v4087 = vpop.f32.mrb[0].mxu0
    %v4088 = vadd.f32 0.0, %v4087
    %v4089 = vpop.f32.mrb[0].mxu0
    %4090 = vmatprep.mubr.f32.mxu0 0.0
    %4091 = vmatmul.mubr.f32.gmra.mrb[0].mxu0 %v4007
    %v4092 = vpop.f32.mrb[0].mxu0
    %v4093 = vadd.f32 0.0, %v4092
    %v4094 = vpop.f32.mrb[0].mxu0
    %4095 = vmatprep.mubr.f32.mxu0 0.0
    %4096 = vmatmul.mubr.f32.gmra.mrb[0].mxu0 %v4010
    %v4097 = vpop.f32.mrb[0].mxu0
    %v4098 = vadd.f32 0.0, %v4097
    %v4099 = vpop.f32.mrb[0].mxu0
    %4100 = vmatprep.mubr.f32.mxu0 0.0
    %4101 = vmatmul.mubr.f32.gmra.mrb[0].mxu0 %v4013
    %v4102 = vpop.f32.mrb[0].mxu0
    %v4103 = vadd.f32 0.0, %v4102
    %v4104 = vpop.f32.mrb[0].mxu0
    %4105 = vmatprep.mubr.f32.mxu0 0.0
    %4106 = vmatmul.mubr.f32.gmra.mrb[0].mxu0 %v4016
    %v4107 = vpop.f32.mrb[0].mxu0
    %v4108 = vadd.f32 0.0, %v4107
    %v4109 = vpop.f32.mrb[0].mxu0
    %4110 = vdwg.mxu0
    %s4111 = scalar_lea.vmem %s10, 32
    %v4112 = vld [vmem:[%s4111] sm:$0xff]
    %s4113 = scalar_lea.vmem %s7, 200
    %v4114 = vld [vmem:[%s4113] sm:$0xff]
    %v4115 = vld [vmem:[%s4113 + $0x8] sm:$0xff]
    %v4116 = vld [vmem:[%s4113 + $0x10] sm:$0xff]
    %v4117 = vld [vmem:[%s4113 + $0x18] sm:$0xff]
    %v4118 = vld [vmem:[%s4113 + $0x20] sm:$0x1]
    %v4120 = vsel %vm305, %v4118, 0
    %4122 = vmatprep.subr.mxu0 0.0
    %4123 = vmatpush1.msra.mxu0 %v4114
    %4124 = vmatprep.subr.mxu0 0.0
    %4125 = vmatpush1.msra.mxu0 %v4115
    %4126 = vmatprep.subr.mxu0 0.0
    %4127 = vmatpush1.msra.mxu0 %v4116
    %4128 = vmatprep.subr.mxu0 0.0
    %4129 = vmatpush1.msra.mxu0 %v4117
    %4130 = vmatprep.subr.mxu0 0.0
    %4131 = vmatpush1.msra.mxu0 %v4120
    %4132 = vmatprep.subr.mxu0 0.0
    %4133 = vmatpush1.msra.mxu0 0.0
    %4134 = vmatprep.subr.mxu0 0.0
    %4135 = vmatpush1.msra.mxu0 0.0
    %4136 = vmatprep.subr.mxu0 0.0
    %4137 = vmatpush1.msra.mxu0 0.0
    %4138 = vmatprep.subr.mxu0 0.0
    %4139 = vmatpush1.msra.mxu0 0.0
    %4140 = vmatprep.subr.mxu0 0.0
    %4141 = vmatpush1.msra.mxu0 0.0
    %4142 = vmatprep.subr.mxu0 0.0
    %4143 = vmatpush1.msra.mxu0 0.0
    %4144 = vmatprep.subr.mxu0 0.0
    %4145 = vmatpush1.msra.mxu0 0.0
    %4146 = vmatprep.subr.mxu0 0.0
    %4147 = vmatpush1.msra.mxu0 0.0
    %4148 = vmatprep.subr.mxu0 0.0
    %4149 = vmatpush1.msra.mxu0 0.0
    %4150 = vmatprep.subr.mxu0 0.0
    %4151 = vmatpush1.msra.mxu0 0.0
    %4152 = vmatprep.subr.mxu0 0.0
    %4153 = vmatpush1.msra.mxu0 0.0
    %4154 = vmatprep.subr.mxu0 0.0
    %4155 = vmatpush1.msra.mxu0 0.0
    %4156 = vmatprep.subr.mxu0 0.0
    %4157 = vmatpush1.msra.mxu0 0.0
    %4158 = vmatprep.subr.mxu0 0.0
    %4159 = vmatpush1.msra.mxu0 0.0
    %4160 = vmatprep.subr.mxu0 0.0
    %4161 = vmatpush1.msra.mxu0 0.0
    %4162 = vmatprep.subr.mxu0 0.0
    %4163 = vmatpush1.msra.mxu0 0.0
    %4164 = vmatprep.subr.mxu0 0.0
    %4165 = vmatpush1.msra.mxu0 0.0
    %4166 = vmatprep.subr.mxu0 0.0
    %4167 = vmatpush1.msra.mxu0 0.0
    %4168 = vmatprep.subr.mxu0 0.0
    %4169 = vmatpush1.msra.mxu0 0.0
    %4170 = vmatprep.subr.mxu0 0.0
    %4171 = vmatpush1.msra.mxu0 0.0
    %4172 = vmatprep.subr.mxu0 0.0
    %4173 = vmatpush1.msra.mxu0 0.0
    %4174 = vmatprep.subr.mxu0 0.0
    %4175 = vmatpush1.msra.mxu0 0.0
    %4176 = vmatprep.subr.mxu0 0.0
    %4177 = vmatpush1.msra.mxu0 0.0
    %4178 = vmatprep.subr.mxu0 0.0
    %4179 = vmatpush1.msra.mxu0 0.0
    %4180 = vmatprep.subr.mxu0 0.0
    %4181 = vmatpush1.msra.mxu0 0.0
    %4182 = vmatprep.subr.mxu0 0.0
    %4183 = vmatpush1.msra.mxu0 0.0
    %4184 = vmatprep.subr.mxu0 0.0
    %4185 = vmatpush1.msra.mxu0 0.0
    %4186 = vmatprep.mubr.f32.mxu0 0.0
    %4187 = vmatmul.mubr.f32.gmra.mrb[0].mxu0 %v3523
    %v4188 = vpop.f32.mrb[0].mxu0
    %v4189 = vadd.f32 0.0, %v4188
    %v4190 = vpop.f32.mrb[0].mxu0
    %4191 = vmatprep.mubr.f32.mxu0 0.0
    %4192 = vmatmul.mubr.f32.gmra.mrb[0].mxu0 %v3526
    %v4193 = vpop.f32.mrb[0].mxu0
    %v4194 = vadd.f32 0.0, %v4193
    %v4195 = vpop.f32.mrb[0].mxu0
    %4196 = vmatprep.mubr.f32.mxu0 0.0
    %4197 = vmatmul.mubr.f32.gmra.mrb[0].mxu0 %v3529
    %v4198 = vpop.f32.mrb[0].mxu0
    %v4199 = vadd.f32 0.0, %v4198
    %v4200 = vpop.f32.mrb[0].mxu0
    %4201 = vmatprep.mubr.f32.mxu0 0.0
    %4202 = vmatmul.mubr.f32.gmra.mrb[0].mxu0 %v3532
    %v4203 = vpop.f32.mrb[0].mxu0
    %v4204 = vadd.f32 0.0, %v4203
    %v4205 = vpop.f32.mrb[0].mxu0
    %4206 = vmatprep.mubr.f32.mxu0 0.0
    %4207 = vmatmul.mubr.f32.gmra.mrb[0].mxu0 %v3535
    %v4208 = vpop.f32.mrb[0].mxu0
    %v4209 = vadd.f32 0.0, %v4208
    %v4210 = vpop.f32.mrb[0].mxu0
    %4211 = vdwg.mxu0
    %s4212 = scalar_lea.vmem %s8, 200
    %v4213 = vld [vmem:[%s4212] sm:$0xff]
    %v4214 = vld [vmem:[%s4212 + $0x8] sm:$0xff]
    %v4215 = vld [vmem:[%s4212 + $0x10] sm:$0xff]
    %v4216 = vld [vmem:[%s4212 + $0x18] sm:$0xff]
    %v4217 = vld [vmem:[%s4212 + $0x20] sm:$0x1]
    %v4219 = vsel %vm305, %v4217, 0
    %4221 = vmatprep.subr.mxu0 0.0
    %4222 = vmatpush1.msra.mxu0 %v4213
    %4223 = vmatprep.subr.mxu0 0.0
    %4224 = vmatpush1.msra.mxu0 %v4214
    %4225 = vmatprep.subr.mxu0 0.0
    %4226 = vmatpush1.msra.mxu0 %v4215
    %4227 = vmatprep.subr.mxu0 0.0
    %4228 = vmatpush1.msra.mxu0 %v4216
    %4229 = vmatprep.subr.mxu0 0.0
    %4230 = vmatpush1.msra.mxu0 %v4219
    %4231 = vmatprep.subr.mxu0 0.0
    %4232 = vmatpush1.msra.mxu0 0.0
    %4233 = vmatprep.subr.mxu0 0.0
    %4234 = vmatpush1.msra.mxu0 0.0
    %4235 = vmatprep.subr.mxu0 0.0
    %4236 = vmatpush1.msra.mxu0 0.0
    %4237 = vmatprep.subr.mxu0 0.0
    %4238 = vmatpush1.msra.mxu0 0.0
    %4239 = vmatprep.subr.mxu0 0.0
    %4240 = vmatpush1.msra.mxu0 0.0
    %4241 = vmatprep.subr.mxu0 0.0
    %4242 = vmatpush1.msra.mxu0 0.0
    %4243 = vmatprep.subr.mxu0 0.0
    %4244 = vmatpush1.msra.mxu0 0.0
    %4245 = vmatprep.subr.mxu0 0.0
    %4246 = vmatpush1.msra.mxu0 0.0
    %4247 = vmatprep.subr.mxu0 0.0
    %4248 = vmatpush1.msra.mxu0 0.0
    %4249 = vmatprep.subr.mxu0 0.0
    %4250 = vmatpush1.msra.mxu0 0.0
    %4251 = vmatprep.subr.mxu0 0.0
    %4252 = vmatpush1.msra.mxu0 0.0
    %4253 = vmatprep.subr.mxu0 0.0
    %4254 = vmatpush1.msra.mxu0 0.0
    %4255 = vmatprep.subr.mxu0 0.0
    %4256 = vmatpush1.msra.mxu0 0.0
    %4257 = vmatprep.subr.mxu0 0.0
    %4258 = vmatpush1.msra.mxu0 0.0
    %4259 = vmatprep.subr.mxu0 0.0
    %4260 = vmatpush1.msra.mxu0 0.0
    %4261 = vmatprep.subr.mxu0 0.0
    %4262 = vmatpush1.msra.mxu0 0.0
    %4263 = vmatprep.subr.mxu0 0.0
    %4264 = vmatpush1.msra.mxu0 0.0
    %4265 = vmatprep.subr.mxu0 0.0
    %4266 = vmatpush1.msra.mxu0 0.0
    %4267 = vmatprep.subr.mxu0 0.0
    %4268 = vmatpush1.msra.mxu0 0.0
    %4269 = vmatprep.subr.mxu0 0.0
    %4270 = vmatpush1.msra.mxu0 0.0
    %4271 = vmatprep.subr.mxu0 0.0
    %4272 = vmatpush1.msra.mxu0 0.0
    %4273 = vmatprep.subr.mxu0 0.0
    %4274 = vmatpush1.msra.mxu0 0.0
    %4275 = vmatprep.subr.mxu0 0.0
    %4276 = vmatpush1.msra.mxu0 0.0
    %4277 = vmatprep.subr.mxu0 0.0
    %4278 = vmatpush1.msra.mxu0 0.0
    %4279 = vmatprep.subr.mxu0 0.0
    %4280 = vmatpush1.msra.mxu0 0.0
    %4281 = vmatprep.subr.mxu0 0.0
    %4282 = vmatpush1.msra.mxu0 0.0
    %4283 = vmatprep.subr.mxu0 0.0
    %4284 = vmatpush1.msra.mxu0 0.0
    %4285 = vmatprep.mubr.f32.mxu0 0.0
    %4286 = vmatmul.mubr.f32.gmra.mrb[0].mxu0 %v3523
    %v4287 = vpop.f32.mrb[0].mxu0
    %v4288 = vadd.f32 0.0, %v4287
    %v4289 = vpop.f32.mrb[0].mxu0
    %4290 = vmatprep.mubr.f32.mxu0 0.0
    %4291 = vmatmul.mubr.f32.gmra.mrb[0].mxu0 %v3526
    %v4292 = vpop.f32.mrb[0].mxu0
    %v4293 = vadd.f32 0.0, %v4292
    %v4294 = vpop.f32.mrb[0].mxu0
    %4295 = vmatprep.mubr.f32.mxu0 0.0
    %4296 = vmatmul.mubr.f32.gmra.mrb[0].mxu0 %v3529
    %v4297 = vpop.f32.mrb[0].mxu0
    %v4298 = vadd.f32 0.0, %v4297
    %v4299 = vpop.f32.mrb[0].mxu0
    %4300 = vmatprep.mubr.f32.mxu0 0.0
    %4301 = vmatmul.mubr.f32.gmra.mrb[0].mxu0 %v3532
    %v4302 = vpop.f32.mrb[0].mxu0
    %v4303 = vadd.f32 0.0, %v4302
    %v4304 = vpop.f32.mrb[0].mxu0
    %4305 = vmatprep.mubr.f32.mxu0 0.0
    %4306 = vmatmul.mubr.f32.gmra.mrb[0].mxu0 %v3535
    %v4307 = vpop.f32.mrb[0].mxu0
    %v4308 = vadd.f32 0.0, %v4307
    %v4309 = vpop.f32.mrb[0].mxu0
    %4310 = vdwg.mxu0
    %s4311 = scalar_lea.vmem %s9, 200
    %v4312 = vld [vmem:[%s4311] sm:$0xff]
    %v4313 = vld [vmem:[%s4311 + $0x8] sm:$0xff]
    %v4314 = vld [vmem:[%s4311 + $0x10] sm:$0xff]
    %v4315 = vld [vmem:[%s4311 + $0x18] sm:$0xff]
    %v4316 = vld [vmem:[%s4311 + $0x20] sm:$0x1]
    %v4318 = vsel %vm305, %v4316, 0
    %4320 = vmatprep.subr.mxu0 0.0
    %4321 = vmatpush1.msra.mxu0 %v4312
    %4322 = vmatprep.subr.mxu0 0.0
    %4323 = vmatpush1.msra.mxu0 %v4313
    %4324 = vmatprep.subr.mxu0 0.0
    %4325 = vmatpush1.msra.mxu0 %v4314
    %4326 = vmatprep.subr.mxu0 0.0
    %4327 = vmatpush1.msra.mxu0 %v4315
    %4328 = vmatprep.subr.mxu0 0.0
    %4329 = vmatpush1.msra.mxu0 %v4318
    %4330 = vmatprep.subr.mxu0 0.0
    %4331 = vmatpush1.msra.mxu0 0.0
    %4332 = vmatprep.subr.mxu0 0.0
    %4333 = vmatpush1.msra.mxu0 0.0
    %4334 = vmatprep.subr.mxu0 0.0
    %4335 = vmatpush1.msra.mxu0 0.0
    %4336 = vmatprep.subr.mxu0 0.0
    %4337 = vmatpush1.msra.mxu0 0.0
    %4338 = vmatprep.subr.mxu0 0.0
    %4339 = vmatpush1.msra.mxu0 0.0
    %4340 = vmatprep.subr.mxu0 0.0
    %4341 = vmatpush1.msra.mxu0 0.0
    %4342 = vmatprep.subr.mxu0 0.0
    %4343 = vmatpush1.msra.mxu0 0.0
    %4344 = vmatprep.subr.mxu0 0.0
    %4345 = vmatpush1.msra.mxu0 0.0
    %4346 = vmatprep.subr.mxu0 0.0
    %4347 = vmatpush1.msra.mxu0 0.0
    %4348 = vmatprep.subr.mxu0 0.0
    %4349 = vmatpush1.msra.mxu0 0.0
    %4350 = vmatprep.subr.mxu0 0.0
    %4351 = vmatpush1.msra.mxu0 0.0
    %4352 = vmatprep.subr.mxu0 0.0
    %4353 = vmatpush1.msra.mxu0 0.0
    %4354 = vmatprep.subr.mxu0 0.0
    %4355 = vmatpush1.msra.mxu0 0.0
    %4356 = vmatprep.subr.mxu0 0.0
    %4357 = vmatpush1.msra.mxu0 0.0
    %4358 = vmatprep.subr.mxu0 0.0
    %4359 = vmatpush1.msra.mxu0 0.0
    %4360 = vmatprep.subr.mxu0 0.0
    %4361 = vmatpush1.msra.mxu0 0.0
    %4362 = vmatprep.subr.mxu0 0.0
    %4363 = vmatpush1.msra.mxu0 0.0
    %4364 = vmatprep.subr.mxu0 0.0
    %4365 = vmatpush1.msra.mxu0 0.0
    %4366 = vmatprep.subr.mxu0 0.0
    %4367 = vmatpush1.msra.mxu0 0.0
    %4368 = vmatprep.subr.mxu0 0.0
    %4369 = vmatpush1.msra.mxu0 0.0
    %4370 = vmatprep.subr.mxu0 0.0
    %4371 = vmatpush1.msra.mxu0 0.0
    %4372 = vmatprep.subr.mxu0 0.0
    %4373 = vmatpush1.msra.mxu0 0.0
    %4374 = vmatprep.subr.mxu0 0.0
    %4375 = vmatpush1.msra.mxu0 0.0
    %4376 = vmatprep.subr.mxu0 0.0
    %4377 = vmatpush1.msra.mxu0 0.0
    %4378 = vmatprep.subr.mxu0 0.0
    %4379 = vmatpush1.msra.mxu0 0.0
    %4380 = vmatprep.subr.mxu0 0.0
    %4381 = vmatpush1.msra.mxu0 0.0
    %4382 = vmatprep.subr.mxu0 0.0
    %4383 = vmatpush1.msra.mxu0 0.0
    %4384 = vmatprep.mubr.f32.mxu0 0.0
    %4385 = vmatmul.mubr.f32.gmra.mrb[0].mxu0 %v3523
    %v4386 = vpop.f32.mrb[0].mxu0
    %v4387 = vadd.f32 0.0, %v4386
    %v4388 = vpop.f32.mrb[0].mxu0
    %4389 = vmatprep.mubr.f32.mxu0 0.0
    %4390 = vmatmul.mubr.f32.gmra.mrb[0].mxu0 %v3526
    %v4391 = vpop.f32.mrb[0].mxu0
    %v4392 = vadd.f32 0.0, %v4391
    %v4393 = vpop.f32.mrb[0].mxu0
    %4394 = vmatprep.mubr.f32.mxu0 0.0
    %4395 = vmatmul.mubr.f32.gmra.mrb[0].mxu0 %v3529
    %v4396 = vpop.f32.mrb[0].mxu0
    %v4397 = vadd.f32 0.0, %v4396
    %v4398 = vpop.f32.mrb[0].mxu0
    %4399 = vmatprep.mubr.f32.mxu0 0.0
    %4400 = vmatmul.mubr.f32.gmra.mrb[0].mxu0 %v3532
    %v4401 = vpop.f32.mrb[0].mxu0
    %v4402 = vadd.f32 0.0, %v4401
    %v4403 = vpop.f32.mrb[0].mxu0
    %4404 = vmatprep.mubr.f32.mxu0 0.0
    %4405 = vmatmul.mubr.f32.gmra.mrb[0].mxu0 %v3535
    %v4406 = vpop.f32.mrb[0].mxu0
    %v4407 = vadd.f32 0.0, %v4406
    %v4408 = vpop.f32.mrb[0].mxu0
    %4409 = vdwg.mxu0
    %v4411 = vsel %vm595, %v4189, 0
    %v4414 = vsel %vm595, %v4194, 0
    %v4417 = vsel %vm595, %v4199, 0
    %v4420 = vsel %vm595, %v4204, 0
    %v4423 = vsel %vm595, %v4209, 0
    %v4426 = vsel %vm595, %v4288, 0
    %v4429 = vsel %vm595, %v4293, 0
    %v4432 = vsel %vm595, %v4298, 0
    %v4435 = vsel %vm595, %v4303, 0
    %v4438 = vsel %vm595, %v4308, 0
    %4440 = vmatprep.subr.mxu0 0.0
    %4441 = vmatpush1.xpose.msra.mxu0 %v4426
    %4442 = vmatprep.subr.mxu0 0.0
    %4443 = vmatpush1.xpose.msra.mxu0 %v4429
    %4444 = vmatprep.subr.mxu0 0.0
    %4445 = vmatpush1.xpose.msra.mxu0 %v4432
    %4446 = vmatprep.subr.mxu0 0.0
    %4447 = vmatpush1.xpose.msra.mxu0 %v4435
    %4448 = vmatprep.subr.mxu0 0.0
    %4449 = vmatpush1.xpose.msra.mxu0 %v4438
    %4450 = vmatprep.subr.mxu0 0.0
    %4451 = vmatpush1.xpose.msra.mxu0 0.0
    %4452 = vmatprep.subr.mxu0 0.0
    %4453 = vmatpush1.xpose.msra.mxu0 0.0
    %4454 = vmatprep.subr.mxu0 0.0
    %4455 = vmatpush1.xpose.msra.mxu0 0.0
    %4456 = vmatprep.subr.mxu0 0.0
    %4457 = vmatpush1.xpose.msra.mxu0 0.0
    %4458 = vmatprep.subr.mxu0 0.0
    %4459 = vmatpush1.xpose.msra.mxu0 0.0
    %4460 = vmatprep.subr.mxu0 0.0
    %4461 = vmatpush1.xpose.msra.mxu0 0.0
    %4462 = vmatprep.subr.mxu0 0.0
    %4463 = vmatpush1.xpose.msra.mxu0 0.0
    %4464 = vmatprep.subr.mxu0 0.0
    %4465 = vmatpush1.xpose.msra.mxu0 0.0
    %4466 = vmatprep.subr.mxu0 0.0
    %4467 = vmatpush1.xpose.msra.mxu0 0.0
    %4468 = vmatprep.subr.mxu0 0.0
    %4469 = vmatpush1.xpose.msra.mxu0 0.0
    %4470 = vmatprep.subr.mxu0 0.0
    %4471 = vmatpush1.xpose.msra.mxu0 0.0
    %4472 = vmatprep.subr.mxu0 0.0
    %4473 = vmatpush1.xpose.msra.mxu0 0.0
    %4474 = vmatprep.subr.mxu0 0.0
    %4475 = vmatpush1.xpose.msra.mxu0 0.0
    %4476 = vmatprep.subr.mxu0 0.0
    %4477 = vmatpush1.xpose.msra.mxu0 0.0
    %4478 = vmatprep.subr.mxu0 0.0
    %4479 = vmatpush1.xpose.msra.mxu0 0.0
    %4480 = vmatprep.subr.mxu0 0.0
    %4481 = vmatpush1.xpose.msra.mxu0 0.0
    %4482 = vmatprep.subr.mxu0 0.0
    %4483 = vmatpush1.xpose.msra.mxu0 0.0
    %4484 = vmatprep.subr.mxu0 0.0
    %4485 = vmatpush1.xpose.msra.mxu0 0.0
    %4486 = vmatprep.subr.mxu0 0.0
    %4487 = vmatpush1.xpose.msra.mxu0 0.0
    %4488 = vmatprep.subr.mxu0 0.0
    %4489 = vmatpush1.xpose.msra.mxu0 0.0
    %4490 = vmatprep.subr.mxu0 0.0
    %4491 = vmatpush1.xpose.msra.mxu0 0.0
    %4492 = vmatprep.subr.mxu0 0.0
    %4493 = vmatpush1.xpose.msra.mxu0 0.0
    %4494 = vmatprep.subr.mxu0 0.0
    %4495 = vmatpush1.xpose.msra.mxu0 0.0
    %4496 = vmatprep.subr.mxu0 0.0
    %4497 = vmatpush1.xpose.msra.mxu0 0.0
    %4498 = vmatprep.subr.mxu0 0.0
    %4499 = vmatpush1.xpose.msra.mxu0 0.0
    %4500 = vmatprep.subr.mxu0 0.0
    %4501 = vmatpush1.xpose.msra.mxu0 0.0
    %4502 = vmatprep.subr.mxu0 0.0
    %4503 = vmatpush1.xpose.msra.mxu0 0.0
    %4504 = vmatprep.mubr.f32.mxu0 0.0
    %4505 = vmatmul.mubr.f32.gmra.mrb[0].mxu0 %v4411
    %v4506 = vpop.f32.mrb[0].mxu0
    %v4507 = vadd.f32 %v181, %v4506
    %v4508 = vpop.f32.mrb[0].mxu0
    %4509 = vmatprep.mubr.f32.mxu0 0.0
    %4510 = vmatmul.mubr.f32.gmra.mrb[0].mxu0 %v4414
    %v4511 = vpop.f32.mrb[0].mxu0
    %v4512 = vadd.f32 %v182, %v4511
    %v4513 = vpop.f32.mrb[0].mxu0
    %4514 = vmatprep.mubr.f32.mxu0 0.0
    %4515 = vmatmul.mubr.f32.gmra.mrb[0].mxu0 %v4417
    %v4516 = vpop.f32.mrb[0].mxu0
    %v4517 = vadd.f32 %v183, %v4516
    %v4518 = vpop.f32.mrb[0].mxu0
    %4519 = vmatprep.mubr.f32.mxu0 0.0
    %4520 = vmatmul.mubr.f32.gmra.mrb[0].mxu0 %v4420
    %v4521 = vpop.f32.mrb[0].mxu0
    %v4522 = vadd.f32 %v184, %v4521
    %v4523 = vpop.f32.mrb[0].mxu0
    %4524 = vmatprep.mubr.f32.mxu0 0.0
    %4525 = vmatmul.mubr.f32.gmra.mrb[0].mxu0 %v4423
    %v4526 = vpop.f32.mrb[0].mxu0
    %v4527 = vadd.f32 %v185, %v4526
    %v4528 = vpop.f32.mrb[0].mxu0
    %4529 = vdwg.mxu0
    %v4530 = vsel %vm716, %v4507, -inf
    %4531 = vmax.xlane.f32.xlu0 %v4530
    %v4532 = vpop.xlane.xlu0 %4531
    %v4533 = vsel %vm716, %v4512, -inf
    %4534 = vmax.xlane.f32.xlu0 %v4533
    %v4535 = vpop.xlane.xlu0 %4534
    %v4536 = vsel %vm716, %v4517, -inf
    %4537 = vmax.xlane.f32.xlu0 %v4536
    %v4538 = vpop.xlane.xlu0 %4537
    %v4539 = vsel %vm716, %v4522, -inf
    %4540 = vmax.xlane.f32.xlu0 %v4539
    %v4541 = vpop.xlane.xlu0 %4540
    %v4542 = vsel %vm729, %v4527, -inf
    %4543 = vmax.xlane.f32.xlu0 %v4542
    %v4544 = vpop.xlane.xlu0 %4543
    %v4545 = vsub.f32 %v4507, %v4532
    %v4546 = vsub.f32 %v4512, %v4535
    %v4547 = vsub.f32 %v4517, %v4538
    %v4548 = vsub.f32 %v4522, %v4541
    %v4549 = vsub.f32 %v4527, %v4544
    %v4550 = vmul.f32 %v4545, 1.442695
    %v4551 = vpow.pop %v4550
    %v4552 = vmul.f32 %v4546, 1.442695
    %v4553 = vpow.pop %v4552
    %v4554 = vmul.f32 %v4547, 1.442695
    %v4555 = vpow.pop %v4554
    %v4556 = vmul.f32 %v4548, 1.442695
    %v4557 = vpow.pop %v4556
    %v4558 = vmul.f32 %v4549, 1.442695
    %v4559 = vpow.pop %v4558
    %v4560 = vsel %vm716, %v4551, 0.0
    %4561 = vadd.xlane.f32.xlu0 %v4560
    %v4562 = vpop.xlane.xlu0 %4561
    %v4563 = vsel %vm716, %v4553, 0.0
    %4564 = vadd.xlane.f32.xlu0 %v4563
    %v4565 = vpop.xlane.xlu0 %4564
    %v4566 = vsel %vm716, %v4555, 0.0
    %4567 = vadd.xlane.f32.xlu0 %v4566
    %v4568 = vpop.xlane.xlu0 %4567
    %v4569 = vsel %vm716, %v4557, 0.0
    %4570 = vadd.xlane.f32.xlu0 %v4569
    %v4571 = vpop.xlane.xlu0 %4570
    %v4572 = vsel %vm729, %v4559, 0.0
    %4573 = vadd.xlane.f32.xlu0 %v4572
    %v4574 = vpop.xlane.xlu0 %4573
    %v4575 = vrcp.pop %v4562
    %v4576 = vrcp.pop %v4565
    %v4577 = vrcp.pop %v4568
    %v4578 = vrcp.pop %v4571
    %v4579 = vrcp.pop %v4574
    %v4580 = vmul.f32 %v4551, %v4575
    %v4581 = vmul.f32 %v4553, %v4576
    %v4582 = vmul.f32 %v4555, %v4577
    %v4583 = vmul.f32 %v4557, %v4578
    %v4584 = vmul.f32 %v4559, %v4579
    %v4586 = vsel %vm716, %v4580, 0
    %v4589 = vsel %vm716, %v4581, 0
    %v4592 = vsel %vm716, %v4582, 0
    %v4595 = vsel %vm716, %v4583, 0
    %v4598 = vsel %vm716, %v4584, 0
    %v4601 = vsel %vm788, %v4407, 0
    %4603 = vmatprep.subr.mxu0 0.0
    %4604 = vmatpush1.msra.mxu0 %v4387
    %4605 = vmatprep.subr.mxu0 0.0
    %4606 = vmatpush1.msra.mxu0 %v4392
    %4607 = vmatprep.subr.mxu0 0.0
    %4608 = vmatpush1.msra.mxu0 %v4397
    %4609 = vmatprep.subr.mxu0 0.0
    %4610 = vmatpush1.msra.mxu0 %v4402
    %4611 = vmatprep.subr.mxu0 0.0
    %4612 = vmatpush1.msra.mxu0 %v4601
    %4613 = vmatprep.subr.mxu0 0.0
    %4614 = vmatpush1.msra.mxu0 0.0
    %4615 = vmatprep.subr.mxu0 0.0
    %4616 = vmatpush1.msra.mxu0 0.0
    %4617 = vmatprep.subr.mxu0 0.0
    %4618 = vmatpush1.msra.mxu0 0.0
    %4619 = vmatprep.subr.mxu0 0.0
    %4620 = vmatpush1.msra.mxu0 0.0
    %4621 = vmatprep.subr.mxu0 0.0
    %4622 = vmatpush1.msra.mxu0 0.0
    %4623 = vmatprep.subr.mxu0 0.0
    %4624 = vmatpush1.msra.mxu0 0.0
    %4625 = vmatprep.subr.mxu0 0.0
    %4626 = vmatpush1.msra.mxu0 0.0
    %4627 = vmatprep.subr.mxu0 0.0
    %4628 = vmatpush1.msra.mxu0 0.0
    %4629 = vmatprep.subr.mxu0 0.0
    %4630 = vmatpush1.msra.mxu0 0.0
    %4631 = vmatprep.subr.mxu0 0.0
    %4632 = vmatpush1.msra.mxu0 0.0
    %4633 = vmatprep.subr.mxu0 0.0
    %4634 = vmatpush1.msra.mxu0 0.0
    %4635 = vmatprep.subr.mxu0 0.0
    %4636 = vmatpush1.msra.mxu0 0.0
    %4637 = vmatprep.subr.mxu0 0.0
    %4638 = vmatpush1.msra.mxu0 0.0
    %4639 = vmatprep.subr.mxu0 0.0
    %4640 = vmatpush1.msra.mxu0 0.0
    %4641 = vmatprep.subr.mxu0 0.0
    %4642 = vmatpush1.msra.mxu0 0.0
    %4643 = vmatprep.subr.mxu0 0.0
    %4644 = vmatpush1.msra.mxu0 0.0
    %4645 = vmatprep.subr.mxu0 0.0
    %4646 = vmatpush1.msra.mxu0 0.0
    %4647 = vmatprep.subr.mxu0 0.0
    %4648 = vmatpush1.msra.mxu0 0.0
    %4649 = vmatprep.subr.mxu0 0.0
    %4650 = vmatpush1.msra.mxu0 0.0
    %4651 = vmatprep.subr.mxu0 0.0
    %4652 = vmatpush1.msra.mxu0 0.0
    %4653 = vmatprep.subr.mxu0 0.0
    %4654 = vmatpush1.msra.mxu0 0.0
    %4655 = vmatprep.subr.mxu0 0.0
    %4656 = vmatpush1.msra.mxu0 0.0
    %4657 = vmatprep.subr.mxu0 0.0
    %4658 = vmatpush1.msra.mxu0 0.0
    %4659 = vmatprep.subr.mxu0 0.0
    %4660 = vmatpush1.msra.mxu0 0.0
    %4661 = vmatprep.subr.mxu0 0.0
    %4662 = vmatpush1.msra.mxu0 0.0
    %4663 = vmatprep.subr.mxu0 0.0
    %4664 = vmatpush1.msra.mxu0 0.0
    %4665 = vmatprep.subr.mxu0 0.0
    %4666 = vmatpush1.msra.mxu0 0.0
    %4667 = vmatprep.mubr.f32.mxu0 0.0
    %4668 = vmatmul.mubr.f32.gmra.mrb[0].mxu0 %v4586
    %v4669 = vpop.f32.mrb[0].mxu0
    %v4670 = vadd.f32 0.0, %v4669
    %v4671 = vpop.f32.mrb[0].mxu0
    %4672 = vmatprep.mubr.f32.mxu0 0.0
    %4673 = vmatmul.mubr.f32.gmra.mrb[0].mxu0 %v4589
    %v4674 = vpop.f32.mrb[0].mxu0
    %v4675 = vadd.f32 0.0, %v4674
    %v4676 = vpop.f32.mrb[0].mxu0
    %4677 = vmatprep.mubr.f32.mxu0 0.0
    %4678 = vmatmul.mubr.f32.gmra.mrb[0].mxu0 %v4592
    %v4679 = vpop.f32.mrb[0].mxu0
    %v4680 = vadd.f32 0.0, %v4679
    %v4681 = vpop.f32.mrb[0].mxu0
    %4682 = vmatprep.mubr.f32.mxu0 0.0
    %4683 = vmatmul.mubr.f32.gmra.mrb[0].mxu0 %v4595
    %v4684 = vpop.f32.mrb[0].mxu0
    %v4685 = vadd.f32 0.0, %v4684
    %v4686 = vpop.f32.mrb[0].mxu0
    %4687 = vmatprep.mubr.f32.mxu0 0.0
    %4688 = vmatmul.mubr.f32.gmra.mrb[0].mxu0 %v4598
    %v4689 = vpop.f32.mrb[0].mxu0
    %v4690 = vadd.f32 0.0, %v4689
    %v4691 = vpop.f32.mrb[0].mxu0
    %4692 = vdwg.mxu0
    %s4693 = scalar_lea.vmem %s10, 40
    %v4694 = vld [vmem:[%s4693] sm:$0xff]
    %v4696 = vsel %vm595, %v4670, 0
    %v4699 = vsel %vm595, %v4675, 0
    %v4702 = vsel %vm595, %v4680, 0
    %v4705 = vsel %vm595, %v4685, 0
    %v4708 = vsel %vm595, %v4690, 0
    %4710 = vmatprep.subr.mxu0 0.0
    %4711 = vmatpush1.msra.mxu0 %v4694
    %4712 = vmatprep.subr.mxu0 0.0
    %4713 = vmatpush1.msra.mxu0 0.0
    %4714 = vmatprep.subr.mxu0 0.0
    %4715 = vmatpush1.msra.mxu0 0.0
    %4716 = vmatprep.subr.mxu0 0.0
    %4717 = vmatpush1.msra.mxu0 0.0
    %4718 = vmatprep.subr.mxu0 0.0
    %4719 = vmatpush1.msra.mxu0 0.0
    %4720 = vmatprep.subr.mxu0 0.0
    %4721 = vmatpush1.msra.mxu0 0.0
    %4722 = vmatprep.subr.mxu0 0.0
    %4723 = vmatpush1.msra.mxu0 0.0
    %4724 = vmatprep.subr.mxu0 0.0
    %4725 = vmatpush1.msra.mxu0 0.0
    %4726 = vmatprep.subr.mxu0 0.0
    %4727 = vmatpush1.msra.mxu0 0.0
    %4728 = vmatprep.subr.mxu0 0.0
    %4729 = vmatpush1.msra.mxu0 0.0
    %4730 = vmatprep.subr.mxu0 0.0
    %4731 = vmatpush1.msra.mxu0 0.0
    %4732 = vmatprep.subr.mxu0 0.0
    %4733 = vmatpush1.msra.mxu0 0.0
    %4734 = vmatprep.subr.mxu0 0.0
    %4735 = vmatpush1.msra.mxu0 0.0
    %4736 = vmatprep.subr.mxu0 0.0
    %4737 = vmatpush1.msra.mxu0 0.0
    %4738 = vmatprep.subr.mxu0 0.0
    %4739 = vmatpush1.msra.mxu0 0.0
    %4740 = vmatprep.subr.mxu0 0.0
    %4741 = vmatpush1.msra.mxu0 0.0
    %4742 = vmatprep.subr.mxu0 0.0
    %4743 = vmatpush1.msra.mxu0 0.0
    %4744 = vmatprep.subr.mxu0 0.0
    %4745 = vmatpush1.msra.mxu0 0.0
    %4746 = vmatprep.subr.mxu0 0.0
    %4747 = vmatpush1.msra.mxu0 0.0
    %4748 = vmatprep.subr.mxu0 0.0
    %4749 = vmatpush1.msra.mxu0 0.0
    %4750 = vmatprep.subr.mxu0 0.0
    %4751 = vmatpush1.msra.mxu0 0.0
    %4752 = vmatprep.subr.mxu0 0.0
    %4753 = vmatpush1.msra.mxu0 0.0
    %4754 = vmatprep.subr.mxu0 0.0
    %4755 = vmatpush1.msra.mxu0 0.0
    %4756 = vmatprep.subr.mxu0 0.0
    %4757 = vmatpush1.msra.mxu0 0.0
    %4758 = vmatprep.subr.mxu0 0.0
    %4759 = vmatpush1.msra.mxu0 0.0
    %4760 = vmatprep.subr.mxu0 0.0
    %4761 = vmatpush1.msra.mxu0 0.0
    %4762 = vmatprep.subr.mxu0 0.0
    %4763 = vmatpush1.msra.mxu0 0.0
    %4764 = vmatprep.subr.mxu0 0.0
    %4765 = vmatpush1.msra.mxu0 0.0
    %4766 = vmatprep.subr.mxu0 0.0
    %4767 = vmatpush1.msra.mxu0 0.0
    %4768 = vmatprep.subr.mxu0 0.0
    %4769 = vmatpush1.msra.mxu0 0.0
    %4770 = vmatprep.subr.mxu0 0.0
    %4771 = vmatpush1.msra.mxu0 0.0
    %4772 = vmatprep.subr.mxu0 0.0
    %4773 = vmatpush1.msra.mxu0 0.0
    %4774 = vmatprep.mubr.f32.mxu0 0.0
    %4775 = vmatmul.mubr.f32.gmra.mrb[0].mxu0 %v4696
    %v4776 = vpop.f32.mrb[0].mxu0
    %v4777 = vadd.f32 0.0, %v4776
    %v4778 = vpop.f32.mrb[0].mxu0
    %4779 = vmatprep.mubr.f32.mxu0 0.0
    %4780 = vmatmul.mubr.f32.gmra.mrb[0].mxu0 %v4699
    %v4781 = vpop.f32.mrb[0].mxu0
    %v4782 = vadd.f32 0.0, %v4781
    %v4783 = vpop.f32.mrb[0].mxu0
    %4784 = vmatprep.mubr.f32.mxu0 0.0
    %4785 = vmatmul.mubr.f32.gmra.mrb[0].mxu0 %v4702
    %v4786 = vpop.f32.mrb[0].mxu0
    %v4787 = vadd.f32 0.0, %v4786
    %v4788 = vpop.f32.mrb[0].mxu0
    %4789 = vmatprep.mubr.f32.mxu0 0.0
    %4790 = vmatmul.mubr.f32.gmra.mrb[0].mxu0 %v4705
    %v4791 = vpop.f32.mrb[0].mxu0
    %v4792 = vadd.f32 0.0, %v4791
    %v4793 = vpop.f32.mrb[0].mxu0
    %4794 = vmatprep.mubr.f32.mxu0 0.0
    %4795 = vmatmul.mubr.f32.gmra.mrb[0].mxu0 %v4708
    %v4796 = vpop.f32.mrb[0].mxu0
    %v4797 = vadd.f32 0.0, %v4796
    %v4798 = vpop.f32.mrb[0].mxu0
    %4799 = vdwg.mxu0
    %v4801 = vsel %vm595, %v4088, 0
    %v4804 = vsel %vm595, %v4093, 0
    %v4807 = vsel %vm595, %v4098, 0
    %v4810 = vsel %vm595, %v4103, 0
    %v4813 = vsel %vm595, %v4108, 0
    %4815 = vmatprep.subr.mxu0 0.0
    %4816 = vmatpush1.msra.mxu0 %v4112
    %4817 = vmatprep.subr.mxu0 0.0
    %4818 = vmatpush1.msra.mxu0 0.0
    %4819 = vmatprep.subr.mxu0 0.0
    %4820 = vmatpush1.msra.mxu0 0.0
    %4821 = vmatprep.subr.mxu0 0.0
    %4822 = vmatpush1.msra.mxu0 0.0
    %4823 = vmatprep.subr.mxu0 0.0
    %4824 = vmatpush1.msra.mxu0 0.0
    %4825 = vmatprep.subr.mxu0 0.0
    %4826 = vmatpush1.msra.mxu0 0.0
    %4827 = vmatprep.subr.mxu0 0.0
    %4828 = vmatpush1.msra.mxu0 0.0
    %4829 = vmatprep.subr.mxu0 0.0
    %4830 = vmatpush1.msra.mxu0 0.0
    %4831 = vmatprep.subr.mxu0 0.0
    %4832 = vmatpush1.msra.mxu0 0.0
    %4833 = vmatprep.subr.mxu0 0.0
    %4834 = vmatpush1.msra.mxu0 0.0
    %4835 = vmatprep.subr.mxu0 0.0
    %4836 = vmatpush1.msra.mxu0 0.0
    %4837 = vmatprep.subr.mxu0 0.0
    %4838 = vmatpush1.msra.mxu0 0.0
    %4839 = vmatprep.subr.mxu0 0.0
    %4840 = vmatpush1.msra.mxu0 0.0
    %4841 = vmatprep.subr.mxu0 0.0
    %4842 = vmatpush1.msra.mxu0 0.0
    %4843 = vmatprep.subr.mxu0 0.0
    %4844 = vmatpush1.msra.mxu0 0.0
    %4845 = vmatprep.subr.mxu0 0.0
    %4846 = vmatpush1.msra.mxu0 0.0
    %4847 = vmatprep.subr.mxu0 0.0
    %4848 = vmatpush1.msra.mxu0 0.0
    %4849 = vmatprep.subr.mxu0 0.0
    %4850 = vmatpush1.msra.mxu0 0.0
    %4851 = vmatprep.subr.mxu0 0.0
    %4852 = vmatpush1.msra.mxu0 0.0
    %4853 = vmatprep.subr.mxu0 0.0
    %4854 = vmatpush1.msra.mxu0 0.0
    %4855 = vmatprep.subr.mxu0 0.0
    %4856 = vmatpush1.msra.mxu0 0.0
    %4857 = vmatprep.subr.mxu0 0.0
    %4858 = vmatpush1.msra.mxu0 0.0
    %4859 = vmatprep.subr.mxu0 0.0
    %4860 = vmatpush1.msra.mxu0 0.0
    %4861 = vmatprep.subr.mxu0 0.0
    %4862 = vmatpush1.msra.mxu0 0.0
    %4863 = vmatprep.subr.mxu0 0.0
    %4864 = vmatpush1.msra.mxu0 0.0
    %4865 = vmatprep.subr.mxu0 0.0
    %4866 = vmatpush1.msra.mxu0 0.0
    %4867 = vmatprep.subr.mxu0 0.0
    %4868 = vmatpush1.msra.mxu0 0.0
    %4869 = vmatprep.subr.mxu0 0.0
    %4870 = vmatpush1.msra.mxu0 0.0
    %4871 = vmatprep.subr.mxu0 0.0
    %4872 = vmatpush1.msra.mxu0 0.0
    %4873 = vmatprep.subr.mxu0 0.0
    %4874 = vmatpush1.msra.mxu0 0.0
    %4875 = vmatprep.subr.mxu0 0.0
    %4876 = vmatpush1.msra.mxu0 0.0
    %4877 = vmatprep.subr.mxu0 0.0
    %4878 = vmatpush1.msra.mxu0 0.0
    %4879 = vmatprep.mubr.f32.mxu0 0.0
    %4880 = vmatmul.mubr.f32.gmra.mrb[0].mxu0 %v4801
    %v4881 = vpop.f32.mrb[0].mxu0
    %v4882 = vadd.f32 %v4777, %v4881
    %v4883 = vpop.f32.mrb[0].mxu0
    %4884 = vmatprep.mubr.f32.mxu0 0.0
    %4885 = vmatmul.mubr.f32.gmra.mrb[0].mxu0 %v4804
    %v4886 = vpop.f32.mrb[0].mxu0
    %v4887 = vadd.f32 %v4782, %v4886
    %v4888 = vpop.f32.mrb[0].mxu0
    %4889 = vmatprep.mubr.f32.mxu0 0.0
    %4890 = vmatmul.mubr.f32.gmra.mrb[0].mxu0 %v4807
    %v4891 = vpop.f32.mrb[0].mxu0
    %v4892 = vadd.f32 %v4787, %v4891
    %v4893 = vpop.f32.mrb[0].mxu0
    %4894 = vmatprep.mubr.f32.mxu0 0.0
    %4895 = vmatmul.mubr.f32.gmra.mrb[0].mxu0 %v4810
    %v4896 = vpop.f32.mrb[0].mxu0
    %v4897 = vadd.f32 %v4792, %v4896
    %v4898 = vpop.f32.mrb[0].mxu0
    %4899 = vmatprep.mubr.f32.mxu0 0.0
    %4900 = vmatmul.mubr.f32.gmra.mrb[0].mxu0 %v4813
    %v4901 = vpop.f32.mrb[0].mxu0
    %v4902 = vadd.f32 %v4797, %v4901
    %v4903 = vpop.f32.mrb[0].mxu0
    %4904 = vdwg.mxu0
    %s4905 = scalar_lea.vmem %s7, 240
    %v4906 = vld [vmem:[%s4905] sm:$0xff]
    %v4907 = vld [vmem:[%s4905 + $0x8] sm:$0xff]
    %v4908 = vld [vmem:[%s4905 + $0x10] sm:$0xff]
    %v4909 = vld [vmem:[%s4905 + $0x18] sm:$0xff]
    %v4910 = vld [vmem:[%s4905 + $0x20] sm:$0x1]
    %v4912 = vsel %vm305, %v4910, 0
    %4914 = vmatprep.subr.mxu0 0.0
    %4915 = vmatpush1.msra.mxu0 %v4906
    %4916 = vmatprep.subr.mxu0 0.0
    %4917 = vmatpush1.msra.mxu0 %v4907
    %4918 = vmatprep.subr.mxu0 0.0
    %4919 = vmatpush1.msra.mxu0 %v4908
    %4920 = vmatprep.subr.mxu0 0.0
    %4921 = vmatpush1.msra.mxu0 %v4909
    %4922 = vmatprep.subr.mxu0 0.0
    %4923 = vmatpush1.msra.mxu0 %v4912
    %4924 = vmatprep.subr.mxu0 0.0
    %4925 = vmatpush1.msra.mxu0 0.0
    %4926 = vmatprep.subr.mxu0 0.0
    %4927 = vmatpush1.msra.mxu0 0.0
    %4928 = vmatprep.subr.mxu0 0.0
    %4929 = vmatpush1.msra.mxu0 0.0
    %4930 = vmatprep.subr.mxu0 0.0
    %4931 = vmatpush1.msra.mxu0 0.0
    %4932 = vmatprep.subr.mxu0 0.0
    %4933 = vmatpush1.msra.mxu0 0.0
    %4934 = vmatprep.subr.mxu0 0.0
    %4935 = vmatpush1.msra.mxu0 0.0
    %4936 = vmatprep.subr.mxu0 0.0
    %4937 = vmatpush1.msra.mxu0 0.0
    %4938 = vmatprep.subr.mxu0 0.0
    %4939 = vmatpush1.msra.mxu0 0.0
    %4940 = vmatprep.subr.mxu0 0.0
    %4941 = vmatpush1.msra.mxu0 0.0
    %4942 = vmatprep.subr.mxu0 0.0
    %4943 = vmatpush1.msra.mxu0 0.0
    %4944 = vmatprep.subr.mxu0 0.0
    %4945 = vmatpush1.msra.mxu0 0.0
    %4946 = vmatprep.subr.mxu0 0.0
    %4947 = vmatpush1.msra.mxu0 0.0
    %4948 = vmatprep.subr.mxu0 0.0
    %4949 = vmatpush1.msra.mxu0 0.0
    %4950 = vmatprep.subr.mxu0 0.0
    %4951 = vmatpush1.msra.mxu0 0.0
    %4952 = vmatprep.subr.mxu0 0.0
    %4953 = vmatpush1.msra.mxu0 0.0
    %4954 = vmatprep.subr.mxu0 0.0
    %4955 = vmatpush1.msra.mxu0 0.0
    %4956 = vmatprep.subr.mxu0 0.0
    %4957 = vmatpush1.msra.mxu0 0.0
    %4958 = vmatprep.subr.mxu0 0.0
    %4959 = vmatpush1.msra.mxu0 0.0
    %4960 = vmatprep.subr.mxu0 0.0
    %4961 = vmatpush1.msra.mxu0 0.0
    %4962 = vmatprep.subr.mxu0 0.0
    %4963 = vmatpush1.msra.mxu0 0.0
    %4964 = vmatprep.subr.mxu0 0.0
    %4965 = vmatpush1.msra.mxu0 0.0
    %4966 = vmatprep.subr.mxu0 0.0
    %4967 = vmatpush1.msra.mxu0 0.0
    %4968 = vmatprep.subr.mxu0 0.0
    %4969 = vmatpush1.msra.mxu0 0.0
    %4970 = vmatprep.subr.mxu0 0.0
    %4971 = vmatpush1.msra.mxu0 0.0
    %4972 = vmatprep.subr.mxu0 0.0
    %4973 = vmatpush1.msra.mxu0 0.0
    %4974 = vmatprep.subr.mxu0 0.0
    %4975 = vmatpush1.msra.mxu0 0.0
    %4976 = vmatprep.subr.mxu0 0.0
    %4977 = vmatpush1.msra.mxu0 0.0
    %4978 = vmatprep.mubr.f32.mxu0 0.0
    %4979 = vmatmul.mubr.f32.gmra.mrb[0].mxu0 %v3523
    %v4980 = vpop.f32.mrb[0].mxu0
    %v4981 = vadd.f32 0.0, %v4980
    %v4982 = vpop.f32.mrb[0].mxu0
    %4983 = vmatprep.mubr.f32.mxu0 0.0
    %4984 = vmatmul.mubr.f32.gmra.mrb[0].mxu0 %v3526
    %v4985 = vpop.f32.mrb[0].mxu0
    %v4986 = vadd.f32 0.0, %v4985
    %v4987 = vpop.f32.mrb[0].mxu0
    %4988 = vmatprep.mubr.f32.mxu0 0.0
    %4989 = vmatmul.mubr.f32.gmra.mrb[0].mxu0 %v3529
    %v4990 = vpop.f32.mrb[0].mxu0
    %v4991 = vadd.f32 0.0, %v4990
    %v4992 = vpop.f32.mrb[0].mxu0
    %4993 = vmatprep.mubr.f32.mxu0 0.0
    %4994 = vmatmul.mubr.f32.gmra.mrb[0].mxu0 %v3532
    %v4995 = vpop.f32.mrb[0].mxu0
    %v4996 = vadd.f32 0.0, %v4995
    %v4997 = vpop.f32.mrb[0].mxu0
    %4998 = vmatprep.mubr.f32.mxu0 0.0
    %4999 = vmatmul.mubr.f32.gmra.mrb[0].mxu0 %v3535
    %v5000 = vpop.f32.mrb[0].mxu0
    %v5001 = vadd.f32 0.0, %v5000
    %v5002 = vpop.f32.mrb[0].mxu0
    %5003 = vdwg.mxu0
    %s5004 = scalar_lea.vmem %s8, 240
    %v5005 = vld [vmem:[%s5004] sm:$0xff]
    %v5006 = vld [vmem:[%s5004 + $0x8] sm:$0xff]
    %v5007 = vld [vmem:[%s5004 + $0x10] sm:$0xff]
    %v5008 = vld [vmem:[%s5004 + $0x18] sm:$0xff]
    %v5009 = vld [vmem:[%s5004 + $0x20] sm:$0x1]
    %v5011 = vsel %vm305, %v5009, 0
    %5013 = vmatprep.subr.mxu0 0.0
    %5014 = vmatpush1.msra.mxu0 %v5005
    %5015 = vmatprep.subr.mxu0 0.0
    %5016 = vmatpush1.msra.mxu0 %v5006
    %5017 = vmatprep.subr.mxu0 0.0
    %5018 = vmatpush1.msra.mxu0 %v5007
    %5019 = vmatprep.subr.mxu0 0.0
    %5020 = vmatpush1.msra.mxu0 %v5008
    %5021 = vmatprep.subr.mxu0 0.0
    %5022 = vmatpush1.msra.mxu0 %v5011
    %5023 = vmatprep.subr.mxu0 0.0
    %5024 = vmatpush1.msra.mxu0 0.0
    %5025 = vmatprep.subr.mxu0 0.0
    %5026 = vmatpush1.msra.mxu0 0.0
    %5027 = vmatprep.subr.mxu0 0.0
    %5028 = vmatpush1.msra.mxu0 0.0
    %5029 = vmatprep.subr.mxu0 0.0
    %5030 = vmatpush1.msra.mxu0 0.0
    %5031 = vmatprep.subr.mxu0 0.0
    %5032 = vmatpush1.msra.mxu0 0.0
    %5033 = vmatprep.subr.mxu0 0.0
    %5034 = vmatpush1.msra.mxu0 0.0
    %5035 = vmatprep.subr.mxu0 0.0
    %5036 = vmatpush1.msra.mxu0 0.0
    %5037 = vmatprep.subr.mxu0 0.0
    %5038 = vmatpush1.msra.mxu0 0.0
    %5039 = vmatprep.subr.mxu0 0.0
    %5040 = vmatpush1.msra.mxu0 0.0
    %5041 = vmatprep.subr.mxu0 0.0
    %5042 = vmatpush1.msra.mxu0 0.0
    %5043 = vmatprep.subr.mxu0 0.0
    %5044 = vmatpush1.msra.mxu0 0.0
    %5045 = vmatprep.subr.mxu0 0.0
    %5046 = vmatpush1.msra.mxu0 0.0
    %5047 = vmatprep.subr.mxu0 0.0
    %5048 = vmatpush1.msra.mxu0 0.0
    %5049 = vmatprep.subr.mxu0 0.0
    %5050 = vmatpush1.msra.mxu0 0.0
    %5051 = vmatprep.subr.mxu0 0.0
    %5052 = vmatpush1.msra.mxu0 0.0
    %5053 = vmatprep.subr.mxu0 0.0
    %5054 = vmatpush1.msra.mxu0 0.0
    %5055 = vmatprep.subr.mxu0 0.0
    %5056 = vmatpush1.msra.mxu0 0.0
    %5057 = vmatprep.subr.mxu0 0.0
    %5058 = vmatpush1.msra.mxu0 0.0
    %5059 = vmatprep.subr.mxu0 0.0
    %5060 = vmatpush1.msra.mxu0 0.0
    %5061 = vmatprep.subr.mxu0 0.0
    %5062 = vmatpush1.msra.mxu0 0.0
    %5063 = vmatprep.subr.mxu0 0.0
    %5064 = vmatpush1.msra.mxu0 0.0
    %5065 = vmatprep.subr.mxu0 0.0
    %5066 = vmatpush1.msra.mxu0 0.0
    %5067 = vmatprep.subr.mxu0 0.0
    %5068 = vmatpush1.msra.mxu0 0.0
    %5069 = vmatprep.subr.mxu0 0.0
    %5070 = vmatpush1.msra.mxu0 0.0
    %5071 = vmatprep.subr.mxu0 0.0
    %5072 = vmatpush1.msra.mxu0 0.0
    %5073 = vmatprep.subr.mxu0 0.0
    %5074 = vmatpush1.msra.mxu0 0.0
    %5075 = vmatprep.subr.mxu0 0.0
    %5076 = vmatpush1.msra.mxu0 0.0
    %5077 = vmatprep.mubr.f32.mxu0 0.0
    %5078 = vmatmul.mubr.f32.gmra.mrb[0].mxu0 %v3523
    %v5079 = vpop.f32.mrb[0].mxu0
    %v5080 = vadd.f32 0.0, %v5079
    %v5081 = vpop.f32.mrb[0].mxu0
    %5082 = vmatprep.mubr.f32.mxu0 0.0
    %5083 = vmatmul.mubr.f32.gmra.mrb[0].mxu0 %v3526
    %v5084 = vpop.f32.mrb[0].mxu0
    %v5085 = vadd.f32 0.0, %v5084
    %v5086 = vpop.f32.mrb[0].mxu0
    %5087 = vmatprep.mubr.f32.mxu0 0.0
    %5088 = vmatmul.mubr.f32.gmra.mrb[0].mxu0 %v3529
    %v5089 = vpop.f32.mrb[0].mxu0
    %v5090 = vadd.f32 0.0, %v5089
    %v5091 = vpop.f32.mrb[0].mxu0
    %5092 = vmatprep.mubr.f32.mxu0 0.0
    %5093 = vmatmul.mubr.f32.gmra.mrb[0].mxu0 %v3532
    %v5094 = vpop.f32.mrb[0].mxu0
    %v5095 = vadd.f32 0.0, %v5094
    %v5096 = vpop.f32.mrb[0].mxu0
    %5097 = vmatprep.mubr.f32.mxu0 0.0
    %5098 = vmatmul.mubr.f32.gmra.mrb[0].mxu0 %v3535
    %v5099 = vpop.f32.mrb[0].mxu0
    %v5100 = vadd.f32 0.0, %v5099
    %v5101 = vpop.f32.mrb[0].mxu0
    %5102 = vdwg.mxu0
    %s5103 = scalar_lea.vmem %s9, 240
    %v5104 = vld [vmem:[%s5103] sm:$0xff]
    %v5105 = vld [vmem:[%s5103 + $0x8] sm:$0xff]
    %v5106 = vld [vmem:[%s5103 + $0x10] sm:$0xff]
    %v5107 = vld [vmem:[%s5103 + $0x18] sm:$0xff]
    %v5108 = vld [vmem:[%s5103 + $0x20] sm:$0x1]
    %v5110 = vsel %vm305, %v5108, 0
    %5112 = vmatprep.subr.mxu0 0.0
    %5113 = vmatpush1.msra.mxu0 %v5104
    %5114 = vmatprep.subr.mxu0 0.0
    %5115 = vmatpush1.msra.mxu0 %v5105
    %5116 = vmatprep.subr.mxu0 0.0
    %5117 = vmatpush1.msra.mxu0 %v5106
    %5118 = vmatprep.subr.mxu0 0.0
    %5119 = vmatpush1.msra.mxu0 %v5107
    %5120 = vmatprep.subr.mxu0 0.0
    %5121 = vmatpush1.msra.mxu0 %v5110
    %5122 = vmatprep.subr.mxu0 0.0
    %5123 = vmatpush1.msra.mxu0 0.0
    %5124 = vmatprep.subr.mxu0 0.0
    %5125 = vmatpush1.msra.mxu0 0.0
    %5126 = vmatprep.subr.mxu0 0.0
    %5127 = vmatpush1.msra.mxu0 0.0
    %5128 = vmatprep.subr.mxu0 0.0
    %5129 = vmatpush1.msra.mxu0 0.0
    %5130 = vmatprep.subr.mxu0 0.0
    %5131 = vmatpush1.msra.mxu0 0.0
    %5132 = vmatprep.subr.mxu0 0.0
    %5133 = vmatpush1.msra.mxu0 0.0
    %5134 = vmatprep.subr.mxu0 0.0
    %5135 = vmatpush1.msra.mxu0 0.0
    %5136 = vmatprep.subr.mxu0 0.0
    %5137 = vmatpush1.msra.mxu0 0.0
    %5138 = vmatprep.subr.mxu0 0.0
    %5139 = vmatpush1.msra.mxu0 0.0
    %5140 = vmatprep.subr.mxu0 0.0
    %5141 = vmatpush1.msra.mxu0 0.0
    %5142 = vmatprep.subr.mxu0 0.0
    %5143 = vmatpush1.msra.mxu0 0.0
    %5144 = vmatprep.subr.mxu0 0.0
    %5145 = vmatpush1.msra.mxu0 0.0
    %5146 = vmatprep.subr.mxu0 0.0
    %5147 = vmatpush1.msra.mxu0 0.0
    %5148 = vmatprep.subr.mxu0 0.0
    %5149 = vmatpush1.msra.mxu0 0.0
    %5150 = vmatprep.subr.mxu0 0.0
    %5151 = vmatpush1.msra.mxu0 0.0
    %5152 = vmatprep.subr.mxu0 0.0
    %5153 = vmatpush1.msra.mxu0 0.0
    %5154 = vmatprep.subr.mxu0 0.0
    %5155 = vmatpush1.msra.mxu0 0.0
    %5156 = vmatprep.subr.mxu0 0.0
    %5157 = vmatpush1.msra.mxu0 0.0
    %5158 = vmatprep.subr.mxu0 0.0
    %5159 = vmatpush1.msra.mxu0 0.0
    %5160 = vmatprep.subr.mxu0 0.0
    %5161 = vmatpush1.msra.mxu0 0.0
    %5162 = vmatprep.subr.mxu0 0.0
    %5163 = vmatpush1.msra.mxu0 0.0
    %5164 = vmatprep.subr.mxu0 0.0
    %5165 = vmatpush1.msra.mxu0 0.0
    %5166 = vmatprep.subr.mxu0 0.0
    %5167 = vmatpush1.msra.mxu0 0.0
    %5168 = vmatprep.subr.mxu0 0.0
    %5169 = vmatpush1.msra.mxu0 0.0
    %5170 = vmatprep.subr.mxu0 0.0
    %5171 = vmatpush1.msra.mxu0 0.0
    %5172 = vmatprep.subr.mxu0 0.0
    %5173 = vmatpush1.msra.mxu0 0.0
    %5174 = vmatprep.subr.mxu0 0.0
    %5175 = vmatpush1.msra.mxu0 0.0
    %5176 = vmatprep.mubr.f32.mxu0 0.0
    %5177 = vmatmul.mubr.f32.gmra.mrb[0].mxu0 %v3523
    %v5178 = vpop.f32.mrb[0].mxu0
    %v5179 = vadd.f32 0.0, %v5178
    %v5180 = vpop.f32.mrb[0].mxu0
    %5181 = vmatprep.mubr.f32.mxu0 0.0
    %5182 = vmatmul.mubr.f32.gmra.mrb[0].mxu0 %v3526
    %v5183 = vpop.f32.mrb[0].mxu0
    %v5184 = vadd.f32 0.0, %v5183
    %v5185 = vpop.f32.mrb[0].mxu0
    %5186 = vmatprep.mubr.f32.mxu0 0.0
    %5187 = vmatmul.mubr.f32.gmra.mrb[0].mxu0 %v3529
    %v5188 = vpop.f32.mrb[0].mxu0
    %v5189 = vadd.f32 0.0, %v5188
    %v5190 = vpop.f32.mrb[0].mxu0
    %5191 = vmatprep.mubr.f32.mxu0 0.0
    %5192 = vmatmul.mubr.f32.gmra.mrb[0].mxu0 %v3532
    %v5193 = vpop.f32.mrb[0].mxu0
    %v5194 = vadd.f32 0.0, %v5193
    %v5195 = vpop.f32.mrb[0].mxu0
    %5196 = vmatprep.mubr.f32.mxu0 0.0
    %5197 = vmatmul.mubr.f32.gmra.mrb[0].mxu0 %v3535
    %v5198 = vpop.f32.mrb[0].mxu0
    %v5199 = vadd.f32 0.0, %v5198
    %v5200 = vpop.f32.mrb[0].mxu0
    %5201 = vdwg.mxu0
    %v5203 = vsel %vm595, %v4981, 0
    %v5206 = vsel %vm595, %v4986, 0
    %v5209 = vsel %vm595, %v4991, 0
    %v5212 = vsel %vm595, %v4996, 0
    %v5215 = vsel %vm595, %v5001, 0
    %v5218 = vsel %vm595, %v5080, 0
    %v5221 = vsel %vm595, %v5085, 0
    %v5224 = vsel %vm595, %v5090, 0
    %v5227 = vsel %vm595, %v5095, 0
    %v5230 = vsel %vm595, %v5100, 0
    %5232 = vmatprep.subr.mxu0 0.0
    %5233 = vmatpush1.xpose.msra.mxu0 %v5218
    %5234 = vmatprep.subr.mxu0 0.0
    %5235 = vmatpush1.xpose.msra.mxu0 %v5221
    %5236 = vmatprep.subr.mxu0 0.0
    %5237 = vmatpush1.xpose.msra.mxu0 %v5224
    %5238 = vmatprep.subr.mxu0 0.0
    %5239 = vmatpush1.xpose.msra.mxu0 %v5227
    %5240 = vmatprep.subr.mxu0 0.0
    %5241 = vmatpush1.xpose.msra.mxu0 %v5230
    %5242 = vmatprep.subr.mxu0 0.0
    %5243 = vmatpush1.xpose.msra.mxu0 0.0
    %5244 = vmatprep.subr.mxu0 0.0
    %5245 = vmatpush1.xpose.msra.mxu0 0.0
    %5246 = vmatprep.subr.mxu0 0.0
    %5247 = vmatpush1.xpose.msra.mxu0 0.0
    %5248 = vmatprep.subr.mxu0 0.0
    %5249 = vmatpush1.xpose.msra.mxu0 0.0
    %5250 = vmatprep.subr.mxu0 0.0
    %5251 = vmatpush1.xpose.msra.mxu0 0.0
    %5252 = vmatprep.subr.mxu0 0.0
    %5253 = vmatpush1.xpose.msra.mxu0 0.0
    %5254 = vmatprep.subr.mxu0 0.0
    %5255 = vmatpush1.xpose.msra.mxu0 0.0
    %5256 = vmatprep.subr.mxu0 0.0
    %5257 = vmatpush1.xpose.msra.mxu0 0.0
    %5258 = vmatprep.subr.mxu0 0.0
    %5259 = vmatpush1.xpose.msra.mxu0 0.0
    %5260 = vmatprep.subr.mxu0 0.0
    %5261 = vmatpush1.xpose.msra.mxu0 0.0
    %5262 = vmatprep.subr.mxu0 0.0
    %5263 = vmatpush1.xpose.msra.mxu0 0.0
    %5264 = vmatprep.subr.mxu0 0.0
    %5265 = vmatpush1.xpose.msra.mxu0 0.0
    %5266 = vmatprep.subr.mxu0 0.0
    %5267 = vmatpush1.xpose.msra.mxu0 0.0
    %5268 = vmatprep.subr.mxu0 0.0
    %5269 = vmatpush1.xpose.msra.mxu0 0.0
    %5270 = vmatprep.subr.mxu0 0.0
    %5271 = vmatpush1.xpose.msra.mxu0 0.0
    %5272 = vmatprep.subr.mxu0 0.0
    %5273 = vmatpush1.xpose.msra.mxu0 0.0
    %5274 = vmatprep.subr.mxu0 0.0
    %5275 = vmatpush1.xpose.msra.mxu0 0.0
    %5276 = vmatprep.subr.mxu0 0.0
    %5277 = vmatpush1.xpose.msra.mxu0 0.0
    %5278 = vmatprep.subr.mxu0 0.0
    %5279 = vmatpush1.xpose.msra.mxu0 0.0
    %5280 = vmatprep.subr.mxu0 0.0
    %5281 = vmatpush1.xpose.msra.mxu0 0.0
    %5282 = vmatprep.subr.mxu0 0.0
    %5283 = vmatpush1.xpose.msra.mxu0 0.0
    %5284 = vmatprep.subr.mxu0 0.0
    %5285 = vmatpush1.xpose.msra.mxu0 0.0
    %5286 = vmatprep.subr.mxu0 0.0
    %5287 = vmatpush1.xpose.msra.mxu0 0.0
    %5288 = vmatprep.subr.mxu0 0.0
    %5289 = vmatpush1.xpose.msra.mxu0 0.0
    %5290 = vmatprep.subr.mxu0 0.0
    %5291 = vmatpush1.xpose.msra.mxu0 0.0
    %5292 = vmatprep.subr.mxu0 0.0
    %5293 = vmatpush1.xpose.msra.mxu0 0.0
    %5294 = vmatprep.subr.mxu0 0.0
    %5295 = vmatpush1.xpose.msra.mxu0 0.0
    %5296 = vmatprep.mubr.f32.mxu0 0.0
    %5297 = vmatmul.mubr.f32.gmra.mrb[0].mxu0 %v5203
    %v5298 = vpop.f32.mrb[0].mxu0
    %v5299 = vadd.f32 %v181, %v5298
    %v5300 = vpop.f32.mrb[0].mxu0
    %5301 = vmatprep.mubr.f32.mxu0 0.0
    %5302 = vmatmul.mubr.f32.gmra.mrb[0].mxu0 %v5206
    %v5303 = vpop.f32.mrb[0].mxu0
    %v5304 = vadd.f32 %v182, %v5303
    %v5305 = vpop.f32.mrb[0].mxu0
    %5306 = vmatprep.mubr.f32.mxu0 0.0
    %5307 = vmatmul.mubr.f32.gmra.mrb[0].mxu0 %v5209
    %v5308 = vpop.f32.mrb[0].mxu0
    %v5309 = vadd.f32 %v183, %v5308
    %v5310 = vpop.f32.mrb[0].mxu0
    %5311 = vmatprep.mubr.f32.mxu0 0.0
    %5312 = vmatmul.mubr.f32.gmra.mrb[0].mxu0 %v5212
    %v5313 = vpop.f32.mrb[0].mxu0
    %v5314 = vadd.f32 %v184, %v5313
    %v5315 = vpop.f32.mrb[0].mxu0
    %5316 = vmatprep.mubr.f32.mxu0 0.0
    %5317 = vmatmul.mubr.f32.gmra.mrb[0].mxu0 %v5215
    %v5318 = vpop.f32.mrb[0].mxu0
    %v5319 = vadd.f32 %v185, %v5318
    %v5320 = vpop.f32.mrb[0].mxu0
    %5321 = vdwg.mxu0
    %v5322 = vsel %vm716, %v5299, -inf
    %5323 = vmax.xlane.f32.xlu0 %v5322
    %v5324 = vpop.xlane.xlu0 %5323
    %v5325 = vsel %vm716, %v5304, -inf
    %5326 = vmax.xlane.f32.xlu0 %v5325
    %v5327 = vpop.xlane.xlu0 %5326
    %v5328 = vsel %vm716, %v5309, -inf
    %5329 = vmax.xlane.f32.xlu0 %v5328
    %v5330 = vpop.xlane.xlu0 %5329
    %v5331 = vsel %vm716, %v5314, -inf
    %5332 = vmax.xlane.f32.xlu0 %v5331
    %v5333 = vpop.xlane.xlu0 %5332
    %v5334 = vsel %vm729, %v5319, -inf
    %5335 = vmax.xlane.f32.xlu0 %v5334
    %v5336 = vpop.xlane.xlu0 %5335
    %v5337 = vsub.f32 %v5299, %v5324
    %v5338 = vsub.f32 %v5304, %v5327
    %v5339 = vsub.f32 %v5309, %v5330
    %v5340 = vsub.f32 %v5314, %v5333
    %v5341 = vsub.f32 %v5319, %v5336
    %v5342 = vmul.f32 %v5337, 1.442695
    %v5343 = vpow.pop %v5342
    %v5344 = vmul.f32 %v5338, 1.442695
    %v5345 = vpow.pop %v5344
    %v5346 = vmul.f32 %v5339, 1.442695
    %v5347 = vpow.pop %v5346
    %v5348 = vmul.f32 %v5340, 1.442695
    %v5349 = vpow.pop %v5348
    %v5350 = vmul.f32 %v5341, 1.442695
    %v5351 = vpow.pop %v5350
    %v5352 = vsel %vm716, %v5343, 0.0
    %5353 = vadd.xlane.f32.xlu0 %v5352
    %v5354 = vpop.xlane.xlu0 %5353
    %v5355 = vsel %vm716, %v5345, 0.0
    %5356 = vadd.xlane.f32.xlu0 %v5355
    %v5357 = vpop.xlane.xlu0 %5356
    %v5358 = vsel %vm716, %v5347, 0.0
    %5359 = vadd.xlane.f32.xlu0 %v5358
    %v5360 = vpop.xlane.xlu0 %5359
    %v5361 = vsel %vm716, %v5349, 0.0
    %5362 = vadd.xlane.f32.xlu0 %v5361
    %v5363 = vpop.xlane.xlu0 %5362
    %v5364 = vsel %vm729, %v5351, 0.0
    %5365 = vadd.xlane.f32.xlu0 %v5364
    %v5366 = vpop.xlane.xlu0 %5365
    %v5367 = vrcp.pop %v5354
    %v5368 = vrcp.pop %v5357
    %v5369 = vrcp.pop %v5360
    %v5370 = vrcp.pop %v5363
    %v5371 = vrcp.pop %v5366
    %v5372 = vmul.f32 %v5343, %v5367
    %v5373 = vmul.f32 %v5345, %v5368
    %v5374 = vmul.f32 %v5347, %v5369
    %v5375 = vmul.f32 %v5349, %v5370
    %v5376 = vmul.f32 %v5351, %v5371
    %v5378 = vsel %vm716, %v5372, 0
    %v5381 = vsel %vm716, %v5373, 0
    %v5384 = vsel %vm716, %v5374, 0
    %v5387 = vsel %vm716, %v5375, 0
    %v5390 = vsel %vm716, %v5376, 0
    %v5393 = vsel %vm788, %v5199, 0
    %5395 = vmatprep.subr.mxu0 0.0
    %5396 = vmatpush1.msra.mxu0 %v5179
    %5397 = vmatprep.subr.mxu0 0.0
    %5398 = vmatpush1.msra.mxu0 %v5184
    %5399 = vmatprep.subr.mxu0 0.0
    %5400 = vmatpush1.msra.mxu0 %v5189
    %5401 = vmatprep.subr.mxu0 0.0
    %5402 = vmatpush1.msra.mxu0 %v5194
    %5403 = vmatprep.subr.mxu0 0.0
    %5404 = vmatpush1.msra.mxu0 %v5393
    %5405 = vmatprep.subr.mxu0 0.0
    %5406 = vmatpush1.msra.mxu0 0.0
    %5407 = vmatprep.subr.mxu0 0.0
    %5408 = vmatpush1.msra.mxu0 0.0
    %5409 = vmatprep.subr.mxu0 0.0
    %5410 = vmatpush1.msra.mxu0 0.0
    %5411 = vmatprep.subr.mxu0 0.0
    %5412 = vmatpush1.msra.mxu0 0.0
    %5413 = vmatprep.subr.mxu0 0.0
    %5414 = vmatpush1.msra.mxu0 0.0
    %5415 = vmatprep.subr.mxu0 0.0
    %5416 = vmatpush1.msra.mxu0 0.0
    %5417 = vmatprep.subr.mxu0 0.0
    %5418 = vmatpush1.msra.mxu0 0.0
    %5419 = vmatprep.subr.mxu0 0.0
    %5420 = vmatpush1.msra.mxu0 0.0
    %5421 = vmatprep.subr.mxu0 0.0
    %5422 = vmatpush1.msra.mxu0 0.0
    %5423 = vmatprep.subr.mxu0 0.0
    %5424 = vmatpush1.msra.mxu0 0.0
    %5425 = vmatprep.subr.mxu0 0.0
    %5426 = vmatpush1.msra.mxu0 0.0
    %5427 = vmatprep.subr.mxu0 0.0
    %5428 = vmatpush1.msra.mxu0 0.0
    %5429 = vmatprep.subr.mxu0 0.0
    %5430 = vmatpush1.msra.mxu0 0.0
    %5431 = vmatprep.subr.mxu0 0.0
    %5432 = vmatpush1.msra.mxu0 0.0
    %5433 = vmatprep.subr.mxu0 0.0
    %5434 = vmatpush1.msra.mxu0 0.0
    %5435 = vmatprep.subr.mxu0 0.0
    %5436 = vmatpush1.msra.mxu0 0.0
    %5437 = vmatprep.subr.mxu0 0.0
    %5438 = vmatpush1.msra.mxu0 0.0
    %5439 = vmatprep.subr.mxu0 0.0
    %5440 = vmatpush1.msra.mxu0 0.0
    %5441 = vmatprep.subr.mxu0 0.0
    %5442 = vmatpush1.msra.mxu0 0.0
    %5443 = vmatprep.subr.mxu0 0.0
    %5444 = vmatpush1.msra.mxu0 0.0
    %5445 = vmatprep.subr.mxu0 0.0
    %5446 = vmatpush1.msra.mxu0 0.0
    %5447 = vmatprep.subr.mxu0 0.0
    %5448 = vmatpush1.msra.mxu0 0.0
    %5449 = vmatprep.subr.mxu0 0.0
    %5450 = vmatpush1.msra.mxu0 0.0
    %5451 = vmatprep.subr.mxu0 0.0
    %5452 = vmatpush1.msra.mxu0 0.0
    %5453 = vmatprep.subr.mxu0 0.0
    %5454 = vmatpush1.msra.mxu0 0.0
    %5455 = vmatprep.subr.mxu0 0.0
    %5456 = vmatpush1.msra.mxu0 0.0
    %5457 = vmatprep.subr.mxu0 0.0
    %5458 = vmatpush1.msra.mxu0 0.0
    %5459 = vmatprep.mubr.f32.mxu0 0.0
    %5460 = vmatmul.mubr.f32.gmra.mrb[0].mxu0 %v5378
    %v5461 = vpop.f32.mrb[0].mxu0
    %v5462 = vadd.f32 0.0, %v5461
    %v5463 = vpop.f32.mrb[0].mxu0
    %5464 = vmatprep.mubr.f32.mxu0 0.0
    %5465 = vmatmul.mubr.f32.gmra.mrb[0].mxu0 %v5381
    %v5466 = vpop.f32.mrb[0].mxu0
    %v5467 = vadd.f32 0.0, %v5466
    %v5468 = vpop.f32.mrb[0].mxu0
    %5469 = vmatprep.mubr.f32.mxu0 0.0
    %5470 = vmatmul.mubr.f32.gmra.mrb[0].mxu0 %v5384
    %v5471 = vpop.f32.mrb[0].mxu0
    %v5472 = vadd.f32 0.0, %v5471
    %v5473 = vpop.f32.mrb[0].mxu0
    %5474 = vmatprep.mubr.f32.mxu0 0.0
    %5475 = vmatmul.mubr.f32.gmra.mrb[0].mxu0 %v5387
    %v5476 = vpop.f32.mrb[0].mxu0
    %v5477 = vadd.f32 0.0, %v5476
    %v5478 = vpop.f32.mrb[0].mxu0
    %5479 = vmatprep.mubr.f32.mxu0 0.0
    %5480 = vmatmul.mubr.f32.gmra.mrb[0].mxu0 %v5390
    %v5481 = vpop.f32.mrb[0].mxu0
    %v5482 = vadd.f32 0.0, %v5481
    %v5483 = vpop.f32.mrb[0].mxu0
    %5484 = vdwg.mxu0
    %s5485 = scalar_lea.vmem %s10, 48
    %v5486 = vld [vmem:[%s5485] sm:$0xff]
    %v5488 = vsel %vm595, %v5462, 0
    %v5491 = vsel %vm595, %v5467, 0
    %v5494 = vsel %vm595, %v5472, 0
    %v5497 = vsel %vm595, %v5477, 0
    %v5500 = vsel %vm595, %v5482, 0
    %5502 = vmatprep.subr.mxu0 0.0
    %5503 = vmatpush1.msra.mxu0 %v5486
    %5504 = vmatprep.subr.mxu0 0.0
    %5505 = vmatpush1.msra.mxu0 0.0
    %5506 = vmatprep.subr.mxu0 0.0
    %5507 = vmatpush1.msra.mxu0 0.0
    %5508 = vmatprep.subr.mxu0 0.0
    %5509 = vmatpush1.msra.mxu0 0.0
    %5510 = vmatprep.subr.mxu0 0.0
    %5511 = vmatpush1.msra.mxu0 0.0
    %5512 = vmatprep.subr.mxu0 0.0
    %5513 = vmatpush1.msra.mxu0 0.0
    %5514 = vmatprep.subr.mxu0 0.0
    %5515 = vmatpush1.msra.mxu0 0.0
    %5516 = vmatprep.subr.mxu0 0.0
    %5517 = vmatpush1.msra.mxu0 0.0
    %5518 = vmatprep.subr.mxu0 0.0
    %5519 = vmatpush1.msra.mxu0 0.0
    %5520 = vmatprep.subr.mxu0 0.0
    %5521 = vmatpush1.msra.mxu0 0.0
    %5522 = vmatprep.subr.mxu0 0.0
    %5523 = vmatpush1.msra.mxu0 0.0
    %5524 = vmatprep.subr.mxu0 0.0
    %5525 = vmatpush1.msra.mxu0 0.0
    %5526 = vmatprep.subr.mxu0 0.0
    %5527 = vmatpush1.msra.mxu0 0.0
    %5528 = vmatprep.subr.mxu0 0.0
    %5529 = vmatpush1.msra.mxu0 0.0
    %5530 = vmatprep.subr.mxu0 0.0
    %5531 = vmatpush1.msra.mxu0 0.0
    %5532 = vmatprep.subr.mxu0 0.0
    %5533 = vmatpush1.msra.mxu0 0.0
    %5534 = vmatprep.subr.mxu0 0.0
    %5535 = vmatpush1.msra.mxu0 0.0
    %5536 = vmatprep.subr.mxu0 0.0
    %5537 = vmatpush1.msra.mxu0 0.0
    %5538 = vmatprep.subr.mxu0 0.0
    %5539 = vmatpush1.msra.mxu0 0.0
    %5540 = vmatprep.subr.mxu0 0.0
    %5541 = vmatpush1.msra.mxu0 0.0
    %5542 = vmatprep.subr.mxu0 0.0
    %5543 = vmatpush1.msra.mxu0 0.0
    %5544 = vmatprep.subr.mxu0 0.0
    %5545 = vmatpush1.msra.mxu0 0.0
    %5546 = vmatprep.subr.mxu0 0.0
    %5547 = vmatpush1.msra.mxu0 0.0
    %5548 = vmatprep.subr.mxu0 0.0
    %5549 = vmatpush1.msra.mxu0 0.0
    %5550 = vmatprep.subr.mxu0 0.0
    %5551 = vmatpush1.msra.mxu0 0.0
    %5552 = vmatprep.subr.mxu0 0.0
    %5553 = vmatpush1.msra.mxu0 0.0
    %5554 = vmatprep.subr.mxu0 0.0
    %5555 = vmatpush1.msra.mxu0 0.0
    %5556 = vmatprep.subr.mxu0 0.0
    %5557 = vmatpush1.msra.mxu0 0.0
    %5558 = vmatprep.subr.mxu0 0.0
    %5559 = vmatpush1.msra.mxu0 0.0
    %5560 = vmatprep.subr.mxu0 0.0
    %5561 = vmatpush1.msra.mxu0 0.0
    %5562 = vmatprep.subr.mxu0 0.0
    %5563 = vmatpush1.msra.mxu0 0.0
    %5564 = vmatprep.subr.mxu0 0.0
    %5565 = vmatpush1.msra.mxu0 0.0
    %5566 = vmatprep.mubr.f32.mxu0 0.0
    %5567 = vmatmul.mubr.f32.gmra.mrb[0].mxu0 %v5488
    %v5568 = vpop.f32.mrb[0].mxu0
    %v5569 = vadd.f32 0.0, %v5568
    %v5570 = vpop.f32.mrb[0].mxu0
    %5571 = vmatprep.mubr.f32.mxu0 0.0
    %5572 = vmatmul.mubr.f32.gmra.mrb[0].mxu0 %v5491
    %v5573 = vpop.f32.mrb[0].mxu0
    %v5574 = vadd.f32 0.0, %v5573
    %v5575 = vpop.f32.mrb[0].mxu0
    %5576 = vmatprep.mubr.f32.mxu0 0.0
    %5577 = vmatmul.mubr.f32.gmra.mrb[0].mxu0 %v5494
    %v5578 = vpop.f32.mrb[0].mxu0
    %v5579 = vadd.f32 0.0, %v5578
    %v5580 = vpop.f32.mrb[0].mxu0
    %5581 = vmatprep.mubr.f32.mxu0 0.0
    %5582 = vmatmul.mubr.f32.gmra.mrb[0].mxu0 %v5497
    %v5583 = vpop.f32.mrb[0].mxu0
    %v5584 = vadd.f32 0.0, %v5583
    %v5585 = vpop.f32.mrb[0].mxu0
    %5586 = vmatprep.mubr.f32.mxu0 0.0
    %5587 = vmatmul.mubr.f32.gmra.mrb[0].mxu0 %v5500
    %v5588 = vpop.f32.mrb[0].mxu0
    %v5589 = vadd.f32 0.0, %v5588
    %v5590 = vpop.f32.mrb[0].mxu0
    %5591 = vdwg.mxu0
    %v5592 = vadd.f32 %v4882, %v5569
    %v5593 = vadd.f32 %v4887, %v5574
    %v5594 = vadd.f32 %v4892, %v5579
    %v5595 = vadd.f32 %v4897, %v5584
    %v5596 = vadd.f32 %v4902, %v5589
    %s5597 = scalar_lea.vmem %s7, 280
    %v5598 = vld [vmem:[%s5597] sm:$0xff]
    %v5599 = vld [vmem:[%s5597 + $0x8] sm:$0xff]
    %v5600 = vld [vmem:[%s5597 + $0x10] sm:$0xff]
    %v5601 = vld [vmem:[%s5597 + $0x18] sm:$0xff]
    %v5602 = vld [vmem:[%s5597 + $0x20] sm:$0x1]
    %v5604 = vsel %vm305, %v5602, 0
    %5606 = vmatprep.subr.mxu0 0.0
    %5607 = vmatpush1.msra.mxu0 %v5598
    %5608 = vmatprep.subr.mxu0 0.0
    %5609 = vmatpush1.msra.mxu0 %v5599
    %5610 = vmatprep.subr.mxu0 0.0
    %5611 = vmatpush1.msra.mxu0 %v5600
    %5612 = vmatprep.subr.mxu0 0.0
    %5613 = vmatpush1.msra.mxu0 %v5601
    %5614 = vmatprep.subr.mxu0 0.0
    %5615 = vmatpush1.msra.mxu0 %v5604
    %5616 = vmatprep.subr.mxu0 0.0
    %5617 = vmatpush1.msra.mxu0 0.0
    %5618 = vmatprep.subr.mxu0 0.0
    %5619 = vmatpush1.msra.mxu0 0.0
    %5620 = vmatprep.subr.mxu0 0.0
    %5621 = vmatpush1.msra.mxu0 0.0
    %5622 = vmatprep.subr.mxu0 0.0
    %5623 = vmatpush1.msra.mxu0 0.0
    %5624 = vmatprep.subr.mxu0 0.0
    %5625 = vmatpush1.msra.mxu0 0.0
    %5626 = vmatprep.subr.mxu0 0.0
    %5627 = vmatpush1.msra.mxu0 0.0
    %5628 = vmatprep.subr.mxu0 0.0
    %5629 = vmatpush1.msra.mxu0 0.0
    %5630 = vmatprep.subr.mxu0 0.0
    %5631 = vmatpush1.msra.mxu0 0.0
    %5632 = vmatprep.subr.mxu0 0.0
    %5633 = vmatpush1.msra.mxu0 0.0
    %5634 = vmatprep.subr.mxu0 0.0
    %5635 = vmatpush1.msra.mxu0 0.0
    %5636 = vmatprep.subr.mxu0 0.0
    %5637 = vmatpush1.msra.mxu0 0.0
    %5638 = vmatprep.subr.mxu0 0.0
    %5639 = vmatpush1.msra.mxu0 0.0
    %5640 = vmatprep.subr.mxu0 0.0
    %5641 = vmatpush1.msra.mxu0 0.0
    %5642 = vmatprep.subr.mxu0 0.0
    %5643 = vmatpush1.msra.mxu0 0.0
    %5644 = vmatprep.subr.mxu0 0.0
    %5645 = vmatpush1.msra.mxu0 0.0
    %5646 = vmatprep.subr.mxu0 0.0
    %5647 = vmatpush1.msra.mxu0 0.0
    %5648 = vmatprep.subr.mxu0 0.0
    %5649 = vmatpush1.msra.mxu0 0.0
    %5650 = vmatprep.subr.mxu0 0.0
    %5651 = vmatpush1.msra.mxu0 0.0
    %5652 = vmatprep.subr.mxu0 0.0
    %5653 = vmatpush1.msra.mxu0 0.0
    %5654 = vmatprep.subr.mxu0 0.0
    %5655 = vmatpush1.msra.mxu0 0.0
    %5656 = vmatprep.subr.mxu0 0.0
    %5657 = vmatpush1.msra.mxu0 0.0
    %5658 = vmatprep.subr.mxu0 0.0
    %5659 = vmatpush1.msra.mxu0 0.0
    %5660 = vmatprep.subr.mxu0 0.0
    %5661 = vmatpush1.msra.mxu0 0.0
    %5662 = vmatprep.subr.mxu0 0.0
    %5663 = vmatpush1.msra.mxu0 0.0
    %5664 = vmatprep.subr.mxu0 0.0
    %5665 = vmatpush1.msra.mxu0 0.0
    %5666 = vmatprep.subr.mxu0 0.0
    %5667 = vmatpush1.msra.mxu0 0.0
    %5668 = vmatprep.subr.mxu0 0.0
    %5669 = vmatpush1.msra.mxu0 0.0
    %5670 = vmatprep.mubr.f32.mxu0 0.0
    %5671 = vmatmul.mubr.f32.gmra.mrb[0].mxu0 %v3523
    %v5672 = vpop.f32.mrb[0].mxu0
    %v5673 = vadd.f32 0.0, %v5672
    %v5674 = vpop.f32.mrb[0].mxu0
    %5675 = vmatprep.mubr.f32.mxu0 0.0
    %5676 = vmatmul.mubr.f32.gmra.mrb[0].mxu0 %v3526
    %v5677 = vpop.f32.mrb[0].mxu0
    %v5678 = vadd.f32 0.0, %v5677
    %v5679 = vpop.f32.mrb[0].mxu0
    %5680 = vmatprep.mubr.f32.mxu0 0.0
    %5681 = vmatmul.mubr.f32.gmra.mrb[0].mxu0 %v3529
    %v5682 = vpop.f32.mrb[0].mxu0
    %v5683 = vadd.f32 0.0, %v5682
    %v5684 = vpop.f32.mrb[0].mxu0
    %5685 = vmatprep.mubr.f32.mxu0 0.0
    %5686 = vmatmul.mubr.f32.gmra.mrb[0].mxu0 %v3532
    %v5687 = vpop.f32.mrb[0].mxu0
    %v5688 = vadd.f32 0.0, %v5687
    %v5689 = vpop.f32.mrb[0].mxu0
    %5690 = vmatprep.mubr.f32.mxu0 0.0
    %5691 = vmatmul.mubr.f32.gmra.mrb[0].mxu0 %v3535
    %v5692 = vpop.f32.mrb[0].mxu0
    %v5693 = vadd.f32 0.0, %v5692
    %v5694 = vpop.f32.mrb[0].mxu0
    %5695 = vdwg.mxu0
    %s5696 = scalar_lea.vmem %s8, 280
    %v5697 = vld [vmem:[%s5696] sm:$0xff]
    %v5698 = vld [vmem:[%s5696 + $0x8] sm:$0xff]
    %v5699 = vld [vmem:[%s5696 + $0x10] sm:$0xff]
    %v5700 = vld [vmem:[%s5696 + $0x18] sm:$0xff]
    %v5701 = vld [vmem:[%s5696 + $0x20] sm:$0x1]
    %v5703 = vsel %vm305, %v5701, 0
    %5705 = vmatprep.subr.mxu0 0.0
    %5706 = vmatpush1.msra.mxu0 %v5697
    %5707 = vmatprep.subr.mxu0 0.0
    %5708 = vmatpush1.msra.mxu0 %v5698
    %5709 = vmatprep.subr.mxu0 0.0
    %5710 = vmatpush1.msra.mxu0 %v5699
    %5711 = vmatprep.subr.mxu0 0.0
    %5712 = vmatpush1.msra.mxu0 %v5700
    %5713 = vmatprep.subr.mxu0 0.0
    %5714 = vmatpush1.msra.mxu0 %v5703
    %5715 = vmatprep.subr.mxu0 0.0
    %5716 = vmatpush1.msra.mxu0 0.0
    %5717 = vmatprep.subr.mxu0 0.0
    %5718 = vmatpush1.msra.mxu0 0.0
    %5719 = vmatprep.subr.mxu0 0.0
    %5720 = vmatpush1.msra.mxu0 0.0
    %5721 = vmatprep.subr.mxu0 0.0
    %5722 = vmatpush1.msra.mxu0 0.0
    %5723 = vmatprep.subr.mxu0 0.0
    %5724 = vmatpush1.msra.mxu0 0.0
    %5725 = vmatprep.subr.mxu0 0.0
    %5726 = vmatpush1.msra.mxu0 0.0
    %5727 = vmatprep.subr.mxu0 0.0
    %5728 = vmatpush1.msra.mxu0 0.0
    %5729 = vmatprep.subr.mxu0 0.0
    %5730 = vmatpush1.msra.mxu0 0.0
    %5731 = vmatprep.subr.mxu0 0.0
    %5732 = vmatpush1.msra.mxu0 0.0
    %5733 = vmatprep.subr.mxu0 0.0
    %5734 = vmatpush1.msra.mxu0 0.0
    %5735 = vmatprep.subr.mxu0 0.0
    %5736 = vmatpush1.msra.mxu0 0.0
    %5737 = vmatprep.subr.mxu0 0.0
    %5738 = vmatpush1.msra.mxu0 0.0
    %5739 = vmatprep.subr.mxu0 0.0
    %5740 = vmatpush1.msra.mxu0 0.0
    %5741 = vmatprep.subr.mxu0 0.0
    %5742 = vmatpush1.msra.mxu0 0.0
    %5743 = vmatprep.subr.mxu0 0.0
    %5744 = vmatpush1.msra.mxu0 0.0
    %5745 = vmatprep.subr.mxu0 0.0
    %5746 = vmatpush1.msra.mxu0 0.0
    %5747 = vmatprep.subr.mxu0 0.0
    %5748 = vmatpush1.msra.mxu0 0.0
    %5749 = vmatprep.subr.mxu0 0.0
    %5750 = vmatpush1.msra.mxu0 0.0
    %5751 = vmatprep.subr.mxu0 0.0
    %5752 = vmatpush1.msra.mxu0 0.0
    %5753 = vmatprep.subr.mxu0 0.0
    %5754 = vmatpush1.msra.mxu0 0.0
    %5755 = vmatprep.subr.mxu0 0.0
    %5756 = vmatpush1.msra.mxu0 0.0
    %5757 = vmatprep.subr.mxu0 0.0
    %5758 = vmatpush1.msra.mxu0 0.0
    %5759 = vmatprep.subr.mxu0 0.0
    %5760 = vmatpush1.msra.mxu0 0.0
    %5761 = vmatprep.subr.mxu0 0.0
    %5762 = vmatpush1.msra.mxu0 0.0
    %5763 = vmatprep.subr.mxu0 0.0
    %5764 = vmatpush1.msra.mxu0 0.0
    %5765 = vmatprep.subr.mxu0 0.0
    %5766 = vmatpush1.msra.mxu0 0.0
    %5767 = vmatprep.subr.mxu0 0.0
    %5768 = vmatpush1.msra.mxu0 0.0
    %5769 = vmatprep.mubr.f32.mxu0 0.0
    %5770 = vmatmul.mubr.f32.gmra.mrb[0].mxu0 %v3523
    %v5771 = vpop.f32.mrb[0].mxu0
    %v5772 = vadd.f32 0.0, %v5771
    %v5773 = vpop.f32.mrb[0].mxu0
    %5774 = vmatprep.mubr.f32.mxu0 0.0
    %5775 = vmatmul.mubr.f32.gmra.mrb[0].mxu0 %v3526
    %v5776 = vpop.f32.mrb[0].mxu0
    %v5777 = vadd.f32 0.0, %v5776
    %v5778 = vpop.f32.mrb[0].mxu0
    %5779 = vmatprep.mubr.f32.mxu0 0.0
    %5780 = vmatmul.mubr.f32.gmra.mrb[0].mxu0 %v3529
    %v5781 = vpop.f32.mrb[0].mxu0
    %v5782 = vadd.f32 0.0, %v5781
    %v5783 = vpop.f32.mrb[0].mxu0
    %5784 = vmatprep.mubr.f32.mxu0 0.0
    %5785 = vmatmul.mubr.f32.gmra.mrb[0].mxu0 %v3532
    %v5786 = vpop.f32.mrb[0].mxu0
    %v5787 = vadd.f32 0.0, %v5786
    %v5788 = vpop.f32.mrb[0].mxu0
    %5789 = vmatprep.mubr.f32.mxu0 0.0
    %5790 = vmatmul.mubr.f32.gmra.mrb[0].mxu0 %v3535
    %v5791 = vpop.f32.mrb[0].mxu0
    %v5792 = vadd.f32 0.0, %v5791
    %v5793 = vpop.f32.mrb[0].mxu0
    %5794 = vdwg.mxu0
    %s5795 = scalar_lea.vmem %s9, 280
    %v5796 = vld [vmem:[%s5795] sm:$0xff]
    %v5797 = vld [vmem:[%s5795 + $0x8] sm:$0xff]
    %v5798 = vld [vmem:[%s5795 + $0x10] sm:$0xff]
    %v5799 = vld [vmem:[%s5795 + $0x18] sm:$0xff]
    %v5800 = vld [vmem:[%s5795 + $0x20] sm:$0x1]
    %v5802 = vsel %vm305, %v5800, 0
    %5804 = vmatprep.subr.mxu0 0.0
    %5805 = vmatpush1.msra.mxu0 %v5796
    %5806 = vmatprep.subr.mxu0 0.0
    %5807 = vmatpush1.msra.mxu0 %v5797
    %5808 = vmatprep.subr.mxu0 0.0
    %5809 = vmatpush1.msra.mxu0 %v5798
    %5810 = vmatprep.subr.mxu0 0.0
    %5811 = vmatpush1.msra.mxu0 %v5799
    %5812 = vmatprep.subr.mxu0 0.0
    %5813 = vmatpush1.msra.mxu0 %v5802
    %5814 = vmatprep.subr.mxu0 0.0
    %5815 = vmatpush1.msra.mxu0 0.0
    %5816 = vmatprep.subr.mxu0 0.0
    %5817 = vmatpush1.msra.mxu0 0.0
    %5818 = vmatprep.subr.mxu0 0.0
    %5819 = vmatpush1.msra.mxu0 0.0
    %5820 = vmatprep.subr.mxu0 0.0
    %5821 = vmatpush1.msra.mxu0 0.0
    %5822 = vmatprep.subr.mxu0 0.0
    %5823 = vmatpush1.msra.mxu0 0.0
    %5824 = vmatprep.subr.mxu0 0.0
    %5825 = vmatpush1.msra.mxu0 0.0
    %5826 = vmatprep.subr.mxu0 0.0
    %5827 = vmatpush1.msra.mxu0 0.0
    %5828 = vmatprep.subr.mxu0 0.0
    %5829 = vmatpush1.msra.mxu0 0.0
    %5830 = vmatprep.subr.mxu0 0.0
    %5831 = vmatpush1.msra.mxu0 0.0
    %5832 = vmatprep.subr.mxu0 0.0
    %5833 = vmatpush1.msra.mxu0 0.0
    %5834 = vmatprep.subr.mxu0 0.0
    %5835 = vmatpush1.msra.mxu0 0.0
    %5836 = vmatprep.subr.mxu0 0.0
    %5837 = vmatpush1.msra.mxu0 0.0
    %5838 = vmatprep.subr.mxu0 0.0
    %5839 = vmatpush1.msra.mxu0 0.0
    %5840 = vmatprep.subr.mxu0 0.0
    %5841 = vmatpush1.msra.mxu0 0.0
    %5842 = vmatprep.subr.mxu0 0.0
    %5843 = vmatpush1.msra.mxu0 0.0
    %5844 = vmatprep.subr.mxu0 0.0
    %5845 = vmatpush1.msra.mxu0 0.0
    %5846 = vmatprep.subr.mxu0 0.0
    %5847 = vmatpush1.msra.mxu0 0.0
    %5848 = vmatprep.subr.mxu0 0.0
    %5849 = vmatpush1.msra.mxu0 0.0
    %5850 = vmatprep.subr.mxu0 0.0
    %5851 = vmatpush1.msra.mxu0 0.0
    %5852 = vmatprep.subr.mxu0 0.0
    %5853 = vmatpush1.msra.mxu0 0.0
    %5854 = vmatprep.subr.mxu0 0.0
    %5855 = vmatpush1.msra.mxu0 0.0
    %5856 = vmatprep.subr.mxu0 0.0
    %5857 = vmatpush1.msra.mxu0 0.0
    %5858 = vmatprep.subr.mxu0 0.0
    %5859 = vmatpush1.msra.mxu0 0.0
    %5860 = vmatprep.subr.mxu0 0.0
    %5861 = vmatpush1.msra.mxu0 0.0
    %5862 = vmatprep.subr.mxu0 0.0
    %5863 = vmatpush1.msra.mxu0 0.0
    %5864 = vmatprep.subr.mxu0 0.0
    %5865 = vmatpush1.msra.mxu0 0.0
    %5866 = vmatprep.subr.mxu0 0.0
    %5867 = vmatpush1.msra.mxu0 0.0
    %5868 = vmatprep.mubr.f32.mxu0 0.0
    %5869 = vmatmul.mubr.f32.gmra.mrb[0].mxu0 %v3523
    %v5870 = vpop.f32.mrb[0].mxu0
    %v5871 = vadd.f32 0.0, %v5870
    %v5872 = vpop.f32.mrb[0].mxu0
    %5873 = vmatprep.mubr.f32.mxu0 0.0
    %5874 = vmatmul.mubr.f32.gmra.mrb[0].mxu0 %v3526
    %v5875 = vpop.f32.mrb[0].mxu0
    %v5876 = vadd.f32 0.0, %v5875
    %v5877 = vpop.f32.mrb[0].mxu0
    %5878 = vmatprep.mubr.f32.mxu0 0.0
    %5879 = vmatmul.mubr.f32.gmra.mrb[0].mxu0 %v3529
    %v5880 = vpop.f32.mrb[0].mxu0
    %v5881 = vadd.f32 0.0, %v5880
    %v5882 = vpop.f32.mrb[0].mxu0
    %5883 = vmatprep.mubr.f32.mxu0 0.0
    %5884 = vmatmul.mubr.f32.gmra.mrb[0].mxu0 %v3532
    %v5885 = vpop.f32.mrb[0].mxu0
    %v5886 = vadd.f32 0.0, %v5885
    %v5887 = vpop.f32.mrb[0].mxu0
    %5888 = vmatprep.mubr.f32.mxu0 0.0
    %5889 = vmatmul.mubr.f32.gmra.mrb[0].mxu0 %v3535
    %v5890 = vpop.f32.mrb[0].mxu0
    %v5891 = vadd.f32 0.0, %v5890
    %v5892 = vpop.f32.mrb[0].mxu0
    %5893 = vdwg.mxu0
    %v5895 = vsel %vm595, %v5673, 0
    %v5898 = vsel %vm595, %v5678, 0
    %v5901 = vsel %vm595, %v5683, 0
    %v5904 = vsel %vm595, %v5688, 0
    %v5907 = vsel %vm595, %v5693, 0
    %v5910 = vsel %vm595, %v5772, 0
    %v5913 = vsel %vm595, %v5777, 0
    %v5916 = vsel %vm595, %v5782, 0
    %v5919 = vsel %vm595, %v5787, 0
    %v5922 = vsel %vm595, %v5792, 0
    %5924 = vmatprep.subr.mxu0 0.0
    %5925 = vmatpush1.xpose.msra.mxu0 %v5910
    %5926 = vmatprep.subr.mxu0 0.0
    %5927 = vmatpush1.xpose.msra.mxu0 %v5913
    %5928 = vmatprep.subr.mxu0 0.0
    %5929 = vmatpush1.xpose.msra.mxu0 %v5916
    %5930 = vmatprep.subr.mxu0 0.0
    %5931 = vmatpush1.xpose.msra.mxu0 %v5919
    %5932 = vmatprep.subr.mxu0 0.0
    %5933 = vmatpush1.xpose.msra.mxu0 %v5922
    %5934 = vmatprep.subr.mxu0 0.0
    %5935 = vmatpush1.xpose.msra.mxu0 0.0
    %5936 = vmatprep.subr.mxu0 0.0
    %5937 = vmatpush1.xpose.msra.mxu0 0.0
    %5938 = vmatprep.subr.mxu0 0.0
    %5939 = vmatpush1.xpose.msra.mxu0 0.0
    %5940 = vmatprep.subr.mxu0 0.0
    %5941 = vmatpush1.xpose.msra.mxu0 0.0
    %5942 = vmatprep.subr.mxu0 0.0
    %5943 = vmatpush1.xpose.msra.mxu0 0.0
    %5944 = vmatprep.subr.mxu0 0.0
    %5945 = vmatpush1.xpose.msra.mxu0 0.0
    %5946 = vmatprep.subr.mxu0 0.0
    %5947 = vmatpush1.xpose.msra.mxu0 0.0
    %5948 = vmatprep.subr.mxu0 0.0
    %5949 = vmatpush1.xpose.msra.mxu0 0.0
    %5950 = vmatprep.subr.mxu0 0.0
    %5951 = vmatpush1.xpose.msra.mxu0 0.0
    %5952 = vmatprep.subr.mxu0 0.0
    %5953 = vmatpush1.xpose.msra.mxu0 0.0
    %5954 = vmatprep.subr.mxu0 0.0
    %5955 = vmatpush1.xpose.msra.mxu0 0.0
    %5956 = vmatprep.subr.mxu0 0.0
    %5957 = vmatpush1.xpose.msra.mxu0 0.0
    %5958 = vmatprep.subr.mxu0 0.0
    %5959 = vmatpush1.xpose.msra.mxu0 0.0
    %5960 = vmatprep.subr.mxu0 0.0
    %5961 = vmatpush1.xpose.msra.mxu0 0.0
    %5962 = vmatprep.subr.mxu0 0.0
    %5963 = vmatpush1.xpose.msra.mxu0 0.0
    %5964 = vmatprep.subr.mxu0 0.0
    %5965 = vmatpush1.xpose.msra.mxu0 0.0
    %5966 = vmatprep.subr.mxu0 0.0
    %5967 = vmatpush1.xpose.msra.mxu0 0.0
    %5968 = vmatprep.subr.mxu0 0.0
    %5969 = vmatpush1.xpose.msra.mxu0 0.0
    %5970 = vmatprep.subr.mxu0 0.0
    %5971 = vmatpush1.xpose.msra.mxu0 0.0
    %5972 = vmatprep.subr.mxu0 0.0
    %5973 = vmatpush1.xpose.msra.mxu0 0.0
    %5974 = vmatprep.subr.mxu0 0.0
    %5975 = vmatpush1.xpose.msra.mxu0 0.0
    %5976 = vmatprep.subr.mxu0 0.0
    %5977 = vmatpush1.xpose.msra.mxu0 0.0
    %5978 = vmatprep.subr.mxu0 0.0
    %5979 = vmatpush1.xpose.msra.mxu0 0.0
    %5980 = vmatprep.subr.mxu0 0.0
    %5981 = vmatpush1.xpose.msra.mxu0 0.0
    %5982 = vmatprep.subr.mxu0 0.0
    %5983 = vmatpush1.xpose.msra.mxu0 0.0
    %5984 = vmatprep.subr.mxu0 0.0
    %5985 = vmatpush1.xpose.msra.mxu0 0.0
    %5986 = vmatprep.subr.mxu0 0.0
    %5987 = vmatpush1.xpose.msra.mxu0 0.0
    %5988 = vmatprep.mubr.f32.mxu0 0.0
    %5989 = vmatmul.mubr.f32.gmra.mrb[0].mxu0 %v5895
    %v5990 = vpop.f32.mrb[0].mxu0
    %v5991 = vadd.f32 %v181, %v5990
    %v5992 = vpop.f32.mrb[0].mxu0
    %5993 = vmatprep.mubr.f32.mxu0 0.0
    %5994 = vmatmul.mubr.f32.gmra.mrb[0].mxu0 %v5898
    %v5995 = vpop.f32.mrb[0].mxu0
    %v5996 = vadd.f32 %v182, %v5995
    %v5997 = vpop.f32.mrb[0].mxu0
    %5998 = vmatprep.mubr.f32.mxu0 0.0
    %5999 = vmatmul.mubr.f32.gmra.mrb[0].mxu0 %v5901
    %v6000 = vpop.f32.mrb[0].mxu0
    %v6001 = vadd.f32 %v183, %v6000
    %v6002 = vpop.f32.mrb[0].mxu0
    %6003 = vmatprep.mubr.f32.mxu0 0.0
    %6004 = vmatmul.mubr.f32.gmra.mrb[0].mxu0 %v5904
    %v6005 = vpop.f32.mrb[0].mxu0
    %v6006 = vadd.f32 %v184, %v6005
    %v6007 = vpop.f32.mrb[0].mxu0
    %6008 = vmatprep.mubr.f32.mxu0 0.0
    %6009 = vmatmul.mubr.f32.gmra.mrb[0].mxu0 %v5907
    %v6010 = vpop.f32.mrb[0].mxu0
    %v6011 = vadd.f32 %v185, %v6010
    %v6012 = vpop.f32.mrb[0].mxu0
    %6013 = vdwg.mxu0
    %v6014 = vsel %vm716, %v5991, -inf
    %6015 = vmax.xlane.f32.xlu0 %v6014
    %v6016 = vpop.xlane.xlu0 %6015
    %v6017 = vsel %vm716, %v5996, -inf
    %6018 = vmax.xlane.f32.xlu0 %v6017
    %v6019 = vpop.xlane.xlu0 %6018
    %v6020 = vsel %vm716, %v6001, -inf
    %6021 = vmax.xlane.f32.xlu0 %v6020
    %v6022 = vpop.xlane.xlu0 %6021
    %v6023 = vsel %vm716, %v6006, -inf
    %6024 = vmax.xlane.f32.xlu0 %v6023
    %v6025 = vpop.xlane.xlu0 %6024
    %v6026 = vsel %vm729, %v6011, -inf
    %6027 = vmax.xlane.f32.xlu0 %v6026
    %v6028 = vpop.xlane.xlu0 %6027
    %v6029 = vsub.f32 %v5991, %v6016
    %v6030 = vsub.f32 %v5996, %v6019
    %v6031 = vsub.f32 %v6001, %v6022
    %v6032 = vsub.f32 %v6006, %v6025
    %v6033 = vsub.f32 %v6011, %v6028
    %v6034 = vmul.f32 %v6029, 1.442695
    %v6035 = vpow.pop %v6034
    %v6036 = vmul.f32 %v6030, 1.442695
    %v6037 = vpow.pop %v6036
    %v6038 = vmul.f32 %v6031, 1.442695
    %v6039 = vpow.pop %v6038
    %v6040 = vmul.f32 %v6032, 1.442695
    %v6041 = vpow.pop %v6040
    %v6042 = vmul.f32 %v6033, 1.442695
    %v6043 = vpow.pop %v6042
    %v6044 = vsel %vm716, %v6035, 0.0
    %6045 = vadd.xlane.f32.xlu0 %v6044
    %v6046 = vpop.xlane.xlu0 %6045
    %v6047 = vsel %vm716, %v6037, 0.0
    %6048 = vadd.xlane.f32.xlu0 %v6047
    %v6049 = vpop.xlane.xlu0 %6048
    %v6050 = vsel %vm716, %v6039, 0.0
    %6051 = vadd.xlane.f32.xlu0 %v6050
    %v6052 = vpop.xlane.xlu0 %6051
    %v6053 = vsel %vm716, %v6041, 0.0
    %6054 = vadd.xlane.f32.xlu0 %v6053
    %v6055 = vpop.xlane.xlu0 %6054
    %v6056 = vsel %vm729, %v6043, 0.0
    %6057 = vadd.xlane.f32.xlu0 %v6056
    %v6058 = vpop.xlane.xlu0 %6057
    %v6059 = vrcp.pop %v6046
    %v6060 = vrcp.pop %v6049
    %v6061 = vrcp.pop %v6052
    %v6062 = vrcp.pop %v6055
    %v6063 = vrcp.pop %v6058
    %v6064 = vmul.f32 %v6035, %v6059
    %v6065 = vmul.f32 %v6037, %v6060
    %v6066 = vmul.f32 %v6039, %v6061
    %v6067 = vmul.f32 %v6041, %v6062
    %v6068 = vmul.f32 %v6043, %v6063
    %v6070 = vsel %vm716, %v6064, 0
    %v6073 = vsel %vm716, %v6065, 0
    %v6076 = vsel %vm716, %v6066, 0
    %v6079 = vsel %vm716, %v6067, 0
    %v6082 = vsel %vm716, %v6068, 0
    %v6085 = vsel %vm788, %v5891, 0
    %6087 = vmatprep.subr.mxu0 0.0
    %6088 = vmatpush1.msra.mxu0 %v5871
    %6089 = vmatprep.subr.mxu0 0.0
    %6090 = vmatpush1.msra.mxu0 %v5876
    %6091 = vmatprep.subr.mxu0 0.0
    %6092 = vmatpush1.msra.mxu0 %v5881
    %6093 = vmatprep.subr.mxu0 0.0
    %6094 = vmatpush1.msra.mxu0 %v5886
    %6095 = vmatprep.subr.mxu0 0.0
    %6096 = vmatpush1.msra.mxu0 %v6085
    %6097 = vmatprep.subr.mxu0 0.0
    %6098 = vmatpush1.msra.mxu0 0.0
    %6099 = vmatprep.subr.mxu0 0.0
    %6100 = vmatpush1.msra.mxu0 0.0
    %6101 = vmatprep.subr.mxu0 0.0
    %6102 = vmatpush1.msra.mxu0 0.0
    %6103 = vmatprep.subr.mxu0 0.0
    %6104 = vmatpush1.msra.mxu0 0.0
    %6105 = vmatprep.subr.mxu0 0.0
    %6106 = vmatpush1.msra.mxu0 0.0
    %6107 = vmatprep.subr.mxu0 0.0
    %6108 = vmatpush1.msra.mxu0 0.0
    %6109 = vmatprep.subr.mxu0 0.0
    %6110 = vmatpush1.msra.mxu0 0.0
    %6111 = vmatprep.subr.mxu0 0.0
    %6112 = vmatpush1.msra.mxu0 0.0
    %6113 = vmatprep.subr.mxu0 0.0
    %6114 = vmatpush1.msra.mxu0 0.0
    %6115 = vmatprep.subr.mxu0 0.0
    %6116 = vmatpush1.msra.mxu0 0.0
    %6117 = vmatprep.subr.mxu0 0.0
    %6118 = vmatpush1.msra.mxu0 0.0
    %6119 = vmatprep.subr.mxu0 0.0
    %6120 = vmatpush1.msra.mxu0 0.0
    %6121 = vmatprep.subr.mxu0 0.0
    %6122 = vmatpush1.msra.mxu0 0.0
    %6123 = vmatprep.subr.mxu0 0.0
    %6124 = vmatpush1.msra.mxu0 0.0
    %6125 = vmatprep.subr.mxu0 0.0
    %6126 = vmatpush1.msra.mxu0 0.0
    %6127 = vmatprep.subr.mxu0 0.0
    %6128 = vmatpush1.msra.mxu0 0.0
    %6129 = vmatprep.subr.mxu0 0.0
    %6130 = vmatpush1.msra.mxu0 0.0
    %6131 = vmatprep.subr.mxu0 0.0
    %6132 = vmatpush1.msra.mxu0 0.0
    %6133 = vmatprep.subr.mxu0 0.0
    %6134 = vmatpush1.msra.mxu0 0.0
    %6135 = vmatprep.subr.mxu0 0.0
    %6136 = vmatpush1.msra.mxu0 0.0
    %6137 = vmatprep.subr.mxu0 0.0
    %6138 = vmatpush1.msra.mxu0 0.0
    %6139 = vmatprep.subr.mxu0 0.0
    %6140 = vmatpush1.msra.mxu0 0.0
    %6141 = vmatprep.subr.mxu0 0.0
    %6142 = vmatpush1.msra.mxu0 0.0
    %6143 = vmatprep.subr.mxu0 0.0
    %6144 = vmatpush1.msra.mxu0 0.0
    %6145 = vmatprep.subr.mxu0 0.0
    %6146 = vmatpush1.msra.mxu0 0.0
    %6147 = vmatprep.subr.mxu0 0.0
    %6148 = vmatpush1.msra.mxu0 0.0
    %6149 = vmatprep.subr.mxu0 0.0
    %6150 = vmatpush1.msra.mxu0 0.0
    %6151 = vmatprep.mubr.f32.mxu0 0.0
    %6152 = vmatmul.mubr.f32.gmra.mrb[0].mxu0 %v6070
    %v6153 = vpop.f32.mrb[0].mxu0
    %v6154 = vadd.f32 0.0, %v6153
    %v6155 = vpop.f32.mrb[0].mxu0
    %6156 = vmatprep.mubr.f32.mxu0 0.0
    %6157 = vmatmul.mubr.f32.gmra.mrb[0].mxu0 %v6073
    %v6158 = vpop.f32.mrb[0].mxu0
    %v6159 = vadd.f32 0.0, %v6158
    %v6160 = vpop.f32.mrb[0].mxu0
    %6161 = vmatprep.mubr.f32.mxu0 0.0
    %6162 = vmatmul.mubr.f32.gmra.mrb[0].mxu0 %v6076
    %v6163 = vpop.f32.mrb[0].mxu0
    %v6164 = vadd.f32 0.0, %v6163
    %v6165 = vpop.f32.mrb[0].mxu0
    %6166 = vmatprep.mubr.f32.mxu0 0.0
    %6167 = vmatmul.mubr.f32.gmra.mrb[0].mxu0 %v6079
    %v6168 = vpop.f32.mrb[0].mxu0
    %v6169 = vadd.f32 0.0, %v6168
    %v6170 = vpop.f32.mrb[0].mxu0
    %6171 = vmatprep.mubr.f32.mxu0 0.0
    %6172 = vmatmul.mubr.f32.gmra.mrb[0].mxu0 %v6082
    %v6173 = vpop.f32.mrb[0].mxu0
    %v6174 = vadd.f32 0.0, %v6173
    %v6175 = vpop.f32.mrb[0].mxu0
    %6176 = vdwg.mxu0
    %s6177 = scalar_lea.vmem %s10, 56
    %v6178 = vld [vmem:[%s6177] sm:$0xff]
    %v6180 = vsel %vm595, %v6154, 0
    %v6183 = vsel %vm595, %v6159, 0
    %v6186 = vsel %vm595, %v6164, 0
    %v6189 = vsel %vm595, %v6169, 0
    %v6192 = vsel %vm595, %v6174, 0
    %6194 = vmatprep.subr.mxu0 0.0
    %6195 = vmatpush1.msra.mxu0 %v6178
    %6196 = vmatprep.subr.mxu0 0.0
    %6197 = vmatpush1.msra.mxu0 0.0
    %6198 = vmatprep.subr.mxu0 0.0
    %6199 = vmatpush1.msra.mxu0 0.0
    %6200 = vmatprep.subr.mxu0 0.0
    %6201 = vmatpush1.msra.mxu0 0.0
    %6202 = vmatprep.subr.mxu0 0.0
    %6203 = vmatpush1.msra.mxu0 0.0
    %6204 = vmatprep.subr.mxu0 0.0
    %6205 = vmatpush1.msra.mxu0 0.0
    %6206 = vmatprep.subr.mxu0 0.0
    %6207 = vmatpush1.msra.mxu0 0.0
    %6208 = vmatprep.subr.mxu0 0.0
    %6209 = vmatpush1.msra.mxu0 0.0
    %6210 = vmatprep.subr.mxu0 0.0
    %6211 = vmatpush1.msra.mxu0 0.0
    %6212 = vmatprep.subr.mxu0 0.0
    %6213 = vmatpush1.msra.mxu0 0.0
    %6214 = vmatprep.subr.mxu0 0.0
    %6215 = vmatpush1.msra.mxu0 0.0
    %6216 = vmatprep.subr.mxu0 0.0
    %6217 = vmatpush1.msra.mxu0 0.0
    %6218 = vmatprep.subr.mxu0 0.0
    %6219 = vmatpush1.msra.mxu0 0.0
    %6220 = vmatprep.subr.mxu0 0.0
    %6221 = vmatpush1.msra.mxu0 0.0
    %6222 = vmatprep.subr.mxu0 0.0
    %6223 = vmatpush1.msra.mxu0 0.0
    %6224 = vmatprep.subr.mxu0 0.0
    %6225 = vmatpush1.msra.mxu0 0.0
    %6226 = vmatprep.subr.mxu0 0.0
    %6227 = vmatpush1.msra.mxu0 0.0
    %6228 = vmatprep.subr.mxu0 0.0
    %6229 = vmatpush1.msra.mxu0 0.0
    %6230 = vmatprep.subr.mxu0 0.0
    %6231 = vmatpush1.msra.mxu0 0.0
    %6232 = vmatprep.subr.mxu0 0.0
    %6233 = vmatpush1.msra.mxu0 0.0
    %6234 = vmatprep.subr.mxu0 0.0
    %6235 = vmatpush1.msra.mxu0 0.0
    %6236 = vmatprep.subr.mxu0 0.0
    %6237 = vmatpush1.msra.mxu0 0.0
    %6238 = vmatprep.subr.mxu0 0.0
    %6239 = vmatpush1.msra.mxu0 0.0
    %6240 = vmatprep.subr.mxu0 0.0
    %6241 = vmatpush1.msra.mxu0 0.0
    %6242 = vmatprep.subr.mxu0 0.0
    %6243 = vmatpush1.msra.mxu0 0.0
    %6244 = vmatprep.subr.mxu0 0.0
    %6245 = vmatpush1.msra.mxu0 0.0
    %6246 = vmatprep.subr.mxu0 0.0
    %6247 = vmatpush1.msra.mxu0 0.0
    %6248 = vmatprep.subr.mxu0 0.0
    %6249 = vmatpush1.msra.mxu0 0.0
    %6250 = vmatprep.subr.mxu0 0.0
    %6251 = vmatpush1.msra.mxu0 0.0
    %6252 = vmatprep.subr.mxu0 0.0
    %6253 = vmatpush1.msra.mxu0 0.0
    %6254 = vmatprep.subr.mxu0 0.0
    %6255 = vmatpush1.msra.mxu0 0.0
    %6256 = vmatprep.subr.mxu0 0.0
    %6257 = vmatpush1.msra.mxu0 0.0
    %6258 = vmatprep.mubr.f32.mxu0 0.0
    %6259 = vmatmul.mubr.f32.gmra.mrb[0].mxu0 %v6180
    %v6260 = vpop.f32.mrb[0].mxu0
    %v6261 = vadd.f32 0.0, %v6260
    %v6262 = vpop.f32.mrb[0].mxu0
    %6263 = vmatprep.mubr.f32.mxu0 0.0
    %6264 = vmatmul.mubr.f32.gmra.mrb[0].mxu0 %v6183
    %v6265 = vpop.f32.mrb[0].mxu0
    %v6266 = vadd.f32 0.0, %v6265
    %v6267 = vpop.f32.mrb[0].mxu0
    %6268 = vmatprep.mubr.f32.mxu0 0.0
    %6269 = vmatmul.mubr.f32.gmra.mrb[0].mxu0 %v6186
    %v6270 = vpop.f32.mrb[0].mxu0
    %v6271 = vadd.f32 0.0, %v6270
    %v6272 = vpop.f32.mrb[0].mxu0
    %6273 = vmatprep.mubr.f32.mxu0 0.0
    %6274 = vmatmul.mubr.f32.gmra.mrb[0].mxu0 %v6189
    %v6275 = vpop.f32.mrb[0].mxu0
    %v6276 = vadd.f32 0.0, %v6275
    %v6277 = vpop.f32.mrb[0].mxu0
    %6278 = vmatprep.mubr.f32.mxu0 0.0
    %6279 = vmatmul.mubr.f32.gmra.mrb[0].mxu0 %v6192
    %v6280 = vpop.f32.mrb[0].mxu0
    %v6281 = vadd.f32 0.0, %v6280
    %v6282 = vpop.f32.mrb[0].mxu0
    %6283 = vdwg.mxu0
    %v6284 = vadd.f32 %v5592, %v6261
    %v6285 = vadd.f32 %v5593, %v6266
    %v6286 = vadd.f32 %v5594, %v6271
    %v6287 = vadd.f32 %v5595, %v6276
    %v6288 = vadd.f32 %v5596, %v6281
    %v6289 = vadd.f32 %v3416, %v6284
    %v6290 = vadd.f32 %v3417, %v6285
    %v6291 = vadd.f32 %v3418, %v6286
    %v6292 = vadd.f32 %v3419, %v6287
    %v6293 = vadd.f32 %v3420, %v6288
    %v6294 = vlaneseq
    %v6295 = vshrl.u32 %v6294, 7
    %v6296 = vsub.s32 0, %v6295
    %v6297 = vrot.slane %v3425, %v6296
    %v6298 = vadd.f32 %v6289, %v6297
    %v6299 = vadd.f32 %v6290, %v6297
    %v6300 = vadd.f32 %v6291, %v6297
    %v6301 = vadd.f32 %v6292, %v6297
    %v6302 = vadd.f32 %v6293, %v6297
    %v6303 = vsel %vm193, %v6298, 0.0
    %6304 = vadd.xlane.f32.xlu0 %v6303
    %v6305 = vpop.xlane.xlu0 %6304
    %v6306 = vsel %vm193, %v6299, 0.0
    %6307 = vadd.xlane.f32.xlu0 %v6306
    %v6308 = vpop.xlane.xlu0 %6307
    %v6309 = vsel %vm193, %v6300, 0.0
    %6310 = vadd.xlane.f32.xlu0 %v6309
    %v6311 = vpop.xlane.xlu0 %6310
    %v6312 = vsel %vm193, %v6301, 0.0
    %6313 = vadd.xlane.f32.xlu0 %v6312
    %v6314 = vpop.xlane.xlu0 %6313
    %v6315 = vsel %vm206, %v6302, 0.0
    %6316 = vadd.xlane.f32.xlu0 %v6315
    %v6317 = vpop.xlane.xlu0 %6316
    %v6318 = vmul.f32 %v6305, %v210
    %v6319 = vmul.f32 %v6308, %v210
    %v6320 = vmul.f32 %v6311, %v210
    %v6321 = vmul.f32 %v6314, %v210
    %v6322 = vmul.f32 %v6317, %v210
    %v6323 = vsub.f32 %v6298, %v6318
    %v6324 = vsub.f32 %v6299, %v6319
    %v6325 = vsub.f32 %v6300, %v6320
    %v6326 = vsub.f32 %v6301, %v6321
    %v6327 = vsub.f32 %v6302, %v6322
    %v6328 = vmul.f32 %v6323, %v6323
    %v6329 = vmul.f32 %v6324, %v6324
    %v6330 = vmul.f32 %v6325, %v6325
    %v6331 = vmul.f32 %v6326, %v6326
    %v6332 = vmul.f32 %v6327, %v6327
    %v6333 = vsel %vm193, %v6328, 0.0
    %6334 = vadd.xlane.f32.xlu0 %v6333
    %v6335 = vpop.xlane.xlu0 %6334
    %v6336 = vsel %vm193, %v6329, 0.0
    %6337 = vadd.xlane.f32.xlu0 %v6336
    %v6338 = vpop.xlane.xlu0 %6337
    %v6339 = vsel %vm193, %v6330, 0.0
    %6340 = vadd.xlane.f32.xlu0 %v6339
    %v6341 = vpop.xlane.xlu0 %6340
    %v6342 = vsel %vm193, %v6331, 0.0
    %6343 = vadd.xlane.f32.xlu0 %v6342
    %v6344 = vpop.xlane.xlu0 %6343
    %v6345 = vsel %vm206, %v6332, 0.0
    %6346 = vadd.xlane.f32.xlu0 %v6345
    %v6347 = vpop.xlane.xlu0 %6346
    %v6348 = vmul.f32 %v6335, %v210
    %v6349 = vmul.f32 %v6338, %v210
    %v6350 = vmul.f32 %v6341, %v210
    %v6351 = vmul.f32 %v6344, %v210
    %v6352 = vmul.f32 %v6347, %v210
    %v6353 = vadd.f32 %v6348, 1e-05
    %v6354 = vadd.f32 %v6349, 1e-05
    %v6355 = vadd.f32 %v6350, 1e-05
    %v6356 = vadd.f32 %v6351, 1e-05
    %v6357 = vadd.f32 %v6352, 1e-05
    %v6358 = vrsqrt.pop %v6353
    %v6359 = vrsqrt.pop %v6354
    %v6360 = vrsqrt.pop %v6355
    %v6361 = vrsqrt.pop %v6356
    %v6362 = vrsqrt.pop %v6357
    %v6363 = vmul.f32 %v6323, %v6358
    %v6364 = vmul.f32 %v6324, %v6359
    %v6365 = vmul.f32 %v6325, %v6360
    %v6366 = vmul.f32 %v6326, %v6361
    %v6367 = vmul.f32 %v6327, %v6362
    %v6368 = vlaneseq
    %v6369 = vshrl.u32 %v6368, 7
    %v6370 = vsub.s32 0, %v6369
    %v6371 = vrot.slane %v3423, %v6370
    %v6372 = vmul.f32 %v6363, %v6371
    %v6373 = vmul.f32 %v6364, %v6371
    %v6374 = vmul.f32 %v6365, %v6371
    %v6375 = vmul.f32 %v6366, %v6371
    %v6376 = vmul.f32 %v6367, %v6371
    %v6377 = vlaneseq
    %v6378 = vshrl.u32 %v6377, 7
    %v6379 = vsub.s32 0, %v6378
    %v6380 = vrot.slane %v3424, %v6379
    %v6381 = vadd.f32 %v6372, %v6380
    %v6382 = vadd.f32 %v6373, %v6380
    %v6383 = vadd.f32 %v6374, %v6380
    %v6384 = vadd.f32 %v6375, %v6380
    %v6385 = vadd.f32 %v6376, %v6380
    %s6386 = scalar_lea.vmem %s11, 32
    %v6387 = vld [vmem:[%s6386] sm:$0xff]
    %v6388 = vld [vmem:[%s6386 + $0x8] sm:$0xff]
    %v6389 = vld [vmem:[%s6386 + $0x10] sm:$0xff]
    %v6390 = vld [vmem:[%s6386 + $0x18] sm:$0xff]
    %v6391 = vlaneseq
    %v6392 = vshrl.u32 %v6391, 7
    %v6393 = vsub.s32 0, %v6392
    %v6394 = vrot.slane %v3426, %v6393
    %v6396 = vsel %vm193, %v6381, 0
    %v6399 = vsel %vm193, %v6382, 0
    %v6402 = vsel %vm193, %v6383, 0
    %v6405 = vsel %vm193, %v6384, 0
    %v6408 = vsel %vm193, %v6385, 0
    %6410 = vmatprep.subr.mxu0 0.0
    %6411 = vmatpush1.msra.mxu0 %v6387
    %6412 = vmatprep.subr.mxu0 0.0
    %6413 = vmatpush1.msra.mxu0 %v6388
    %6414 = vmatprep.subr.mxu0 0.0
    %6415 = vmatpush1.msra.mxu0 %v6389
    %6416 = vmatprep.subr.mxu0 0.0
    %6417 = vmatpush1.msra.mxu0 %v6390
    %6418 = vmatprep.subr.mxu0 0.0
    %6419 = vmatpush1.msra.mxu0 0.0
    %6420 = vmatprep.subr.mxu0 0.0
    %6421 = vmatpush1.msra.mxu0 0.0
    %6422 = vmatprep.subr.mxu0 0.0
    %6423 = vmatpush1.msra.mxu0 0.0
    %6424 = vmatprep.subr.mxu0 0.0
    %6425 = vmatpush1.msra.mxu0 0.0
    %6426 = vmatprep.subr.mxu0 0.0
    %6427 = vmatpush1.msra.mxu0 0.0
    %6428 = vmatprep.subr.mxu0 0.0
    %6429 = vmatpush1.msra.mxu0 0.0
    %6430 = vmatprep.subr.mxu0 0.0
    %6431 = vmatpush1.msra.mxu0 0.0
    %6432 = vmatprep.subr.mxu0 0.0
    %6433 = vmatpush1.msra.mxu0 0.0
    %6434 = vmatprep.subr.mxu0 0.0
    %6435 = vmatpush1.msra.mxu0 0.0
    %6436 = vmatprep.subr.mxu0 0.0
    %6437 = vmatpush1.msra.mxu0 0.0
    %6438 = vmatprep.subr.mxu0 0.0
    %6439 = vmatpush1.msra.mxu0 0.0
    %6440 = vmatprep.subr.mxu0 0.0
    %6441 = vmatpush1.msra.mxu0 0.0
    %6442 = vmatprep.subr.mxu0 0.0
    %6443 = vmatpush1.msra.mxu0 0.0
    %6444 = vmatprep.subr.mxu0 0.0
    %6445 = vmatpush1.msra.mxu0 0.0
    %6446 = vmatprep.subr.mxu0 0.0
    %6447 = vmatpush1.msra.mxu0 0.0
    %6448 = vmatprep.subr.mxu0 0.0
    %6449 = vmatpush1.msra.mxu0 0.0
    %6450 = vmatprep.subr.mxu0 0.0
    %6451 = vmatpush1.msra.mxu0 0.0
    %6452 = vmatprep.subr.mxu0 0.0
    %6453 = vmatpush1.msra.mxu0 0.0
    %6454 = vmatprep.subr.mxu0 0.0
    %6455 = vmatpush1.msra.mxu0 0.0
    %6456 = vmatprep.subr.mxu0 0.0
    %6457 = vmatpush1.msra.mxu0 0.0
    %6458 = vmatprep.subr.mxu0 0.0
    %6459 = vmatpush1.msra.mxu0 0.0
    %6460 = vmatprep.subr.mxu0 0.0
    %6461 = vmatpush1.msra.mxu0 0.0
    %6462 = vmatprep.subr.mxu0 0.0
    %6463 = vmatpush1.msra.mxu0 0.0
    %6464 = vmatprep.subr.mxu0 0.0
    %6465 = vmatpush1.msra.mxu0 0.0
    %6466 = vmatprep.subr.mxu0 0.0
    %6467 = vmatpush1.msra.mxu0 0.0
    %6468 = vmatprep.subr.mxu0 0.0
    %6469 = vmatpush1.msra.mxu0 0.0
    %6470 = vmatprep.subr.mxu0 0.0
    %6471 = vmatpush1.msra.mxu0 0.0
    %6472 = vmatprep.subr.mxu0 0.0
    %6473 = vmatpush1.msra.mxu0 0.0
    %6474 = vmatprep.mubr.f32.mxu0 0.0
    %6475 = vmatmul.mubr.f32.gmra.mrb[0].mxu0 %v6396
    %v6476 = vpop.f32.mrb[0].mxu0
    %v6477 = vadd.f32 %v6394, %v6476
    %v6478 = vpop.f32.mrb[0].mxu0
    %6479 = vmatprep.mubr.f32.mxu0 0.0
    %6480 = vmatmul.mubr.f32.gmra.mrb[0].mxu0 %v6399
    %v6481 = vpop.f32.mrb[0].mxu0
    %v6482 = vadd.f32 %v6394, %v6481
    %v6483 = vpop.f32.mrb[0].mxu0
    %6484 = vmatprep.mubr.f32.mxu0 0.0
    %6485 = vmatmul.mubr.f32.gmra.mrb[0].mxu0 %v6402
    %v6486 = vpop.f32.mrb[0].mxu0
    %v6487 = vadd.f32 %v6394, %v6486
    %v6488 = vpop.f32.mrb[0].mxu0
    %6489 = vmatprep.mubr.f32.mxu0 0.0
    %6490 = vmatmul.mubr.f32.gmra.mrb[0].mxu0 %v6405
    %v6491 = vpop.f32.mrb[0].mxu0
    %v6492 = vadd.f32 %v6394, %v6491
    %v6493 = vpop.f32.mrb[0].mxu0
    %6494 = vmatprep.mubr.f32.mxu0 0.0
    %6495 = vmatmul.mubr.f32.gmra.mrb[0].mxu0 %v6408
    %v6496 = vpop.f32.mrb[0].mxu0
    %v6497 = vadd.f32 %v6394, %v6496
    %v6498 = vpop.f32.mrb[0].mxu0
    %6499 = vdwg.mxu0
    %v6500 = vmul.f32 %v6477, 0.5
    %v6501 = vmul.f32 %v6482, 0.5
    %v6502 = vmul.f32 %v6487, 0.5
    %v6503 = vmul.f32 %v6492, 0.5
    %v6504 = vmul.f32 %v6497, 0.5
    %v6505 = vmul.f32 %v6477, 0.70710677
    %v6506 = vmul.f32 %v6482, 0.70710677
    %v6507 = vmul.f32 %v6487, 0.70710677
    %v6508 = vmul.f32 %v6492, 0.70710677
    %v6509 = vmul.f32 %v6497, 0.70710677
    %v6510 = verf.f32.pop %v6505
    %v6511 = verf.f32.pop %v6506
    %v6512 = verf.f32.pop %v6507
    %v6513 = verf.f32.pop %v6508
    %v6514 = verf.f32.pop %v6509
    %v6515 = vadd.f32 %v6510, 1.0
    %v6516 = vadd.f32 %v6511, 1.0
    %v6517 = vadd.f32 %v6512, 1.0
    %v6518 = vadd.f32 %v6513, 1.0
    %v6519 = vadd.f32 %v6514, 1.0
    %v6520 = vmul.f32 %v6500, %v6515
    %v6521 = vmul.f32 %v6501, %v6516
    %v6522 = vmul.f32 %v6502, %v6517
    %v6523 = vmul.f32 %v6503, %v6518
    %v6524 = vmul.f32 %v6504, %v6519
    %s6525 = scalar_lea.vmem %s12, 64
    %v6526 = vld [vmem:[%s6525] sm:$0xff]
    %v6527 = vld [vmem:[%s6525 + $0x8] sm:$0xff]
    %v6528 = vld [vmem:[%s6525 + $0x10] sm:$0xff]
    %v6529 = vld [vmem:[%s6525 + $0x18] sm:$0xff]
    %v6530 = vld [vmem:[%s6525 + $0x20] sm:$0xff]
    %v6531 = vld [vmem:[%s6525 + $0x28] sm:$0xff]
    %v6532 = vld [vmem:[%s6525 + $0x30] sm:$0xff]
    %v6533 = vld [vmem:[%s6525 + $0x38] sm:$0xff]
    %v6535 = vsel %vm75, %v6520, 0
    %v6538 = vsel %vm75, %v6521, 0
    %v6541 = vsel %vm75, %v6522, 0
    %v6544 = vsel %vm75, %v6523, 0
    %v6547 = vsel %vm75, %v6524, 0
    %6549 = vmatprep.subr.mxu0 0.0
    %6550 = vmatpush1.msra.mxu0 %v6526
    %6551 = vmatprep.subr.mxu0 0.0
    %6552 = vmatpush1.msra.mxu0 %v6527
    %6553 = vmatprep.subr.mxu0 0.0
    %6554 = vmatpush1.msra.mxu0 %v6528
    %6555 = vmatprep.subr.mxu0 0.0
    %6556 = vmatpush1.msra.mxu0 %v6529
    %6557 = vmatprep.subr.mxu0 0.0
    %6558 = vmatpush1.msra.mxu0 %v6530
    %6559 = vmatprep.subr.mxu0 0.0
    %6560 = vmatpush1.msra.mxu0 %v6531
    %6561 = vmatprep.subr.mxu0 0.0
    %6562 = vmatpush1.msra.mxu0 %v6532
    %6563 = vmatprep.subr.mxu0 0.0
    %6564 = vmatpush1.msra.mxu0 %v6533
    %6565 = vmatprep.subr.mxu0 0.0
    %6566 = vmatpush1.msra.mxu0 0.0
    %6567 = vmatprep.subr.mxu0 0.0
    %6568 = vmatpush1.msra.mxu0 0.0
    %6569 = vmatprep.subr.mxu0 0.0
    %6570 = vmatpush1.msra.mxu0 0.0
    %6571 = vmatprep.subr.mxu0 0.0
    %6572 = vmatpush1.msra.mxu0 0.0
    %6573 = vmatprep.subr.mxu0 0.0
    %6574 = vmatpush1.msra.mxu0 0.0
    %6575 = vmatprep.subr.mxu0 0.0
    %6576 = vmatpush1.msra.mxu0 0.0
    %6577 = vmatprep.subr.mxu0 0.0
    %6578 = vmatpush1.msra.mxu0 0.0
    %6579 = vmatprep.subr.mxu0 0.0
    %6580 = vmatpush1.msra.mxu0 0.0
    %6581 = vmatprep.subr.mxu0 0.0
    %6582 = vmatpush1.msra.mxu0 0.0
    %6583 = vmatprep.subr.mxu0 0.0
    %6584 = vmatpush1.msra.mxu0 0.0
    %6585 = vmatprep.subr.mxu0 0.0
    %6586 = vmatpush1.msra.mxu0 0.0
    %6587 = vmatprep.subr.mxu0 0.0
    %6588 = vmatpush1.msra.mxu0 0.0
    %6589 = vmatprep.subr.mxu0 0.0
    %6590 = vmatpush1.msra.mxu0 0.0
    %6591 = vmatprep.subr.mxu0 0.0
    %6592 = vmatpush1.msra.mxu0 0.0
    %6593 = vmatprep.subr.mxu0 0.0
    %6594 = vmatpush1.msra.mxu0 0.0
    %6595 = vmatprep.subr.mxu0 0.0
    %6596 = vmatpush1.msra.mxu0 0.0
    %6597 = vmatprep.subr.mxu0 0.0
    %6598 = vmatpush1.msra.mxu0 0.0
    %6599 = vmatprep.subr.mxu0 0.0
    %6600 = vmatpush1.msra.mxu0 0.0
    %6601 = vmatprep.subr.mxu0 0.0
    %6602 = vmatpush1.msra.mxu0 0.0
    %6603 = vmatprep.subr.mxu0 0.0
    %6604 = vmatpush1.msra.mxu0 0.0
    %6605 = vmatprep.subr.mxu0 0.0
    %6606 = vmatpush1.msra.mxu0 0.0
    %6607 = vmatprep.subr.mxu0 0.0
    %6608 = vmatpush1.msra.mxu0 0.0
    %6609 = vmatprep.subr.mxu0 0.0
    %6610 = vmatpush1.msra.mxu0 0.0
    %6611 = vmatprep.subr.mxu0 0.0
    %6612 = vmatpush1.msra.mxu0 0.0
    %6613 = vmatprep.mubr.f32.mxu0 0.0
    %6614 = vmatmul.mubr.f32.gmra.mrb[0].mxu0 %v6535
    %v6615 = vpop.f32.mrb[0].mxu0
    %v6616 = vadd.f32 0.0, %v6615
    %v6617 = vpop.f32.mrb[0].mxu0
    %6618 = vmatprep.mubr.f32.mxu0 0.0
    %6619 = vmatmul.mubr.f32.gmra.mrb[0].mxu0 %v6538
    %v6620 = vpop.f32.mrb[0].mxu0
    %v6621 = vadd.f32 0.0, %v6620
    %v6622 = vpop.f32.mrb[0].mxu0
    %6623 = vmatprep.mubr.f32.mxu0 0.0
    %6624 = vmatmul.mubr.f32.gmra.mrb[0].mxu0 %v6541
    %v6625 = vpop.f32.mrb[0].mxu0
    %v6626 = vadd.f32 0.0, %v6625
    %v6627 = vpop.f32.mrb[0].mxu0
    %6628 = vmatprep.mubr.f32.mxu0 0.0
    %6629 = vmatmul.mubr.f32.gmra.mrb[0].mxu0 %v6544
    %v6630 = vpop.f32.mrb[0].mxu0
    %v6631 = vadd.f32 0.0, %v6630
    %v6632 = vpop.f32.mrb[0].mxu0
    %6633 = vmatprep.mubr.f32.mxu0 0.0
    %6634 = vmatmul.mubr.f32.gmra.mrb[0].mxu0 %v6547
    %v6635 = vpop.f32.mrb[0].mxu0
    %v6636 = vadd.f32 0.0, %v6635
    %v6637 = vpop.f32.mrb[0].mxu0
    %6638 = vdwg.mxu0
    %v6639 = vadd.f32 %v6298, %v6616
    %v6640 = vadd.f32 %v6299, %v6621
    %v6641 = vadd.f32 %v6300, %v6626
    %v6642 = vadd.f32 %v6301, %v6631
    %v6643 = vadd.f32 %v6302, %v6636
    %v6644 = vlaneseq
    %v6645 = vshrl.u32 %v6644, 7
    %v6646 = vsub.s32 0, %v6645
    %v6647 = vrot.slane %v3427, %v6646
    %v6648 = vadd.f32 %v6639, %v6647
    %v6649 = vadd.f32 %v6640, %v6647
    %v6650 = vadd.f32 %v6641, %v6647
    %v6651 = vadd.f32 %v6642, %v6647
    %v6652 = vadd.f32 %v6643, %v6647
    %v6653 = vld [vmem:[%s16 + $0xe] sm:$0x1]
    %v6654 = vld [vmem:[%s16 + $0xf] sm:$0x1]
    %v6655 = vld [vmem:[%s16 + $0x10] sm:$0x1]
    %v6656 = vld [vmem:[%s16 + $0x11] sm:$0x1]
    %v6657 = vld [vmem:[%s5] sm:$0xff]
    %v6658 = vld [vmem:[%s5 + $0x8] sm:$0xff]
    %v6660 = vsel %vm716, %v6657, 0
    %v6663 = vsel %vm716, %v6658, 0
    %v6666 = vsel %vm788, %v6652, 0
    %6668 = vmatprep.subr.mxu0 0.0
    %6669 = vmatpush1.msra.mxu0 %v6648
    %6670 = vmatprep.subr.mxu0 0.0
    %6671 = vmatpush1.msra.mxu0 %v6649
    %6672 = vmatprep.subr.mxu0 0.0
    %6673 = vmatpush1.msra.mxu0 %v6650
    %6674 = vmatprep.subr.mxu0 0.0
    %6675 = vmatpush1.msra.mxu0 %v6651
    %6676 = vmatprep.subr.mxu0 0.0
    %6677 = vmatpush1.msra.mxu0 %v6666
    %6678 = vmatprep.subr.mxu0 0.0
    %6679 = vmatpush1.msra.mxu0 0.0
    %6680 = vmatprep.subr.mxu0 0.0
    %6681 = vmatpush1.msra.mxu0 0.0
    %6682 = vmatprep.subr.mxu0 0.0
    %6683 = vmatpush1.msra.mxu0 0.0
    %6684 = vmatprep.subr.mxu0 0.0
    %6685 = vmatpush1.msra.mxu0 0.0
    %6686 = vmatprep.subr.mxu0 0.0
    %6687 = vmatpush1.msra.mxu0 0.0
    %6688 = vmatprep.subr.mxu0 0.0
    %6689 = vmatpush1.msra.mxu0 0.0
    %6690 = vmatprep.subr.mxu0 0.0
    %6691 = vmatpush1.msra.mxu0 0.0
    %6692 = vmatprep.subr.mxu0 0.0
    %6693 = vmatpush1.msra.mxu0 0.0
    %6694 = vmatprep.subr.mxu0 0.0
    %6695 = vmatpush1.msra.mxu0 0.0
    %6696 = vmatprep.subr.mxu0 0.0
    %6697 = vmatpush1.msra.mxu0 0.0
    %6698 = vmatprep.subr.mxu0 0.0
    %6699 = vmatpush1.msra.mxu0 0.0
    %6700 = vmatprep.subr.mxu0 0.0
    %6701 = vmatpush1.msra.mxu0 0.0
    %6702 = vmatprep.subr.mxu0 0.0
    %6703 = vmatpush1.msra.mxu0 0.0
    %6704 = vmatprep.subr.mxu0 0.0
    %6705 = vmatpush1.msra.mxu0 0.0
    %6706 = vmatprep.subr.mxu0 0.0
    %6707 = vmatpush1.msra.mxu0 0.0
    %6708 = vmatprep.subr.mxu0 0.0
    %6709 = vmatpush1.msra.mxu0 0.0
    %6710 = vmatprep.subr.mxu0 0.0
    %6711 = vmatpush1.msra.mxu0 0.0
    %6712 = vmatprep.subr.mxu0 0.0
    %6713 = vmatpush1.msra.mxu0 0.0
    %6714 = vmatprep.subr.mxu0 0.0
    %6715 = vmatpush1.msra.mxu0 0.0
    %6716 = vmatprep.subr.mxu0 0.0
    %6717 = vmatpush1.msra.mxu0 0.0
    %6718 = vmatprep.subr.mxu0 0.0
    %6719 = vmatpush1.msra.mxu0 0.0
    %6720 = vmatprep.subr.mxu0 0.0
    %6721 = vmatpush1.msra.mxu0 0.0
    %6722 = vmatprep.subr.mxu0 0.0
    %6723 = vmatpush1.msra.mxu0 0.0
    %6724 = vmatprep.subr.mxu0 0.0
    %6725 = vmatpush1.msra.mxu0 0.0
    %6726 = vmatprep.subr.mxu0 0.0
    %6727 = vmatpush1.msra.mxu0 0.0
    %6728 = vmatprep.subr.mxu0 0.0
    %6729 = vmatpush1.msra.mxu0 0.0
    %6730 = vmatprep.subr.mxu0 0.0
    %6731 = vmatpush1.msra.mxu0 0.0
    %6732 = vmatprep.mubr.f32.mxu0 0.0
    %6733 = vmatmul.mubr.f32.gmra.mrb[0].mxu0 %v6660
    %v6734 = vpop.f32.mrb[0].mxu0
    %v6735 = vadd.f32 0.0, %v6734
    %v6736 = vpop.f32.mrb[0].mxu0
    %6737 = vmatprep.mubr.f32.mxu0 0.0
    %6738 = vmatmul.mubr.f32.gmra.mrb[0].mxu0 %v6663
    %v6739 = vpop.f32.mrb[0].mxu0
    %v6740 = vadd.f32 0.0, %v6739
    %v6741 = vpop.f32.mrb[0].mxu0
    %6742 = vdwg.mxu0
    %v6743 = vsel %vm193, %v6735, 0.0
    %6744 = vadd.xlane.f32.xlu0 %v6743
    %v6745 = vpop.xlane.xlu0 %6744
    %v6746 = vsel %vm193, %v6740, 0.0
    %6747 = vadd.xlane.f32.xlu0 %v6746
    %v6748 = vpop.xlane.xlu0 %6747
    %v6749 = vmul.f32 %v6745, %v210
    %v6750 = vmul.f32 %v6748, %v210
    %v6751 = vsub.f32 %v6735, %v6749
    %v6752 = vsub.f32 %v6740, %v6750
    %v6753 = vmul.f32 %v6751, %v6751
    %v6754 = vmul.f32 %v6752, %v6752
    %v6755 = vsel %vm193, %v6753, 0.0
    %6756 = vadd.xlane.f32.xlu0 %v6755
    %v6757 = vpop.xlane.xlu0 %6756
    %v6758 = vsel %vm193, %v6754, 0.0
    %6759 = vadd.xlane.f32.xlu0 %v6758
    %v6760 = vpop.xlane.xlu0 %6759
    %v6761 = vmul.f32 %v6757, %v210
    %v6762 = vmul.f32 %v6760, %v210
    %v6763 = vadd.f32 %v6761, 1e-05
    %v6764 = vadd.f32 %v6762, 1e-05
    %v6765 = vrsqrt.pop %v6763
    %v6766 = vrsqrt.pop %v6764
    %v6767 = vmul.f32 %v6751, %v6765
    %v6768 = vmul.f32 %v6752, %v6766
    %v6769 = vlaneseq
    %v6770 = vshrl.u32 %v6769, 7
    %v6771 = vsub.s32 0, %v6770
    %v6772 = vrot.slane %v6653, %v6771
    %v6773 = vmul.f32 %v6767, %v6772
    %v6774 = vmul.f32 %v6768, %v6772
    %v6775 = vlaneseq
    %v6776 = vshrl.u32 %v6775, 7
    %v6777 = vsub.s32 0, %v6776
    %v6778 = vrot.slane %v6654, %v6777
    %v6779 = vadd.f32 %v6773, %v6778
    %v6780 = vadd.f32 %v6774, %v6778
    %v6781 = vld [vmem:[%s1] sm:$0xff]
    %v6782 = vld [vmem:[%s1 + $0x8] sm:$0xff]
    %v6783 = vld [vmem:[%s13] sm:$0xff]
    %v6784 = vld [vmem:[%s13 + $0x8] sm:$0xff]
    %v6785 = vld [vmem:[%s13 + $0x10] sm:$0x1]
    %vm6786 = vcmask 138240
    %v6788 = vsel %vm6786, %v6781, 0
    %v6791 = vsel %vm6786, %v6782, 0
    %v6794 = vsel %vm305, %v6785, 0
    %6796 = vmatprep.subr.mxu0 0.0
    %6797 = vmatpush1.msra.mxu0 %v6783
    %6798 = vmatprep.subr.mxu0 0.0
    %6799 = vmatpush1.msra.mxu0 %v6784
    %6800 = vmatprep.subr.mxu0 0.0
    %6801 = vmatpush1.msra.mxu0 %v6794
    %6802 = vmatprep.subr.mxu0 0.0
    %6803 = vmatpush1.msra.mxu0 0.0
    %6804 = vmatprep.subr.mxu0 0.0
    %6805 = vmatpush1.msra.mxu0 0.0
    %6806 = vmatprep.subr.mxu0 0.0
    %6807 = vmatpush1.msra.mxu0 0.0
    %6808 = vmatprep.subr.mxu0 0.0
    %6809 = vmatpush1.msra.mxu0 0.0
    %6810 = vmatprep.subr.mxu0 0.0
    %6811 = vmatpush1.msra.mxu0 0.0
    %6812 = vmatprep.subr.mxu0 0.0
    %6813 = vmatpush1.msra.mxu0 0.0
    %6814 = vmatprep.subr.mxu0 0.0
    %6815 = vmatpush1.msra.mxu0 0.0
    %6816 = vmatprep.subr.mxu0 0.0
    %6817 = vmatpush1.msra.mxu0 0.0
    %6818 = vmatprep.subr.mxu0 0.0
    %6819 = vmatpush1.msra.mxu0 0.0
    %6820 = vmatprep.subr.mxu0 0.0
    %6821 = vmatpush1.msra.mxu0 0.0
    %6822 = vmatprep.subr.mxu0 0.0
    %6823 = vmatpush1.msra.mxu0 0.0
    %6824 = vmatprep.subr.mxu0 0.0
    %6825 = vmatpush1.msra.mxu0 0.0
    %6826 = vmatprep.subr.mxu0 0.0
    %6827 = vmatpush1.msra.mxu0 0.0
    %6828 = vmatprep.subr.mxu0 0.0
    %6829 = vmatpush1.msra.mxu0 0.0
    %6830 = vmatprep.subr.mxu0 0.0
    %6831 = vmatpush1.msra.mxu0 0.0
    %6832 = vmatprep.subr.mxu0 0.0
    %6833 = vmatpush1.msra.mxu0 0.0
    %6834 = vmatprep.subr.mxu0 0.0
    %6835 = vmatpush1.msra.mxu0 0.0
    %6836 = vmatprep.subr.mxu0 0.0
    %6837 = vmatpush1.msra.mxu0 0.0
    %6838 = vmatprep.subr.mxu0 0.0
    %6839 = vmatpush1.msra.mxu0 0.0
    %6840 = vmatprep.subr.mxu0 0.0
    %6841 = vmatpush1.msra.mxu0 0.0
    %6842 = vmatprep.subr.mxu0 0.0
    %6843 = vmatpush1.msra.mxu0 0.0
    %6844 = vmatprep.subr.mxu0 0.0
    %6845 = vmatpush1.msra.mxu0 0.0
    %6846 = vmatprep.subr.mxu0 0.0
    %6847 = vmatpush1.msra.mxu0 0.0
    %6848 = vmatprep.subr.mxu0 0.0
    %6849 = vmatpush1.msra.mxu0 0.0
    %6850 = vmatprep.subr.mxu0 0.0
    %6851 = vmatpush1.msra.mxu0 0.0
    %6852 = vmatprep.subr.mxu0 0.0
    %6853 = vmatpush1.msra.mxu0 0.0
    %6854 = vmatprep.subr.mxu0 0.0
    %6855 = vmatpush1.msra.mxu0 0.0
    %6856 = vmatprep.subr.mxu0 0.0
    %6857 = vmatpush1.msra.mxu0 0.0
    %6858 = vmatprep.subr.mxu0 0.0
    %6859 = vmatpush1.msra.mxu0 0.0
    %6860 = vmatprep.mubr.f32.mxu0 0.0
    %6861 = vmatmul.mubr.f32.gmra.mrb[0].mxu0 %v6788
    %v6862 = vpop.f32.mrb[0].mxu0
    %v6863 = vadd.f32 0.0, %v6862
    %v6864 = vpop.f32.mrb[0].mxu0
    %6865 = vmatprep.mubr.f32.mxu0 0.0
    %6866 = vmatmul.mubr.f32.gmra.mrb[0].mxu0 %v6791
    %v6867 = vpop.f32.mrb[0].mxu0
    %v6868 = vadd.f32 0.0, %v6867
    %v6869 = vpop.f32.mrb[0].mxu0
    %6870 = vdwg.mxu0
    %v6871 = vmax.f32 %v6863, 0.0
    %v6872 = vmax.f32 %v6868, 0.0
    %v6873 = vmul.f32 %v6779, %v6871
    %v6874 = vmul.f32 %v6780, %v6872
    %v6875 = vld [vmem:[%s14] sm:$0xff]
    %v6876 = vld [vmem:[%s14 + $0x8] sm:$0xff]
    %v6877 = vld [vmem:[%s14 + $0x10] sm:$0xff]
    %v6878 = vld [vmem:[%s14 + $0x18] sm:$0xff]
    %v6879 = vlaneseq
    %v6880 = vshrl.u32 %v6879, 7
    %v6881 = vsub.s32 0, %v6880
    %v6882 = vrot.slane %v6655, %v6881
    %v6884 = vsel %vm193, %v6873, 0
    %v6887 = vsel %vm193, %v6874, 0
    %6889 = vmatprep.subr.mxu0 0.0
    %6890 = vmatpush1.msra.mxu0 %v6875
    %6891 = vmatprep.subr.mxu0 0.0
    %6892 = vmatpush1.msra.mxu0 %v6876
    %6893 = vmatprep.subr.mxu0 0.0
    %6894 = vmatpush1.msra.mxu0 %v6877
    %6895 = vmatprep.subr.mxu0 0.0
    %6896 = vmatpush1.msra.mxu0 %v6878
    %6897 = vmatprep.subr.mxu0 0.0
    %6898 = vmatpush1.msra.mxu0 0.0
    %6899 = vmatprep.subr.mxu0 0.0
    %6900 = vmatpush1.msra.mxu0 0.0
    %6901 = vmatprep.subr.mxu0 0.0
    %6902 = vmatpush1.msra.mxu0 0.0
    %6903 = vmatprep.subr.mxu0 0.0
    %6904 = vmatpush1.msra.mxu0 0.0
    %6905 = vmatprep.subr.mxu0 0.0
    %6906 = vmatpush1.msra.mxu0 0.0
    %6907 = vmatprep.subr.mxu0 0.0
    %6908 = vmatpush1.msra.mxu0 0.0
    %6909 = vmatprep.subr.mxu0 0.0
    %6910 = vmatpush1.msra.mxu0 0.0
    %6911 = vmatprep.subr.mxu0 0.0
    %6912 = vmatpush1.msra.mxu0 0.0
    %6913 = vmatprep.subr.mxu0 0.0
    %6914 = vmatpush1.msra.mxu0 0.0
    %6915 = vmatprep.subr.mxu0 0.0
    %6916 = vmatpush1.msra.mxu0 0.0
    %6917 = vmatprep.subr.mxu0 0.0
    %6918 = vmatpush1.msra.mxu0 0.0
    %6919 = vmatprep.subr.mxu0 0.0
    %6920 = vmatpush1.msra.mxu0 0.0
    %6921 = vmatprep.subr.mxu0 0.0
    %6922 = vmatpush1.msra.mxu0 0.0
    %6923 = vmatprep.subr.mxu0 0.0
    %6924 = vmatpush1.msra.mxu0 0.0
    %6925 = vmatprep.subr.mxu0 0.0
    %6926 = vmatpush1.msra.mxu0 0.0
    %6927 = vmatprep.subr.mxu0 0.0
    %6928 = vmatpush1.msra.mxu0 0.0
    %6929 = vmatprep.subr.mxu0 0.0
    %6930 = vmatpush1.msra.mxu0 0.0
    %6931 = vmatprep.subr.mxu0 0.0
    %6932 = vmatpush1.msra.mxu0 0.0
    %6933 = vmatprep.subr.mxu0 0.0
    %6934 = vmatpush1.msra.mxu0 0.0
    %6935 = vmatprep.subr.mxu0 0.0
    %6936 = vmatpush1.msra.mxu0 0.0
    %6937 = vmatprep.subr.mxu0 0.0
    %6938 = vmatpush1.msra.mxu0 0.0
    %6939 = vmatprep.subr.mxu0 0.0
    %6940 = vmatpush1.msra.mxu0 0.0
    %6941 = vmatprep.subr.mxu0 0.0
    %6942 = vmatpush1.msra.mxu0 0.0
    %6943 = vmatprep.subr.mxu0 0.0
    %6944 = vmatpush1.msra.mxu0 0.0
    %6945 = vmatprep.subr.mxu0 0.0
    %6946 = vmatpush1.msra.mxu0 0.0
    %6947 = vmatprep.subr.mxu0 0.0
    %6948 = vmatpush1.msra.mxu0 0.0
    %6949 = vmatprep.subr.mxu0 0.0
    %6950 = vmatpush1.msra.mxu0 0.0
    %6951 = vmatprep.subr.mxu0 0.0
    %6952 = vmatpush1.msra.mxu0 0.0
    %6953 = vmatprep.mubr.f32.mxu0 0.0
    %6954 = vmatmul.mubr.f32.gmra.mrb[0].mxu0 %v6884
    %v6955 = vpop.f32.mrb[0].mxu0
    %v6956 = vadd.f32 %v6882, %v6955
    %v6957 = vpop.f32.mrb[0].mxu0
    %6958 = vmatprep.mubr.f32.mxu0 0.0
    %6959 = vmatmul.mubr.f32.gmra.mrb[0].mxu0 %v6887
    %v6960 = vpop.f32.mrb[0].mxu0
    %v6961 = vadd.f32 %v6882, %v6960
    %v6962 = vpop.f32.mrb[0].mxu0
    %6963 = vdwg.mxu0
    %v6964 = vmax.f32 %v6956, 0.0
    %v6965 = vmax.f32 %v6961, 0.0
    %v6966 = vld [vmem:[%s15] sm:$0xff]
    %v6967 = vld [vmem:[%s15 + $0x8] sm:$0xff]
    %v6968 = vld [vmem:[%s15 + $0x10] sm:$0xff]
    %v6969 = vld [vmem:[%s15 + $0x18] sm:$0xff]
    %v6970 = vld [vmem:[%s15 + $0x20] sm:$0xff]
    %v6971 = vld [vmem:[%s15 + $0x28] sm:$0xff]
    %v6972 = vld [vmem:[%s15 + $0x30] sm:$0xff]
    %v6973 = vld [vmem:[%s15 + $0x38] sm:$0xff]
    %v6974 = vlaneseq
    %v6975 = vshrl.u32 %v6974, 7
    %v6976 = vsub.s32 0, %v6975
    %v6977 = vrot.slane %v6656, %v6976
    %v6979 = vsel %vm75, %v6964, 0
    %v6982 = vsel %vm75, %v6965, 0
    %6984 = vmatprep.subr.mxu0 0.0
    %6985 = vmatpush1.msra.mxu0 %v6966
    %6986 = vmatprep.subr.mxu0 0.0
    %6987 = vmatpush1.msra.mxu0 %v6967
    %6988 = vmatprep.subr.mxu0 0.0
    %6989 = vmatpush1.msra.mxu0 %v6968
    %6990 = vmatprep.subr.mxu0 0.0
    %6991 = vmatpush1.msra.mxu0 %v6969
    %6992 = vmatprep.subr.mxu0 0.0
    %6993 = vmatpush1.msra.mxu0 %v6970
    %6994 = vmatprep.subr.mxu0 0.0
    %6995 = vmatpush1.msra.mxu0 %v6971
    %6996 = vmatprep.subr.mxu0 0.0
    %6997 = vmatpush1.msra.mxu0 %v6972
    %6998 = vmatprep.subr.mxu0 0.0
    %6999 = vmatpush1.msra.mxu0 %v6973
    %7000 = vmatprep.subr.mxu0 0.0
    %7001 = vmatpush1.msra.mxu0 0.0
    %7002 = vmatprep.subr.mxu0 0.0
    %7003 = vmatpush1.msra.mxu0 0.0
    %7004 = vmatprep.subr.mxu0 0.0
    %7005 = vmatpush1.msra.mxu0 0.0
    %7006 = vmatprep.subr.mxu0 0.0
    %7007 = vmatpush1.msra.mxu0 0.0
    %7008 = vmatprep.subr.mxu0 0.0
    %7009 = vmatpush1.msra.mxu0 0.0
    %7010 = vmatprep.subr.mxu0 0.0
    %7011 = vmatpush1.msra.mxu0 0.0
    %7012 = vmatprep.subr.mxu0 0.0
    %7013 = vmatpush1.msra.mxu0 0.0
    %7014 = vmatprep.subr.mxu0 0.0
    %7015 = vmatpush1.msra.mxu0 0.0
    %7016 = vmatprep.subr.mxu0 0.0
    %7017 = vmatpush1.msra.mxu0 0.0
    %7018 = vmatprep.subr.mxu0 0.0
    %7019 = vmatpush1.msra.mxu0 0.0
    %7020 = vmatprep.subr.mxu0 0.0
    %7021 = vmatpush1.msra.mxu0 0.0
    %7022 = vmatprep.subr.mxu0 0.0
    %7023 = vmatpush1.msra.mxu0 0.0
    %7024 = vmatprep.subr.mxu0 0.0
    %7025 = vmatpush1.msra.mxu0 0.0
    %7026 = vmatprep.subr.mxu0 0.0
    %7027 = vmatpush1.msra.mxu0 0.0
    %7028 = vmatprep.subr.mxu0 0.0
    %7029 = vmatpush1.msra.mxu0 0.0
    %7030 = vmatprep.subr.mxu0 0.0
    %7031 = vmatpush1.msra.mxu0 0.0
    %7032 = vmatprep.subr.mxu0 0.0
    %7033 = vmatpush1.msra.mxu0 0.0
    %7034 = vmatprep.subr.mxu0 0.0
    %7035 = vmatpush1.msra.mxu0 0.0
    %7036 = vmatprep.subr.mxu0 0.0
    %7037 = vmatpush1.msra.mxu0 0.0
    %7038 = vmatprep.subr.mxu0 0.0
    %7039 = vmatpush1.msra.mxu0 0.0
    %7040 = vmatprep.subr.mxu0 0.0
    %7041 = vmatpush1.msra.mxu0 0.0
    %7042 = vmatprep.subr.mxu0 0.0
    %7043 = vmatpush1.msra.mxu0 0.0
    %7044 = vmatprep.subr.mxu0 0.0
    %7045 = vmatpush1.msra.mxu0 0.0
    %7046 = vmatprep.subr.mxu0 0.0
    %7047 = vmatpush1.msra.mxu0 0.0
    %7048 = vmatprep.mubr.f32.mxu0 0.0
    %7049 = vmatmul.mubr.f32.gmra.mrb[0].mxu0 %v6979
    %v7050 = vpop.f32.mrb[0].mxu0
    %v7051 = vadd.f32 %v6977, %v7050
    %v7052 = vpop.f32.mrb[0].mxu0
    %7053 = vmatprep.mubr.f32.mxu0 0.0
    %7054 = vmatmul.mubr.f32.gmra.mrb[0].mxu0 %v6982
    %v7055 = vpop.f32.mrb[0].mxu0
    %v7056 = vadd.f32 %v6977, %v7055
    %v7057 = vpop.f32.mrb[0].mxu0
    %7058 = vdwg.mxu0
    %v7059 = vld [vmem:[%s6] sm:$0x3]
    %vm7060 = vcmask 130048
    %v7062 = vsel %vm7060, %v7059, 0
    %7064 = vmatprep.subr.mxu0 0.0
    %7065 = vmatpush1.msra.mxu0 %v7051
    %7066 = vmatprep.subr.mxu0 0.0
    %7067 = vmatpush1.msra.mxu0 %v7056
    %7068 = vmatprep.subr.mxu0 0.0
    %7069 = vmatpush1.msra.mxu0 0.0
    %7070 = vmatprep.subr.mxu0 0.0
    %7071 = vmatpush1.msra.mxu0 0.0
    %7072 = vmatprep.subr.mxu0 0.0
    %7073 = vmatpush1.msra.mxu0 0.0
    %7074 = vmatprep.subr.mxu0 0.0
    %7075 = vmatpush1.msra.mxu0 0.0
    %7076 = vmatprep.subr.mxu0 0.0
    %7077 = vmatpush1.msra.mxu0 0.0
    %7078 = vmatprep.subr.mxu0 0.0
    %7079 = vmatpush1.msra.mxu0 0.0
    %7080 = vmatprep.subr.mxu0 0.0
    %7081 = vmatpush1.msra.mxu0 0.0
    %7082 = vmatprep.subr.mxu0 0.0
    %7083 = vmatpush1.msra.mxu0 0.0
    %7084 = vmatprep.subr.mxu0 0.0
    %7085 = vmatpush1.msra.mxu0 0.0
    %7086 = vmatprep.subr.mxu0 0.0
    %7087 = vmatpush1.msra.mxu0 0.0
    %7088 = vmatprep.subr.mxu0 0.0
    %7089 = vmatpush1.msra.mxu0 0.0
    %7090 = vmatprep.subr.mxu0 0.0
    %7091 = vmatpush1.msra.mxu0 0.0
    %7092 = vmatprep.subr.mxu0 0.0
    %7093 = vmatpush1.msra.mxu0 0.0
    %7094 = vmatprep.subr.mxu0 0.0
    %7095 = vmatpush1.msra.mxu0 0.0
    %7096 = vmatprep.subr.mxu0 0.0
    %7097 = vmatpush1.msra.mxu0 0.0
    %7098 = vmatprep.subr.mxu0 0.0
    %7099 = vmatpush1.msra.mxu0 0.0
    %7100 = vmatprep.subr.mxu0 0.0
    %7101 = vmatpush1.msra.mxu0 0.0
    %7102 = vmatprep.subr.mxu0 0.0
    %7103 = vmatpush1.msra.mxu0 0.0
    %7104 = vmatprep.subr.mxu0 0.0
    %7105 = vmatpush1.msra.mxu0 0.0
    %7106 = vmatprep.subr.mxu0 0.0
    %7107 = vmatpush1.msra.mxu0 0.0
    %7108 = vmatprep.subr.mxu0 0.0
    %7109 = vmatpush1.msra.mxu0 0.0
    %7110 = vmatprep.subr.mxu0 0.0
    %7111 = vmatpush1.msra.mxu0 0.0
    %7112 = vmatprep.subr.mxu0 0.0
    %7113 = vmatpush1.msra.mxu0 0.0
    %7114 = vmatprep.subr.mxu0 0.0
    %7115 = vmatpush1.msra.mxu0 0.0
    %7116 = vmatprep.subr.mxu0 0.0
    %7117 = vmatpush1.msra.mxu0 0.0
    %7118 = vmatprep.subr.mxu0 0.0
    %7119 = vmatpush1.msra.mxu0 0.0
    %7120 = vmatprep.subr.mxu0 0.0
    %7121 = vmatpush1.msra.mxu0 0.0
    %7122 = vmatprep.subr.mxu0 0.0
    %7123 = vmatpush1.msra.mxu0 0.0
    %7124 = vmatprep.subr.mxu0 0.0
    %7125 = vmatpush1.msra.mxu0 0.0
    %7126 = vmatprep.subr.mxu0 0.0
    %7127 = vmatpush1.msra.mxu0 0.0
    %7128 = vmatprep.mubr.f32.mxu0 0.0
    %7129 = vmatmul.mubr.f32.gmra.mrb[0].mxu0 %v7062
    %v7130 = vpop.f32.mrb[0].mxu0
    %v7131 = vadd.f32 0.0, %v7130
    %v7132 = vpop.f32.mrb[0].mxu0
    %7133 = vdwg.mxu0
    %vm7134 = vcmask 25600
    %7135 = vst.msk [vmem:[#allocation2] sm:$0x3] %vm7134, %v7131
    // Predicated region
    $region70: #{_lambda_.1} parent=1 // pred_check
      _
    $region71: #{_lambda_.1} parent=1 // pred_check_branch
      %7137 = sbr.rel (0) target = $region73
    $region72: #{_lambda_.1} parent=1 // pred_region
      %s7139 = ssub.s32 32, 32
      %7140 = vsyncadd [#allocation3], %s7139
      %s7142 = sshll.u32 [#allocation2], 4
      %s7143 = int_to_ptr.vmem [resolvable:$true] %s7142
      %7145 = dma.vmem_to_hbm [thread:$0]  %s7143, 32, %s17, [#allocation3]
    $region73: #{_lambda_.1} parent=1 // pred_fallthru
      _
    // Predicated region
    $region74: #{_lambda_.1} parent=1 // pred_check
      _
    $region75: #{_lambda_.1} parent=1 // pred_check_branch
      %7147 = sbr.rel (0) target = $region77
    $region76: #{_lambda_.1} parent=1 // pred_region
      %7148 = dma.done [#allocation3], 32
    $region77: #{_lambda_.1} parent=1 // pred_fallthru
      _
    %7149 = vsyncpa [#allocation3], 1

</llo_original>
